<compile_context>
chip_gen: v7x
topology: tpu7x:2x2x1
jax: 0.10.0
libtpu: 0.0.40
codegen_flags: <defaults>
</compile_context>

<pallas_src>
import jax
import jax.numpy as jnp
from jax.experimental import pallas as pl
from jax.experimental.pallas import tpu as pltpu


def _round_up(n, m):
    return ((n + m - 1) // m) * m


# ----------------------------------------------------------------------------
# Kernel: one batch tile through the full encoder -> reparametrize -> decoder.
# ----------------------------------------------------------------------------
def vae_kernel(
    x_ref, eps_ref,
    w1_ref, b1_ref,
    w12_ref, b12_ref,
    w13_ref, b13_ref,
    wmv_ref, bmv_ref,      # fused fc21|fc22 head
    w3_ref, b3_ref,
    w32_ref, b32_ref,
    w41_ref, b41_ref,
    w4_ref, b4_ref,
    recon_ref, mulv_ref,
):
    def linear(h, w_ref, b_ref):
        # bf16 x bf16 -> f32 accumulation on the MXU, f32 bias add.
        return jnp.dot(h, w_ref[...], preferred_element_type=jnp.float32) + b_ref[...]

    def relu_bf16(v):
        return jnp.maximum(v, 0.0).astype(jnp.bfloat16)

    # ---------------- encode ----------------
    x = x_ref[...]                                        # (bm, 1024) bf16
    h = relu_bf16(linear(x, w1_ref, b1_ref))              # (bm, 896)
    h = relu_bf16(linear(h, w12_ref, b12_ref))            # (bm, 512)
    h = relu_bf16(linear(h, w13_ref, b13_ref))            # (bm, 384)

    mulv = linear(h, wmv_ref, bmv_ref)                    # (bm, 256) f32
    mu = mulv[:, :128]                                    # real mu in [:, :100]
    logvar = mulv[:, 128:]                                # real logvar in [:, :100]

    # ---------------- reparametrize ----------------
    std = jnp.exp(0.5 * logvar)
    z = eps_ref[...] * std + mu                           # (bm, 128) f32; padded lanes = 0

    # ---------------- decode ----------------
    h = relu_bf16(linear(z.astype(jnp.bfloat16), w3_ref, b3_ref))   # (bm, 384)
    h = relu_bf16(linear(h, w32_ref, b32_ref))                      # (bm, 512)
    h = relu_bf16(linear(h, w41_ref, b41_ref))                      # (bm, 896)
    logits = linear(h, w4_ref, b4_ref)                              # (bm, 1024) f32

    recon_ref[...] = jax.nn.sigmoid(logits)
    mulv_ref[...] = mulv


# ----------------------------------------------------------------------------
# Parameter packing: pad every dim to a multiple of 128, fuse mu/logvar head,
# cast weights to bf16 (biases stay f32).  Call once; reuse across forwards.
# ----------------------------------------------------------------------------
def pack_params(params):
    """params: 9 (w, b) pairs in forward order (fc1, fc12, fc13, fc21, fc22,
    fc3, fc32, fc41, fc4); w is (in, out) f32, b is (out,) f32."""
    (w1, b1), (w12, b12), (w13, b13), (w21, b21), (w22, b22), \
        (w3, b3), (w32, b32), (w41, b41), (w4, b4) = params

    def pad_wb(w, b, in_p, out_p):
        wp = jnp.zeros((in_p, out_p), jnp.float32).at[: w.shape[0], : w.shape[1]].set(w)
        bp = jnp.zeros((1, out_p), jnp.float32).at[0, : b.shape[0]].set(b)
        return wp.astype(jnp.bfloat16), bp

    packed = [
        pad_wb(w1, b1, 1024, 896),
        pad_wb(w12, b12, 896, 512),
        pad_wb(w13, b13, 512, 384),
    ]

    # Fused mu/logvar head: mu -> lanes [0, 128), logvar -> lanes [128, 256).
    wmv = jnp.zeros((384, 256), jnp.float32)
    wmv = wmv.at[:300, :100].set(w21).at[:300, 128:228].set(w22)
    bmv = jnp.zeros((1, 256), jnp.float32)
    bmv = bmv.at[0, :100].set(b21).at[0, 128:228].set(b22)
    packed.append((wmv.astype(jnp.bfloat16), bmv))

    packed += [
        pad_wb(w3, b3, 128, 384),
        pad_wb(w32, b32, 384, 512),
        pad_wb(w41, b41, 512, 896),
        pad_wb(w4, b4, 896, 1024),
    ]
    return packed


# ----------------------------------------------------------------------------
# Wrapper
# ----------------------------------------------------------------------------
def vae_forward(x, eps, packed_params, *, max_block_rows=256):
    """x: any shape with total elems divisible by 1024 (mirrors x.view(-1, 1024)).
    eps: (B, 100) standard-normal noise.  packed_params: output of pack_params."""
    x2d = x.reshape(-1, 1024)
    B = x2d.shape[0]

    bm = min(max_block_rows, _round_up(B, 16))   # bf16-friendly sublane multiple
    Bp = _round_up(B, bm)

    x_pad = jnp.zeros((Bp, 1024), jnp.bfloat16).at[:B].set(x2d.astype(jnp.bfloat16))
    eps_pad = jnp.zeros((Bp, 128), jnp.float32).at[:B, :100].set(eps.astype(jnp.float32))

    args = [x_pad, eps_pad]
    in_specs = [
        pl.BlockSpec((bm, 1024), lambda i: (i, 0)),
        pl.BlockSpec((bm, 128), lambda i: (i, 0)),
    ]
    for w, b in packed_params:
        args += [w, b]
        # Constant index_map: weights/biases stay VMEM-resident across grid steps.
        in_specs += [
            pl.BlockSpec(w.shape, lambda i: (0, 0)),
            pl.BlockSpec(b.shape, lambda i: (0, 0)),
        ]

    recon_full, mulv = pl.pallas_call(
        vae_kernel,
        out_shape=(
            jax.ShapeDtypeStruct((Bp, 1024), jnp.float32),
            jax.ShapeDtypeStruct((Bp, 256), jnp.float32),
        ),
        grid=(Bp // bm,),
        in_specs=in_specs,
        out_specs=(
            pl.BlockSpec((bm, 1024), lambda i: (i, 0)),
            pl.BlockSpec((bm, 256), lambda i: (i, 0)),
        ),
        compiler_params=pltpu.CompilerParams(
            dimension_semantics=("parallel",),   # megacore split on v7x
            vmem_limit_bytes=40 << 20,           # ~20 MiB actual; fits v7x's 64 MiB
        ),
    )(*args)

    recon = recon_full[:B]
    mu = mulv[:B, :100]
    logvar = mulv[:B, 128:228]
    return recon, mu, logvar


# ----------------------------------------------------------------------------
# Deterministic parameter init (matches nn.Linear shapes; synthetic values)
# ----------------------------------------------------------------------------
def init_params(key):
    dims = [
        (1024, 800),  # fc1
        (800, 500),   # fc12
        (500, 300),   # fc13
        (300, 100),   # fc21
        (300, 100),   # fc22
        (100, 300),   # fc3
        (300, 500),   # fc32
        (500, 800),   # fc41
        (800, 1024),  # fc4
    ]
    params = []
    for fan_in, fan_out in dims:
        key, kw, kb = jax.random.split(key, 3)
        bound = 1.0 / jnp.sqrt(fan_in)  # PyTorch default Linear init range
        w = jax.random.uniform(kw, (fan_in, fan_out), jnp.float32, -bound, bound)
        b = jax.random.uniform(kb, (fan_out,), jnp.float32, -bound, bound)
        params.append((w, b))
    return params


if __name__ == "__main__":
    key = jax.random.PRNGKey(0)
    k_params, k_x, k_eps = jax.random.split(key, 3)

    params = init_params(k_params)
    packed = pack_params(params)

    # Small NCHW-like input consistent with x.view(-1, 1024): (2, 1, 32, 32)
    x = jax.random.uniform(k_x, (2, 1, 32, 32), jnp.float32)
    eps = jax.random.normal(k_eps, (2, 100), jnp.float32)  # reparametrization noise

    recon, mu, logvar = vae_forward(x, eps, packed)
    jax.block_until_ready((recon, mu, logvar))

    assert recon.shape == (2, 1024) and mu.shape == (2, 100) and logvar.shape == (2, 100)
    print("KERNEL_OK")
</pallas_src>

<mosaic_0001>
module attributes {stable_mosaic.version = 11 : i64} {
  func.func @vae_kernel(%arg0: i32, %arg1: memref<16x1024xbf16, #tpu.memory_space<vmem>>, %arg2: memref<16x128xf32, #tpu.memory_space<vmem>>, %arg3: memref<1024x896xbf16, #tpu.memory_space<vmem>>, %arg4: memref<1x896xf32, #tpu.memory_space<vmem>>, %arg5: memref<896x512xbf16, #tpu.memory_space<vmem>>, %arg6: memref<1x512xf32, #tpu.memory_space<vmem>>, %arg7: memref<512x384xbf16, #tpu.memory_space<vmem>>, %arg8: memref<1x384xf32, #tpu.memory_space<vmem>>, %arg9: memref<384x256xbf16, #tpu.memory_space<vmem>>, %arg10: memref<1x256xf32, #tpu.memory_space<vmem>>, %arg11: memref<128x384xbf16, #tpu.memory_space<vmem>>, %arg12: memref<1x384xf32, #tpu.memory_space<vmem>>, %arg13: memref<384x512xbf16, #tpu.memory_space<vmem>>, %arg14: memref<1x512xf32, #tpu.memory_space<vmem>>, %arg15: memref<512x896xbf16, #tpu.memory_space<vmem>>, %arg16: memref<1x896xf32, #tpu.memory_space<vmem>>, %arg17: memref<896x1024xbf16, #tpu.memory_space<vmem>>, %arg18: memref<1x1024xf32, #tpu.memory_space<vmem>>, %arg19: memref<16x1024xf32, #tpu.memory_space<vmem>>, %arg20: memref<16x256xf32, #tpu.memory_space<vmem>>) attributes {dimension_semantics = [#tpu.dimension_semantics<parallel>], iteration_bounds = array<i64: 1>, scalar_prefetch = 0 : i64, scratch_operands = 0 : i64, tpu.core_type = #tpu.core_type<tc>, window_params = [{transform_indices = @transform_0, window_bounds = array<i64: 16, 1024>}, {transform_indices = @transform_1, window_bounds = array<i64: 16, 128>}, {pipeline_mode = #tpu.pipeline_mode<synchronous>, transform_indices = @transform_2, window_bounds = array<i64: 1024, 896>}, {pipeline_mode = #tpu.pipeline_mode<synchronous>, transform_indices = @transform_3, window_bounds = array<i64: 1, 896>}, {pipeline_mode = #tpu.pipeline_mode<synchronous>, transform_indices = @transform_4, window_bounds = array<i64: 896, 512>}, {pipeline_mode = #tpu.pipeline_mode<synchronous>, transform_indices = @transform_5, window_bounds = array<i64: 1, 512>}, {pipeline_mode = #tpu.pipeline_mode<synchronous>, transform_indices = @transform_6, window_bounds = array<i64: 512, 384>}, {pipeline_mode = #tpu.pipeline_mode<synchronous>, transform_indices = @transform_7, window_bounds = array<i64: 1, 384>}, {pipeline_mode = #tpu.pipeline_mode<synchronous>, transform_indices = @transform_8, window_bounds = array<i64: 384, 256>}, {pipeline_mode = #tpu.pipeline_mode<synchronous>, transform_indices = @transform_9, window_bounds = array<i64: 1, 256>}, {pipeline_mode = #tpu.pipeline_mode<synchronous>, transform_indices = @transform_10, window_bounds = array<i64: 128, 384>}, {pipeline_mode = #tpu.pipeline_mode<synchronous>, transform_indices = @transform_11, window_bounds = array<i64: 1, 384>}, {pipeline_mode = #tpu.pipeline_mode<synchronous>, transform_indices = @transform_12, window_bounds = array<i64: 384, 512>}, {pipeline_mode = #tpu.pipeline_mode<synchronous>, transform_indices = @transform_13, window_bounds = array<i64: 1, 512>}, {pipeline_mode = #tpu.pipeline_mode<synchronous>, transform_indices = @transform_14, window_bounds = array<i64: 512, 896>}, {pipeline_mode = #tpu.pipeline_mode<synchronous>, transform_indices = @transform_15, window_bounds = array<i64: 1, 896>}, {pipeline_mode = #tpu.pipeline_mode<synchronous>, transform_indices = @transform_16, window_bounds = array<i64: 896, 1024>}, {pipeline_mode = #tpu.pipeline_mode<synchronous>, transform_indices = @transform_17, window_bounds = array<i64: 1, 1024>}, {transform_indices = @transform_18, window_bounds = array<i64: 16, 1024>}, {transform_indices = @transform_19, window_bounds = array<i64: 16, 256>}]} {
    %c0 = arith.constant 0 : index
    %c0_0 = arith.constant 0 : index
    %0 = vector.load %arg1[%c0, %c0_0] : memref<16x1024xbf16, #tpu.memory_space<vmem>>, vector<16x1024xbf16>
    %c0_1 = arith.constant 0 : index
    %c0_2 = arith.constant 0 : index
    %1 = vector.load %arg3[%c0_1, %c0_2] : memref<1024x896xbf16, #tpu.memory_space<vmem>>, vector<1024x896xbf16>
    %cst = arith.constant dense<0.000000e+00> : vector<16x896xf32>
    %2 = tpu.matmul %0, %1, %cst {dimension_numbers = #tpu.dot_dimension_numbers<[1], [0], [0], [1], [0, 0, 1, 1], [], []>} : vector<16x1024xbf16>, vector<1024x896xbf16>, vector<16x896xf32> -> vector<16x896xf32>
    %c0_3 = arith.constant 0 : index
    %c0_4 = arith.constant 0 : index
    %3 = vector.load %arg4[%c0_3, %c0_4] : memref<1x896xf32, #tpu.memory_space<vmem>>, vector<1x896xf32>
    %4 = vector.broadcast %3 : vector<1x896xf32> to vector<16x896xf32>
    %5 = arith.addf %2, %4 : vector<16x896xf32>
    %cst_5 = arith.constant 0.000000e+00 : f32
    %6 = vector.broadcast %cst_5 : f32 to vector<16x896xf32>
    %7 = arith.maximumf %5, %6 : vector<16x896xf32>
    %8 = arith.truncf %7 : vector<16x896xf32> to vector<16x896xbf16>
    %c0_6 = arith.constant 0 : index
    %c0_7 = arith.constant 0 : index
    %9 = vector.load %arg5[%c0_6, %c0_7] : memref<896x512xbf16, #tpu.memory_space<vmem>>, vector<896x512xbf16>
    %cst_8 = arith.constant dense<0.000000e+00> : vector<16x512xf32>
    %10 = tpu.matmul %8, %9, %cst_8 {dimension_numbers = #tpu.dot_dimension_numbers<[1], [0], [0], [1], [0, 0, 1, 1], [], []>} : vector<16x896xbf16>, vector<896x512xbf16>, vector<16x512xf32> -> vector<16x512xf32>
    %c0_9 = arith.constant 0 : index
    %c0_10 = arith.constant 0 : index
    %11 = vector.load %arg6[%c0_9, %c0_10] : memref<1x512xf32, #tpu.memory_space<vmem>>, vector<1x512xf32>
    %12 = vector.broadcast %11 : vector<1x512xf32> to vector<16x512xf32>
    %13 = arith.addf %10, %12 : vector<16x512xf32>
    %cst_11 = arith.constant 0.000000e+00 : f32
    %14 = vector.broadcast %cst_11 : f32 to vector<16x512xf32>
    %15 = arith.maximumf %13, %14 : vector<16x512xf32>
    %16 = arith.truncf %15 : vector<16x512xf32> to vector<16x512xbf16>
    %c0_12 = arith.constant 0 : index
    %c0_13 = arith.constant 0 : index
    %17 = vector.load %arg7[%c0_12, %c0_13] : memref<512x384xbf16, #tpu.memory_space<vmem>>, vector<512x384xbf16>
    %cst_14 = arith.constant dense<0.000000e+00> : vector<16x384xf32>
    %18 = tpu.matmul %16, %17, %cst_14 {dimension_numbers = #tpu.dot_dimension_numbers<[1], [0], [0], [1], [0, 0, 1, 1], [], []>} : vector<16x512xbf16>, vector<512x384xbf16>, vector<16x384xf32> -> vector<16x384xf32>
    %c0_15 = arith.constant 0 : index
    %c0_16 = arith.constant 0 : index
    %19 = vector.load %arg8[%c0_15, %c0_16] : memref<1x384xf32, #tpu.memory_space<vmem>>, vector<1x384xf32>
    %20 = vector.broadcast %19 : vector<1x384xf32> to vector<16x384xf32>
    %21 = arith.addf %18, %20 : vector<16x384xf32>
    %cst_17 = arith.constant 0.000000e+00 : f32
    %22 = vector.broadcast %cst_17 : f32 to vector<16x384xf32>
    %23 = arith.maximumf %21, %22 : vector<16x384xf32>
    %24 = arith.truncf %23 : vector<16x384xf32> to vector<16x384xbf16>
    %c0_18 = arith.constant 0 : index
    %c0_19 = arith.constant 0 : index
    %25 = vector.load %arg9[%c0_18, %c0_19] : memref<384x256xbf16, #tpu.memory_space<vmem>>, vector<384x256xbf16>
    %cst_20 = arith.constant dense<0.000000e+00> : vector<16x256xf32>
    %26 = tpu.matmul %24, %25, %cst_20 {dimension_numbers = #tpu.dot_dimension_numbers<[1], [0], [0], [1], [0, 0, 1, 1], [], []>} : vector<16x384xbf16>, vector<384x256xbf16>, vector<16x256xf32> -> vector<16x256xf32>
    %c0_21 = arith.constant 0 : index
    %c0_22 = arith.constant 0 : index
    %27 = vector.load %arg10[%c0_21, %c0_22] : memref<1x256xf32, #tpu.memory_space<vmem>>, vector<1x256xf32>
    %28 = vector.broadcast %27 : vector<1x256xf32> to vector<16x256xf32>
    %29 = arith.addf %26, %28 : vector<16x256xf32>
    %30 = vector.extract_strided_slice %29 {offsets = [0, 0], sizes = [16, 128], strides = [1, 1]} : vector<16x256xf32> to vector<16x128xf32>
    %31 = vector.extract_strided_slice %29 {offsets = [0, 128], sizes = [16, 128], strides = [1, 1]} : vector<16x256xf32> to vector<16x128xf32>
    %cst_23 = arith.constant 5.000000e-01 : f32
    %32 = vector.broadcast %cst_23 : f32 to vector<16x128xf32>
    %33 = arith.mulf %32, %31 : vector<16x128xf32>
    %34 = math.exp %33 : vector<16x128xf32>
    %c0_24 = arith.constant 0 : index
    %c0_25 = arith.constant 0 : index
    %35 = vector.load %arg2[%c0_24, %c0_25] : memref<16x128xf32, #tpu.memory_space<vmem>>, vector<16x128xf32>
    %36 = arith.mulf %35, %34 : vector<16x128xf32>
    %37 = arith.addf %36, %30 : vector<16x128xf32>
    %38 = arith.truncf %37 : vector<16x128xf32> to vector<16x128xbf16>
    %c0_26 = arith.constant 0 : index
    %c0_27 = arith.constant 0 : index
    %39 = vector.load %arg11[%c0_26, %c0_27] : memref<128x384xbf16, #tpu.memory_space<vmem>>, vector<128x384xbf16>
    %cst_28 = arith.constant dense<0.000000e+00> : vector<16x384xf32>
    %40 = tpu.matmul %38, %39, %cst_28 {dimension_numbers = #tpu.dot_dimension_numbers<[1], [0], [0], [1], [0, 0, 1, 1], [], []>} : vector<16x128xbf16>, vector<128x384xbf16>, vector<16x384xf32> -> vector<16x384xf32>
    %c0_29 = arith.constant 0 : index
    %c0_30 = arith.constant 0 : index
    %41 = vector.load %arg12[%c0_29, %c0_30] : memref<1x384xf32, #tpu.memory_space<vmem>>, vector<1x384xf32>
    %42 = vector.broadcast %41 : vector<1x384xf32> to vector<16x384xf32>
    %43 = arith.addf %40, %42 : vector<16x384xf32>
    %cst_31 = arith.constant 0.000000e+00 : f32
    %44 = vector.broadcast %cst_31 : f32 to vector<16x384xf32>
    %45 = arith.maximumf %43, %44 : vector<16x384xf32>
    %46 = arith.truncf %45 : vector<16x384xf32> to vector<16x384xbf16>
    %c0_32 = arith.constant 0 : index
    %c0_33 = arith.constant 0 : index
    %47 = vector.load %arg13[%c0_32, %c0_33] : memref<384x512xbf16, #tpu.memory_space<vmem>>, vector<384x512xbf16>
    %cst_34 = arith.constant dense<0.000000e+00> : vector<16x512xf32>
    %48 = tpu.matmul %46, %47, %cst_34 {dimension_numbers = #tpu.dot_dimension_numbers<[1], [0], [0], [1], [0, 0, 1, 1], [], []>} : vector<16x384xbf16>, vector<384x512xbf16>, vector<16x512xf32> -> vector<16x512xf32>
    %c0_35 = arith.constant 0 : index
    %c0_36 = arith.constant 0 : index
    %49 = vector.load %arg14[%c0_35, %c0_36] : memref<1x512xf32, #tpu.memory_space<vmem>>, vector<1x512xf32>
    %50 = vector.broadcast %49 : vector<1x512xf32> to vector<16x512xf32>
    %51 = arith.addf %48, %50 : vector<16x512xf32>
    %cst_37 = arith.constant 0.000000e+00 : f32
    %52 = vector.broadcast %cst_37 : f32 to vector<16x512xf32>
    %53 = arith.maximumf %51, %52 : vector<16x512xf32>
    %54 = arith.truncf %53 : vector<16x512xf32> to vector<16x512xbf16>
    %c0_38 = arith.constant 0 : index
    %c0_39 = arith.constant 0 : index
    %55 = vector.load %arg15[%c0_38, %c0_39] : memref<512x896xbf16, #tpu.memory_space<vmem>>, vector<512x896xbf16>
    %cst_40 = arith.constant dense<0.000000e+00> : vector<16x896xf32>
    %56 = tpu.matmul %54, %55, %cst_40 {dimension_numbers = #tpu.dot_dimension_numbers<[1], [0], [0], [1], [0, 0, 1, 1], [], []>} : vector<16x512xbf16>, vector<512x896xbf16>, vector<16x896xf32> -> vector<16x896xf32>
    %c0_41 = arith.constant 0 : index
    %c0_42 = arith.constant 0 : index
    %57 = vector.load %arg16[%c0_41, %c0_42] : memref<1x896xf32, #tpu.memory_space<vmem>>, vector<1x896xf32>
    %58 = vector.broadcast %57 : vector<1x896xf32> to vector<16x896xf32>
    %59 = arith.addf %56, %58 : vector<16x896xf32>
    %cst_43 = arith.constant 0.000000e+00 : f32
    %60 = vector.broadcast %cst_43 : f32 to vector<16x896xf32>
    %61 = arith.maximumf %59, %60 : vector<16x896xf32>
    %62 = arith.truncf %61 : vector<16x896xf32> to vector<16x896xbf16>
    %c0_44 = arith.constant 0 : index
    %c0_45 = arith.constant 0 : index
    %63 = vector.load %arg17[%c0_44, %c0_45] : memref<896x1024xbf16, #tpu.memory_space<vmem>>, vector<896x1024xbf16>
    %cst_46 = arith.constant dense<0.000000e+00> : vector<16x1024xf32>
    %64 = tpu.matmul %62, %63, %cst_46 {dimension_numbers = #tpu.dot_dimension_numbers<[1], [0], [0], [1], [0, 0, 1, 1], [], []>} : vector<16x896xbf16>, vector<896x1024xbf16>, vector<16x1024xf32> -> vector<16x1024xf32>
    %c0_47 = arith.constant 0 : index
    %c0_48 = arith.constant 0 : index
    %65 = vector.load %arg18[%c0_47, %c0_48] : memref<1x1024xf32, #tpu.memory_space<vmem>>, vector<1x1024xf32>
    %66 = vector.broadcast %65 : vector<1x1024xf32> to vector<16x1024xf32>
    %67 = arith.addf %64, %66 : vector<16x1024xf32>
    %68 = arith.negf %67 : vector<16x1024xf32>
    %69 = math.exp %68 : vector<16x1024xf32>
    %cst_49 = arith.constant 1.000000e+00 : f32
    %70 = vector.broadcast %cst_49 : f32 to vector<16x1024xf32>
    %71 = arith.addf %70, %69 : vector<16x1024xf32>
    %72 = arith.divf %70, %71 : vector<16x1024xf32>
    %c0_50 = arith.constant 0 : index
    %c0_51 = arith.constant 0 : index
    %73 = vector.load %arg19[%c0_50, %c0_51] : memref<16x1024xf32, #tpu.memory_space<vmem>>, vector<16x1024xf32>
    tpu.vector_store %arg19[%c0_50, %c0_51], %72 {strides = array<i32>} : memref<16x1024xf32, #tpu.memory_space<vmem>>, vector<16x1024xf32>,
    %c0_52 = arith.constant 0 : index
    %c0_53 = arith.constant 0 : index
    %74 = vector.load %arg20[%c0_52, %c0_53] : memref<16x256xf32, #tpu.memory_space<vmem>>, vector<16x256xf32>
    tpu.vector_store %arg20[%c0_52, %c0_53], %29 {strides = array<i32>} : memref<16x256xf32, #tpu.memory_space<vmem>>, vector<16x256xf32>,
    return
  }
  func.func @transform_0(%arg0: i32) -> (i32, i32) {
    %c0_i32 = arith.constant 0 : i32
    %c0_i32_0 = arith.constant 0 : i32
    return %arg0, %c0_i32 : i32, i32
  }
  func.func @transform_1(%arg0: i32) -> (i32, i32) {
    %c0_i32 = arith.constant 0 : i32
    %c0_i32_0 = arith.constant 0 : i32
    return %arg0, %c0_i32 : i32, i32
  }
  func.func @transform_2(%arg0: i32) -> (i32, i32) {
    %c0_i32 = arith.constant 0 : i32
    %c0_i32_0 = arith.constant 0 : i32
    %c0_i32_1 = arith.constant 0 : i32
    return %c0_i32, %c0_i32_0 : i32, i32
  }
  func.func @transform_3(%arg0: i32) -> (i32, i32) {
    %c0_i32 = arith.constant 0 : i32
    %c0_i32_0 = arith.constant 0 : i32
    %c0_i32_1 = arith.constant 0 : i32
    return %c0_i32, %c0_i32_0 : i32, i32
  }
  func.func @transform_4(%arg0: i32) -> (i32, i32) {
    %c0_i32 = arith.constant 0 : i32
    %c0_i32_0 = arith.constant 0 : i32
    %c0_i32_1 = arith.constant 0 : i32
    return %c0_i32, %c0_i32_0 : i32, i32
  }
  func.func @transform_5(%arg0: i32) -> (i32, i32) {
    %c0_i32 = arith.constant 0 : i32
    %c0_i32_0 = arith.constant 0 : i32
    %c0_i32_1 = arith.constant 0 : i32
    return %c0_i32, %c0_i32_0 : i32, i32
  }
  func.func @transform_6(%arg0: i32) -> (i32, i32) {
    %c0_i32 = arith.constant 0 : i32
    %c0_i32_0 = arith.constant 0 : i32
    %c0_i32_1 = arith.constant 0 : i32
    return %c0_i32, %c0_i32_0 : i32, i32
  }
  func.func @transform_7(%arg0: i32) -> (i32, i32) {
    %c0_i32 = arith.constant 0 : i32
    %c0_i32_0 = arith.constant 0 : i32
    %c0_i32_1 = arith.constant 0 : i32
    return %c0_i32, %c0_i32_0 : i32, i32
  }
  func.func @transform_8(%arg0: i32) -> (i32, i32) {
    %c0_i32 = arith.constant 0 : i32
    %c0_i32_0 = arith.constant 0 : i32
    %c0_i32_1 = arith.constant 0 : i32
    return %c0_i32, %c0_i32_0 : i32, i32
  }
  func.func @transform_9(%arg0: i32) -> (i32, i32) {
    %c0_i32 = arith.constant 0 : i32
    %c0_i32_0 = arith.constant 0 : i32
    %c0_i32_1 = arith.constant 0 : i32
    return %c0_i32, %c0_i32_0 : i32, i32
  }
  func.func @transform_10(%arg0: i32) -> (i32, i32) {
    %c0_i32 = arith.constant 0 : i32
    %c0_i32_0 = arith.constant 0 : i32
    %c0_i32_1 = arith.constant 0 : i32
    return %c0_i32, %c0_i32_0 : i32, i32
  }
  func.func @transform_11(%arg0: i32) -> (i32, i32) {
    %c0_i32 = arith.constant 0 : i32
    %c0_i32_0 = arith.constant 0 : i32
    %c0_i32_1 = arith.constant 0 : i32
    return %c0_i32, %c0_i32_0 : i32, i32
  }
  func.func @transform_12(%arg0: i32) -> (i32, i32) {
    %c0_i32 = arith.constant 0 : i32
    %c0_i32_0 = arith.constant 0 : i32
    %c0_i32_1 = arith.constant 0 : i32
    return %c0_i32, %c0_i32_0 : i32, i32
  }
  func.func @transform_13(%arg0: i32) -> (i32, i32) {
    %c0_i32 = arith.constant 0 : i32
    %c0_i32_0 = arith.constant 0 : i32
    %c0_i32_1 = arith.constant 0 : i32
    return %c0_i32, %c0_i32_0 : i32, i32
  }
  func.func @transform_14(%arg0: i32) -> (i32, i32) {
    %c0_i32 = arith.constant 0 : i32
    %c0_i32_0 = arith.constant 0 : i32
    %c0_i32_1 = arith.constant 0 : i32
    return %c0_i32, %c0_i32_0 : i32, i32
  }
  func.func @transform_15(%arg0: i32) -> (i32, i32) {
    %c0_i32 = arith.constant 0 : i32
    %c0_i32_0 = arith.constant 0 : i32
    %c0_i32_1 = arith.constant 0 : i32
    return %c0_i32, %c0_i32_0 : i32, i32
  }
  func.func @transform_16(%arg0: i32) -> (i32, i32) {
    %c0_i32 = arith.constant 0 : i32
    %c0_i32_0 = arith.constant 0 : i32
    %c0_i32_1 = arith.constant 0 : i32
    return %c0_i32, %c0_i32_0 : i32, i32
  }
  func.func @transform_17(%arg0: i32) -> (i32, i32) {
    %c0_i32 = arith.constant 0 : i32
    %c0_i32_0 = arith.constant 0 : i32
    %c0_i32_1 = arith.constant 0 : i32
    return %c0_i32, %c0_i32_0 : i32, i32
  }
  func.func @transform_18(%arg0: i32) -> (i32, i32) {
    %c0_i32 = arith.constant 0 : i32
    %c0_i32_0 = arith.constant 0 : i32
    return %arg0, %c0_i32 : i32, i32
  }
  func.func @transform_19(%arg0: i32) -> (i32, i32) {
    %c0_i32 = arith.constant 0 : i32
    %c0_i32_0 = arith.constant 0 : i32
    return %arg0, %c0_i32 : i32, i32
  }
}

</mosaic_0001>

<llo_original>
// kernel: tpu_custom_call.1
$region0: #{tpu_custom_call.1}
  #allocation0 [shape = 'u32[]', space=smem, size = 0x4, offset = 0x4, fixed_abs, tag = 'smem constant byte address 0x4 - core index']
  #allocation1 [shape = 'u32[144,128]{1,0:T(1,128)}', space=vmem, size = 0x12000, scoped, tag = 'internal scratch']
  %s0 = inlined_call_operand.hbm [shape: bf16[16,1024], index: 0, kind: input, shape index: {}]
  %s1 = inlined_call_operand.hbm [shape: f32[16,128], index: 1, kind: input, shape index: {}]
  %s2 = inlined_call_operand.hbm [shape: bf16[1024,896], index: 2, kind: input, shape index: {}]
  %s3 = inlined_call_operand.hbm [shape: f32[1,896], index: 3, kind: input, shape index: {}]
  %s4 = inlined_call_operand.hbm [shape: bf16[896,512], index: 4, kind: input, shape index: {}]
  %s5 = inlined_call_operand.hbm [shape: f32[1,512], index: 5, kind: input, shape index: {}]
  %s6 = inlined_call_operand.hbm [shape: bf16[512,384], index: 6, kind: input, shape index: {}]
  %s7 = inlined_call_operand.hbm [shape: f32[1,384], index: 7, kind: input, shape index: {}]
  %s8 = inlined_call_operand.hbm [shape: bf16[384,256], index: 8, kind: input, shape index: {}]
  %s9 = inlined_call_operand.hbm [shape: f32[1,256], index: 9, kind: input, shape index: {}]
  %s10 = inlined_call_operand.hbm [shape: bf16[128,384], index: 10, kind: input, shape index: {}]
  %s11 = inlined_call_operand.hbm [shape: f32[1,384], index: 11, kind: input, shape index: {}]
  %s12 = inlined_call_operand.hbm [shape: bf16[384,512], index: 12, kind: input, shape index: {}]
  %s13 = inlined_call_operand.hbm [shape: f32[1,512], index: 13, kind: input, shape index: {}]
  %s14 = inlined_call_operand.hbm [shape: bf16[512,896], index: 14, kind: input, shape index: {}]
  %s15 = inlined_call_operand.hbm [shape: f32[1,896], index: 15, kind: input, shape index: {}]
  %s16 = inlined_call_operand.hbm [shape: bf16[896,1024], index: 16, kind: input, shape index: {}]
  %s17 = inlined_call_operand.hbm [shape: f32[1,1024], index: 17, kind: input, shape index: {}]
  %s18 = inlined_call_operand.hbm [shape: f32[16,1024], index: 18, kind: output, shape index: {0}]
  %s19 = inlined_call_operand.hbm [shape: f32[16,256], index: 19, kind: output, shape index: {1}]
  %20 = xla_tuple %s18, %s19
  %s21 = sld [smem:[#allocation0]]
  $region162: #{tpu_custom_call.1} parent=0
    _
  %s23 = ssub.s32 1, %s21
  %s24 = scalar_select 0, %s23, %s21
  $region1: #{tpu_custom_call.1} parent=0
    #allocation2 [shape = 'u8[32768]{0}', space=vmem, size = 0x8000, scoped, tag = 'input window, operand 0, single buffered']
    #allocation3 [shape = 's32[1]{0}', space=sflag, size = 0x4, scoped, tag = 'scoped memory for tpu_custom_call.1']
    #allocation4 [shape = 's32[1]{0}', space=sflag, size = 0x4, scoped, tag = 'scoped memory for tpu_custom_call.1']
    #allocation5 [shape = 'u8[8192]{0}', space=vmem, size = 0x2000, scoped, tag = 'input window, operand 1, single buffered']
    #allocation6 [shape = 's32[1]{0}', space=sflag, size = 0x4, scoped, tag = 'scoped memory for tpu_custom_call.1']
    #allocation7 [shape = 'u8[1835008]{0}', space=vmem, size = 0x1c0000, scoped, tag = 'input window, operand 2, single buffered']
    #allocation8 [shape = 'u8[3584]{0}', space=vmem, size = 0x1000, scoped, tag = 'input window, operand 3, single buffered']
    #allocation9 [shape = 's32[1]{0}', space=sflag, size = 0x4, scoped, tag = 'scoped memory for tpu_custom_call.1']
    #allocation10 [shape = 'u8[917504]{0}', space=vmem, size = 0xe0000, scoped, tag = 'input window, operand 4, single buffered']
    #allocation11 [shape = 'u8[2048]{0}', space=vmem, size = 0x800, scoped, tag = 'input window, operand 5, single buffered']
    #allocation12 [shape = 's32[1]{0}', space=sflag, size = 0x4, scoped, tag = 'scoped memory for tpu_custom_call.1']
    #allocation13 [shape = 'u8[393216]{0}', space=vmem, size = 0x60000, scoped, tag = 'input window, operand 6, single buffered']
    #allocation14 [shape = 'u8[1536]{0}', space=vmem, size = 0x800, scoped, tag = 'input window, operand 7, single buffered']
    #allocation15 [shape = 's32[1]{0}', space=sflag, size = 0x4, scoped, tag = 'scoped memory for tpu_custom_call.1']
    #allocation16 [shape = 'u8[196608]{0}', space=vmem, size = 0x30000, scoped, tag = 'input window, operand 8, single buffered']
    #allocation17 [shape = 'u8[1024]{0}', space=vmem, size = 0x400, scoped, tag = 'input window, operand 9, single buffered']
    #allocation18 [shape = 's32[1]{0}', space=sflag, size = 0x4, scoped, tag = 'scoped memory for tpu_custom_call.1']
    #allocation19 [shape = 'u8[98304]{0}', space=vmem, size = 0x18000, scoped, tag = 'input window, operand 10, single buffered']
    #allocation20 [shape = 'u8[1536]{0}', space=vmem, size = 0x800, scoped, tag = 'input window, operand 11, single buffered']
    #allocation21 [shape = 's32[1]{0}', space=sflag, size = 0x4, scoped, tag = 'scoped memory for tpu_custom_call.1']
    #allocation22 [shape = 'u8[393216]{0}', space=vmem, size = 0x60000, scoped, tag = 'input window, operand 12, single buffered']
    #allocation23 [shape = 'u8[2048]{0}', space=vmem, size = 0x800, scoped, tag = 'input window, operand 13, single buffered']
    #allocation24 [shape = 's32[1]{0}', space=sflag, size = 0x4, scoped, tag = 'scoped memory for tpu_custom_call.1']
    #allocation25 [shape = 'u8[917504]{0}', space=vmem, size = 0xe0000, scoped, tag = 'input window, operand 14, single buffered']
    #allocation26 [shape = 'u8[3584]{0}', space=vmem, size = 0x1000, scoped, tag = 'input window, operand 15, single buffered']
    #allocation27 [shape = 's32[1]{0}', space=sflag, size = 0x4, scoped, tag = 'scoped memory for tpu_custom_call.1']
    #allocation28 [shape = 'u8[1835008]{0}', space=vmem, size = 0x1c0000, scoped, tag = 'input window, operand 16, single buffered']
    #allocation29 [shape = 'u8[4096]{0}', space=vmem, size = 0x1000, scoped, tag = 'input window, operand 17, single buffered']
    #allocation30 [shape = 's32[1]{0}', space=sflag, size = 0x4, scoped, tag = 'scoped memory for tpu_custom_call.1']
    #allocation31 [shape = 'u8[65536]{0}', space=vmem, size = 0x10000, scoped, tag = 'output window, operand 0, single buffered']
    #allocation32 [shape = 'u8[16384]{0}', space=vmem, size = 0x4000, scoped, tag = 'output window, operand 1, single buffered']
    #allocation33 [shape = 's32[1]{0}', space=sflag, size = 0x4, scoped, tag = 'scoped memory for tpu_custom_call.1']
    %25 = vsyncpa [#allocation3], 0
    %26 = vsyncpa [#allocation6], 0
    %27 = vsyncpa [#allocation9], 0
    %28 = vsyncpa [#allocation12], 0
    %29 = vsyncpa [#allocation15], 0
    %30 = vsyncpa [#allocation18], 0
    %31 = vsyncpa [#allocation21], 0
    %32 = vsyncpa [#allocation24], 0
    %33 = vsyncpa [#allocation27], 0
    %34 = vsyncpa [#allocation30], 0
    %35 = vsyncpa [#allocation4], 0
    %36 = vsyncpa [#allocation33], 0
    // Predicated region
    $region2: #{tpu_custom_call.1} parent=1 // pred_check
      _
    $region3: #{tpu_custom_call.1} parent=1 // pred_check_branch
      %38 = sbr.rel (0) target = $region5
    $region4: #{tpu_custom_call.1} parent=1 // pred_region
      %s40 = ssub.s32 1024, 1024
      %41 = vsyncadd [#allocation3], %s40
      %s42 = sshll.u32 [#allocation2], 4
      %s43 = int_to_ptr.vmem [resolvable:$true] %s42
      %48 = dma.hbm_to_vmem [thread:$0]  %s0, 1024, %s43, [#allocation3], 512, 512, 32
    $region5: #{tpu_custom_call.1} parent=1 // pred_fallthru
      _
    // Predicated region
    $region6: #{tpu_custom_call.1} parent=1 // pred_check
      _
    $region7: #{tpu_custom_call.1} parent=1 // pred_check_branch
      %50 = sbr.rel (0) target = $region9
    $region8: #{tpu_custom_call.1} parent=1 // pred_region
      %s52 = ssub.s32 256, 256
      %53 = vsyncadd [#allocation6], %s52
      %s54 = sshll.u32 [#allocation5], 4
      %s55 = int_to_ptr.vmem [resolvable:$true] %s54
      %60 = dma.hbm_to_vmem [thread:$0]  %s1, 256, %s55, [#allocation6], 128, 128, 8
    $region9: #{tpu_custom_call.1} parent=1 // pred_fallthru
      _
    // Predicated region
    $region10: #{tpu_custom_call.1} parent=1 // pred_check
      _
    $region11: #{tpu_custom_call.1} parent=1 // pred_check_branch
      %62 = sbr.rel (0) target = $region13
    $region12: #{tpu_custom_call.1} parent=1 // pred_region
      %s64 = ssub.s32 57344, 57344
      %65 = vsyncadd [#allocation6], %s64
      %s66 = sshll.u32 [#allocation7], 4
      %s67 = int_to_ptr.vmem [resolvable:$true] %s66
      %72 = dma.hbm_to_vmem [thread:$0]  %s2, 57344, %s67, [#allocation6], 448, 448, 28
    $region13: #{tpu_custom_call.1} parent=1 // pred_fallthru
      _
    // Predicated region
    $region14: #{tpu_custom_call.1} parent=1 // pred_check
      _
    $region15: #{tpu_custom_call.1} parent=1 // pred_check_branch
      %74 = sbr.rel (0) target = $region17
    $region16: #{tpu_custom_call.1} parent=1 // pred_region
      %s76 = ssub.s32 112, 112
      %77 = vsyncadd [#allocation9], %s76
      %s79 = sshll.u32 [#allocation8], 4
      %s80 = int_to_ptr.vmem [resolvable:$true] %s79
      %82 = dma.hbm_to_vmem [thread:$0]  %s3, 112, %s80, [#allocation9]
    $region17: #{tpu_custom_call.1} parent=1 // pred_fallthru
      _
    // Predicated region
    $region18: #{tpu_custom_call.1} parent=1 // pred_check
      _
    $region19: #{tpu_custom_call.1} parent=1 // pred_check_branch
      %84 = sbr.rel (0) target = $region21
    $region20: #{tpu_custom_call.1} parent=1 // pred_region
      %s86 = ssub.s32 28672, 28672
      %87 = vsyncadd [#allocation9], %s86
      %s88 = sshll.u32 [#allocation10], 4
      %s89 = int_to_ptr.vmem [resolvable:$true] %s88
      %94 = dma.hbm_to_vmem [thread:$0]  %s4, 28672, %s89, [#allocation9], 256, 256, 16
    $region21: #{tpu_custom_call.1} parent=1 // pred_fallthru
      _
    // Predicated region
    $region22: #{tpu_custom_call.1} parent=1 // pred_check
      _
    $region23: #{tpu_custom_call.1} parent=1 // pred_check_branch
      %96 = sbr.rel (0) target = $region25
    $region24: #{tpu_custom_call.1} parent=1 // pred_region
      %s98 = ssub.s32 64, 64
      %99 = vsyncadd [#allocation12], %s98
      %s101 = sshll.u32 [#allocation11], 4
      %s102 = int_to_ptr.vmem [resolvable:$true] %s101
      %104 = dma.hbm_to_vmem [thread:$0]  %s5, 64, %s102, [#allocation12]
    $region25: #{tpu_custom_call.1} parent=1 // pred_fallthru
      _
    // Predicated region
    $region26: #{tpu_custom_call.1} parent=1 // pred_check
      _
    $region27: #{tpu_custom_call.1} parent=1 // pred_check_branch
      %106 = sbr.rel (0) target = $region29
    $region28: #{tpu_custom_call.1} parent=1 // pred_region
      %s108 = ssub.s32 12288, 12288
      %109 = vsyncadd [#allocation12], %s108
      %s110 = sshll.u32 [#allocation13], 4
      %s111 = int_to_ptr.vmem [resolvable:$true] %s110
      %116 = dma.hbm_to_vmem [thread:$0]  %s6, 12288, %s111, [#allocation12], 192, 192, 12
    $region29: #{tpu_custom_call.1} parent=1 // pred_fallthru
      _
    // Predicated region
    $region30: #{tpu_custom_call.1} parent=1 // pred_check
      _
    $region31: #{tpu_custom_call.1} parent=1 // pred_check_branch
      %118 = sbr.rel (0) target = $region33
    $region32: #{tpu_custom_call.1} parent=1 // pred_region
      %s120 = ssub.s32 48, 48
      %121 = vsyncadd [#allocation15], %s120
      %s123 = sshll.u32 [#allocation14], 4
      %s124 = int_to_ptr.vmem [resolvable:$true] %s123
      %126 = dma.hbm_to_vmem [thread:$0]  %s7, 48, %s124, [#allocation15]
    $region33: #{tpu_custom_call.1} parent=1 // pred_fallthru
      _
    // Predicated region
    $region34: #{tpu_custom_call.1} parent=1 // pred_check
      _
    $region35: #{tpu_custom_call.1} parent=1 // pred_check_branch
      %128 = sbr.rel (0) target = $region37
    $region36: #{tpu_custom_call.1} parent=1 // pred_region
      %s130 = ssub.s32 6144, 6144
      %131 = vsyncadd [#allocation15], %s130
      %s132 = sshll.u32 [#allocation16], 4
      %s133 = int_to_ptr.vmem [resolvable:$true] %s132
      %138 = dma.hbm_to_vmem [thread:$0]  %s8, 6144, %s133, [#allocation15], 128, 128, 8
    $region37: #{tpu_custom_call.1} parent=1 // pred_fallthru
      _
    // Predicated region
    $region38: #{tpu_custom_call.1} parent=1 // pred_check
      _
    $region39: #{tpu_custom_call.1} parent=1 // pred_check_branch
      %140 = sbr.rel (0) target = $region41
    $region40: #{tpu_custom_call.1} parent=1 // pred_region
      %s142 = ssub.s32 32, 32
      %143 = vsyncadd [#allocation18], %s142
      %s145 = sshll.u32 [#allocation17], 4
      %s146 = int_to_ptr.vmem [resolvable:$true] %s145
      %148 = dma.hbm_to_vmem [thread:$0]  %s9, 32, %s146, [#allocation18]
    $region41: #{tpu_custom_call.1} parent=1 // pred_fallthru
      _
    // Predicated region
    $region42: #{tpu_custom_call.1} parent=1 // pred_check
      _
    $region43: #{tpu_custom_call.1} parent=1 // pred_check_branch
      %150 = sbr.rel (0) target = $region45
    $region44: #{tpu_custom_call.1} parent=1 // pred_region
      %s152 = ssub.s32 3072, 3072
      %153 = vsyncadd [#allocation18], %s152
      %s154 = sshll.u32 [#allocation19], 4
      %s155 = int_to_ptr.vmem [resolvable:$true] %s154
      %160 = dma.hbm_to_vmem [thread:$0]  %s10, 3072, %s155, [#allocation18], 192, 192, 12
    $region45: #{tpu_custom_call.1} parent=1 // pred_fallthru
      _
    // Predicated region
    $region46: #{tpu_custom_call.1} parent=1 // pred_check
      _
    $region47: #{tpu_custom_call.1} parent=1 // pred_check_branch
      %162 = sbr.rel (0) target = $region49
    $region48: #{tpu_custom_call.1} parent=1 // pred_region
      %s164 = ssub.s32 48, 48
      %165 = vsyncadd [#allocation21], %s164
      %s167 = sshll.u32 [#allocation20], 4
      %s168 = int_to_ptr.vmem [resolvable:$true] %s167
      %170 = dma.hbm_to_vmem [thread:$0]  %s11, 48, %s168, [#allocation21]
    $region49: #{tpu_custom_call.1} parent=1 // pred_fallthru
      _
    // Predicated region
    $region50: #{tpu_custom_call.1} parent=1 // pred_check
      _
    $region51: #{tpu_custom_call.1} parent=1 // pred_check_branch
      %172 = sbr.rel (0) target = $region53
    $region52: #{tpu_custom_call.1} parent=1 // pred_region
      %s174 = ssub.s32 12288, 12288
      %175 = vsyncadd [#allocation21], %s174
      %s176 = sshll.u32 [#allocation22], 4
      %s177 = int_to_ptr.vmem [resolvable:$true] %s176
      %182 = dma.hbm_to_vmem [thread:$0]  %s12, 12288, %s177, [#allocation21], 256, 256, 16
    $region53: #{tpu_custom_call.1} parent=1 // pred_fallthru
      _
    // Predicated region
    $region54: #{tpu_custom_call.1} parent=1 // pred_check
      _
    $region55: #{tpu_custom_call.1} parent=1 // pred_check_branch
      %184 = sbr.rel (0) target = $region57
    $region56: #{tpu_custom_call.1} parent=1 // pred_region
      %s186 = ssub.s32 64, 64
      %187 = vsyncadd [#allocation24], %s186
      %s189 = sshll.u32 [#allocation23], 4
      %s190 = int_to_ptr.vmem [resolvable:$true] %s189
      %192 = dma.hbm_to_vmem [thread:$0]  %s13, 64, %s190, [#allocation24]
    $region57: #{tpu_custom_call.1} parent=1 // pred_fallthru
      _
    // Predicated region
    $region58: #{tpu_custom_call.1} parent=1 // pred_check
      _
    $region59: #{tpu_custom_call.1} parent=1 // pred_check_branch
      %194 = sbr.rel (0) target = $region61
    $region60: #{tpu_custom_call.1} parent=1 // pred_region
      %s196 = ssub.s32 28672, 28672
      %197 = vsyncadd [#allocation24], %s196
      %s198 = sshll.u32 [#allocation25], 4
      %s199 = int_to_ptr.vmem [resolvable:$true] %s198
      %204 = dma.hbm_to_vmem [thread:$0]  %s14, 28672, %s199, [#allocation24], 448, 448, 28
    $region61: #{tpu_custom_call.1} parent=1 // pred_fallthru
      _
    // Predicated region
    $region62: #{tpu_custom_call.1} parent=1 // pred_check
      _
    $region63: #{tpu_custom_call.1} parent=1 // pred_check_branch
      %206 = sbr.rel (0) target = $region65
    $region64: #{tpu_custom_call.1} parent=1 // pred_region
      %s208 = ssub.s32 112, 112
      %209 = vsyncadd [#allocation27], %s208
      %s211 = sshll.u32 [#allocation26], 4
      %s212 = int_to_ptr.vmem [resolvable:$true] %s211
      %214 = dma.hbm_to_vmem [thread:$0]  %s15, 112, %s212, [#allocation27]
    $region65: #{tpu_custom_call.1} parent=1 // pred_fallthru
      _
    // Predicated region
    $region66: #{tpu_custom_call.1} parent=1 // pred_check
      _
    $region67: #{tpu_custom_call.1} parent=1 // pred_check_branch
      %216 = sbr.rel (0) target = $region69
    $region68: #{tpu_custom_call.1} parent=1 // pred_region
      %s218 = ssub.s32 57344, 57344
      %219 = vsyncadd [#allocation27], %s218
      %s220 = sshll.u32 [#allocation28], 4
      %s221 = int_to_ptr.vmem [resolvable:$true] %s220
      %226 = dma.hbm_to_vmem [thread:$0]  %s16, 57344, %s221, [#allocation27], 512, 512, 32
    $region69: #{tpu_custom_call.1} parent=1 // pred_fallthru
      _
    // Predicated region
    $region70: #{tpu_custom_call.1} parent=1 // pred_check
      _
    $region71: #{tpu_custom_call.1} parent=1 // pred_check_branch
      %228 = sbr.rel (0) target = $region73
    $region72: #{tpu_custom_call.1} parent=1 // pred_region
      %s230 = ssub.s32 128, 128
      %231 = vsyncadd [#allocation30], %s230
      %s233 = sshll.u32 [#allocation29], 4
      %s234 = int_to_ptr.vmem [resolvable:$true] %s233
      %236 = dma.hbm_to_vmem [thread:$0]  %s17, 128, %s234, [#allocation30]
    $region73: #{tpu_custom_call.1} parent=1 // pred_fallthru
      _
    // Predicated region
    $region74: #{tpu_custom_call.1} parent=1 // pred_check
      _
    $region75: #{tpu_custom_call.1} parent=1 // pred_check_branch
      %238 = sbr.rel (0) target = $region77
    $region76: #{tpu_custom_call.1} parent=1 // pred_region
      %239 = dma.done [#allocation3], 1024
    $region77: #{tpu_custom_call.1} parent=1 // pred_fallthru
      _
    // Predicated region
    $region78: #{tpu_custom_call.1} parent=1 // pred_check
      _
    $region79: #{tpu_custom_call.1} parent=1 // pred_check_branch
      %241 = sbr.rel (0) target = $region81
    $region80: #{tpu_custom_call.1} parent=1 // pred_region
      %242 = dma.done [#allocation6], 256
    $region81: #{tpu_custom_call.1} parent=1 // pred_fallthru
      _
    // Predicated region
    $region82: #{tpu_custom_call.1} parent=1 // pred_check
      _
    $region83: #{tpu_custom_call.1} parent=1 // pred_check_branch
      %244 = sbr.rel (0) target = $region85
    $region84: #{tpu_custom_call.1} parent=1 // pred_region
      %245 = dma.done [#allocation6], 57344
    $region85: #{tpu_custom_call.1} parent=1 // pred_fallthru
      _
    // Predicated region
    $region86: #{tpu_custom_call.1} parent=1 // pred_check
      _
    $region87: #{tpu_custom_call.1} parent=1 // pred_check_branch
      %247 = sbr.rel (0) target = $region89
    $region88: #{tpu_custom_call.1} parent=1 // pred_region
      %248 = dma.done [#allocation9], 112
    $region89: #{tpu_custom_call.1} parent=1 // pred_fallthru
      _
    // Predicated region
    $region90: #{tpu_custom_call.1} parent=1 // pred_check
      _
    $region91: #{tpu_custom_call.1} parent=1 // pred_check_branch
      %250 = sbr.rel (0) target = $region93
    $region92: #{tpu_custom_call.1} parent=1 // pred_region
      %251 = dma.done [#allocation9], 28672
    $region93: #{tpu_custom_call.1} parent=1 // pred_fallthru
      _
    // Predicated region
    $region94: #{tpu_custom_call.1} parent=1 // pred_check
      _
    $region95: #{tpu_custom_call.1} parent=1 // pred_check_branch
      %253 = sbr.rel (0) target = $region97
    $region96: #{tpu_custom_call.1} parent=1 // pred_region
      %254 = dma.done [#allocation12], 64
    $region97: #{tpu_custom_call.1} parent=1 // pred_fallthru
      _
    // Predicated region
    $region98: #{tpu_custom_call.1} parent=1 // pred_check
      _
    $region99: #{tpu_custom_call.1} parent=1 // pred_check_branch
      %256 = sbr.rel (0) target = $region101
    $region100: #{tpu_custom_call.1} parent=1 // pred_region
      %257 = dma.done [#allocation12], 12288
    $region101: #{tpu_custom_call.1} parent=1 // pred_fallthru
      _
    // Predicated region
    $region102: #{tpu_custom_call.1} parent=1 // pred_check
      _
    $region103: #{tpu_custom_call.1} parent=1 // pred_check_branch
      %259 = sbr.rel (0) target = $region105
    $region104: #{tpu_custom_call.1} parent=1 // pred_region
      %260 = dma.done [#allocation15], 48
    $region105: #{tpu_custom_call.1} parent=1 // pred_fallthru
      _
    // Predicated region
    $region106: #{tpu_custom_call.1} parent=1 // pred_check
      _
    $region107: #{tpu_custom_call.1} parent=1 // pred_check_branch
      %262 = sbr.rel (0) target = $region109
    $region108: #{tpu_custom_call.1} parent=1 // pred_region
      %263 = dma.done [#allocation15], 6144
    $region109: #{tpu_custom_call.1} parent=1 // pred_fallthru
      _
    // Predicated region
    $region110: #{tpu_custom_call.1} parent=1 // pred_check
      _
    $region111: #{tpu_custom_call.1} parent=1 // pred_check_branch
      %265 = sbr.rel (0) target = $region113
    $region112: #{tpu_custom_call.1} parent=1 // pred_region
      %266 = dma.done [#allocation18], 32
    $region113: #{tpu_custom_call.1} parent=1 // pred_fallthru
      _
    // Predicated region
    $region114: #{tpu_custom_call.1} parent=1 // pred_check
      _
    $region115: #{tpu_custom_call.1} parent=1 // pred_check_branch
      %268 = sbr.rel (0) target = $region117
    $region116: #{tpu_custom_call.1} parent=1 // pred_region
      %269 = dma.done [#allocation18], 3072
    $region117: #{tpu_custom_call.1} parent=1 // pred_fallthru
      _
    // Predicated region
    $region118: #{tpu_custom_call.1} parent=1 // pred_check
      _
    $region119: #{tpu_custom_call.1} parent=1 // pred_check_branch
      %271 = sbr.rel (0) target = $region121
    $region120: #{tpu_custom_call.1} parent=1 // pred_region
      %272 = dma.done [#allocation21], 48
    $region121: #{tpu_custom_call.1} parent=1 // pred_fallthru
      _
    // Predicated region
    $region122: #{tpu_custom_call.1} parent=1 // pred_check
      _
    $region123: #{tpu_custom_call.1} parent=1 // pred_check_branch
      %274 = sbr.rel (0) target = $region125
    $region124: #{tpu_custom_call.1} parent=1 // pred_region
      %275 = dma.done [#allocation21], 12288
    $region125: #{tpu_custom_call.1} parent=1 // pred_fallthru
      _
    // Predicated region
    $region126: #{tpu_custom_call.1} parent=1 // pred_check
      _
    $region127: #{tpu_custom_call.1} parent=1 // pred_check_branch
      %277 = sbr.rel (0) target = $region129
    $region128: #{tpu_custom_call.1} parent=1 // pred_region
      %278 = dma.done [#allocation24], 64
    $region129: #{tpu_custom_call.1} parent=1 // pred_fallthru
      _
    // Predicated region
    $region130: #{tpu_custom_call.1} parent=1 // pred_check
      _
    $region131: #{tpu_custom_call.1} parent=1 // pred_check_branch
      %280 = sbr.rel (0) target = $region133
    $region132: #{tpu_custom_call.1} parent=1 // pred_region
      %281 = dma.done [#allocation24], 28672
    $region133: #{tpu_custom_call.1} parent=1 // pred_fallthru
      _
    // Predicated region
    $region134: #{tpu_custom_call.1} parent=1 // pred_check
      _
    $region135: #{tpu_custom_call.1} parent=1 // pred_check_branch
      %283 = sbr.rel (0) target = $region137
    $region136: #{tpu_custom_call.1} parent=1 // pred_region
      %284 = dma.done [#allocation27], 112
    $region137: #{tpu_custom_call.1} parent=1 // pred_fallthru
      _
    // Predicated region
    $region138: #{tpu_custom_call.1} parent=1 // pred_check
      _
    $region139: #{tpu_custom_call.1} parent=1 // pred_check_branch
      %286 = sbr.rel (0) target = $region141
    $region140: #{tpu_custom_call.1} parent=1 // pred_region
      %287 = dma.done [#allocation27], 57344
    $region141: #{tpu_custom_call.1} parent=1 // pred_fallthru
      _
    // Predicated region
    $region142: #{tpu_custom_call.1} parent=1 // pred_check
      _
    $region143: #{tpu_custom_call.1} parent=1 // pred_check_branch
      %289 = sbr.rel (0) target = $region145
    $region144: #{tpu_custom_call.1} parent=1 // pred_region
      %290 = dma.done [#allocation30], 128
    $region145: #{tpu_custom_call.1} parent=1 // pred_fallthru
      _
    %v292 = vld [vmem:[#allocation2] sm:$0xff]
    %v293 = vld [vmem:[#allocation2 + $0x8] sm:$0xff]
    %v294 = vld [vmem:[#allocation2 + $0x10] sm:$0xff]
    %v295 = vld [vmem:[#allocation2 + $0x18] sm:$0xff]
    %v296 = vld [vmem:[#allocation2 + $0x20] sm:$0xff]
    %v297 = vld [vmem:[#allocation2 + $0x28] sm:$0xff]
    %v298 = vld [vmem:[#allocation2 + $0x30] sm:$0xff]
    %v299 = vld [vmem:[#allocation2 + $0x38] sm:$0xff]
    %v300 = vld [vmem:[#allocation7] sm:$0xff]
    %v301 = vld [vmem:[#allocation7 + $0x8] sm:$0xff]
    %v302 = vld [vmem:[#allocation7 + $0x10] sm:$0xff]
    %v303 = vld [vmem:[#allocation7 + $0x18] sm:$0xf]
    %v304 = vld [vmem:[#allocation7 + $0x1c] sm:$0xff]
    %v305 = vld [vmem:[#allocation7 + $0x24] sm:$0xff]
    %v306 = vld [vmem:[#allocation7 + $0x2c] sm:$0xff]
    %v307 = vld [vmem:[#allocation7 + $0x34] sm:$0xf]
    %v308 = vld [vmem:[#allocation7 + $0x38] sm:$0xff]
    %v309 = vld [vmem:[#allocation7 + $0x40] sm:$0xff]
    %v310 = vld [vmem:[#allocation7 + $0x48] sm:$0xff]
    %v311 = vld [vmem:[#allocation7 + $0x50] sm:$0xf]
    %v312 = vld [vmem:[#allocation7 + $0x54] sm:$0xff]
    %v313 = vld [vmem:[#allocation7 + $0x5c] sm:$0xff]
    %v314 = vld [vmem:[#allocation7 + $0x64] sm:$0xff]
    %v315 = vld [vmem:[#allocation7 + $0x6c] sm:$0xf]
    %v316 = vld [vmem:[#allocation7 + $0x70] sm:$0xff]
    %v317 = vld [vmem:[#allocation7 + $0x78] sm:$0xff]
    %v318 = vld [vmem:[#allocation7 + $0x80] sm:$0xff]
    %v319 = vld [vmem:[#allocation7 + $0x88] sm:$0xf]
    %v320 = vld [vmem:[#allocation7 + $0x8c] sm:$0xff]
    %v321 = vld [vmem:[#allocation7 + $0x94] sm:$0xff]
    %v322 = vld [vmem:[#allocation7 + $0x9c] sm:$0xff]
    %v323 = vld [vmem:[#allocation7 + $0xa4] sm:$0xf]
    %v324 = vld [vmem:[#allocation7 + $0xa8] sm:$0xff]
    %v325 = vld [vmem:[#allocation7 + $0xb0] sm:$0xff]
    %v326 = vld [vmem:[#allocation7 + $0xb8] sm:$0xff]
    %v327 = vld [vmem:[#allocation7 + $0xc0] sm:$0xf]
    %v328 = vld [vmem:[#allocation7 + $0xc4] sm:$0xff]
    %v329 = vld [vmem:[#allocation7 + $0xcc] sm:$0xff]
    %v330 = vld [vmem:[#allocation7 + $0xd4] sm:$0xff]
    %v331 = vld [vmem:[#allocation7 + $0xdc] sm:$0xf]
    %v332 = vld [vmem:[#allocation7 + $0xe0] sm:$0xff]
    %v333 = vld [vmem:[#allocation7 + $0xe8] sm:$0xff]
    %v334 = vld [vmem:[#allocation7 + $0xf0] sm:$0xff]
    %v335 = vld [vmem:[#allocation7 + $0xf8] sm:$0xf]
    %v336 = vld [vmem:[#allocation7 + $0xfc] sm:$0xff]
    %v337 = vld [vmem:[#allocation7 + $0x104] sm:$0xff]
    %v338 = vld [vmem:[#allocation7 + $0x10c] sm:$0xff]
    %v339 = vld [vmem:[#allocation7 + $0x114] sm:$0xf]
    %v340 = vld [vmem:[#allocation7 + $0x118] sm:$0xff]
    %v341 = vld [vmem:[#allocation7 + $0x120] sm:$0xff]
    %v342 = vld [vmem:[#allocation7 + $0x128] sm:$0xff]
    %v343 = vld [vmem:[#allocation7 + $0x130] sm:$0xf]
    %v344 = vld [vmem:[#allocation7 + $0x134] sm:$0xff]
    %v345 = vld [vmem:[#allocation7 + $0x13c] sm:$0xff]
    %v346 = vld [vmem:[#allocation7 + $0x144] sm:$0xff]
    %v347 = vld [vmem:[#allocation7 + $0x14c] sm:$0xf]
    %v348 = vld [vmem:[#allocation7 + $0x150] sm:$0xff]
    %v349 = vld [vmem:[#allocation7 + $0x158] sm:$0xff]
    %v350 = vld [vmem:[#allocation7 + $0x160] sm:$0xff]
    %v351 = vld [vmem:[#allocation7 + $0x168] sm:$0xf]
    %v352 = vld [vmem:[#allocation7 + $0x16c] sm:$0xff]
    %v353 = vld [vmem:[#allocation7 + $0x174] sm:$0xff]
    %v354 = vld [vmem:[#allocation7 + $0x17c] sm:$0xff]
    %v355 = vld [vmem:[#allocation7 + $0x184] sm:$0xf]
    %v356 = vld [vmem:[#allocation7 + $0x188] sm:$0xff]
    %v357 = vld [vmem:[#allocation7 + $0x190] sm:$0xff]
    %v358 = vld [vmem:[#allocation7 + $0x198] sm:$0xff]
    %v359 = vld [vmem:[#allocation7 + $0x1a0] sm:$0xf]
    %v360 = vld [vmem:[#allocation7 + $0x1a4] sm:$0xff]
    %v361 = vld [vmem:[#allocation7 + $0x1ac] sm:$0xff]
    %v362 = vld [vmem:[#allocation7 + $0x1b4] sm:$0xff]
    %v363 = vld [vmem:[#allocation7 + $0x1bc] sm:$0xf]
    %v364 = vld [vmem:[#allocation7 + $0x1c0] sm:$0xff]
    %v365 = vld [vmem:[#allocation7 + $0x1c8] sm:$0xff]
    %v366 = vld [vmem:[#allocation7 + $0x1d0] sm:$0xff]
    %v367 = vld [vmem:[#allocation7 + $0x1d8] sm:$0xf]
    %v368 = vld [vmem:[#allocation7 + $0x1dc] sm:$0xff]
    %v369 = vld [vmem:[#allocation7 + $0x1e4] sm:$0xff]
    %v370 = vld [vmem:[#allocation7 + $0x1ec] sm:$0xff]
    %v371 = vld [vmem:[#allocation7 + $0x1f4] sm:$0xf]
    %v372 = vld [vmem:[#allocation7 + $0x1f8] sm:$0xff]
    %v373 = vld [vmem:[#allocation7 + $0x200] sm:$0xff]
    %v374 = vld [vmem:[#allocation7 + $0x208] sm:$0xff]
    %v375 = vld [vmem:[#allocation7 + $0x210] sm:$0xf]
    %v376 = vld [vmem:[#allocation7 + $0x214] sm:$0xff]
    %v377 = vld [vmem:[#allocation7 + $0x21c] sm:$0xff]
    %v378 = vld [vmem:[#allocation7 + $0x224] sm:$0xff]
    %v379 = vld [vmem:[#allocation7 + $0x22c] sm:$0xf]
    %v380 = vld [vmem:[#allocation7 + $0x230] sm:$0xff]
    %v381 = vld [vmem:[#allocation7 + $0x238] sm:$0xff]
    %v382 = vld [vmem:[#allocation7 + $0x240] sm:$0xff]
    %v383 = vld [vmem:[#allocation7 + $0x248] sm:$0xf]
    %v384 = vld [vmem:[#allocation7 + $0x24c] sm:$0xff]
    %v385 = vld [vmem:[#allocation7 + $0x254] sm:$0xff]
    %v386 = vld [vmem:[#allocation7 + $0x25c] sm:$0xff]
    %v387 = vld [vmem:[#allocation7 + $0x264] sm:$0xf]
    %v388 = vld [vmem:[#allocation7 + $0x268] sm:$0xff]
    %v389 = vld [vmem:[#allocation7 + $0x270] sm:$0xff]
    %v390 = vld [vmem:[#allocation7 + $0x278] sm:$0xff]
    %v391 = vld [vmem:[#allocation7 + $0x280] sm:$0xf]
    %v392 = vld [vmem:[#allocation7 + $0x284] sm:$0xff]
    %v393 = vld [vmem:[#allocation7 + $0x28c] sm:$0xff]
    %v394 = vld [vmem:[#allocation7 + $0x294] sm:$0xff]
    %v395 = vld [vmem:[#allocation7 + $0x29c] sm:$0xf]
    %v396 = vld [vmem:[#allocation7 + $0x2a0] sm:$0xff]
    %v397 = vld [vmem:[#allocation7 + $0x2a8] sm:$0xff]
    %v398 = vld [vmem:[#allocation7 + $0x2b0] sm:$0xff]
    %v399 = vld [vmem:[#allocation7 + $0x2b8] sm:$0xf]
    %v400 = vld [vmem:[#allocation7 + $0x2bc] sm:$0xff]
    %v401 = vld [vmem:[#allocation7 + $0x2c4] sm:$0xff]
    %v402 = vld [vmem:[#allocation7 + $0x2cc] sm:$0xff]
    %v403 = vld [vmem:[#allocation7 + $0x2d4] sm:$0xf]
    %v404 = vld [vmem:[#allocation7 + $0x2d8] sm:$0xff]
    %v405 = vld [vmem:[#allocation7 + $0x2e0] sm:$0xff]
    %v406 = vld [vmem:[#allocation7 + $0x2e8] sm:$0xff]
    %v407 = vld [vmem:[#allocation7 + $0x2f0] sm:$0xf]
    %v408 = vld [vmem:[#allocation7 + $0x2f4] sm:$0xff]
    %v409 = vld [vmem:[#allocation7 + $0x2fc] sm:$0xff]
    %v410 = vld [vmem:[#allocation7 + $0x304] sm:$0xff]
    %v411 = vld [vmem:[#allocation7 + $0x30c] sm:$0xf]
    %v412 = vld [vmem:[#allocation7 + $0x310] sm:$0xff]
    %v413 = vld [vmem:[#allocation7 + $0x318] sm:$0xff]
    %v414 = vld [vmem:[#allocation7 + $0x320] sm:$0xff]
    %v415 = vld [vmem:[#allocation7 + $0x328] sm:$0xf]
    %v416 = vld [vmem:[#allocation7 + $0x32c] sm:$0xff]
    %v417 = vld [vmem:[#allocation7 + $0x334] sm:$0xff]
    %v418 = vld [vmem:[#allocation7 + $0x33c] sm:$0xff]
    %v419 = vld [vmem:[#allocation7 + $0x344] sm:$0xf]
    %v420 = vld [vmem:[#allocation7 + $0x348] sm:$0xff]
    %v421 = vld [vmem:[#allocation7 + $0x350] sm:$0xff]
    %v422 = vld [vmem:[#allocation7 + $0x358] sm:$0xff]
    %v423 = vld [vmem:[#allocation7 + $0x360] sm:$0xf]
    %v424 = vld [vmem:[#allocation7 + $0x364] sm:$0xff]
    %v425 = vld [vmem:[#allocation7 + $0x36c] sm:$0xff]
    %v426 = vld [vmem:[#allocation7 + $0x374] sm:$0xff]
    %v427 = vld [vmem:[#allocation7 + $0x37c] sm:$0xf]
    %v428 = vld [vmem:[#allocation7 + $0x380] sm:$0xff]
    %v429 = vld [vmem:[#allocation7 + $0x388] sm:$0xff]
    %v430 = vld [vmem:[#allocation7 + $0x390] sm:$0xff]
    %v431 = vld [vmem:[#allocation7 + $0x398] sm:$0xf]
    %v432 = vld [vmem:[#allocation7 + $0x39c] sm:$0xff]
    %v433 = vld [vmem:[#allocation7 + $0x3a4] sm:$0xff]
    %v434 = vld [vmem:[#allocation7 + $0x3ac] sm:$0xff]
    %v435 = vld [vmem:[#allocation7 + $0x3b4] sm:$0xf]
    %v436 = vld [vmem:[#allocation7 + $0x3b8] sm:$0xff]
    %v437 = vld [vmem:[#allocation7 + $0x3c0] sm:$0xff]
    %v438 = vld [vmem:[#allocation7 + $0x3c8] sm:$0xff]
    %v439 = vld [vmem:[#allocation7 + $0x3d0] sm:$0xf]
    %v440 = vld [vmem:[#allocation7 + $0x3d4] sm:$0xff]
    %v441 = vld [vmem:[#allocation7 + $0x3dc] sm:$0xff]
    %v442 = vld [vmem:[#allocation7 + $0x3e4] sm:$0xff]
    %v443 = vld [vmem:[#allocation7 + $0x3ec] sm:$0xf]
    %v444 = vld [vmem:[#allocation7 + $0x3f0] sm:$0xff]
    %v445 = vld [vmem:[#allocation7 + $0x3f8] sm:$0xff]
    %v446 = vld [vmem:[#allocation7 + $0x400] sm:$0xff]
    %v447 = vld [vmem:[#allocation7 + $0x408] sm:$0xf]
    %v448 = vld [vmem:[#allocation7 + $0x40c] sm:$0xff]
    %v449 = vld [vmem:[#allocation7 + $0x414] sm:$0xff]
    %v450 = vld [vmem:[#allocation7 + $0x41c] sm:$0xff]
    %v451 = vld [vmem:[#allocation7 + $0x424] sm:$0xf]
    %v452 = vld [vmem:[#allocation7 + $0x428] sm:$0xff]
    %v453 = vld [vmem:[#allocation7 + $0x430] sm:$0xff]
    %v454 = vld [vmem:[#allocation7 + $0x438] sm:$0xff]
    %v455 = vld [vmem:[#allocation7 + $0x440] sm:$0xf]
    %v456 = vld [vmem:[#allocation7 + $0x444] sm:$0xff]
    %v457 = vld [vmem:[#allocation7 + $0x44c] sm:$0xff]
    %v458 = vld [vmem:[#allocation7 + $0x454] sm:$0xff]
    %v459 = vld [vmem:[#allocation7 + $0x45c] sm:$0xf]
    %v460 = vld [vmem:[#allocation7 + $0x460] sm:$0xff]
    %v461 = vld [vmem:[#allocation7 + $0x468] sm:$0xff]
    %v462 = vld [vmem:[#allocation7 + $0x470] sm:$0xff]
    %v463 = vld [vmem:[#allocation7 + $0x478] sm:$0xf]
    %v464 = vld [vmem:[#allocation7 + $0x47c] sm:$0xff]
    %v465 = vld [vmem:[#allocation7 + $0x484] sm:$0xff]
    %v466 = vld [vmem:[#allocation7 + $0x48c] sm:$0xff]
    %v467 = vld [vmem:[#allocation7 + $0x494] sm:$0xf]
    %v468 = vld [vmem:[#allocation7 + $0x498] sm:$0xff]
    %v469 = vld [vmem:[#allocation7 + $0x4a0] sm:$0xff]
    %v470 = vld [vmem:[#allocation7 + $0x4a8] sm:$0xff]
    %v471 = vld [vmem:[#allocation7 + $0x4b0] sm:$0xf]
    %v472 = vld [vmem:[#allocation7 + $0x4b4] sm:$0xff]
    %v473 = vld [vmem:[#allocation7 + $0x4bc] sm:$0xff]
    %v474 = vld [vmem:[#allocation7 + $0x4c4] sm:$0xff]
    %v475 = vld [vmem:[#allocation7 + $0x4cc] sm:$0xf]
    %v476 = vld [vmem:[#allocation7 + $0x4d0] sm:$0xff]
    %v477 = vld [vmem:[#allocation7 + $0x4d8] sm:$0xff]
    %v478 = vld [vmem:[#allocation7 + $0x4e0] sm:$0xff]
    %v479 = vld [vmem:[#allocation7 + $0x4e8] sm:$0xf]
    %v480 = vld [vmem:[#allocation7 + $0x4ec] sm:$0xff]
    %v481 = vld [vmem:[#allocation7 + $0x4f4] sm:$0xff]
    %v482 = vld [vmem:[#allocation7 + $0x4fc] sm:$0xff]
    %v483 = vld [vmem:[#allocation7 + $0x504] sm:$0xf]
    %v484 = vld [vmem:[#allocation7 + $0x508] sm:$0xff]
    %v485 = vld [vmem:[#allocation7 + $0x510] sm:$0xff]
    %v486 = vld [vmem:[#allocation7 + $0x518] sm:$0xff]
    %v487 = vld [vmem:[#allocation7 + $0x520] sm:$0xf]
    %v488 = vld [vmem:[#allocation7 + $0x524] sm:$0xff]
    %v489 = vld [vmem:[#allocation7 + $0x52c] sm:$0xff]
    %v490 = vld [vmem:[#allocation7 + $0x534] sm:$0xff]
    %v491 = vld [vmem:[#allocation7 + $0x53c] sm:$0xf]
    %v492 = vld [vmem:[#allocation7 + $0x540] sm:$0xff]
    %v493 = vld [vmem:[#allocation7 + $0x548] sm:$0xff]
    %v494 = vld [vmem:[#allocation7 + $0x550] sm:$0xff]
    %v495 = vld [vmem:[#allocation7 + $0x558] sm:$0xf]
    %v496 = vld [vmem:[#allocation7 + $0x55c] sm:$0xff]
    %v497 = vld [vmem:[#allocation7 + $0x564] sm:$0xff]
    %v498 = vld [vmem:[#allocation7 + $0x56c] sm:$0xff]
    %v499 = vld [vmem:[#allocation7 + $0x574] sm:$0xf]
    %v500 = vld [vmem:[#allocation7 + $0x578] sm:$0xff]
    %v501 = vld [vmem:[#allocation7 + $0x580] sm:$0xff]
    %v502 = vld [vmem:[#allocation7 + $0x588] sm:$0xff]
    %v503 = vld [vmem:[#allocation7 + $0x590] sm:$0xf]
    %v504 = vld [vmem:[#allocation7 + $0x594] sm:$0xff]
    %v505 = vld [vmem:[#allocation7 + $0x59c] sm:$0xff]
    %v506 = vld [vmem:[#allocation7 + $0x5a4] sm:$0xff]
    %v507 = vld [vmem:[#allocation7 + $0x5ac] sm:$0xf]
    %v508 = vld [vmem:[#allocation7 + $0x5b0] sm:$0xff]
    %v509 = vld [vmem:[#allocation7 + $0x5b8] sm:$0xff]
    %v510 = vld [vmem:[#allocation7 + $0x5c0] sm:$0xff]
    %v511 = vld [vmem:[#allocation7 + $0x5c8] sm:$0xf]
    %v512 = vld [vmem:[#allocation7 + $0x5cc] sm:$0xff]
    %v513 = vld [vmem:[#allocation7 + $0x5d4] sm:$0xff]
    %v514 = vld [vmem:[#allocation7 + $0x5dc] sm:$0xff]
    %v515 = vld [vmem:[#allocation7 + $0x5e4] sm:$0xf]
    %v516 = vld [vmem:[#allocation7 + $0x5e8] sm:$0xff]
    %v517 = vld [vmem:[#allocation7 + $0x5f0] sm:$0xff]
    %v518 = vld [vmem:[#allocation7 + $0x5f8] sm:$0xff]
    %v519 = vld [vmem:[#allocation7 + $0x600] sm:$0xf]
    %v520 = vld [vmem:[#allocation7 + $0x604] sm:$0xff]
    %v521 = vld [vmem:[#allocation7 + $0x60c] sm:$0xff]
    %v522 = vld [vmem:[#allocation7 + $0x614] sm:$0xff]
    %v523 = vld [vmem:[#allocation7 + $0x61c] sm:$0xf]
    %v524 = vld [vmem:[#allocation7 + $0x620] sm:$0xff]
    %v525 = vld [vmem:[#allocation7 + $0x628] sm:$0xff]
    %v526 = vld [vmem:[#allocation7 + $0x630] sm:$0xff]
    %v527 = vld [vmem:[#allocation7 + $0x638] sm:$0xf]
    %v528 = vld [vmem:[#allocation7 + $0x63c] sm:$0xff]
    %v529 = vld [vmem:[#allocation7 + $0x644] sm:$0xff]
    %v530 = vld [vmem:[#allocation7 + $0x64c] sm:$0xff]
    %v531 = vld [vmem:[#allocation7 + $0x654] sm:$0xf]
    %v532 = vld [vmem:[#allocation7 + $0x658] sm:$0xff]
    %v533 = vld [vmem:[#allocation7 + $0x660] sm:$0xff]
    %v534 = vld [vmem:[#allocation7 + $0x668] sm:$0xff]
    %v535 = vld [vmem:[#allocation7 + $0x670] sm:$0xf]
    %v536 = vld [vmem:[#allocation7 + $0x674] sm:$0xff]
    %v537 = vld [vmem:[#allocation7 + $0x67c] sm:$0xff]
    %v538 = vld [vmem:[#allocation7 + $0x684] sm:$0xff]
    %v539 = vld [vmem:[#allocation7 + $0x68c] sm:$0xf]
    %v540 = vld [vmem:[#allocation7 + $0x690] sm:$0xff]
    %v541 = vld [vmem:[#allocation7 + $0x698] sm:$0xff]
    %v542 = vld [vmem:[#allocation7 + $0x6a0] sm:$0xff]
    %v543 = vld [vmem:[#allocation7 + $0x6a8] sm:$0xf]
    %v544 = vld [vmem:[#allocation7 + $0x6ac] sm:$0xff]
    %v545 = vld [vmem:[#allocation7 + $0x6b4] sm:$0xff]
    %v546 = vld [vmem:[#allocation7 + $0x6bc] sm:$0xff]
    %v547 = vld [vmem:[#allocation7 + $0x6c4] sm:$0xf]
    %v548 = vld [vmem:[#allocation7 + $0x6c8] sm:$0xff]
    %v549 = vld [vmem:[#allocation7 + $0x6d0] sm:$0xff]
    %v550 = vld [vmem:[#allocation7 + $0x6d8] sm:$0xff]
    %v551 = vld [vmem:[#allocation7 + $0x6e0] sm:$0xf]
    %v552 = vld [vmem:[#allocation7 + $0x6e4] sm:$0xff]
    %v553 = vld [vmem:[#allocation7 + $0x6ec] sm:$0xff]
    %v554 = vld [vmem:[#allocation7 + $0x6f4] sm:$0xff]
    %v555 = vld [vmem:[#allocation7 + $0x6fc] sm:$0xf]
    %v556 = vld [vmem:[#allocation7 + $0x700] sm:$0xff]
    %v557 = vld [vmem:[#allocation7 + $0x708] sm:$0xff]
    %v558 = vld [vmem:[#allocation7 + $0x710] sm:$0xff]
    %v559 = vld [vmem:[#allocation7 + $0x718] sm:$0xf]
    %v560 = vld [vmem:[#allocation7 + $0x71c] sm:$0xff]
    %v561 = vld [vmem:[#allocation7 + $0x724] sm:$0xff]
    %v562 = vld [vmem:[#allocation7 + $0x72c] sm:$0xff]
    %v563 = vld [vmem:[#allocation7 + $0x734] sm:$0xf]
    %v564 = vld [vmem:[#allocation7 + $0x738] sm:$0xff]
    %v565 = vld [vmem:[#allocation7 + $0x740] sm:$0xff]
    %v566 = vld [vmem:[#allocation7 + $0x748] sm:$0xff]
    %v567 = vld [vmem:[#allocation7 + $0x750] sm:$0xf]
    %v568 = vld [vmem:[#allocation7 + $0x754] sm:$0xff]
    %v569 = vld [vmem:[#allocation7 + $0x75c] sm:$0xff]
    %v570 = vld [vmem:[#allocation7 + $0x764] sm:$0xff]
    %v571 = vld [vmem:[#allocation7 + $0x76c] sm:$0xf]
    %v572 = vld [vmem:[#allocation7 + $0x770] sm:$0xff]
    %v573 = vld [vmem:[#allocation7 + $0x778] sm:$0xff]
    %v574 = vld [vmem:[#allocation7 + $0x780] sm:$0xff]
    %v575 = vld [vmem:[#allocation7 + $0x788] sm:$0xf]
    %v576 = vld [vmem:[#allocation7 + $0x78c] sm:$0xff]
    %v577 = vld [vmem:[#allocation7 + $0x794] sm:$0xff]
    %v578 = vld [vmem:[#allocation7 + $0x79c] sm:$0xff]
    %v579 = vld [vmem:[#allocation7 + $0x7a4] sm:$0xf]
    %v580 = vld [vmem:[#allocation7 + $0x7a8] sm:$0xff]
    %v581 = vld [vmem:[#allocation7 + $0x7b0] sm:$0xff]
    %v582 = vld [vmem:[#allocation7 + $0x7b8] sm:$0xff]
    %v583 = vld [vmem:[#allocation7 + $0x7c0] sm:$0xf]
    %v584 = vld [vmem:[#allocation7 + $0x7c4] sm:$0xff]
    %v585 = vld [vmem:[#allocation7 + $0x7cc] sm:$0xff]
    %v586 = vld [vmem:[#allocation7 + $0x7d4] sm:$0xff]
    %v587 = vld [vmem:[#allocation7 + $0x7dc] sm:$0xf]
    %v588 = vld [vmem:[#allocation7 + $0x7e0] sm:$0xff]
    %v589 = vld [vmem:[#allocation7 + $0x7e8] sm:$0xff]
    %v590 = vld [vmem:[#allocation7 + $0x7f0] sm:$0xff]
    %v591 = vld [vmem:[#allocation7 + $0x7f8] sm:$0xf]
    %v592 = vld [vmem:[#allocation7 + $0x7fc] sm:$0xff]
    %v593 = vld [vmem:[#allocation7 + $0x804] sm:$0xff]
    %v594 = vld [vmem:[#allocation7 + $0x80c] sm:$0xff]
    %v595 = vld [vmem:[#allocation7 + $0x814] sm:$0xf]
    %v596 = vld [vmem:[#allocation7 + $0x818] sm:$0xff]
    %v597 = vld [vmem:[#allocation7 + $0x820] sm:$0xff]
    %v598 = vld [vmem:[#allocation7 + $0x828] sm:$0xff]
    %v599 = vld [vmem:[#allocation7 + $0x830] sm:$0xf]
    %v600 = vld [vmem:[#allocation7 + $0x834] sm:$0xff]
    %v601 = vld [vmem:[#allocation7 + $0x83c] sm:$0xff]
    %v602 = vld [vmem:[#allocation7 + $0x844] sm:$0xff]
    %v603 = vld [vmem:[#allocation7 + $0x84c] sm:$0xf]
    %v604 = vld [vmem:[#allocation7 + $0x850] sm:$0xff]
    %v605 = vld [vmem:[#allocation7 + $0x858] sm:$0xff]
    %v606 = vld [vmem:[#allocation7 + $0x860] sm:$0xff]
    %v607 = vld [vmem:[#allocation7 + $0x868] sm:$0xf]
    %v608 = vld [vmem:[#allocation7 + $0x86c] sm:$0xff]
    %v609 = vld [vmem:[#allocation7 + $0x874] sm:$0xff]
    %v610 = vld [vmem:[#allocation7 + $0x87c] sm:$0xff]
    %v611 = vld [vmem:[#allocation7 + $0x884] sm:$0xf]
    %v612 = vld [vmem:[#allocation7 + $0x888] sm:$0xff]
    %v613 = vld [vmem:[#allocation7 + $0x890] sm:$0xff]
    %v614 = vld [vmem:[#allocation7 + $0x898] sm:$0xff]
    %v615 = vld [vmem:[#allocation7 + $0x8a0] sm:$0xf]
    %v616 = vld [vmem:[#allocation7 + $0x8a4] sm:$0xff]
    %v617 = vld [vmem:[#allocation7 + $0x8ac] sm:$0xff]
    %v618 = vld [vmem:[#allocation7 + $0x8b4] sm:$0xff]
    %v619 = vld [vmem:[#allocation7 + $0x8bc] sm:$0xf]
    %v620 = vld [vmem:[#allocation7 + $0x8c0] sm:$0xff]
    %v621 = vld [vmem:[#allocation7 + $0x8c8] sm:$0xff]
    %v622 = vld [vmem:[#allocation7 + $0x8d0] sm:$0xff]
    %v623 = vld [vmem:[#allocation7 + $0x8d8] sm:$0xf]
    %v624 = vld [vmem:[#allocation7 + $0x8dc] sm:$0xff]
    %v625 = vld [vmem:[#allocation7 + $0x8e4] sm:$0xff]
    %v626 = vld [vmem:[#allocation7 + $0x8ec] sm:$0xff]
    %v627 = vld [vmem:[#allocation7 + $0x8f4] sm:$0xf]
    %v628 = vld [vmem:[#allocation7 + $0x8f8] sm:$0xff]
    %v629 = vld [vmem:[#allocation7 + $0x900] sm:$0xff]
    %v630 = vld [vmem:[#allocation7 + $0x908] sm:$0xff]
    %v631 = vld [vmem:[#allocation7 + $0x910] sm:$0xf]
    %v632 = vld [vmem:[#allocation7 + $0x914] sm:$0xff]
    %v633 = vld [vmem:[#allocation7 + $0x91c] sm:$0xff]
    %v634 = vld [vmem:[#allocation7 + $0x924] sm:$0xff]
    %v635 = vld [vmem:[#allocation7 + $0x92c] sm:$0xf]
    %v636 = vld [vmem:[#allocation7 + $0x930] sm:$0xff]
    %v637 = vld [vmem:[#allocation7 + $0x938] sm:$0xff]
    %v638 = vld [vmem:[#allocation7 + $0x940] sm:$0xff]
    %v639 = vld [vmem:[#allocation7 + $0x948] sm:$0xf]
    %v640 = vld [vmem:[#allocation7 + $0x94c] sm:$0xff]
    %v641 = vld [vmem:[#allocation7 + $0x954] sm:$0xff]
    %v642 = vld [vmem:[#allocation7 + $0x95c] sm:$0xff]
    %v643 = vld [vmem:[#allocation7 + $0x964] sm:$0xf]
    %v644 = vld [vmem:[#allocation7 + $0x968] sm:$0xff]
    %v645 = vld [vmem:[#allocation7 + $0x970] sm:$0xff]
    %v646 = vld [vmem:[#allocation7 + $0x978] sm:$0xff]
    %v647 = vld [vmem:[#allocation7 + $0x980] sm:$0xf]
    %v648 = vld [vmem:[#allocation7 + $0x984] sm:$0xff]
    %v649 = vld [vmem:[#allocation7 + $0x98c] sm:$0xff]
    %v650 = vld [vmem:[#allocation7 + $0x994] sm:$0xff]
    %v651 = vld [vmem:[#allocation7 + $0x99c] sm:$0xf]
    %v652 = vld [vmem:[#allocation7 + $0x9a0] sm:$0xff]
    %v653 = vld [vmem:[#allocation7 + $0x9a8] sm:$0xff]
    %v654 = vld [vmem:[#allocation7 + $0x9b0] sm:$0xff]
    %v655 = vld [vmem:[#allocation7 + $0x9b8] sm:$0xf]
    %v656 = vld [vmem:[#allocation7 + $0x9bc] sm:$0xff]
    %v657 = vld [vmem:[#allocation7 + $0x9c4] sm:$0xff]
    %v658 = vld [vmem:[#allocation7 + $0x9cc] sm:$0xff]
    %v659 = vld [vmem:[#allocation7 + $0x9d4] sm:$0xf]
    %v660 = vld [vmem:[#allocation7 + $0x9d8] sm:$0xff]
    %v661 = vld [vmem:[#allocation7 + $0x9e0] sm:$0xff]
    %v662 = vld [vmem:[#allocation7 + $0x9e8] sm:$0xff]
    %v663 = vld [vmem:[#allocation7 + $0x9f0] sm:$0xf]
    %v664 = vld [vmem:[#allocation7 + $0x9f4] sm:$0xff]
    %v665 = vld [vmem:[#allocation7 + $0x9fc] sm:$0xff]
    %v666 = vld [vmem:[#allocation7 + $0xa04] sm:$0xff]
    %v667 = vld [vmem:[#allocation7 + $0xa0c] sm:$0xf]
    %v668 = vld [vmem:[#allocation7 + $0xa10] sm:$0xff]
    %v669 = vld [vmem:[#allocation7 + $0xa18] sm:$0xff]
    %v670 = vld [vmem:[#allocation7 + $0xa20] sm:$0xff]
    %v671 = vld [vmem:[#allocation7 + $0xa28] sm:$0xf]
    %v672 = vld [vmem:[#allocation7 + $0xa2c] sm:$0xff]
    %v673 = vld [vmem:[#allocation7 + $0xa34] sm:$0xff]
    %v674 = vld [vmem:[#allocation7 + $0xa3c] sm:$0xff]
    %v675 = vld [vmem:[#allocation7 + $0xa44] sm:$0xf]
    %v676 = vld [vmem:[#allocation7 + $0xa48] sm:$0xff]
    %v677 = vld [vmem:[#allocation7 + $0xa50] sm:$0xff]
    %v678 = vld [vmem:[#allocation7 + $0xa58] sm:$0xff]
    %v679 = vld [vmem:[#allocation7 + $0xa60] sm:$0xf]
    %v680 = vld [vmem:[#allocation7 + $0xa64] sm:$0xff]
    %v681 = vld [vmem:[#allocation7 + $0xa6c] sm:$0xff]
    %v682 = vld [vmem:[#allocation7 + $0xa74] sm:$0xff]
    %v683 = vld [vmem:[#allocation7 + $0xa7c] sm:$0xf]
    %v684 = vld [vmem:[#allocation7 + $0xa80] sm:$0xff]
    %v685 = vld [vmem:[#allocation7 + $0xa88] sm:$0xff]
    %v686 = vld [vmem:[#allocation7 + $0xa90] sm:$0xff]
    %v687 = vld [vmem:[#allocation7 + $0xa98] sm:$0xf]
    %v688 = vld [vmem:[#allocation7 + $0xa9c] sm:$0xff]
    %v689 = vld [vmem:[#allocation7 + $0xaa4] sm:$0xff]
    %v690 = vld [vmem:[#allocation7 + $0xaac] sm:$0xff]
    %v691 = vld [vmem:[#allocation7 + $0xab4] sm:$0xf]
    %v692 = vld [vmem:[#allocation7 + $0xab8] sm:$0xff]
    %v693 = vld [vmem:[#allocation7 + $0xac0] sm:$0xff]
    %v694 = vld [vmem:[#allocation7 + $0xac8] sm:$0xff]
    %v695 = vld [vmem:[#allocation7 + $0xad0] sm:$0xf]
    %v696 = vld [vmem:[#allocation7 + $0xad4] sm:$0xff]
    %v697 = vld [vmem:[#allocation7 + $0xadc] sm:$0xff]
    %v698 = vld [vmem:[#allocation7 + $0xae4] sm:$0xff]
    %v699 = vld [vmem:[#allocation7 + $0xaec] sm:$0xf]
    %v700 = vld [vmem:[#allocation7 + $0xaf0] sm:$0xff]
    %v701 = vld [vmem:[#allocation7 + $0xaf8] sm:$0xff]
    %v702 = vld [vmem:[#allocation7 + $0xb00] sm:$0xff]
    %v703 = vld [vmem:[#allocation7 + $0xb08] sm:$0xf]
    %v704 = vld [vmem:[#allocation7 + $0xb0c] sm:$0xff]
    %v705 = vld [vmem:[#allocation7 + $0xb14] sm:$0xff]
    %v706 = vld [vmem:[#allocation7 + $0xb1c] sm:$0xff]
    %v707 = vld [vmem:[#allocation7 + $0xb24] sm:$0xf]
    %v708 = vld [vmem:[#allocation7 + $0xb28] sm:$0xff]
    %v709 = vld [vmem:[#allocation7 + $0xb30] sm:$0xff]
    %v710 = vld [vmem:[#allocation7 + $0xb38] sm:$0xff]
    %v711 = vld [vmem:[#allocation7 + $0xb40] sm:$0xf]
    %v712 = vld [vmem:[#allocation7 + $0xb44] sm:$0xff]
    %v713 = vld [vmem:[#allocation7 + $0xb4c] sm:$0xff]
    %v714 = vld [vmem:[#allocation7 + $0xb54] sm:$0xff]
    %v715 = vld [vmem:[#allocation7 + $0xb5c] sm:$0xf]
    %v716 = vld [vmem:[#allocation7 + $0xb60] sm:$0xff]
    %v717 = vld [vmem:[#allocation7 + $0xb68] sm:$0xff]
    %v718 = vld [vmem:[#allocation7 + $0xb70] sm:$0xff]
    %v719 = vld [vmem:[#allocation7 + $0xb78] sm:$0xf]
    %v720 = vld [vmem:[#allocation7 + $0xb7c] sm:$0xff]
    %v721 = vld [vmem:[#allocation7 + $0xb84] sm:$0xff]
    %v722 = vld [vmem:[#allocation7 + $0xb8c] sm:$0xff]
    %v723 = vld [vmem:[#allocation7 + $0xb94] sm:$0xf]
    %v724 = vld [vmem:[#allocation7 + $0xb98] sm:$0xff]
    %v725 = vld [vmem:[#allocation7 + $0xba0] sm:$0xff]
    %v726 = vld [vmem:[#allocation7 + $0xba8] sm:$0xff]
    %v727 = vld [vmem:[#allocation7 + $0xbb0] sm:$0xf]
    %v728 = vld [vmem:[#allocation7 + $0xbb4] sm:$0xff]
    %v729 = vld [vmem:[#allocation7 + $0xbbc] sm:$0xff]
    %v730 = vld [vmem:[#allocation7 + $0xbc4] sm:$0xff]
    %v731 = vld [vmem:[#allocation7 + $0xbcc] sm:$0xf]
    %v732 = vld [vmem:[#allocation7 + $0xbd0] sm:$0xff]
    %v733 = vld [vmem:[#allocation7 + $0xbd8] sm:$0xff]
    %v734 = vld [vmem:[#allocation7 + $0xbe0] sm:$0xff]
    %v735 = vld [vmem:[#allocation7 + $0xbe8] sm:$0xf]
    %v736 = vld [vmem:[#allocation7 + $0xbec] sm:$0xff]
    %v737 = vld [vmem:[#allocation7 + $0xbf4] sm:$0xff]
    %v738 = vld [vmem:[#allocation7 + $0xbfc] sm:$0xff]
    %v739 = vld [vmem:[#allocation7 + $0xc04] sm:$0xf]
    %v740 = vld [vmem:[#allocation7 + $0xc08] sm:$0xff]
    %v741 = vld [vmem:[#allocation7 + $0xc10] sm:$0xff]
    %v742 = vld [vmem:[#allocation7 + $0xc18] sm:$0xff]
    %v743 = vld [vmem:[#allocation7 + $0xc20] sm:$0xf]
    %v744 = vld [vmem:[#allocation7 + $0xc24] sm:$0xff]
    %v745 = vld [vmem:[#allocation7 + $0xc2c] sm:$0xff]
    %v746 = vld [vmem:[#allocation7 + $0xc34] sm:$0xff]
    %v747 = vld [vmem:[#allocation7 + $0xc3c] sm:$0xf]
    %v748 = vld [vmem:[#allocation7 + $0xc40] sm:$0xff]
    %v749 = vld [vmem:[#allocation7 + $0xc48] sm:$0xff]
    %v750 = vld [vmem:[#allocation7 + $0xc50] sm:$0xff]
    %v751 = vld [vmem:[#allocation7 + $0xc58] sm:$0xf]
    %v752 = vld [vmem:[#allocation7 + $0xc5c] sm:$0xff]
    %v753 = vld [vmem:[#allocation7 + $0xc64] sm:$0xff]
    %v754 = vld [vmem:[#allocation7 + $0xc6c] sm:$0xff]
    %v755 = vld [vmem:[#allocation7 + $0xc74] sm:$0xf]
    %v756 = vld [vmem:[#allocation7 + $0xc78] sm:$0xff]
    %v757 = vld [vmem:[#allocation7 + $0xc80] sm:$0xff]
    %v758 = vld [vmem:[#allocation7 + $0xc88] sm:$0xff]
    %v759 = vld [vmem:[#allocation7 + $0xc90] sm:$0xf]
    %v760 = vld [vmem:[#allocation7 + $0xc94] sm:$0xff]
    %v761 = vld [vmem:[#allocation7 + $0xc9c] sm:$0xff]
    %v762 = vld [vmem:[#allocation7 + $0xca4] sm:$0xff]
    %v763 = vld [vmem:[#allocation7 + $0xcac] sm:$0xf]
    %v764 = vld [vmem:[#allocation7 + $0xcb0] sm:$0xff]
    %v765 = vld [vmem:[#allocation7 + $0xcb8] sm:$0xff]
    %v766 = vld [vmem:[#allocation7 + $0xcc0] sm:$0xff]
    %v767 = vld [vmem:[#allocation7 + $0xcc8] sm:$0xf]
    %v768 = vld [vmem:[#allocation7 + $0xccc] sm:$0xff]
    %v769 = vld [vmem:[#allocation7 + $0xcd4] sm:$0xff]
    %v770 = vld [vmem:[#allocation7 + $0xcdc] sm:$0xff]
    %v771 = vld [vmem:[#allocation7 + $0xce4] sm:$0xf]
    %v772 = vld [vmem:[#allocation7 + $0xce8] sm:$0xff]
    %v773 = vld [vmem:[#allocation7 + $0xcf0] sm:$0xff]
    %v774 = vld [vmem:[#allocation7 + $0xcf8] sm:$0xff]
    %v775 = vld [vmem:[#allocation7 + $0xd00] sm:$0xf]
    %v776 = vld [vmem:[#allocation7 + $0xd04] sm:$0xff]
    %v777 = vld [vmem:[#allocation7 + $0xd0c] sm:$0xff]
    %v778 = vld [vmem:[#allocation7 + $0xd14] sm:$0xff]
    %v779 = vld [vmem:[#allocation7 + $0xd1c] sm:$0xf]
    %v780 = vld [vmem:[#allocation7 + $0xd20] sm:$0xff]
    %v781 = vld [vmem:[#allocation7 + $0xd28] sm:$0xff]
    %v782 = vld [vmem:[#allocation7 + $0xd30] sm:$0xff]
    %v783 = vld [vmem:[#allocation7 + $0xd38] sm:$0xf]
    %v784 = vld [vmem:[#allocation7 + $0xd3c] sm:$0xff]
    %v785 = vld [vmem:[#allocation7 + $0xd44] sm:$0xff]
    %v786 = vld [vmem:[#allocation7 + $0xd4c] sm:$0xff]
    %v787 = vld [vmem:[#allocation7 + $0xd54] sm:$0xf]
    %v788 = vld [vmem:[#allocation7 + $0xd58] sm:$0xff]
    %v789 = vld [vmem:[#allocation7 + $0xd60] sm:$0xff]
    %v790 = vld [vmem:[#allocation7 + $0xd68] sm:$0xff]
    %v791 = vld [vmem:[#allocation7 + $0xd70] sm:$0xf]
    %v792 = vld [vmem:[#allocation7 + $0xd74] sm:$0xff]
    %v793 = vld [vmem:[#allocation7 + $0xd7c] sm:$0xff]
    %v794 = vld [vmem:[#allocation7 + $0xd84] sm:$0xff]
    %v795 = vld [vmem:[#allocation7 + $0xd8c] sm:$0xf]
    %v796 = vld [vmem:[#allocation7 + $0xd90] sm:$0xff]
    %v797 = vld [vmem:[#allocation7 + $0xd98] sm:$0xff]
    %v798 = vld [vmem:[#allocation7 + $0xda0] sm:$0xff]
    %v799 = vld [vmem:[#allocation7 + $0xda8] sm:$0xf]
    %v800 = vld [vmem:[#allocation7 + $0xdac] sm:$0xff]
    %v801 = vld [vmem:[#allocation7 + $0xdb4] sm:$0xff]
    %v802 = vld [vmem:[#allocation7 + $0xdbc] sm:$0xff]
    %v803 = vld [vmem:[#allocation7 + $0xdc4] sm:$0xf]
    %v804 = vld [vmem:[#allocation7 + $0xdc8] sm:$0xff]
    %v805 = vld [vmem:[#allocation7 + $0xdd0] sm:$0xff]
    %v806 = vld [vmem:[#allocation7 + $0xdd8] sm:$0xff]
    %v807 = vld [vmem:[#allocation7 + $0xde0] sm:$0xf]
    %v808 = vld [vmem:[#allocation7 + $0xde4] sm:$0xff]
    %v809 = vld [vmem:[#allocation7 + $0xdec] sm:$0xff]
    %v810 = vld [vmem:[#allocation7 + $0xdf4] sm:$0xff]
    %v811 = vld [vmem:[#allocation7 + $0xdfc] sm:$0xf]
    %v812 = vld [vmem:[#allocation8] sm:$0xff]
    %v814 = vlaneseq
    %v815 = vshrl.u32 %v814, 7
    %v816 = vsub.s32 0, %v815
    %v817 = vrot.slane %v812, %v816
    %v818 = vlaneseq
    %v819 = vshrl.u32 %v818, 7
    %v820 = vsub.s32 1, %v819
    %v821 = vrot.slane %v812, %v820
    %v822 = vlaneseq
    %v823 = vshrl.u32 %v822, 7
    %v824 = vsub.s32 2, %v823
    %v825 = vrot.slane %v812, %v824
    %v826 = vlaneseq
    %v827 = vshrl.u32 %v826, 7
    %v828 = vsub.s32 3, %v827
    %v829 = vrot.slane %v812, %v828
    %v830 = vlaneseq
    %v831 = vshrl.u32 %v830, 7
    %v832 = vsub.s32 4, %v831
    %v833 = vrot.slane %v812, %v832
    %v834 = vlaneseq
    %v835 = vshrl.u32 %v834, 7
    %v836 = vsub.s32 5, %v835
    %v837 = vrot.slane %v812, %v836
    %v838 = vlaneseq
    %v839 = vshrl.u32 %v838, 7
    %v840 = vsub.s32 6, %v839
    %v841 = vrot.slane %v812, %v840
    %v857 = vunpack.c.l.b16 %v292
    %v858 = vunpack.c.h.b16 %v292
    %v859 = vunpack.c.l.b16 %v293
    %v860 = vunpack.c.h.b16 %v293
    %v861 = vunpack.c.l.b16 %v294
    %v862 = vunpack.c.h.b16 %v294
    %v863 = vunpack.c.l.b16 %v295
    %v864 = vunpack.c.h.b16 %v295
    %v865 = vunpack.c.l.b16 %v296
    %v866 = vunpack.c.h.b16 %v296
    %v867 = vunpack.c.l.b16 %v297
    %v868 = vunpack.c.h.b16 %v297
    %v869 = vunpack.c.l.b16 %v298
    %v870 = vunpack.c.h.b16 %v298
    %v871 = vunpack.c.l.b16 %v299
    %v872 = vunpack.c.h.b16 %v299
    %v873 = vpack.c.b16 %v865, %v857
    %v874 = vpack.c.b16 %v866, %v858
    %v875 = vpack.c.b16 %v867, %v859
    %v876 = vpack.c.b16 %v868, %v860
    %v877 = vpack.c.b16 %v869, %v861
    %v878 = vpack.c.b16 %v870, %v862
    %v879 = vpack.c.b16 %v871, %v863
    %v880 = vpack.c.b16 %v872, %v864
    %v1401 = vunpack.c.l.b16 %v300
    %v1402 = vunpack.c.h.b16 %v300
    %v1403 = vunpack.c.l.b16 %v301
    %v1404 = vunpack.c.h.b16 %v301
    %v1405 = vunpack.c.l.b16 %v302
    %v1406 = vunpack.c.h.b16 %v302
    %v1407 = vunpack.c.l.b16 %v303
    %v1408 = vunpack.c.l.b16 %v304
    %v1409 = vunpack.c.h.b16 %v304
    %v1410 = vunpack.c.l.b16 %v305
    %v1411 = vunpack.c.h.b16 %v305
    %v1412 = vunpack.c.l.b16 %v306
    %v1413 = vunpack.c.h.b16 %v306
    %v1414 = vunpack.c.l.b16 %v307
    %v1415 = vunpack.c.l.b16 %v308
    %v1416 = vunpack.c.h.b16 %v308
    %v1417 = vunpack.c.l.b16 %v309
    %v1418 = vunpack.c.h.b16 %v309
    %v1419 = vunpack.c.l.b16 %v310
    %v1420 = vunpack.c.h.b16 %v310
    %v1421 = vunpack.c.l.b16 %v311
    %v1422 = vunpack.c.l.b16 %v312
    %v1423 = vunpack.c.h.b16 %v312
    %v1424 = vunpack.c.l.b16 %v313
    %v1425 = vunpack.c.h.b16 %v313
    %v1426 = vunpack.c.l.b16 %v314
    %v1427 = vunpack.c.h.b16 %v314
    %v1428 = vunpack.c.l.b16 %v315
    %v1429 = vunpack.c.l.b16 %v316
    %v1430 = vunpack.c.h.b16 %v316
    %v1431 = vunpack.c.l.b16 %v317
    %v1432 = vunpack.c.h.b16 %v317
    %v1433 = vunpack.c.l.b16 %v318
    %v1434 = vunpack.c.h.b16 %v318
    %v1435 = vunpack.c.l.b16 %v319
    %v1436 = vunpack.c.l.b16 %v320
    %v1437 = vunpack.c.h.b16 %v320
    %v1438 = vunpack.c.l.b16 %v321
    %v1439 = vunpack.c.h.b16 %v321
    %v1440 = vunpack.c.l.b16 %v322
    %v1441 = vunpack.c.h.b16 %v322
    %v1442 = vunpack.c.l.b16 %v323
    %v1443 = vunpack.c.l.b16 %v324
    %v1444 = vunpack.c.h.b16 %v324
    %v1445 = vunpack.c.l.b16 %v325
    %v1446 = vunpack.c.h.b16 %v325
    %v1447 = vunpack.c.l.b16 %v326
    %v1448 = vunpack.c.h.b16 %v326
    %v1449 = vunpack.c.l.b16 %v327
    %v1450 = vunpack.c.l.b16 %v328
    %v1451 = vunpack.c.h.b16 %v328
    %v1452 = vunpack.c.l.b16 %v329
    %v1453 = vunpack.c.h.b16 %v329
    %v1454 = vunpack.c.l.b16 %v330
    %v1455 = vunpack.c.h.b16 %v330
    %v1456 = vunpack.c.l.b16 %v331
    %v1457 = vunpack.c.l.b16 %v332
    %v1458 = vunpack.c.h.b16 %v332
    %v1459 = vunpack.c.l.b16 %v333
    %v1460 = vunpack.c.h.b16 %v333
    %v1461 = vunpack.c.l.b16 %v334
    %v1462 = vunpack.c.h.b16 %v334
    %v1463 = vunpack.c.l.b16 %v335
    %v1464 = vunpack.c.l.b16 %v336
    %v1465 = vunpack.c.h.b16 %v336
    %v1466 = vunpack.c.l.b16 %v337
    %v1467 = vunpack.c.h.b16 %v337
    %v1468 = vunpack.c.l.b16 %v338
    %v1469 = vunpack.c.h.b16 %v338
    %v1470 = vunpack.c.l.b16 %v339
    %v1471 = vunpack.c.l.b16 %v340
    %v1472 = vunpack.c.h.b16 %v340
    %v1473 = vunpack.c.l.b16 %v341
    %v1474 = vunpack.c.h.b16 %v341
    %v1475 = vunpack.c.l.b16 %v342
    %v1476 = vunpack.c.h.b16 %v342
    %v1477 = vunpack.c.l.b16 %v343
    %v1478 = vunpack.c.l.b16 %v344
    %v1479 = vunpack.c.h.b16 %v344
    %v1480 = vunpack.c.l.b16 %v345
    %v1481 = vunpack.c.h.b16 %v345
    %v1482 = vunpack.c.l.b16 %v346
    %v1483 = vunpack.c.h.b16 %v346
    %v1484 = vunpack.c.l.b16 %v347
    %v1485 = vunpack.c.l.b16 %v348
    %v1486 = vunpack.c.h.b16 %v348
    %v1487 = vunpack.c.l.b16 %v349
    %v1488 = vunpack.c.h.b16 %v349
    %v1489 = vunpack.c.l.b16 %v350
    %v1490 = vunpack.c.h.b16 %v350
    %v1491 = vunpack.c.l.b16 %v351
    %v1492 = vunpack.c.l.b16 %v352
    %v1493 = vunpack.c.h.b16 %v352
    %v1494 = vunpack.c.l.b16 %v353
    %v1495 = vunpack.c.h.b16 %v353
    %v1496 = vunpack.c.l.b16 %v354
    %v1497 = vunpack.c.h.b16 %v354
    %v1498 = vunpack.c.l.b16 %v355
    %v1499 = vunpack.c.l.b16 %v356
    %v1500 = vunpack.c.h.b16 %v356
    %v1501 = vunpack.c.l.b16 %v357
    %v1502 = vunpack.c.h.b16 %v357
    %v1503 = vunpack.c.l.b16 %v358
    %v1504 = vunpack.c.h.b16 %v358
    %v1505 = vunpack.c.l.b16 %v359
    %v1506 = vunpack.c.l.b16 %v360
    %v1507 = vunpack.c.h.b16 %v360
    %v1508 = vunpack.c.l.b16 %v361
    %v1509 = vunpack.c.h.b16 %v361
    %v1510 = vunpack.c.l.b16 %v362
    %v1511 = vunpack.c.h.b16 %v362
    %v1512 = vunpack.c.l.b16 %v363
    %v1513 = vunpack.c.l.b16 %v364
    %v1514 = vunpack.c.h.b16 %v364
    %v1515 = vunpack.c.l.b16 %v365
    %v1516 = vunpack.c.h.b16 %v365
    %v1517 = vunpack.c.l.b16 %v366
    %v1518 = vunpack.c.h.b16 %v366
    %v1519 = vunpack.c.l.b16 %v367
    %v1520 = vunpack.c.l.b16 %v368
    %v1521 = vunpack.c.h.b16 %v368
    %v1522 = vunpack.c.l.b16 %v369
    %v1523 = vunpack.c.h.b16 %v369
    %v1524 = vunpack.c.l.b16 %v370
    %v1525 = vunpack.c.h.b16 %v370
    %v1526 = vunpack.c.l.b16 %v371
    %v1527 = vunpack.c.l.b16 %v372
    %v1528 = vunpack.c.h.b16 %v372
    %v1529 = vunpack.c.l.b16 %v373
    %v1530 = vunpack.c.h.b16 %v373
    %v1531 = vunpack.c.l.b16 %v374
    %v1532 = vunpack.c.h.b16 %v374
    %v1533 = vunpack.c.l.b16 %v375
    %v1534 = vunpack.c.l.b16 %v376
    %v1535 = vunpack.c.h.b16 %v376
    %v1536 = vunpack.c.l.b16 %v377
    %v1537 = vunpack.c.h.b16 %v377
    %v1538 = vunpack.c.l.b16 %v378
    %v1539 = vunpack.c.h.b16 %v378
    %v1540 = vunpack.c.l.b16 %v379
    %v1541 = vunpack.c.l.b16 %v380
    %v1542 = vunpack.c.h.b16 %v380
    %v1543 = vunpack.c.l.b16 %v381
    %v1544 = vunpack.c.h.b16 %v381
    %v1545 = vunpack.c.l.b16 %v382
    %v1546 = vunpack.c.h.b16 %v382
    %v1547 = vunpack.c.l.b16 %v383
    %v1548 = vunpack.c.l.b16 %v384
    %v1549 = vunpack.c.h.b16 %v384
    %v1550 = vunpack.c.l.b16 %v385
    %v1551 = vunpack.c.h.b16 %v385
    %v1552 = vunpack.c.l.b16 %v386
    %v1553 = vunpack.c.h.b16 %v386
    %v1554 = vunpack.c.l.b16 %v387
    %v1555 = vunpack.c.l.b16 %v388
    %v1556 = vunpack.c.h.b16 %v388
    %v1557 = vunpack.c.l.b16 %v389
    %v1558 = vunpack.c.h.b16 %v389
    %v1559 = vunpack.c.l.b16 %v390
    %v1560 = vunpack.c.h.b16 %v390
    %v1561 = vunpack.c.l.b16 %v391
    %v1562 = vunpack.c.l.b16 %v392
    %v1563 = vunpack.c.h.b16 %v392
    %v1564 = vunpack.c.l.b16 %v393
    %v1565 = vunpack.c.h.b16 %v393
    %v1566 = vunpack.c.l.b16 %v394
    %v1567 = vunpack.c.h.b16 %v394
    %v1568 = vunpack.c.l.b16 %v395
    %v1569 = vunpack.c.l.b16 %v396
    %v1570 = vunpack.c.h.b16 %v396
    %v1571 = vunpack.c.l.b16 %v397
    %v1572 = vunpack.c.h.b16 %v397
    %v1573 = vunpack.c.l.b16 %v398
    %v1574 = vunpack.c.h.b16 %v398
    %v1575 = vunpack.c.l.b16 %v399
    %v1576 = vunpack.c.l.b16 %v400
    %v1577 = vunpack.c.h.b16 %v400
    %v1578 = vunpack.c.l.b16 %v401
    %v1579 = vunpack.c.h.b16 %v401
    %v1580 = vunpack.c.l.b16 %v402
    %v1581 = vunpack.c.h.b16 %v402
    %v1582 = vunpack.c.l.b16 %v403
    %v1583 = vunpack.c.l.b16 %v404
    %v1584 = vunpack.c.h.b16 %v404
    %v1585 = vunpack.c.l.b16 %v405
    %v1586 = vunpack.c.h.b16 %v405
    %v1587 = vunpack.c.l.b16 %v406
    %v1588 = vunpack.c.h.b16 %v406
    %v1589 = vunpack.c.l.b16 %v407
    %v1590 = vunpack.c.l.b16 %v408
    %v1591 = vunpack.c.h.b16 %v408
    %v1592 = vunpack.c.l.b16 %v409
    %v1593 = vunpack.c.h.b16 %v409
    %v1594 = vunpack.c.l.b16 %v410
    %v1595 = vunpack.c.h.b16 %v410
    %v1596 = vunpack.c.l.b16 %v411
    %v1597 = vunpack.c.l.b16 %v412
    %v1598 = vunpack.c.h.b16 %v412
    %v1599 = vunpack.c.l.b16 %v413
    %v1600 = vunpack.c.h.b16 %v413
    %v1601 = vunpack.c.l.b16 %v414
    %v1602 = vunpack.c.h.b16 %v414
    %v1603 = vunpack.c.l.b16 %v415
    %v1604 = vunpack.c.l.b16 %v416
    %v1605 = vunpack.c.h.b16 %v416
    %v1606 = vunpack.c.l.b16 %v417
    %v1607 = vunpack.c.h.b16 %v417
    %v1608 = vunpack.c.l.b16 %v418
    %v1609 = vunpack.c.h.b16 %v418
    %v1610 = vunpack.c.l.b16 %v419
    %v1611 = vunpack.c.l.b16 %v420
    %v1612 = vunpack.c.h.b16 %v420
    %v1613 = vunpack.c.l.b16 %v421
    %v1614 = vunpack.c.h.b16 %v421
    %v1615 = vunpack.c.l.b16 %v422
    %v1616 = vunpack.c.h.b16 %v422
    %v1617 = vunpack.c.l.b16 %v423
    %v1618 = vunpack.c.l.b16 %v424
    %v1619 = vunpack.c.h.b16 %v424
    %v1620 = vunpack.c.l.b16 %v425
    %v1621 = vunpack.c.h.b16 %v425
    %v1622 = vunpack.c.l.b16 %v426
    %v1623 = vunpack.c.h.b16 %v426
    %v1624 = vunpack.c.l.b16 %v427
    %v1625 = vunpack.c.l.b16 %v428
    %v1626 = vunpack.c.h.b16 %v428
    %v1627 = vunpack.c.l.b16 %v429
    %v1628 = vunpack.c.h.b16 %v429
    %v1629 = vunpack.c.l.b16 %v430
    %v1630 = vunpack.c.h.b16 %v430
    %v1631 = vunpack.c.l.b16 %v431
    %v1632 = vunpack.c.l.b16 %v432
    %v1633 = vunpack.c.h.b16 %v432
    %v1634 = vunpack.c.l.b16 %v433
    %v1635 = vunpack.c.h.b16 %v433
    %v1636 = vunpack.c.l.b16 %v434
    %v1637 = vunpack.c.h.b16 %v434
    %v1638 = vunpack.c.l.b16 %v435
    %v1639 = vunpack.c.l.b16 %v436
    %v1640 = vunpack.c.h.b16 %v436
    %v1641 = vunpack.c.l.b16 %v437
    %v1642 = vunpack.c.h.b16 %v437
    %v1643 = vunpack.c.l.b16 %v438
    %v1644 = vunpack.c.h.b16 %v438
    %v1645 = vunpack.c.l.b16 %v439
    %v1646 = vunpack.c.l.b16 %v440
    %v1647 = vunpack.c.h.b16 %v440
    %v1648 = vunpack.c.l.b16 %v441
    %v1649 = vunpack.c.h.b16 %v441
    %v1650 = vunpack.c.l.b16 %v442
    %v1651 = vunpack.c.h.b16 %v442
    %v1652 = vunpack.c.l.b16 %v443
    %v1653 = vunpack.c.l.b16 %v444
    %v1654 = vunpack.c.h.b16 %v444
    %v1655 = vunpack.c.l.b16 %v445
    %v1656 = vunpack.c.h.b16 %v445
    %v1657 = vunpack.c.l.b16 %v446
    %v1658 = vunpack.c.h.b16 %v446
    %v1659 = vunpack.c.l.b16 %v447
    %v1660 = vunpack.c.l.b16 %v448
    %v1661 = vunpack.c.h.b16 %v448
    %v1662 = vunpack.c.l.b16 %v449
    %v1663 = vunpack.c.h.b16 %v449
    %v1664 = vunpack.c.l.b16 %v450
    %v1665 = vunpack.c.h.b16 %v450
    %v1666 = vunpack.c.l.b16 %v451
    %v1667 = vunpack.c.l.b16 %v452
    %v1668 = vunpack.c.h.b16 %v452
    %v1669 = vunpack.c.l.b16 %v453
    %v1670 = vunpack.c.h.b16 %v453
    %v1671 = vunpack.c.l.b16 %v454
    %v1672 = vunpack.c.h.b16 %v454
    %v1673 = vunpack.c.l.b16 %v455
    %v1674 = vunpack.c.l.b16 %v456
    %v1675 = vunpack.c.h.b16 %v456
    %v1676 = vunpack.c.l.b16 %v457
    %v1677 = vunpack.c.h.b16 %v457
    %v1678 = vunpack.c.l.b16 %v458
    %v1679 = vunpack.c.h.b16 %v458
    %v1680 = vunpack.c.l.b16 %v459
    %v1681 = vunpack.c.l.b16 %v460
    %v1682 = vunpack.c.h.b16 %v460
    %v1683 = vunpack.c.l.b16 %v461
    %v1684 = vunpack.c.h.b16 %v461
    %v1685 = vunpack.c.l.b16 %v462
    %v1686 = vunpack.c.h.b16 %v462
    %v1687 = vunpack.c.l.b16 %v463
    %v1688 = vunpack.c.l.b16 %v464
    %v1689 = vunpack.c.h.b16 %v464
    %v1690 = vunpack.c.l.b16 %v465
    %v1691 = vunpack.c.h.b16 %v465
    %v1692 = vunpack.c.l.b16 %v466
    %v1693 = vunpack.c.h.b16 %v466
    %v1694 = vunpack.c.l.b16 %v467
    %v1695 = vunpack.c.l.b16 %v468
    %v1696 = vunpack.c.h.b16 %v468
    %v1697 = vunpack.c.l.b16 %v469
    %v1698 = vunpack.c.h.b16 %v469
    %v1699 = vunpack.c.l.b16 %v470
    %v1700 = vunpack.c.h.b16 %v470
    %v1701 = vunpack.c.l.b16 %v471
    %v1702 = vunpack.c.l.b16 %v472
    %v1703 = vunpack.c.h.b16 %v472
    %v1704 = vunpack.c.l.b16 %v473
    %v1705 = vunpack.c.h.b16 %v473
    %v1706 = vunpack.c.l.b16 %v474
    %v1707 = vunpack.c.h.b16 %v474
    %v1708 = vunpack.c.l.b16 %v475
    %v1709 = vunpack.c.l.b16 %v476
    %v1710 = vunpack.c.h.b16 %v476
    %v1711 = vunpack.c.l.b16 %v477
    %v1712 = vunpack.c.h.b16 %v477
    %v1713 = vunpack.c.l.b16 %v478
    %v1714 = vunpack.c.h.b16 %v478
    %v1715 = vunpack.c.l.b16 %v479
    %v1716 = vunpack.c.l.b16 %v480
    %v1717 = vunpack.c.h.b16 %v480
    %v1718 = vunpack.c.l.b16 %v481
    %v1719 = vunpack.c.h.b16 %v481
    %v1720 = vunpack.c.l.b16 %v482
    %v1721 = vunpack.c.h.b16 %v482
    %v1722 = vunpack.c.l.b16 %v483
    %v1723 = vunpack.c.l.b16 %v484
    %v1724 = vunpack.c.h.b16 %v484
    %v1725 = vunpack.c.l.b16 %v485
    %v1726 = vunpack.c.h.b16 %v485
    %v1727 = vunpack.c.l.b16 %v486
    %v1728 = vunpack.c.h.b16 %v486
    %v1729 = vunpack.c.l.b16 %v487
    %v1730 = vunpack.c.l.b16 %v488
    %v1731 = vunpack.c.h.b16 %v488
    %v1732 = vunpack.c.l.b16 %v489
    %v1733 = vunpack.c.h.b16 %v489
    %v1734 = vunpack.c.l.b16 %v490
    %v1735 = vunpack.c.h.b16 %v490
    %v1736 = vunpack.c.l.b16 %v491
    %v1737 = vunpack.c.l.b16 %v492
    %v1738 = vunpack.c.h.b16 %v492
    %v1739 = vunpack.c.l.b16 %v493
    %v1740 = vunpack.c.h.b16 %v493
    %v1741 = vunpack.c.l.b16 %v494
    %v1742 = vunpack.c.h.b16 %v494
    %v1743 = vunpack.c.l.b16 %v495
    %v1744 = vunpack.c.l.b16 %v496
    %v1745 = vunpack.c.h.b16 %v496
    %v1746 = vunpack.c.l.b16 %v497
    %v1747 = vunpack.c.h.b16 %v497
    %v1748 = vunpack.c.l.b16 %v498
    %v1749 = vunpack.c.h.b16 %v498
    %v1750 = vunpack.c.l.b16 %v499
    %v1751 = vunpack.c.l.b16 %v500
    %v1752 = vunpack.c.h.b16 %v500
    %v1753 = vunpack.c.l.b16 %v501
    %v1754 = vunpack.c.h.b16 %v501
    %v1755 = vunpack.c.l.b16 %v502
    %v1756 = vunpack.c.h.b16 %v502
    %v1757 = vunpack.c.l.b16 %v503
    %v1758 = vunpack.c.l.b16 %v504
    %v1759 = vunpack.c.h.b16 %v504
    %v1760 = vunpack.c.l.b16 %v505
    %v1761 = vunpack.c.h.b16 %v505
    %v1762 = vunpack.c.l.b16 %v506
    %v1763 = vunpack.c.h.b16 %v506
    %v1764 = vunpack.c.l.b16 %v507
    %v1765 = vunpack.c.l.b16 %v508
    %v1766 = vunpack.c.h.b16 %v508
    %v1767 = vunpack.c.l.b16 %v509
    %v1768 = vunpack.c.h.b16 %v509
    %v1769 = vunpack.c.l.b16 %v510
    %v1770 = vunpack.c.h.b16 %v510
    %v1771 = vunpack.c.l.b16 %v511
    %v1772 = vunpack.c.l.b16 %v512
    %v1773 = vunpack.c.h.b16 %v512
    %v1774 = vunpack.c.l.b16 %v513
    %v1775 = vunpack.c.h.b16 %v513
    %v1776 = vunpack.c.l.b16 %v514
    %v1777 = vunpack.c.h.b16 %v514
    %v1778 = vunpack.c.l.b16 %v515
    %v1779 = vunpack.c.l.b16 %v516
    %v1780 = vunpack.c.h.b16 %v516
    %v1781 = vunpack.c.l.b16 %v517
    %v1782 = vunpack.c.h.b16 %v517
    %v1783 = vunpack.c.l.b16 %v518
    %v1784 = vunpack.c.h.b16 %v518
    %v1785 = vunpack.c.l.b16 %v519
    %v1786 = vunpack.c.l.b16 %v520
    %v1787 = vunpack.c.h.b16 %v520
    %v1788 = vunpack.c.l.b16 %v521
    %v1789 = vunpack.c.h.b16 %v521
    %v1790 = vunpack.c.l.b16 %v522
    %v1791 = vunpack.c.h.b16 %v522
    %v1792 = vunpack.c.l.b16 %v523
    %v1793 = vunpack.c.l.b16 %v524
    %v1794 = vunpack.c.h.b16 %v524
    %v1795 = vunpack.c.l.b16 %v525
    %v1796 = vunpack.c.h.b16 %v525
    %v1797 = vunpack.c.l.b16 %v526
    %v1798 = vunpack.c.h.b16 %v526
    %v1799 = vunpack.c.l.b16 %v527
    %v1800 = vunpack.c.l.b16 %v528
    %v1801 = vunpack.c.h.b16 %v528
    %v1802 = vunpack.c.l.b16 %v529
    %v1803 = vunpack.c.h.b16 %v529
    %v1804 = vunpack.c.l.b16 %v530
    %v1805 = vunpack.c.h.b16 %v530
    %v1806 = vunpack.c.l.b16 %v531
    %v1807 = vunpack.c.l.b16 %v532
    %v1808 = vunpack.c.h.b16 %v532
    %v1809 = vunpack.c.l.b16 %v533
    %v1810 = vunpack.c.h.b16 %v533
    %v1811 = vunpack.c.l.b16 %v534
    %v1812 = vunpack.c.h.b16 %v534
    %v1813 = vunpack.c.l.b16 %v535
    %v1814 = vunpack.c.l.b16 %v536
    %v1815 = vunpack.c.h.b16 %v536
    %v1816 = vunpack.c.l.b16 %v537
    %v1817 = vunpack.c.h.b16 %v537
    %v1818 = vunpack.c.l.b16 %v538
    %v1819 = vunpack.c.h.b16 %v538
    %v1820 = vunpack.c.l.b16 %v539
    %v1821 = vunpack.c.l.b16 %v540
    %v1822 = vunpack.c.h.b16 %v540
    %v1823 = vunpack.c.l.b16 %v541
    %v1824 = vunpack.c.h.b16 %v541
    %v1825 = vunpack.c.l.b16 %v542
    %v1826 = vunpack.c.h.b16 %v542
    %v1827 = vunpack.c.l.b16 %v543
    %v1828 = vunpack.c.l.b16 %v544
    %v1829 = vunpack.c.h.b16 %v544
    %v1830 = vunpack.c.l.b16 %v545
    %v1831 = vunpack.c.h.b16 %v545
    %v1832 = vunpack.c.l.b16 %v546
    %v1833 = vunpack.c.h.b16 %v546
    %v1834 = vunpack.c.l.b16 %v547
    %v1835 = vunpack.c.l.b16 %v548
    %v1836 = vunpack.c.h.b16 %v548
    %v1837 = vunpack.c.l.b16 %v549
    %v1838 = vunpack.c.h.b16 %v549
    %v1839 = vunpack.c.l.b16 %v550
    %v1840 = vunpack.c.h.b16 %v550
    %v1841 = vunpack.c.l.b16 %v551
    %v1842 = vunpack.c.l.b16 %v552
    %v1843 = vunpack.c.h.b16 %v552
    %v1844 = vunpack.c.l.b16 %v553
    %v1845 = vunpack.c.h.b16 %v553
    %v1846 = vunpack.c.l.b16 %v554
    %v1847 = vunpack.c.h.b16 %v554
    %v1848 = vunpack.c.l.b16 %v555
    %v1849 = vunpack.c.l.b16 %v556
    %v1850 = vunpack.c.h.b16 %v556
    %v1851 = vunpack.c.l.b16 %v557
    %v1852 = vunpack.c.h.b16 %v557
    %v1853 = vunpack.c.l.b16 %v558
    %v1854 = vunpack.c.h.b16 %v558
    %v1855 = vunpack.c.l.b16 %v559
    %v1856 = vunpack.c.l.b16 %v560
    %v1857 = vunpack.c.h.b16 %v560
    %v1858 = vunpack.c.l.b16 %v561
    %v1859 = vunpack.c.h.b16 %v561
    %v1860 = vunpack.c.l.b16 %v562
    %v1861 = vunpack.c.h.b16 %v562
    %v1862 = vunpack.c.l.b16 %v563
    %v1863 = vunpack.c.l.b16 %v564
    %v1864 = vunpack.c.h.b16 %v564
    %v1865 = vunpack.c.l.b16 %v565
    %v1866 = vunpack.c.h.b16 %v565
    %v1867 = vunpack.c.l.b16 %v566
    %v1868 = vunpack.c.h.b16 %v566
    %v1869 = vunpack.c.l.b16 %v567
    %v1870 = vunpack.c.l.b16 %v568
    %v1871 = vunpack.c.h.b16 %v568
    %v1872 = vunpack.c.l.b16 %v569
    %v1873 = vunpack.c.h.b16 %v569
    %v1874 = vunpack.c.l.b16 %v570
    %v1875 = vunpack.c.h.b16 %v570
    %v1876 = vunpack.c.l.b16 %v571
    %v1877 = vunpack.c.l.b16 %v572
    %v1878 = vunpack.c.h.b16 %v572
    %v1879 = vunpack.c.l.b16 %v573
    %v1880 = vunpack.c.h.b16 %v573
    %v1881 = vunpack.c.l.b16 %v574
    %v1882 = vunpack.c.h.b16 %v574
    %v1883 = vunpack.c.l.b16 %v575
    %v1884 = vunpack.c.l.b16 %v576
    %v1885 = vunpack.c.h.b16 %v576
    %v1886 = vunpack.c.l.b16 %v577
    %v1887 = vunpack.c.h.b16 %v577
    %v1888 = vunpack.c.l.b16 %v578
    %v1889 = vunpack.c.h.b16 %v578
    %v1890 = vunpack.c.l.b16 %v579
    %v1891 = vunpack.c.l.b16 %v580
    %v1892 = vunpack.c.h.b16 %v580
    %v1893 = vunpack.c.l.b16 %v581
    %v1894 = vunpack.c.h.b16 %v581
    %v1895 = vunpack.c.l.b16 %v582
    %v1896 = vunpack.c.h.b16 %v582
    %v1897 = vunpack.c.l.b16 %v583
    %v1898 = vunpack.c.l.b16 %v584
    %v1899 = vunpack.c.h.b16 %v584
    %v1900 = vunpack.c.l.b16 %v585
    %v1901 = vunpack.c.h.b16 %v585
    %v1902 = vunpack.c.l.b16 %v586
    %v1903 = vunpack.c.h.b16 %v586
    %v1904 = vunpack.c.l.b16 %v587
    %v1905 = vunpack.c.l.b16 %v588
    %v1906 = vunpack.c.h.b16 %v588
    %v1907 = vunpack.c.l.b16 %v589
    %v1908 = vunpack.c.h.b16 %v589
    %v1909 = vunpack.c.l.b16 %v590
    %v1910 = vunpack.c.h.b16 %v590
    %v1911 = vunpack.c.l.b16 %v591
    %v1912 = vunpack.c.l.b16 %v592
    %v1913 = vunpack.c.h.b16 %v592
    %v1914 = vunpack.c.l.b16 %v593
    %v1915 = vunpack.c.h.b16 %v593
    %v1916 = vunpack.c.l.b16 %v594
    %v1917 = vunpack.c.h.b16 %v594
    %v1918 = vunpack.c.l.b16 %v595
    %v1919 = vunpack.c.l.b16 %v596
    %v1920 = vunpack.c.h.b16 %v596
    %v1921 = vunpack.c.l.b16 %v597
    %v1922 = vunpack.c.h.b16 %v597
    %v1923 = vunpack.c.l.b16 %v598
    %v1924 = vunpack.c.h.b16 %v598
    %v1925 = vunpack.c.l.b16 %v599
    %v1926 = vunpack.c.l.b16 %v600
    %v1927 = vunpack.c.h.b16 %v600
    %v1928 = vunpack.c.l.b16 %v601
    %v1929 = vunpack.c.h.b16 %v601
    %v1930 = vunpack.c.l.b16 %v602
    %v1931 = vunpack.c.h.b16 %v602
    %v1932 = vunpack.c.l.b16 %v603
    %v1933 = vunpack.c.l.b16 %v604
    %v1934 = vunpack.c.h.b16 %v604
    %v1935 = vunpack.c.l.b16 %v605
    %v1936 = vunpack.c.h.b16 %v605
    %v1937 = vunpack.c.l.b16 %v606
    %v1938 = vunpack.c.h.b16 %v606
    %v1939 = vunpack.c.l.b16 %v607
    %v1940 = vunpack.c.l.b16 %v608
    %v1941 = vunpack.c.h.b16 %v608
    %v1942 = vunpack.c.l.b16 %v609
    %v1943 = vunpack.c.h.b16 %v609
    %v1944 = vunpack.c.l.b16 %v610
    %v1945 = vunpack.c.h.b16 %v610
    %v1946 = vunpack.c.l.b16 %v611
    %v1947 = vunpack.c.l.b16 %v612
    %v1948 = vunpack.c.h.b16 %v612
    %v1949 = vunpack.c.l.b16 %v613
    %v1950 = vunpack.c.h.b16 %v613
    %v1951 = vunpack.c.l.b16 %v614
    %v1952 = vunpack.c.h.b16 %v614
    %v1953 = vunpack.c.l.b16 %v615
    %v1954 = vunpack.c.l.b16 %v616
    %v1955 = vunpack.c.h.b16 %v616
    %v1956 = vunpack.c.l.b16 %v617
    %v1957 = vunpack.c.h.b16 %v617
    %v1958 = vunpack.c.l.b16 %v618
    %v1959 = vunpack.c.h.b16 %v618
    %v1960 = vunpack.c.l.b16 %v619
    %v1961 = vunpack.c.l.b16 %v620
    %v1962 = vunpack.c.h.b16 %v620
    %v1963 = vunpack.c.l.b16 %v621
    %v1964 = vunpack.c.h.b16 %v621
    %v1965 = vunpack.c.l.b16 %v622
    %v1966 = vunpack.c.h.b16 %v622
    %v1967 = vunpack.c.l.b16 %v623
    %v1968 = vunpack.c.l.b16 %v624
    %v1969 = vunpack.c.h.b16 %v624
    %v1970 = vunpack.c.l.b16 %v625
    %v1971 = vunpack.c.h.b16 %v625
    %v1972 = vunpack.c.l.b16 %v626
    %v1973 = vunpack.c.h.b16 %v626
    %v1974 = vunpack.c.l.b16 %v627
    %v1975 = vunpack.c.l.b16 %v628
    %v1976 = vunpack.c.h.b16 %v628
    %v1977 = vunpack.c.l.b16 %v629
    %v1978 = vunpack.c.h.b16 %v629
    %v1979 = vunpack.c.l.b16 %v630
    %v1980 = vunpack.c.h.b16 %v630
    %v1981 = vunpack.c.l.b16 %v631
    %v1982 = vunpack.c.l.b16 %v632
    %v1983 = vunpack.c.h.b16 %v632
    %v1984 = vunpack.c.l.b16 %v633
    %v1985 = vunpack.c.h.b16 %v633
    %v1986 = vunpack.c.l.b16 %v634
    %v1987 = vunpack.c.h.b16 %v634
    %v1988 = vunpack.c.l.b16 %v635
    %v1989 = vunpack.c.l.b16 %v636
    %v1990 = vunpack.c.h.b16 %v636
    %v1991 = vunpack.c.l.b16 %v637
    %v1992 = vunpack.c.h.b16 %v637
    %v1993 = vunpack.c.l.b16 %v638
    %v1994 = vunpack.c.h.b16 %v638
    %v1995 = vunpack.c.l.b16 %v639
    %v1996 = vunpack.c.l.b16 %v640
    %v1997 = vunpack.c.h.b16 %v640
    %v1998 = vunpack.c.l.b16 %v641
    %v1999 = vunpack.c.h.b16 %v641
    %v2000 = vunpack.c.l.b16 %v642
    %v2001 = vunpack.c.h.b16 %v642
    %v2002 = vunpack.c.l.b16 %v643
    %v2003 = vunpack.c.l.b16 %v644
    %v2004 = vunpack.c.h.b16 %v644
    %v2005 = vunpack.c.l.b16 %v645
    %v2006 = vunpack.c.h.b16 %v645
    %v2007 = vunpack.c.l.b16 %v646
    %v2008 = vunpack.c.h.b16 %v646
    %v2009 = vunpack.c.l.b16 %v647
    %v2010 = vunpack.c.l.b16 %v648
    %v2011 = vunpack.c.h.b16 %v648
    %v2012 = vunpack.c.l.b16 %v649
    %v2013 = vunpack.c.h.b16 %v649
    %v2014 = vunpack.c.l.b16 %v650
    %v2015 = vunpack.c.h.b16 %v650
    %v2016 = vunpack.c.l.b16 %v651
    %v2017 = vunpack.c.l.b16 %v652
    %v2018 = vunpack.c.h.b16 %v652
    %v2019 = vunpack.c.l.b16 %v653
    %v2020 = vunpack.c.h.b16 %v653
    %v2021 = vunpack.c.l.b16 %v654
    %v2022 = vunpack.c.h.b16 %v654
    %v2023 = vunpack.c.l.b16 %v655
    %v2024 = vunpack.c.l.b16 %v656
    %v2025 = vunpack.c.h.b16 %v656
    %v2026 = vunpack.c.l.b16 %v657
    %v2027 = vunpack.c.h.b16 %v657
    %v2028 = vunpack.c.l.b16 %v658
    %v2029 = vunpack.c.h.b16 %v658
    %v2030 = vunpack.c.l.b16 %v659
    %v2031 = vunpack.c.l.b16 %v660
    %v2032 = vunpack.c.h.b16 %v660
    %v2033 = vunpack.c.l.b16 %v661
    %v2034 = vunpack.c.h.b16 %v661
    %v2035 = vunpack.c.l.b16 %v662
    %v2036 = vunpack.c.h.b16 %v662
    %v2037 = vunpack.c.l.b16 %v663
    %v2038 = vunpack.c.l.b16 %v664
    %v2039 = vunpack.c.h.b16 %v664
    %v2040 = vunpack.c.l.b16 %v665
    %v2041 = vunpack.c.h.b16 %v665
    %v2042 = vunpack.c.l.b16 %v666
    %v2043 = vunpack.c.h.b16 %v666
    %v2044 = vunpack.c.l.b16 %v667
    %v2045 = vunpack.c.l.b16 %v668
    %v2046 = vunpack.c.h.b16 %v668
    %v2047 = vunpack.c.l.b16 %v669
    %v2048 = vunpack.c.h.b16 %v669
    %v2049 = vunpack.c.l.b16 %v670
    %v2050 = vunpack.c.h.b16 %v670
    %v2051 = vunpack.c.l.b16 %v671
    %v2052 = vunpack.c.l.b16 %v672
    %v2053 = vunpack.c.h.b16 %v672
    %v2054 = vunpack.c.l.b16 %v673
    %v2055 = vunpack.c.h.b16 %v673
    %v2056 = vunpack.c.l.b16 %v674
    %v2057 = vunpack.c.h.b16 %v674
    %v2058 = vunpack.c.l.b16 %v675
    %v2059 = vunpack.c.l.b16 %v676
    %v2060 = vunpack.c.h.b16 %v676
    %v2061 = vunpack.c.l.b16 %v677
    %v2062 = vunpack.c.h.b16 %v677
    %v2063 = vunpack.c.l.b16 %v678
    %v2064 = vunpack.c.h.b16 %v678
    %v2065 = vunpack.c.l.b16 %v679
    %v2066 = vunpack.c.l.b16 %v680
    %v2067 = vunpack.c.h.b16 %v680
    %v2068 = vunpack.c.l.b16 %v681
    %v2069 = vunpack.c.h.b16 %v681
    %v2070 = vunpack.c.l.b16 %v682
    %v2071 = vunpack.c.h.b16 %v682
    %v2072 = vunpack.c.l.b16 %v683
    %v2073 = vunpack.c.l.b16 %v684
    %v2074 = vunpack.c.h.b16 %v684
    %v2075 = vunpack.c.l.b16 %v685
    %v2076 = vunpack.c.h.b16 %v685
    %v2077 = vunpack.c.l.b16 %v686
    %v2078 = vunpack.c.h.b16 %v686
    %v2079 = vunpack.c.l.b16 %v687
    %v2080 = vunpack.c.l.b16 %v688
    %v2081 = vunpack.c.h.b16 %v688
    %v2082 = vunpack.c.l.b16 %v689
    %v2083 = vunpack.c.h.b16 %v689
    %v2084 = vunpack.c.l.b16 %v690
    %v2085 = vunpack.c.h.b16 %v690
    %v2086 = vunpack.c.l.b16 %v691
    %v2087 = vunpack.c.l.b16 %v692
    %v2088 = vunpack.c.h.b16 %v692
    %v2089 = vunpack.c.l.b16 %v693
    %v2090 = vunpack.c.h.b16 %v693
    %v2091 = vunpack.c.l.b16 %v694
    %v2092 = vunpack.c.h.b16 %v694
    %v2093 = vunpack.c.l.b16 %v695
    %v2094 = vunpack.c.l.b16 %v696
    %v2095 = vunpack.c.h.b16 %v696
    %v2096 = vunpack.c.l.b16 %v697
    %v2097 = vunpack.c.h.b16 %v697
    %v2098 = vunpack.c.l.b16 %v698
    %v2099 = vunpack.c.h.b16 %v698
    %v2100 = vunpack.c.l.b16 %v699
    %v2101 = vunpack.c.l.b16 %v700
    %v2102 = vunpack.c.h.b16 %v700
    %v2103 = vunpack.c.l.b16 %v701
    %v2104 = vunpack.c.h.b16 %v701
    %v2105 = vunpack.c.l.b16 %v702
    %v2106 = vunpack.c.h.b16 %v702
    %v2107 = vunpack.c.l.b16 %v703
    %v2108 = vunpack.c.l.b16 %v704
    %v2109 = vunpack.c.h.b16 %v704
    %v2110 = vunpack.c.l.b16 %v705
    %v2111 = vunpack.c.h.b16 %v705
    %v2112 = vunpack.c.l.b16 %v706
    %v2113 = vunpack.c.h.b16 %v706
    %v2114 = vunpack.c.l.b16 %v707
    %v2115 = vunpack.c.l.b16 %v708
    %v2116 = vunpack.c.h.b16 %v708
    %v2117 = vunpack.c.l.b16 %v709
    %v2118 = vunpack.c.h.b16 %v709
    %v2119 = vunpack.c.l.b16 %v710
    %v2120 = vunpack.c.h.b16 %v710
    %v2121 = vunpack.c.l.b16 %v711
    %v2122 = vunpack.c.l.b16 %v712
    %v2123 = vunpack.c.h.b16 %v712
    %v2124 = vunpack.c.l.b16 %v713
    %v2125 = vunpack.c.h.b16 %v713
    %v2126 = vunpack.c.l.b16 %v714
    %v2127 = vunpack.c.h.b16 %v714
    %v2128 = vunpack.c.l.b16 %v715
    %v2129 = vunpack.c.l.b16 %v716
    %v2130 = vunpack.c.h.b16 %v716
    %v2131 = vunpack.c.l.b16 %v717
    %v2132 = vunpack.c.h.b16 %v717
    %v2133 = vunpack.c.l.b16 %v718
    %v2134 = vunpack.c.h.b16 %v718
    %v2135 = vunpack.c.l.b16 %v719
    %v2136 = vunpack.c.l.b16 %v720
    %v2137 = vunpack.c.h.b16 %v720
    %v2138 = vunpack.c.l.b16 %v721
    %v2139 = vunpack.c.h.b16 %v721
    %v2140 = vunpack.c.l.b16 %v722
    %v2141 = vunpack.c.h.b16 %v722
    %v2142 = vunpack.c.l.b16 %v723
    %v2143 = vunpack.c.l.b16 %v724
    %v2144 = vunpack.c.h.b16 %v724
    %v2145 = vunpack.c.l.b16 %v725
    %v2146 = vunpack.c.h.b16 %v725
    %v2147 = vunpack.c.l.b16 %v726
    %v2148 = vunpack.c.h.b16 %v726
    %v2149 = vunpack.c.l.b16 %v727
    %v2150 = vunpack.c.l.b16 %v728
    %v2151 = vunpack.c.h.b16 %v728
    %v2152 = vunpack.c.l.b16 %v729
    %v2153 = vunpack.c.h.b16 %v729
    %v2154 = vunpack.c.l.b16 %v730
    %v2155 = vunpack.c.h.b16 %v730
    %v2156 = vunpack.c.l.b16 %v731
    %v2157 = vunpack.c.l.b16 %v732
    %v2158 = vunpack.c.h.b16 %v732
    %v2159 = vunpack.c.l.b16 %v733
    %v2160 = vunpack.c.h.b16 %v733
    %v2161 = vunpack.c.l.b16 %v734
    %v2162 = vunpack.c.h.b16 %v734
    %v2163 = vunpack.c.l.b16 %v735
    %v2164 = vunpack.c.l.b16 %v736
    %v2165 = vunpack.c.h.b16 %v736
    %v2166 = vunpack.c.l.b16 %v737
    %v2167 = vunpack.c.h.b16 %v737
    %v2168 = vunpack.c.l.b16 %v738
    %v2169 = vunpack.c.h.b16 %v738
    %v2170 = vunpack.c.l.b16 %v739
    %v2171 = vunpack.c.l.b16 %v740
    %v2172 = vunpack.c.h.b16 %v740
    %v2173 = vunpack.c.l.b16 %v741
    %v2174 = vunpack.c.h.b16 %v741
    %v2175 = vunpack.c.l.b16 %v742
    %v2176 = vunpack.c.h.b16 %v742
    %v2177 = vunpack.c.l.b16 %v743
    %v2178 = vunpack.c.l.b16 %v744
    %v2179 = vunpack.c.h.b16 %v744
    %v2180 = vunpack.c.l.b16 %v745
    %v2181 = vunpack.c.h.b16 %v745
    %v2182 = vunpack.c.l.b16 %v746
    %v2183 = vunpack.c.h.b16 %v746
    %v2184 = vunpack.c.l.b16 %v747
    %v2185 = vunpack.c.l.b16 %v748
    %v2186 = vunpack.c.h.b16 %v748
    %v2187 = vunpack.c.l.b16 %v749
    %v2188 = vunpack.c.h.b16 %v749
    %v2189 = vunpack.c.l.b16 %v750
    %v2190 = vunpack.c.h.b16 %v750
    %v2191 = vunpack.c.l.b16 %v751
    %v2192 = vunpack.c.l.b16 %v752
    %v2193 = vunpack.c.h.b16 %v752
    %v2194 = vunpack.c.l.b16 %v753
    %v2195 = vunpack.c.h.b16 %v753
    %v2196 = vunpack.c.l.b16 %v754
    %v2197 = vunpack.c.h.b16 %v754
    %v2198 = vunpack.c.l.b16 %v755
    %v2199 = vunpack.c.l.b16 %v756
    %v2200 = vunpack.c.h.b16 %v756
    %v2201 = vunpack.c.l.b16 %v757
    %v2202 = vunpack.c.h.b16 %v757
    %v2203 = vunpack.c.l.b16 %v758
    %v2204 = vunpack.c.h.b16 %v758
    %v2205 = vunpack.c.l.b16 %v759
    %v2206 = vunpack.c.l.b16 %v760
    %v2207 = vunpack.c.h.b16 %v760
    %v2208 = vunpack.c.l.b16 %v761
    %v2209 = vunpack.c.h.b16 %v761
    %v2210 = vunpack.c.l.b16 %v762
    %v2211 = vunpack.c.h.b16 %v762
    %v2212 = vunpack.c.l.b16 %v763
    %v2213 = vunpack.c.l.b16 %v764
    %v2214 = vunpack.c.h.b16 %v764
    %v2215 = vunpack.c.l.b16 %v765
    %v2216 = vunpack.c.h.b16 %v765
    %v2217 = vunpack.c.l.b16 %v766
    %v2218 = vunpack.c.h.b16 %v766
    %v2219 = vunpack.c.l.b16 %v767
    %v2220 = vunpack.c.l.b16 %v768
    %v2221 = vunpack.c.h.b16 %v768
    %v2222 = vunpack.c.l.b16 %v769
    %v2223 = vunpack.c.h.b16 %v769
    %v2224 = vunpack.c.l.b16 %v770
    %v2225 = vunpack.c.h.b16 %v770
    %v2226 = vunpack.c.l.b16 %v771
    %v2227 = vunpack.c.l.b16 %v772
    %v2228 = vunpack.c.h.b16 %v772
    %v2229 = vunpack.c.l.b16 %v773
    %v2230 = vunpack.c.h.b16 %v773
    %v2231 = vunpack.c.l.b16 %v774
    %v2232 = vunpack.c.h.b16 %v774
    %v2233 = vunpack.c.l.b16 %v775
    %v2234 = vunpack.c.l.b16 %v776
    %v2235 = vunpack.c.h.b16 %v776
    %v2236 = vunpack.c.l.b16 %v777
    %v2237 = vunpack.c.h.b16 %v777
    %v2238 = vunpack.c.l.b16 %v778
    %v2239 = vunpack.c.h.b16 %v778
    %v2240 = vunpack.c.l.b16 %v779
    %v2241 = vunpack.c.l.b16 %v780
    %v2242 = vunpack.c.h.b16 %v780
    %v2243 = vunpack.c.l.b16 %v781
    %v2244 = vunpack.c.h.b16 %v781
    %v2245 = vunpack.c.l.b16 %v782
    %v2246 = vunpack.c.h.b16 %v782
    %v2247 = vunpack.c.l.b16 %v783
    %v2248 = vunpack.c.l.b16 %v784
    %v2249 = vunpack.c.h.b16 %v784
    %v2250 = vunpack.c.l.b16 %v785
    %v2251 = vunpack.c.h.b16 %v785
    %v2252 = vunpack.c.l.b16 %v786
    %v2253 = vunpack.c.h.b16 %v786
    %v2254 = vunpack.c.l.b16 %v787
    %v2255 = vunpack.c.l.b16 %v788
    %v2256 = vunpack.c.h.b16 %v788
    %v2257 = vunpack.c.l.b16 %v789
    %v2258 = vunpack.c.h.b16 %v789
    %v2259 = vunpack.c.l.b16 %v790
    %v2260 = vunpack.c.h.b16 %v790
    %v2261 = vunpack.c.l.b16 %v791
    %v2262 = vunpack.c.l.b16 %v792
    %v2263 = vunpack.c.h.b16 %v792
    %v2264 = vunpack.c.l.b16 %v793
    %v2265 = vunpack.c.h.b16 %v793
    %v2266 = vunpack.c.l.b16 %v794
    %v2267 = vunpack.c.h.b16 %v794
    %v2268 = vunpack.c.l.b16 %v795
    %v2269 = vunpack.c.l.b16 %v796
    %v2270 = vunpack.c.h.b16 %v796
    %v2271 = vunpack.c.l.b16 %v797
    %v2272 = vunpack.c.h.b16 %v797
    %v2273 = vunpack.c.l.b16 %v798
    %v2274 = vunpack.c.h.b16 %v798
    %v2275 = vunpack.c.l.b16 %v799
    %v2276 = vunpack.c.l.b16 %v800
    %v2277 = vunpack.c.h.b16 %v800
    %v2278 = vunpack.c.l.b16 %v801
    %v2279 = vunpack.c.h.b16 %v801
    %v2280 = vunpack.c.l.b16 %v802
    %v2281 = vunpack.c.h.b16 %v802
    %v2282 = vunpack.c.l.b16 %v803
    %v2283 = vunpack.c.l.b16 %v804
    %v2284 = vunpack.c.h.b16 %v804
    %v2285 = vunpack.c.l.b16 %v805
    %v2286 = vunpack.c.h.b16 %v805
    %v2287 = vunpack.c.l.b16 %v806
    %v2288 = vunpack.c.h.b16 %v806
    %v2289 = vunpack.c.l.b16 %v807
    %v2290 = vunpack.c.l.b16 %v808
    %v2291 = vunpack.c.h.b16 %v808
    %v2292 = vunpack.c.l.b16 %v809
    %v2293 = vunpack.c.h.b16 %v809
    %v2294 = vunpack.c.l.b16 %v810
    %v2295 = vunpack.c.h.b16 %v810
    %v2296 = vunpack.c.l.b16 %v811
    %v2297 = vpack.c.b16 %v1408, %v1401
    %v2298 = vpack.c.b16 %v1409, %v1402
    %v2299 = vpack.c.b16 %v1410, %v1403
    %v2300 = vpack.c.b16 %v1411, %v1404
    %v2301 = vpack.c.b16 %v1412, %v1405
    %v2302 = vpack.c.b16 %v1413, %v1406
    %v2303 = vpack.c.b16 %v1414, %v1407
    %v2304 = vpack.c.b16 %v1422, %v1415
    %v2305 = vpack.c.b16 %v1423, %v1416
    %v2306 = vpack.c.b16 %v1424, %v1417
    %v2307 = vpack.c.b16 %v1425, %v1418
    %v2308 = vpack.c.b16 %v1426, %v1419
    %v2309 = vpack.c.b16 %v1427, %v1420
    %v2310 = vpack.c.b16 %v1428, %v1421
    %v2311 = vpack.c.b16 %v1436, %v1429
    %v2312 = vpack.c.b16 %v1437, %v1430
    %v2313 = vpack.c.b16 %v1438, %v1431
    %v2314 = vpack.c.b16 %v1439, %v1432
    %v2315 = vpack.c.b16 %v1440, %v1433
    %v2316 = vpack.c.b16 %v1441, %v1434
    %v2317 = vpack.c.b16 %v1442, %v1435
    %v2318 = vpack.c.b16 %v1450, %v1443
    %v2319 = vpack.c.b16 %v1451, %v1444
    %v2320 = vpack.c.b16 %v1452, %v1445
    %v2321 = vpack.c.b16 %v1453, %v1446
    %v2322 = vpack.c.b16 %v1454, %v1447
    %v2323 = vpack.c.b16 %v1455, %v1448
    %v2324 = vpack.c.b16 %v1456, %v1449
    %v2325 = vpack.c.b16 %v1464, %v1457
    %v2326 = vpack.c.b16 %v1465, %v1458
    %v2327 = vpack.c.b16 %v1466, %v1459
    %v2328 = vpack.c.b16 %v1467, %v1460
    %v2329 = vpack.c.b16 %v1468, %v1461
    %v2330 = vpack.c.b16 %v1469, %v1462
    %v2331 = vpack.c.b16 %v1470, %v1463
    %v2332 = vpack.c.b16 %v1478, %v1471
    %v2333 = vpack.c.b16 %v1479, %v1472
    %v2334 = vpack.c.b16 %v1480, %v1473
    %v2335 = vpack.c.b16 %v1481, %v1474
    %v2336 = vpack.c.b16 %v1482, %v1475
    %v2337 = vpack.c.b16 %v1483, %v1476
    %v2338 = vpack.c.b16 %v1484, %v1477
    %v2339 = vpack.c.b16 %v1492, %v1485
    %v2340 = vpack.c.b16 %v1493, %v1486
    %v2341 = vpack.c.b16 %v1494, %v1487
    %v2342 = vpack.c.b16 %v1495, %v1488
    %v2343 = vpack.c.b16 %v1496, %v1489
    %v2344 = vpack.c.b16 %v1497, %v1490
    %v2345 = vpack.c.b16 %v1498, %v1491
    %v2346 = vpack.c.b16 %v1506, %v1499
    %v2347 = vpack.c.b16 %v1507, %v1500
    %v2348 = vpack.c.b16 %v1508, %v1501
    %v2349 = vpack.c.b16 %v1509, %v1502
    %v2350 = vpack.c.b16 %v1510, %v1503
    %v2351 = vpack.c.b16 %v1511, %v1504
    %v2352 = vpack.c.b16 %v1512, %v1505
    %v2353 = vpack.c.b16 %v1520, %v1513
    %v2354 = vpack.c.b16 %v1521, %v1514
    %v2355 = vpack.c.b16 %v1522, %v1515
    %v2356 = vpack.c.b16 %v1523, %v1516
    %v2357 = vpack.c.b16 %v1524, %v1517
    %v2358 = vpack.c.b16 %v1525, %v1518
    %v2359 = vpack.c.b16 %v1526, %v1519
    %v2360 = vpack.c.b16 %v1534, %v1527
    %v2361 = vpack.c.b16 %v1535, %v1528
    %v2362 = vpack.c.b16 %v1536, %v1529
    %v2363 = vpack.c.b16 %v1537, %v1530
    %v2364 = vpack.c.b16 %v1538, %v1531
    %v2365 = vpack.c.b16 %v1539, %v1532
    %v2366 = vpack.c.b16 %v1540, %v1533
    %v2367 = vpack.c.b16 %v1548, %v1541
    %v2368 = vpack.c.b16 %v1549, %v1542
    %v2369 = vpack.c.b16 %v1550, %v1543
    %v2370 = vpack.c.b16 %v1551, %v1544
    %v2371 = vpack.c.b16 %v1552, %v1545
    %v2372 = vpack.c.b16 %v1553, %v1546
    %v2373 = vpack.c.b16 %v1554, %v1547
    %v2374 = vpack.c.b16 %v1562, %v1555
    %v2375 = vpack.c.b16 %v1563, %v1556
    %v2376 = vpack.c.b16 %v1564, %v1557
    %v2377 = vpack.c.b16 %v1565, %v1558
    %v2378 = vpack.c.b16 %v1566, %v1559
    %v2379 = vpack.c.b16 %v1567, %v1560
    %v2380 = vpack.c.b16 %v1568, %v1561
    %v2381 = vpack.c.b16 %v1576, %v1569
    %v2382 = vpack.c.b16 %v1577, %v1570
    %v2383 = vpack.c.b16 %v1578, %v1571
    %v2384 = vpack.c.b16 %v1579, %v1572
    %v2385 = vpack.c.b16 %v1580, %v1573
    %v2386 = vpack.c.b16 %v1581, %v1574
    %v2387 = vpack.c.b16 %v1582, %v1575
    %v2388 = vpack.c.b16 %v1590, %v1583
    %v2389 = vpack.c.b16 %v1591, %v1584
    %v2390 = vpack.c.b16 %v1592, %v1585
    %v2391 = vpack.c.b16 %v1593, %v1586
    %v2392 = vpack.c.b16 %v1594, %v1587
    %v2393 = vpack.c.b16 %v1595, %v1588
    %v2394 = vpack.c.b16 %v1596, %v1589
    %v2395 = vpack.c.b16 %v1604, %v1597
    %v2396 = vpack.c.b16 %v1605, %v1598
    %v2397 = vpack.c.b16 %v1606, %v1599
    %v2398 = vpack.c.b16 %v1607, %v1600
    %v2399 = vpack.c.b16 %v1608, %v1601
    %v2400 = vpack.c.b16 %v1609, %v1602
    %v2401 = vpack.c.b16 %v1610, %v1603
    %v2402 = vpack.c.b16 %v1618, %v1611
    %v2403 = vpack.c.b16 %v1619, %v1612
    %v2404 = vpack.c.b16 %v1620, %v1613
    %v2405 = vpack.c.b16 %v1621, %v1614
    %v2406 = vpack.c.b16 %v1622, %v1615
    %v2407 = vpack.c.b16 %v1623, %v1616
    %v2408 = vpack.c.b16 %v1624, %v1617
    %v2409 = vpack.c.b16 %v1632, %v1625
    %v2410 = vpack.c.b16 %v1633, %v1626
    %v2411 = vpack.c.b16 %v1634, %v1627
    %v2412 = vpack.c.b16 %v1635, %v1628
    %v2413 = vpack.c.b16 %v1636, %v1629
    %v2414 = vpack.c.b16 %v1637, %v1630
    %v2415 = vpack.c.b16 %v1638, %v1631
    %v2416 = vpack.c.b16 %v1646, %v1639
    %v2417 = vpack.c.b16 %v1647, %v1640
    %v2418 = vpack.c.b16 %v1648, %v1641
    %v2419 = vpack.c.b16 %v1649, %v1642
    %v2420 = vpack.c.b16 %v1650, %v1643
    %v2421 = vpack.c.b16 %v1651, %v1644
    %v2422 = vpack.c.b16 %v1652, %v1645
    %v2423 = vpack.c.b16 %v1660, %v1653
    %v2424 = vpack.c.b16 %v1661, %v1654
    %v2425 = vpack.c.b16 %v1662, %v1655
    %v2426 = vpack.c.b16 %v1663, %v1656
    %v2427 = vpack.c.b16 %v1664, %v1657
    %v2428 = vpack.c.b16 %v1665, %v1658
    %v2429 = vpack.c.b16 %v1666, %v1659
    %v2430 = vpack.c.b16 %v1674, %v1667
    %v2431 = vpack.c.b16 %v1675, %v1668
    %v2432 = vpack.c.b16 %v1676, %v1669
    %v2433 = vpack.c.b16 %v1677, %v1670
    %v2434 = vpack.c.b16 %v1678, %v1671
    %v2435 = vpack.c.b16 %v1679, %v1672
    %v2436 = vpack.c.b16 %v1680, %v1673
    %v2437 = vpack.c.b16 %v1688, %v1681
    %v2438 = vpack.c.b16 %v1689, %v1682
    %v2439 = vpack.c.b16 %v1690, %v1683
    %v2440 = vpack.c.b16 %v1691, %v1684
    %v2441 = vpack.c.b16 %v1692, %v1685
    %v2442 = vpack.c.b16 %v1693, %v1686
    %v2443 = vpack.c.b16 %v1694, %v1687
    %v2444 = vpack.c.b16 %v1702, %v1695
    %v2445 = vpack.c.b16 %v1703, %v1696
    %v2446 = vpack.c.b16 %v1704, %v1697
    %v2447 = vpack.c.b16 %v1705, %v1698
    %v2448 = vpack.c.b16 %v1706, %v1699
    %v2449 = vpack.c.b16 %v1707, %v1700
    %v2450 = vpack.c.b16 %v1708, %v1701
    %v2451 = vpack.c.b16 %v1716, %v1709
    %v2452 = vpack.c.b16 %v1717, %v1710
    %v2453 = vpack.c.b16 %v1718, %v1711
    %v2454 = vpack.c.b16 %v1719, %v1712
    %v2455 = vpack.c.b16 %v1720, %v1713
    %v2456 = vpack.c.b16 %v1721, %v1714
    %v2457 = vpack.c.b16 %v1722, %v1715
    %v2458 = vpack.c.b16 %v1730, %v1723
    %v2459 = vpack.c.b16 %v1731, %v1724
    %v2460 = vpack.c.b16 %v1732, %v1725
    %v2461 = vpack.c.b16 %v1733, %v1726
    %v2462 = vpack.c.b16 %v1734, %v1727
    %v2463 = vpack.c.b16 %v1735, %v1728
    %v2464 = vpack.c.b16 %v1736, %v1729
    %v2465 = vpack.c.b16 %v1744, %v1737
    %v2466 = vpack.c.b16 %v1745, %v1738
    %v2467 = vpack.c.b16 %v1746, %v1739
    %v2468 = vpack.c.b16 %v1747, %v1740
    %v2469 = vpack.c.b16 %v1748, %v1741
    %v2470 = vpack.c.b16 %v1749, %v1742
    %v2471 = vpack.c.b16 %v1750, %v1743
    %v2472 = vpack.c.b16 %v1758, %v1751
    %v2473 = vpack.c.b16 %v1759, %v1752
    %v2474 = vpack.c.b16 %v1760, %v1753
    %v2475 = vpack.c.b16 %v1761, %v1754
    %v2476 = vpack.c.b16 %v1762, %v1755
    %v2477 = vpack.c.b16 %v1763, %v1756
    %v2478 = vpack.c.b16 %v1764, %v1757
    %v2479 = vpack.c.b16 %v1772, %v1765
    %v2480 = vpack.c.b16 %v1773, %v1766
    %v2481 = vpack.c.b16 %v1774, %v1767
    %v2482 = vpack.c.b16 %v1775, %v1768
    %v2483 = vpack.c.b16 %v1776, %v1769
    %v2484 = vpack.c.b16 %v1777, %v1770
    %v2485 = vpack.c.b16 %v1778, %v1771
    %v2486 = vpack.c.b16 %v1786, %v1779
    %v2487 = vpack.c.b16 %v1787, %v1780
    %v2488 = vpack.c.b16 %v1788, %v1781
    %v2489 = vpack.c.b16 %v1789, %v1782
    %v2490 = vpack.c.b16 %v1790, %v1783
    %v2491 = vpack.c.b16 %v1791, %v1784
    %v2492 = vpack.c.b16 %v1792, %v1785
    %v2493 = vpack.c.b16 %v1800, %v1793
    %v2494 = vpack.c.b16 %v1801, %v1794
    %v2495 = vpack.c.b16 %v1802, %v1795
    %v2496 = vpack.c.b16 %v1803, %v1796
    %v2497 = vpack.c.b16 %v1804, %v1797
    %v2498 = vpack.c.b16 %v1805, %v1798
    %v2499 = vpack.c.b16 %v1806, %v1799
    %v2500 = vpack.c.b16 %v1814, %v1807
    %v2501 = vpack.c.b16 %v1815, %v1808
    %v2502 = vpack.c.b16 %v1816, %v1809
    %v2503 = vpack.c.b16 %v1817, %v1810
    %v2504 = vpack.c.b16 %v1818, %v1811
    %v2505 = vpack.c.b16 %v1819, %v1812
    %v2506 = vpack.c.b16 %v1820, %v1813
    %v2507 = vpack.c.b16 %v1828, %v1821
    %v2508 = vpack.c.b16 %v1829, %v1822
    %v2509 = vpack.c.b16 %v1830, %v1823
    %v2510 = vpack.c.b16 %v1831, %v1824
    %v2511 = vpack.c.b16 %v1832, %v1825
    %v2512 = vpack.c.b16 %v1833, %v1826
    %v2513 = vpack.c.b16 %v1834, %v1827
    %v2514 = vpack.c.b16 %v1842, %v1835
    %v2515 = vpack.c.b16 %v1843, %v1836
    %v2516 = vpack.c.b16 %v1844, %v1837
    %v2517 = vpack.c.b16 %v1845, %v1838
    %v2518 = vpack.c.b16 %v1846, %v1839
    %v2519 = vpack.c.b16 %v1847, %v1840
    %v2520 = vpack.c.b16 %v1848, %v1841
    %v2521 = vpack.c.b16 %v1856, %v1849
    %v2522 = vpack.c.b16 %v1857, %v1850
    %v2523 = vpack.c.b16 %v1858, %v1851
    %v2524 = vpack.c.b16 %v1859, %v1852
    %v2525 = vpack.c.b16 %v1860, %v1853
    %v2526 = vpack.c.b16 %v1861, %v1854
    %v2527 = vpack.c.b16 %v1862, %v1855
    %v2528 = vpack.c.b16 %v1870, %v1863
    %v2529 = vpack.c.b16 %v1871, %v1864
    %v2530 = vpack.c.b16 %v1872, %v1865
    %v2531 = vpack.c.b16 %v1873, %v1866
    %v2532 = vpack.c.b16 %v1874, %v1867
    %v2533 = vpack.c.b16 %v1875, %v1868
    %v2534 = vpack.c.b16 %v1876, %v1869
    %v2535 = vpack.c.b16 %v1884, %v1877
    %v2536 = vpack.c.b16 %v1885, %v1878
    %v2537 = vpack.c.b16 %v1886, %v1879
    %v2538 = vpack.c.b16 %v1887, %v1880
    %v2539 = vpack.c.b16 %v1888, %v1881
    %v2540 = vpack.c.b16 %v1889, %v1882
    %v2541 = vpack.c.b16 %v1890, %v1883
    %v2542 = vpack.c.b16 %v1898, %v1891
    %v2543 = vpack.c.b16 %v1899, %v1892
    %v2544 = vpack.c.b16 %v1900, %v1893
    %v2545 = vpack.c.b16 %v1901, %v1894
    %v2546 = vpack.c.b16 %v1902, %v1895
    %v2547 = vpack.c.b16 %v1903, %v1896
    %v2548 = vpack.c.b16 %v1904, %v1897
    %v2549 = vpack.c.b16 %v1912, %v1905
    %v2550 = vpack.c.b16 %v1913, %v1906
    %v2551 = vpack.c.b16 %v1914, %v1907
    %v2552 = vpack.c.b16 %v1915, %v1908
    %v2553 = vpack.c.b16 %v1916, %v1909
    %v2554 = vpack.c.b16 %v1917, %v1910
    %v2555 = vpack.c.b16 %v1918, %v1911
    %v2556 = vpack.c.b16 %v1926, %v1919
    %v2557 = vpack.c.b16 %v1927, %v1920
    %v2558 = vpack.c.b16 %v1928, %v1921
    %v2559 = vpack.c.b16 %v1929, %v1922
    %v2560 = vpack.c.b16 %v1930, %v1923
    %v2561 = vpack.c.b16 %v1931, %v1924
    %v2562 = vpack.c.b16 %v1932, %v1925
    %v2563 = vpack.c.b16 %v1940, %v1933
    %v2564 = vpack.c.b16 %v1941, %v1934
    %v2565 = vpack.c.b16 %v1942, %v1935
    %v2566 = vpack.c.b16 %v1943, %v1936
    %v2567 = vpack.c.b16 %v1944, %v1937
    %v2568 = vpack.c.b16 %v1945, %v1938
    %v2569 = vpack.c.b16 %v1946, %v1939
    %v2570 = vpack.c.b16 %v1954, %v1947
    %v2571 = vpack.c.b16 %v1955, %v1948
    %v2572 = vpack.c.b16 %v1956, %v1949
    %v2573 = vpack.c.b16 %v1957, %v1950
    %v2574 = vpack.c.b16 %v1958, %v1951
    %v2575 = vpack.c.b16 %v1959, %v1952
    %v2576 = vpack.c.b16 %v1960, %v1953
    %v2577 = vpack.c.b16 %v1968, %v1961
    %v2578 = vpack.c.b16 %v1969, %v1962
    %v2579 = vpack.c.b16 %v1970, %v1963
    %v2580 = vpack.c.b16 %v1971, %v1964
    %v2581 = vpack.c.b16 %v1972, %v1965
    %v2582 = vpack.c.b16 %v1973, %v1966
    %v2583 = vpack.c.b16 %v1974, %v1967
    %v2584 = vpack.c.b16 %v1982, %v1975
    %v2585 = vpack.c.b16 %v1983, %v1976
    %v2586 = vpack.c.b16 %v1984, %v1977
    %v2587 = vpack.c.b16 %v1985, %v1978
    %v2588 = vpack.c.b16 %v1986, %v1979
    %v2589 = vpack.c.b16 %v1987, %v1980
    %v2590 = vpack.c.b16 %v1988, %v1981
    %v2591 = vpack.c.b16 %v1996, %v1989
    %v2592 = vpack.c.b16 %v1997, %v1990
    %v2593 = vpack.c.b16 %v1998, %v1991
    %v2594 = vpack.c.b16 %v1999, %v1992
    %v2595 = vpack.c.b16 %v2000, %v1993
    %v2596 = vpack.c.b16 %v2001, %v1994
    %v2597 = vpack.c.b16 %v2002, %v1995
    %v2598 = vpack.c.b16 %v2010, %v2003
    %v2599 = vpack.c.b16 %v2011, %v2004
    %v2600 = vpack.c.b16 %v2012, %v2005
    %v2601 = vpack.c.b16 %v2013, %v2006
    %v2602 = vpack.c.b16 %v2014, %v2007
    %v2603 = vpack.c.b16 %v2015, %v2008
    %v2604 = vpack.c.b16 %v2016, %v2009
    %v2605 = vpack.c.b16 %v2024, %v2017
    %v2606 = vpack.c.b16 %v2025, %v2018
    %v2607 = vpack.c.b16 %v2026, %v2019
    %v2608 = vpack.c.b16 %v2027, %v2020
    %v2609 = vpack.c.b16 %v2028, %v2021
    %v2610 = vpack.c.b16 %v2029, %v2022
    %v2611 = vpack.c.b16 %v2030, %v2023
    %v2612 = vpack.c.b16 %v2038, %v2031
    %v2613 = vpack.c.b16 %v2039, %v2032
    %v2614 = vpack.c.b16 %v2040, %v2033
    %v2615 = vpack.c.b16 %v2041, %v2034
    %v2616 = vpack.c.b16 %v2042, %v2035
    %v2617 = vpack.c.b16 %v2043, %v2036
    %v2618 = vpack.c.b16 %v2044, %v2037
    %v2619 = vpack.c.b16 %v2052, %v2045
    %v2620 = vpack.c.b16 %v2053, %v2046
    %v2621 = vpack.c.b16 %v2054, %v2047
    %v2622 = vpack.c.b16 %v2055, %v2048
    %v2623 = vpack.c.b16 %v2056, %v2049
    %v2624 = vpack.c.b16 %v2057, %v2050
    %v2625 = vpack.c.b16 %v2058, %v2051
    %v2626 = vpack.c.b16 %v2066, %v2059
    %v2627 = vpack.c.b16 %v2067, %v2060
    %v2628 = vpack.c.b16 %v2068, %v2061
    %v2629 = vpack.c.b16 %v2069, %v2062
    %v2630 = vpack.c.b16 %v2070, %v2063
    %v2631 = vpack.c.b16 %v2071, %v2064
    %v2632 = vpack.c.b16 %v2072, %v2065
    %v2633 = vpack.c.b16 %v2080, %v2073
    %v2634 = vpack.c.b16 %v2081, %v2074
    %v2635 = vpack.c.b16 %v2082, %v2075
    %v2636 = vpack.c.b16 %v2083, %v2076
    %v2637 = vpack.c.b16 %v2084, %v2077
    %v2638 = vpack.c.b16 %v2085, %v2078
    %v2639 = vpack.c.b16 %v2086, %v2079
    %v2640 = vpack.c.b16 %v2094, %v2087
    %v2641 = vpack.c.b16 %v2095, %v2088
    %v2642 = vpack.c.b16 %v2096, %v2089
    %v2643 = vpack.c.b16 %v2097, %v2090
    %v2644 = vpack.c.b16 %v2098, %v2091
    %v2645 = vpack.c.b16 %v2099, %v2092
    %v2646 = vpack.c.b16 %v2100, %v2093
    %v2647 = vpack.c.b16 %v2108, %v2101
    %v2648 = vpack.c.b16 %v2109, %v2102
    %v2649 = vpack.c.b16 %v2110, %v2103
    %v2650 = vpack.c.b16 %v2111, %v2104
    %v2651 = vpack.c.b16 %v2112, %v2105
    %v2652 = vpack.c.b16 %v2113, %v2106
    %v2653 = vpack.c.b16 %v2114, %v2107
    %v2654 = vpack.c.b16 %v2122, %v2115
    %v2655 = vpack.c.b16 %v2123, %v2116
    %v2656 = vpack.c.b16 %v2124, %v2117
    %v2657 = vpack.c.b16 %v2125, %v2118
    %v2658 = vpack.c.b16 %v2126, %v2119
    %v2659 = vpack.c.b16 %v2127, %v2120
    %v2660 = vpack.c.b16 %v2128, %v2121
    %v2661 = vpack.c.b16 %v2136, %v2129
    %v2662 = vpack.c.b16 %v2137, %v2130
    %v2663 = vpack.c.b16 %v2138, %v2131
    %v2664 = vpack.c.b16 %v2139, %v2132
    %v2665 = vpack.c.b16 %v2140, %v2133
    %v2666 = vpack.c.b16 %v2141, %v2134
    %v2667 = vpack.c.b16 %v2142, %v2135
    %v2668 = vpack.c.b16 %v2150, %v2143
    %v2669 = vpack.c.b16 %v2151, %v2144
    %v2670 = vpack.c.b16 %v2152, %v2145
    %v2671 = vpack.c.b16 %v2153, %v2146
    %v2672 = vpack.c.b16 %v2154, %v2147
    %v2673 = vpack.c.b16 %v2155, %v2148
    %v2674 = vpack.c.b16 %v2156, %v2149
    %v2675 = vpack.c.b16 %v2164, %v2157
    %v2676 = vpack.c.b16 %v2165, %v2158
    %v2677 = vpack.c.b16 %v2166, %v2159
    %v2678 = vpack.c.b16 %v2167, %v2160
    %v2679 = vpack.c.b16 %v2168, %v2161
    %v2680 = vpack.c.b16 %v2169, %v2162
    %v2681 = vpack.c.b16 %v2170, %v2163
    %v2682 = vpack.c.b16 %v2178, %v2171
    %v2683 = vpack.c.b16 %v2179, %v2172
    %v2684 = vpack.c.b16 %v2180, %v2173
    %v2685 = vpack.c.b16 %v2181, %v2174
    %v2686 = vpack.c.b16 %v2182, %v2175
    %v2687 = vpack.c.b16 %v2183, %v2176
    %v2688 = vpack.c.b16 %v2184, %v2177
    %v2689 = vpack.c.b16 %v2192, %v2185
    %v2690 = vpack.c.b16 %v2193, %v2186
    %v2691 = vpack.c.b16 %v2194, %v2187
    %v2692 = vpack.c.b16 %v2195, %v2188
    %v2693 = vpack.c.b16 %v2196, %v2189
    %v2694 = vpack.c.b16 %v2197, %v2190
    %v2695 = vpack.c.b16 %v2198, %v2191
    %v2696 = vpack.c.b16 %v2206, %v2199
    %v2697 = vpack.c.b16 %v2207, %v2200
    %v2698 = vpack.c.b16 %v2208, %v2201
    %v2699 = vpack.c.b16 %v2209, %v2202
    %v2700 = vpack.c.b16 %v2210, %v2203
    %v2701 = vpack.c.b16 %v2211, %v2204
    %v2702 = vpack.c.b16 %v2212, %v2205
    %v2703 = vpack.c.b16 %v2220, %v2213
    %v2704 = vpack.c.b16 %v2221, %v2214
    %v2705 = vpack.c.b16 %v2222, %v2215
    %v2706 = vpack.c.b16 %v2223, %v2216
    %v2707 = vpack.c.b16 %v2224, %v2217
    %v2708 = vpack.c.b16 %v2225, %v2218
    %v2709 = vpack.c.b16 %v2226, %v2219
    %v2710 = vpack.c.b16 %v2234, %v2227
    %v2711 = vpack.c.b16 %v2235, %v2228
    %v2712 = vpack.c.b16 %v2236, %v2229
    %v2713 = vpack.c.b16 %v2237, %v2230
    %v2714 = vpack.c.b16 %v2238, %v2231
    %v2715 = vpack.c.b16 %v2239, %v2232
    %v2716 = vpack.c.b16 %v2240, %v2233
    %v2717 = vpack.c.b16 %v2248, %v2241
    %v2718 = vpack.c.b16 %v2249, %v2242
    %v2719 = vpack.c.b16 %v2250, %v2243
    %v2720 = vpack.c.b16 %v2251, %v2244
    %v2721 = vpack.c.b16 %v2252, %v2245
    %v2722 = vpack.c.b16 %v2253, %v2246
    %v2723 = vpack.c.b16 %v2254, %v2247
    %v2724 = vpack.c.b16 %v2262, %v2255
    %v2725 = vpack.c.b16 %v2263, %v2256
    %v2726 = vpack.c.b16 %v2264, %v2257
    %v2727 = vpack.c.b16 %v2265, %v2258
    %v2728 = vpack.c.b16 %v2266, %v2259
    %v2729 = vpack.c.b16 %v2267, %v2260
    %v2730 = vpack.c.b16 %v2268, %v2261
    %v2731 = vpack.c.b16 %v2276, %v2269
    %v2732 = vpack.c.b16 %v2277, %v2270
    %v2733 = vpack.c.b16 %v2278, %v2271
    %v2734 = vpack.c.b16 %v2279, %v2272
    %v2735 = vpack.c.b16 %v2280, %v2273
    %v2736 = vpack.c.b16 %v2281, %v2274
    %v2737 = vpack.c.b16 %v2282, %v2275
    %v2738 = vpack.c.b16 %v2290, %v2283
    %v2739 = vpack.c.b16 %v2291, %v2284
    %v2740 = vpack.c.b16 %v2292, %v2285
    %v2741 = vpack.c.b16 %v2293, %v2286
    %v2742 = vpack.c.b16 %v2294, %v2287
    %v2743 = vpack.c.b16 %v2295, %v2288
    %v2744 = vpack.c.b16 %v2296, %v2289
    %3193 = vmatprep.subr.bf16.mxu0 %v2298
    %3194 = vmatpush1.bf16.msra.mxu0 %v2297
    %3195 = vmatprep.subr.bf16.mxu0 %v2305
    %3196 = vmatpush1.bf16.msra.mxu0 %v2304
    %3197 = vmatprep.subr.bf16.mxu0 %v2312
    %3198 = vmatpush1.bf16.msra.mxu0 %v2311
    %3199 = vmatprep.subr.bf16.mxu0 %v2319
    %3200 = vmatpush1.bf16.msra.mxu0 %v2318
    %3201 = vmatprep.subr.bf16.mxu0 %v2326
    %3202 = vmatpush1.bf16.msra.mxu0 %v2325
    %3203 = vmatprep.subr.bf16.mxu0 %v2333
    %3204 = vmatpush1.bf16.msra.mxu0 %v2332
    %3205 = vmatprep.subr.bf16.mxu0 %v2340
    %3206 = vmatpush1.bf16.msra.mxu0 %v2339
    %3207 = vmatprep.subr.bf16.mxu0 %v2347
    %3208 = vmatpush1.bf16.msra.mxu0 %v2346
    %3209 = vmatprep.subr.bf16.mxu0 %v2354
    %3210 = vmatpush1.bf16.msra.mxu0 %v2353
    %3211 = vmatprep.subr.bf16.mxu0 %v2361
    %3212 = vmatpush1.bf16.msra.mxu0 %v2360
    %3213 = vmatprep.subr.bf16.mxu0 %v2368
    %3214 = vmatpush1.bf16.msra.mxu0 %v2367
    %3215 = vmatprep.subr.bf16.mxu0 %v2375
    %3216 = vmatpush1.bf16.msra.mxu0 %v2374
    %3217 = vmatprep.subr.bf16.mxu0 %v2382
    %3218 = vmatpush1.bf16.msra.mxu0 %v2381
    %3219 = vmatprep.subr.bf16.mxu0 %v2389
    %3220 = vmatpush1.bf16.msra.mxu0 %v2388
    %3221 = vmatprep.subr.bf16.mxu0 %v2396
    %3222 = vmatpush1.bf16.msra.mxu0 %v2395
    %3223 = vmatprep.subr.bf16.mxu0 %v2403
    %3224 = vmatpush1.bf16.msra.mxu0 %v2402
    %3225 = vmatprep.mubr.bf16.mxu0 %v874
    %3226 = vmatmul.mubr.bf16.gmra.mrb[0].mxu0 %v873
    %v3227 = vpop.f32.mrb[0].mxu0
    %v3228 = vadd.f32 %v817, %v3227
    %v3229 = vpop.f32.mrb[0].mxu0
    %v3230 = vadd.f32 %v821, %v3229
    %v3231 = vpop.f32.mrb[0].mxu0
    %v3232 = vadd.f32 %v817, %v3231
    %v3233 = vpop.f32.mrb[0].mxu0
    %v3234 = vadd.f32 %v821, %v3233
    %3235 = vdwg.mxu0
    %3236 = vmatprep.subr.bf16.mxu0 %v2410
    %3237 = vmatpush1.bf16.msra.mxu0 %v2409
    %3238 = vmatprep.subr.bf16.mxu0 %v2417
    %3239 = vmatpush1.bf16.msra.mxu0 %v2416
    %3240 = vmatprep.subr.bf16.mxu0 %v2424
    %3241 = vmatpush1.bf16.msra.mxu0 %v2423
    %3242 = vmatprep.subr.bf16.mxu0 %v2431
    %3243 = vmatpush1.bf16.msra.mxu0 %v2430
    %3244 = vmatprep.subr.bf16.mxu0 %v2438
    %3245 = vmatpush1.bf16.msra.mxu0 %v2437
    %3246 = vmatprep.subr.bf16.mxu0 %v2445
    %3247 = vmatpush1.bf16.msra.mxu0 %v2444
    %3248 = vmatprep.subr.bf16.mxu0 %v2452
    %3249 = vmatpush1.bf16.msra.mxu0 %v2451
    %3250 = vmatprep.subr.bf16.mxu0 %v2459
    %3251 = vmatpush1.bf16.msra.mxu0 %v2458
    %3252 = vmatprep.subr.bf16.mxu0 %v2466
    %3253 = vmatpush1.bf16.msra.mxu0 %v2465
    %3254 = vmatprep.subr.bf16.mxu0 %v2473
    %3255 = vmatpush1.bf16.msra.mxu0 %v2472
    %3256 = vmatprep.subr.bf16.mxu0 %v2480
    %3257 = vmatpush1.bf16.msra.mxu0 %v2479
    %3258 = vmatprep.subr.bf16.mxu0 %v2487
    %3259 = vmatpush1.bf16.msra.mxu0 %v2486
    %3260 = vmatprep.subr.bf16.mxu0 %v2494
    %3261 = vmatpush1.bf16.msra.mxu0 %v2493
    %3262 = vmatprep.subr.bf16.mxu0 %v2501
    %3263 = vmatpush1.bf16.msra.mxu0 %v2500
    %3264 = vmatprep.subr.bf16.mxu0 %v2508
    %3265 = vmatpush1.bf16.msra.mxu0 %v2507
    %3266 = vmatprep.subr.bf16.mxu0 %v2515
    %3267 = vmatpush1.bf16.msra.mxu0 %v2514
    %3268 = vmatprep.mubr.bf16.mxu0 %v876
    %3269 = vmatmul.mubr.bf16.gmra.mrb[0].mxu0 %v875
    %v3270 = vpop.f32.mrb[0].mxu0
    %v3271 = vadd.f32 %v3228, %v3270
    %v3272 = vpop.f32.mrb[0].mxu0
    %v3273 = vadd.f32 %v3230, %v3272
    %v3274 = vpop.f32.mrb[0].mxu0
    %v3275 = vadd.f32 %v3232, %v3274
    %v3276 = vpop.f32.mrb[0].mxu0
    %v3277 = vadd.f32 %v3234, %v3276
    %3278 = vdwg.mxu0
    %3279 = vmatprep.subr.bf16.mxu0 %v2522
    %3280 = vmatpush1.bf16.msra.mxu0 %v2521
    %3281 = vmatprep.subr.bf16.mxu0 %v2529
    %3282 = vmatpush1.bf16.msra.mxu0 %v2528
    %3283 = vmatprep.subr.bf16.mxu0 %v2536
    %3284 = vmatpush1.bf16.msra.mxu0 %v2535
    %3285 = vmatprep.subr.bf16.mxu0 %v2543
    %3286 = vmatpush1.bf16.msra.mxu0 %v2542
    %3287 = vmatprep.subr.bf16.mxu0 %v2550
    %3288 = vmatpush1.bf16.msra.mxu0 %v2549
    %3289 = vmatprep.subr.bf16.mxu0 %v2557
    %3290 = vmatpush1.bf16.msra.mxu0 %v2556
    %3291 = vmatprep.subr.bf16.mxu0 %v2564
    %3292 = vmatpush1.bf16.msra.mxu0 %v2563
    %3293 = vmatprep.subr.bf16.mxu0 %v2571
    %3294 = vmatpush1.bf16.msra.mxu0 %v2570
    %3295 = vmatprep.subr.bf16.mxu0 %v2578
    %3296 = vmatpush1.bf16.msra.mxu0 %v2577
    %3297 = vmatprep.subr.bf16.mxu0 %v2585
    %3298 = vmatpush1.bf16.msra.mxu0 %v2584
    %3299 = vmatprep.subr.bf16.mxu0 %v2592
    %3300 = vmatpush1.bf16.msra.mxu0 %v2591
    %3301 = vmatprep.subr.bf16.mxu0 %v2599
    %3302 = vmatpush1.bf16.msra.mxu0 %v2598
    %3303 = vmatprep.subr.bf16.mxu0 %v2606
    %3304 = vmatpush1.bf16.msra.mxu0 %v2605
    %3305 = vmatprep.subr.bf16.mxu0 %v2613
    %3306 = vmatpush1.bf16.msra.mxu0 %v2612
    %3307 = vmatprep.subr.bf16.mxu0 %v2620
    %3308 = vmatpush1.bf16.msra.mxu0 %v2619
    %3309 = vmatprep.subr.bf16.mxu0 %v2627
    %3310 = vmatpush1.bf16.msra.mxu0 %v2626
    %3311 = vmatprep.mubr.bf16.mxu0 %v878
    %3312 = vmatmul.mubr.bf16.gmra.mrb[0].mxu0 %v877
    %v3313 = vpop.f32.mrb[0].mxu0
    %v3314 = vadd.f32 %v3271, %v3313
    %v3315 = vpop.f32.mrb[0].mxu0
    %v3316 = vadd.f32 %v3273, %v3315
    %v3317 = vpop.f32.mrb[0].mxu0
    %v3318 = vadd.f32 %v3275, %v3317
    %v3319 = vpop.f32.mrb[0].mxu0
    %v3320 = vadd.f32 %v3277, %v3319
    %3321 = vdwg.mxu0
    %3322 = vmatprep.subr.bf16.mxu0 %v2634
    %3323 = vmatpush1.bf16.msra.mxu0 %v2633
    %3324 = vmatprep.subr.bf16.mxu0 %v2641
    %3325 = vmatpush1.bf16.msra.mxu0 %v2640
    %3326 = vmatprep.subr.bf16.mxu0 %v2648
    %3327 = vmatpush1.bf16.msra.mxu0 %v2647
    %3328 = vmatprep.subr.bf16.mxu0 %v2655
    %3329 = vmatpush1.bf16.msra.mxu0 %v2654
    %3330 = vmatprep.subr.bf16.mxu0 %v2662
    %3331 = vmatpush1.bf16.msra.mxu0 %v2661
    %3332 = vmatprep.subr.bf16.mxu0 %v2669
    %3333 = vmatpush1.bf16.msra.mxu0 %v2668
    %3334 = vmatprep.subr.bf16.mxu0 %v2676
    %3335 = vmatpush1.bf16.msra.mxu0 %v2675
    %3336 = vmatprep.subr.bf16.mxu0 %v2683
    %3337 = vmatpush1.bf16.msra.mxu0 %v2682
    %3338 = vmatprep.subr.bf16.mxu0 %v2690
    %3339 = vmatpush1.bf16.msra.mxu0 %v2689
    %3340 = vmatprep.subr.bf16.mxu0 %v2697
    %3341 = vmatpush1.bf16.msra.mxu0 %v2696
    %3342 = vmatprep.subr.bf16.mxu0 %v2704
    %3343 = vmatpush1.bf16.msra.mxu0 %v2703
    %3344 = vmatprep.subr.bf16.mxu0 %v2711
    %3345 = vmatpush1.bf16.msra.mxu0 %v2710
    %3346 = vmatprep.subr.bf16.mxu0 %v2718
    %3347 = vmatpush1.bf16.msra.mxu0 %v2717
    %3348 = vmatprep.subr.bf16.mxu0 %v2725
    %3349 = vmatpush1.bf16.msra.mxu0 %v2724
    %3350 = vmatprep.subr.bf16.mxu0 %v2732
    %3351 = vmatpush1.bf16.msra.mxu0 %v2731
    %3352 = vmatprep.subr.bf16.mxu0 %v2739
    %3353 = vmatpush1.bf16.msra.mxu0 %v2738
    %3354 = vmatprep.mubr.bf16.mxu0 %v880
    %3355 = vmatmul.mubr.bf16.gmra.mrb[0].mxu0 %v879
    %v3356 = vpop.f32.mrb[0].mxu0
    %v3357 = vadd.f32 %v3314, %v3356
    %v3358 = vpop.f32.mrb[0].mxu0
    %v3359 = vadd.f32 %v3316, %v3358
    %v3360 = vpop.f32.mrb[0].mxu0
    %v3361 = vadd.f32 %v3318, %v3360
    %v3362 = vpop.f32.mrb[0].mxu0
    %v3363 = vadd.f32 %v3320, %v3362
    %3364 = vdwg.mxu0
    %3365 = vmatprep.subr.bf16.mxu0 %v2300
    %3366 = vmatpush1.bf16.msra.mxu0 %v2299
    %3367 = vmatprep.subr.bf16.mxu0 %v2307
    %3368 = vmatpush1.bf16.msra.mxu0 %v2306
    %3369 = vmatprep.subr.bf16.mxu0 %v2314
    %3370 = vmatpush1.bf16.msra.mxu0 %v2313
    %3371 = vmatprep.subr.bf16.mxu0 %v2321
    %3372 = vmatpush1.bf16.msra.mxu0 %v2320
    %3373 = vmatprep.subr.bf16.mxu0 %v2328
    %3374 = vmatpush1.bf16.msra.mxu0 %v2327
    %3375 = vmatprep.subr.bf16.mxu0 %v2335
    %3376 = vmatpush1.bf16.msra.mxu0 %v2334
    %3377 = vmatprep.subr.bf16.mxu0 %v2342
    %3378 = vmatpush1.bf16.msra.mxu0 %v2341
    %3379 = vmatprep.subr.bf16.mxu0 %v2349
    %3380 = vmatpush1.bf16.msra.mxu0 %v2348
    %3381 = vmatprep.subr.bf16.mxu0 %v2356
    %3382 = vmatpush1.bf16.msra.mxu0 %v2355
    %3383 = vmatprep.subr.bf16.mxu0 %v2363
    %3384 = vmatpush1.bf16.msra.mxu0 %v2362
    %3385 = vmatprep.subr.bf16.mxu0 %v2370
    %3386 = vmatpush1.bf16.msra.mxu0 %v2369
    %3387 = vmatprep.subr.bf16.mxu0 %v2377
    %3388 = vmatpush1.bf16.msra.mxu0 %v2376
    %3389 = vmatprep.subr.bf16.mxu0 %v2384
    %3390 = vmatpush1.bf16.msra.mxu0 %v2383
    %3391 = vmatprep.subr.bf16.mxu0 %v2391
    %3392 = vmatpush1.bf16.msra.mxu0 %v2390
    %3393 = vmatprep.subr.bf16.mxu0 %v2398
    %3394 = vmatpush1.bf16.msra.mxu0 %v2397
    %3395 = vmatprep.subr.bf16.mxu0 %v2405
    %3396 = vmatpush1.bf16.msra.mxu0 %v2404
    %3397 = vmatprep.mubr.bf16.mxu0 %v874
    %3398 = vmatmul.mubr.bf16.gmra.mrb[0].mxu0 %v873
    %v3399 = vpop.f32.mrb[0].mxu0
    %v3400 = vadd.f32 %v825, %v3399
    %v3401 = vpop.f32.mrb[0].mxu0
    %v3402 = vadd.f32 %v829, %v3401
    %v3403 = vpop.f32.mrb[0].mxu0
    %v3404 = vadd.f32 %v825, %v3403
    %v3405 = vpop.f32.mrb[0].mxu0
    %v3406 = vadd.f32 %v829, %v3405
    %3407 = vdwg.mxu0
    %3408 = vmatprep.subr.bf16.mxu0 %v2412
    %3409 = vmatpush1.bf16.msra.mxu0 %v2411
    %3410 = vmatprep.subr.bf16.mxu0 %v2419
    %3411 = vmatpush1.bf16.msra.mxu0 %v2418
    %3412 = vmatprep.subr.bf16.mxu0 %v2426
    %3413 = vmatpush1.bf16.msra.mxu0 %v2425
    %3414 = vmatprep.subr.bf16.mxu0 %v2433
    %3415 = vmatpush1.bf16.msra.mxu0 %v2432
    %3416 = vmatprep.subr.bf16.mxu0 %v2440
    %3417 = vmatpush1.bf16.msra.mxu0 %v2439
    %3418 = vmatprep.subr.bf16.mxu0 %v2447
    %3419 = vmatpush1.bf16.msra.mxu0 %v2446
    %3420 = vmatprep.subr.bf16.mxu0 %v2454
    %3421 = vmatpush1.bf16.msra.mxu0 %v2453
    %3422 = vmatprep.subr.bf16.mxu0 %v2461
    %3423 = vmatpush1.bf16.msra.mxu0 %v2460
    %3424 = vmatprep.subr.bf16.mxu0 %v2468
    %3425 = vmatpush1.bf16.msra.mxu0 %v2467
    %3426 = vmatprep.subr.bf16.mxu0 %v2475
    %3427 = vmatpush1.bf16.msra.mxu0 %v2474
    %3428 = vmatprep.subr.bf16.mxu0 %v2482
    %3429 = vmatpush1.bf16.msra.mxu0 %v2481
    %3430 = vmatprep.subr.bf16.mxu0 %v2489
    %3431 = vmatpush1.bf16.msra.mxu0 %v2488
    %3432 = vmatprep.subr.bf16.mxu0 %v2496
    %3433 = vmatpush1.bf16.msra.mxu0 %v2495
    %3434 = vmatprep.subr.bf16.mxu0 %v2503
    %3435 = vmatpush1.bf16.msra.mxu0 %v2502
    %3436 = vmatprep.subr.bf16.mxu0 %v2510
    %3437 = vmatpush1.bf16.msra.mxu0 %v2509
    %3438 = vmatprep.subr.bf16.mxu0 %v2517
    %3439 = vmatpush1.bf16.msra.mxu0 %v2516
    %3440 = vmatprep.mubr.bf16.mxu0 %v876
    %3441 = vmatmul.mubr.bf16.gmra.mrb[0].mxu0 %v875
    %v3442 = vpop.f32.mrb[0].mxu0
    %v3443 = vadd.f32 %v3400, %v3442
    %v3444 = vpop.f32.mrb[0].mxu0
    %v3445 = vadd.f32 %v3402, %v3444
    %v3446 = vpop.f32.mrb[0].mxu0
    %v3447 = vadd.f32 %v3404, %v3446
    %v3448 = vpop.f32.mrb[0].mxu0
    %v3449 = vadd.f32 %v3406, %v3448
    %3450 = vdwg.mxu0
    %3451 = vmatprep.subr.bf16.mxu0 %v2524
    %3452 = vmatpush1.bf16.msra.mxu0 %v2523
    %3453 = vmatprep.subr.bf16.mxu0 %v2531
    %3454 = vmatpush1.bf16.msra.mxu0 %v2530
    %3455 = vmatprep.subr.bf16.mxu0 %v2538
    %3456 = vmatpush1.bf16.msra.mxu0 %v2537
    %3457 = vmatprep.subr.bf16.mxu0 %v2545
    %3458 = vmatpush1.bf16.msra.mxu0 %v2544
    %3459 = vmatprep.subr.bf16.mxu0 %v2552
    %3460 = vmatpush1.bf16.msra.mxu0 %v2551
    %3461 = vmatprep.subr.bf16.mxu0 %v2559
    %3462 = vmatpush1.bf16.msra.mxu0 %v2558
    %3463 = vmatprep.subr.bf16.mxu0 %v2566
    %3464 = vmatpush1.bf16.msra.mxu0 %v2565
    %3465 = vmatprep.subr.bf16.mxu0 %v2573
    %3466 = vmatpush1.bf16.msra.mxu0 %v2572
    %3467 = vmatprep.subr.bf16.mxu0 %v2580
    %3468 = vmatpush1.bf16.msra.mxu0 %v2579
    %3469 = vmatprep.subr.bf16.mxu0 %v2587
    %3470 = vmatpush1.bf16.msra.mxu0 %v2586
    %3471 = vmatprep.subr.bf16.mxu0 %v2594
    %3472 = vmatpush1.bf16.msra.mxu0 %v2593
    %3473 = vmatprep.subr.bf16.mxu0 %v2601
    %3474 = vmatpush1.bf16.msra.mxu0 %v2600
    %3475 = vmatprep.subr.bf16.mxu0 %v2608
    %3476 = vmatpush1.bf16.msra.mxu0 %v2607
    %3477 = vmatprep.subr.bf16.mxu0 %v2615
    %3478 = vmatpush1.bf16.msra.mxu0 %v2614
    %3479 = vmatprep.subr.bf16.mxu0 %v2622
    %3480 = vmatpush1.bf16.msra.mxu0 %v2621
    %3481 = vmatprep.subr.bf16.mxu0 %v2629
    %3482 = vmatpush1.bf16.msra.mxu0 %v2628
    %3483 = vmatprep.mubr.bf16.mxu0 %v878
    %3484 = vmatmul.mubr.bf16.gmra.mrb[0].mxu0 %v877
    %v3485 = vpop.f32.mrb[0].mxu0
    %v3486 = vadd.f32 %v3443, %v3485
    %v3487 = vpop.f32.mrb[0].mxu0
    %v3488 = vadd.f32 %v3445, %v3487
    %v3489 = vpop.f32.mrb[0].mxu0
    %v3490 = vadd.f32 %v3447, %v3489
    %v3491 = vpop.f32.mrb[0].mxu0
    %v3492 = vadd.f32 %v3449, %v3491
    %3493 = vdwg.mxu0
    %3494 = vmatprep.subr.bf16.mxu0 %v2636
    %3495 = vmatpush1.bf16.msra.mxu0 %v2635
    %3496 = vmatprep.subr.bf16.mxu0 %v2643
    %3497 = vmatpush1.bf16.msra.mxu0 %v2642
    %3498 = vmatprep.subr.bf16.mxu0 %v2650
    %3499 = vmatpush1.bf16.msra.mxu0 %v2649
    %3500 = vmatprep.subr.bf16.mxu0 %v2657
    %3501 = vmatpush1.bf16.msra.mxu0 %v2656
    %3502 = vmatprep.subr.bf16.mxu0 %v2664
    %3503 = vmatpush1.bf16.msra.mxu0 %v2663
    %3504 = vmatprep.subr.bf16.mxu0 %v2671
    %3505 = vmatpush1.bf16.msra.mxu0 %v2670
    %3506 = vmatprep.subr.bf16.mxu0 %v2678
    %3507 = vmatpush1.bf16.msra.mxu0 %v2677
    %3508 = vmatprep.subr.bf16.mxu0 %v2685
    %3509 = vmatpush1.bf16.msra.mxu0 %v2684
    %3510 = vmatprep.subr.bf16.mxu0 %v2692
    %3511 = vmatpush1.bf16.msra.mxu0 %v2691
    %3512 = vmatprep.subr.bf16.mxu0 %v2699
    %3513 = vmatpush1.bf16.msra.mxu0 %v2698
    %3514 = vmatprep.subr.bf16.mxu0 %v2706
    %3515 = vmatpush1.bf16.msra.mxu0 %v2705
    %3516 = vmatprep.subr.bf16.mxu0 %v2713
    %3517 = vmatpush1.bf16.msra.mxu0 %v2712
    %3518 = vmatprep.subr.bf16.mxu0 %v2720
    %3519 = vmatpush1.bf16.msra.mxu0 %v2719
    %3520 = vmatprep.subr.bf16.mxu0 %v2727
    %3521 = vmatpush1.bf16.msra.mxu0 %v2726
    %3522 = vmatprep.subr.bf16.mxu0 %v2734
    %3523 = vmatpush1.bf16.msra.mxu0 %v2733
    %3524 = vmatprep.subr.bf16.mxu0 %v2741
    %3525 = vmatpush1.bf16.msra.mxu0 %v2740
    %3526 = vmatprep.mubr.bf16.mxu0 %v880
    %3527 = vmatmul.mubr.bf16.gmra.mrb[0].mxu0 %v879
    %v3528 = vpop.f32.mrb[0].mxu0
    %v3529 = vadd.f32 %v3486, %v3528
    %v3530 = vpop.f32.mrb[0].mxu0
    %v3531 = vadd.f32 %v3488, %v3530
    %v3532 = vpop.f32.mrb[0].mxu0
    %v3533 = vadd.f32 %v3490, %v3532
    %v3534 = vpop.f32.mrb[0].mxu0
    %v3535 = vadd.f32 %v3492, %v3534
    %3536 = vdwg.mxu0
    %3537 = vmatprep.subr.bf16.mxu0 %v2302
    %3538 = vmatpush1.bf16.msra.mxu0 %v2301
    %3539 = vmatprep.subr.bf16.mxu0 %v2309
    %3540 = vmatpush1.bf16.msra.mxu0 %v2308
    %3541 = vmatprep.subr.bf16.mxu0 %v2316
    %3542 = vmatpush1.bf16.msra.mxu0 %v2315
    %3543 = vmatprep.subr.bf16.mxu0 %v2323
    %3544 = vmatpush1.bf16.msra.mxu0 %v2322
    %3545 = vmatprep.subr.bf16.mxu0 %v2330
    %3546 = vmatpush1.bf16.msra.mxu0 %v2329
    %3547 = vmatprep.subr.bf16.mxu0 %v2337
    %3548 = vmatpush1.bf16.msra.mxu0 %v2336
    %3549 = vmatprep.subr.bf16.mxu0 %v2344
    %3550 = vmatpush1.bf16.msra.mxu0 %v2343
    %3551 = vmatprep.subr.bf16.mxu0 %v2351
    %3552 = vmatpush1.bf16.msra.mxu0 %v2350
    %3553 = vmatprep.subr.bf16.mxu0 %v2358
    %3554 = vmatpush1.bf16.msra.mxu0 %v2357
    %3555 = vmatprep.subr.bf16.mxu0 %v2365
    %3556 = vmatpush1.bf16.msra.mxu0 %v2364
    %3557 = vmatprep.subr.bf16.mxu0 %v2372
    %3558 = vmatpush1.bf16.msra.mxu0 %v2371
    %3559 = vmatprep.subr.bf16.mxu0 %v2379
    %3560 = vmatpush1.bf16.msra.mxu0 %v2378
    %3561 = vmatprep.subr.bf16.mxu0 %v2386
    %3562 = vmatpush1.bf16.msra.mxu0 %v2385
    %3563 = vmatprep.subr.bf16.mxu0 %v2393
    %3564 = vmatpush1.bf16.msra.mxu0 %v2392
    %3565 = vmatprep.subr.bf16.mxu0 %v2400
    %3566 = vmatpush1.bf16.msra.mxu0 %v2399
    %3567 = vmatprep.subr.bf16.mxu0 %v2407
    %3568 = vmatpush1.bf16.msra.mxu0 %v2406
    %3569 = vmatprep.mubr.bf16.mxu0 %v874
    %3570 = vmatmul.mubr.bf16.gmra.mrb[0].mxu0 %v873
    %v3571 = vpop.f32.mrb[0].mxu0
    %v3572 = vadd.f32 %v833, %v3571
    %v3573 = vpop.f32.mrb[0].mxu0
    %v3574 = vadd.f32 %v837, %v3573
    %v3575 = vpop.f32.mrb[0].mxu0
    %v3576 = vadd.f32 %v833, %v3575
    %v3577 = vpop.f32.mrb[0].mxu0
    %v3578 = vadd.f32 %v837, %v3577
    %3579 = vdwg.mxu0
    %3580 = vmatprep.subr.bf16.mxu0 %v2414
    %3581 = vmatpush1.bf16.msra.mxu0 %v2413
    %3582 = vmatprep.subr.bf16.mxu0 %v2421
    %3583 = vmatpush1.bf16.msra.mxu0 %v2420
    %3584 = vmatprep.subr.bf16.mxu0 %v2428
    %3585 = vmatpush1.bf16.msra.mxu0 %v2427
    %3586 = vmatprep.subr.bf16.mxu0 %v2435
    %3587 = vmatpush1.bf16.msra.mxu0 %v2434
    %3588 = vmatprep.subr.bf16.mxu0 %v2442
    %3589 = vmatpush1.bf16.msra.mxu0 %v2441
    %3590 = vmatprep.subr.bf16.mxu0 %v2449
    %3591 = vmatpush1.bf16.msra.mxu0 %v2448
    %3592 = vmatprep.subr.bf16.mxu0 %v2456
    %3593 = vmatpush1.bf16.msra.mxu0 %v2455
    %3594 = vmatprep.subr.bf16.mxu0 %v2463
    %3595 = vmatpush1.bf16.msra.mxu0 %v2462
    %3596 = vmatprep.subr.bf16.mxu0 %v2470
    %3597 = vmatpush1.bf16.msra.mxu0 %v2469
    %3598 = vmatprep.subr.bf16.mxu0 %v2477
    %3599 = vmatpush1.bf16.msra.mxu0 %v2476
    %3600 = vmatprep.subr.bf16.mxu0 %v2484
    %3601 = vmatpush1.bf16.msra.mxu0 %v2483
    %3602 = vmatprep.subr.bf16.mxu0 %v2491
    %3603 = vmatpush1.bf16.msra.mxu0 %v2490
    %3604 = vmatprep.subr.bf16.mxu0 %v2498
    %3605 = vmatpush1.bf16.msra.mxu0 %v2497
    %3606 = vmatprep.subr.bf16.mxu0 %v2505
    %3607 = vmatpush1.bf16.msra.mxu0 %v2504
    %3608 = vmatprep.subr.bf16.mxu0 %v2512
    %3609 = vmatpush1.bf16.msra.mxu0 %v2511
    %3610 = vmatprep.subr.bf16.mxu0 %v2519
    %3611 = vmatpush1.bf16.msra.mxu0 %v2518
    %3612 = vmatprep.mubr.bf16.mxu0 %v876
    %3613 = vmatmul.mubr.bf16.gmra.mrb[0].mxu0 %v875
    %v3614 = vpop.f32.mrb[0].mxu0
    %v3615 = vadd.f32 %v3572, %v3614
    %v3616 = vpop.f32.mrb[0].mxu0
    %v3617 = vadd.f32 %v3574, %v3616
    %v3618 = vpop.f32.mrb[0].mxu0
    %v3619 = vadd.f32 %v3576, %v3618
    %v3620 = vpop.f32.mrb[0].mxu0
    %v3621 = vadd.f32 %v3578, %v3620
    %3622 = vdwg.mxu0
    %3623 = vmatprep.subr.bf16.mxu0 %v2526
    %3624 = vmatpush1.bf16.msra.mxu0 %v2525
    %3625 = vmatprep.subr.bf16.mxu0 %v2533
    %3626 = vmatpush1.bf16.msra.mxu0 %v2532
    %3627 = vmatprep.subr.bf16.mxu0 %v2540
    %3628 = vmatpush1.bf16.msra.mxu0 %v2539
    %3629 = vmatprep.subr.bf16.mxu0 %v2547
    %3630 = vmatpush1.bf16.msra.mxu0 %v2546
    %3631 = vmatprep.subr.bf16.mxu0 %v2554
    %3632 = vmatpush1.bf16.msra.mxu0 %v2553
    %3633 = vmatprep.subr.bf16.mxu0 %v2561
    %3634 = vmatpush1.bf16.msra.mxu0 %v2560
    %3635 = vmatprep.subr.bf16.mxu0 %v2568
    %3636 = vmatpush1.bf16.msra.mxu0 %v2567
    %3637 = vmatprep.subr.bf16.mxu0 %v2575
    %3638 = vmatpush1.bf16.msra.mxu0 %v2574
    %3639 = vmatprep.subr.bf16.mxu0 %v2582
    %3640 = vmatpush1.bf16.msra.mxu0 %v2581
    %3641 = vmatprep.subr.bf16.mxu0 %v2589
    %3642 = vmatpush1.bf16.msra.mxu0 %v2588
    %3643 = vmatprep.subr.bf16.mxu0 %v2596
    %3644 = vmatpush1.bf16.msra.mxu0 %v2595
    %3645 = vmatprep.subr.bf16.mxu0 %v2603
    %3646 = vmatpush1.bf16.msra.mxu0 %v2602
    %3647 = vmatprep.subr.bf16.mxu0 %v2610
    %3648 = vmatpush1.bf16.msra.mxu0 %v2609
    %3649 = vmatprep.subr.bf16.mxu0 %v2617
    %3650 = vmatpush1.bf16.msra.mxu0 %v2616
    %3651 = vmatprep.subr.bf16.mxu0 %v2624
    %3652 = vmatpush1.bf16.msra.mxu0 %v2623
    %3653 = vmatprep.subr.bf16.mxu0 %v2631
    %3654 = vmatpush1.bf16.msra.mxu0 %v2630
    %3655 = vmatprep.mubr.bf16.mxu0 %v878
    %3656 = vmatmul.mubr.bf16.gmra.mrb[0].mxu0 %v877
    %v3657 = vpop.f32.mrb[0].mxu0
    %v3658 = vadd.f32 %v3615, %v3657
    %v3659 = vpop.f32.mrb[0].mxu0
    %v3660 = vadd.f32 %v3617, %v3659
    %v3661 = vpop.f32.mrb[0].mxu0
    %v3662 = vadd.f32 %v3619, %v3661
    %v3663 = vpop.f32.mrb[0].mxu0
    %v3664 = vadd.f32 %v3621, %v3663
    %3665 = vdwg.mxu0
    %3666 = vmatprep.subr.bf16.mxu0 %v2638
    %3667 = vmatpush1.bf16.msra.mxu0 %v2637
    %3668 = vmatprep.subr.bf16.mxu0 %v2645
    %3669 = vmatpush1.bf16.msra.mxu0 %v2644
    %3670 = vmatprep.subr.bf16.mxu0 %v2652
    %3671 = vmatpush1.bf16.msra.mxu0 %v2651
    %3672 = vmatprep.subr.bf16.mxu0 %v2659
    %3673 = vmatpush1.bf16.msra.mxu0 %v2658
    %3674 = vmatprep.subr.bf16.mxu0 %v2666
    %3675 = vmatpush1.bf16.msra.mxu0 %v2665
    %3676 = vmatprep.subr.bf16.mxu0 %v2673
    %3677 = vmatpush1.bf16.msra.mxu0 %v2672
    %3678 = vmatprep.subr.bf16.mxu0 %v2680
    %3679 = vmatpush1.bf16.msra.mxu0 %v2679
    %3680 = vmatprep.subr.bf16.mxu0 %v2687
    %3681 = vmatpush1.bf16.msra.mxu0 %v2686
    %3682 = vmatprep.subr.bf16.mxu0 %v2694
    %3683 = vmatpush1.bf16.msra.mxu0 %v2693
    %3684 = vmatprep.subr.bf16.mxu0 %v2701
    %3685 = vmatpush1.bf16.msra.mxu0 %v2700
    %3686 = vmatprep.subr.bf16.mxu0 %v2708
    %3687 = vmatpush1.bf16.msra.mxu0 %v2707
    %3688 = vmatprep.subr.bf16.mxu0 %v2715
    %3689 = vmatpush1.bf16.msra.mxu0 %v2714
    %3690 = vmatprep.subr.bf16.mxu0 %v2722
    %3691 = vmatpush1.bf16.msra.mxu0 %v2721
    %3692 = vmatprep.subr.bf16.mxu0 %v2729
    %3693 = vmatpush1.bf16.msra.mxu0 %v2728
    %3694 = vmatprep.subr.bf16.mxu0 %v2736
    %3695 = vmatpush1.bf16.msra.mxu0 %v2735
    %3696 = vmatprep.subr.bf16.mxu0 %v2743
    %3697 = vmatpush1.bf16.msra.mxu0 %v2742
    %3698 = vmatprep.mubr.bf16.mxu0 %v880
    %3699 = vmatmul.mubr.bf16.gmra.mrb[0].mxu0 %v879
    %v3700 = vpop.f32.mrb[0].mxu0
    %v3701 = vadd.f32 %v3658, %v3700
    %v3702 = vpop.f32.mrb[0].mxu0
    %v3703 = vadd.f32 %v3660, %v3702
    %v3704 = vpop.f32.mrb[0].mxu0
    %v3705 = vadd.f32 %v3662, %v3704
    %v3706 = vpop.f32.mrb[0].mxu0
    %v3707 = vadd.f32 %v3664, %v3706
    %3708 = vdwg.mxu0
    %3709 = vmatprep.subr.bf16.mxu0 0
    %3710 = vmatpush1.bf16.msra.mxu0 %v2303
    %3711 = vmatprep.subr.bf16.mxu0 0
    %3712 = vmatpush1.bf16.msra.mxu0 %v2310
    %3713 = vmatprep.subr.bf16.mxu0 0
    %3714 = vmatpush1.bf16.msra.mxu0 %v2317
    %3715 = vmatprep.subr.bf16.mxu0 0
    %3716 = vmatpush1.bf16.msra.mxu0 %v2324
    %3717 = vmatprep.subr.bf16.mxu0 0
    %3718 = vmatpush1.bf16.msra.mxu0 %v2331
    %3719 = vmatprep.subr.bf16.mxu0 0
    %3720 = vmatpush1.bf16.msra.mxu0 %v2338
    %3721 = vmatprep.subr.bf16.mxu0 0
    %3722 = vmatpush1.bf16.msra.mxu0 %v2345
    %3723 = vmatprep.subr.bf16.mxu0 0
    %3724 = vmatpush1.bf16.msra.mxu0 %v2352
    %3725 = vmatprep.subr.bf16.mxu0 0
    %3726 = vmatpush1.bf16.msra.mxu0 %v2359
    %3727 = vmatprep.subr.bf16.mxu0 0
    %3728 = vmatpush1.bf16.msra.mxu0 %v2366
    %3729 = vmatprep.subr.bf16.mxu0 0
    %3730 = vmatpush1.bf16.msra.mxu0 %v2373
    %3731 = vmatprep.subr.bf16.mxu0 0
    %3732 = vmatpush1.bf16.msra.mxu0 %v2380
    %3733 = vmatprep.subr.bf16.mxu0 0
    %3734 = vmatpush1.bf16.msra.mxu0 %v2387
    %3735 = vmatprep.subr.bf16.mxu0 0
    %3736 = vmatpush1.bf16.msra.mxu0 %v2394
    %3737 = vmatprep.subr.bf16.mxu0 0
    %3738 = vmatpush1.bf16.msra.mxu0 %v2401
    %3739 = vmatprep.subr.bf16.mxu0 0
    %3740 = vmatpush1.bf16.msra.mxu0 %v2408
    %3741 = vmatprep.mubr.bf16.mxu0 %v874
    %3742 = vmatmul.mubr.bf16.gmra.mrb[0].mxu0 %v873
    %v3743 = vpop.f32.mrb[0].mxu0
    %v3744 = vadd.f32 %v841, %v3743
    %v3745 = vpop.f32.mrb[0].mxu0
    %v3746 = vpop.f32.mrb[0].mxu0
    %v3747 = vadd.f32 %v841, %v3746
    %v3748 = vpop.f32.mrb[0].mxu0
    %3749 = vdwg.mxu0
    %3750 = vmatprep.subr.bf16.mxu0 0
    %3751 = vmatpush1.bf16.msra.mxu0 %v2415
    %3752 = vmatprep.subr.bf16.mxu0 0
    %3753 = vmatpush1.bf16.msra.mxu0 %v2422
    %3754 = vmatprep.subr.bf16.mxu0 0
    %3755 = vmatpush1.bf16.msra.mxu0 %v2429
    %3756 = vmatprep.subr.bf16.mxu0 0
    %3757 = vmatpush1.bf16.msra.mxu0 %v2436
    %3758 = vmatprep.subr.bf16.mxu0 0
    %3759 = vmatpush1.bf16.msra.mxu0 %v2443
    %3760 = vmatprep.subr.bf16.mxu0 0
    %3761 = vmatpush1.bf16.msra.mxu0 %v2450
    %3762 = vmatprep.subr.bf16.mxu0 0
    %3763 = vmatpush1.bf16.msra.mxu0 %v2457
    %3764 = vmatprep.subr.bf16.mxu0 0
    %3765 = vmatpush1.bf16.msra.mxu0 %v2464
    %3766 = vmatprep.subr.bf16.mxu0 0
    %3767 = vmatpush1.bf16.msra.mxu0 %v2471
    %3768 = vmatprep.subr.bf16.mxu0 0
    %3769 = vmatpush1.bf16.msra.mxu0 %v2478
    %3770 = vmatprep.subr.bf16.mxu0 0
    %3771 = vmatpush1.bf16.msra.mxu0 %v2485
    %3772 = vmatprep.subr.bf16.mxu0 0
    %3773 = vmatpush1.bf16.msra.mxu0 %v2492
    %3774 = vmatprep.subr.bf16.mxu0 0
    %3775 = vmatpush1.bf16.msra.mxu0 %v2499
    %3776 = vmatprep.subr.bf16.mxu0 0
    %3777 = vmatpush1.bf16.msra.mxu0 %v2506
    %3778 = vmatprep.subr.bf16.mxu0 0
    %3779 = vmatpush1.bf16.msra.mxu0 %v2513
    %3780 = vmatprep.subr.bf16.mxu0 0
    %3781 = vmatpush1.bf16.msra.mxu0 %v2520
    %3782 = vmatprep.mubr.bf16.mxu0 %v876
    %3783 = vmatmul.mubr.bf16.gmra.mrb[0].mxu0 %v875
    %v3784 = vpop.f32.mrb[0].mxu0
    %v3785 = vadd.f32 %v3744, %v3784
    %v3786 = vpop.f32.mrb[0].mxu0
    %v3787 = vpop.f32.mrb[0].mxu0
    %v3788 = vadd.f32 %v3747, %v3787
    %v3789 = vpop.f32.mrb[0].mxu0
    %3790 = vdwg.mxu0
    %3791 = vmatprep.subr.bf16.mxu0 0
    %3792 = vmatpush1.bf16.msra.mxu0 %v2527
    %3793 = vmatprep.subr.bf16.mxu0 0
    %3794 = vmatpush1.bf16.msra.mxu0 %v2534
    %3795 = vmatprep.subr.bf16.mxu0 0
    %3796 = vmatpush1.bf16.msra.mxu0 %v2541
    %3797 = vmatprep.subr.bf16.mxu0 0
    %3798 = vmatpush1.bf16.msra.mxu0 %v2548
    %3799 = vmatprep.subr.bf16.mxu0 0
    %3800 = vmatpush1.bf16.msra.mxu0 %v2555
    %3801 = vmatprep.subr.bf16.mxu0 0
    %3802 = vmatpush1.bf16.msra.mxu0 %v2562
    %3803 = vmatprep.subr.bf16.mxu0 0
    %3804 = vmatpush1.bf16.msra.mxu0 %v2569
    %3805 = vmatprep.subr.bf16.mxu0 0
    %3806 = vmatpush1.bf16.msra.mxu0 %v2576
    %3807 = vmatprep.subr.bf16.mxu0 0
    %3808 = vmatpush1.bf16.msra.mxu0 %v2583
    %3809 = vmatprep.subr.bf16.mxu0 0
    %3810 = vmatpush1.bf16.msra.mxu0 %v2590
    %3811 = vmatprep.subr.bf16.mxu0 0
    %3812 = vmatpush1.bf16.msra.mxu0 %v2597
    %3813 = vmatprep.subr.bf16.mxu0 0
    %3814 = vmatpush1.bf16.msra.mxu0 %v2604
    %3815 = vmatprep.subr.bf16.mxu0 0
    %3816 = vmatpush1.bf16.msra.mxu0 %v2611
    %3817 = vmatprep.subr.bf16.mxu0 0
    %3818 = vmatpush1.bf16.msra.mxu0 %v2618
    %3819 = vmatprep.subr.bf16.mxu0 0
    %3820 = vmatpush1.bf16.msra.mxu0 %v2625
    %3821 = vmatprep.subr.bf16.mxu0 0
    %3822 = vmatpush1.bf16.msra.mxu0 %v2632
    %3823 = vmatprep.mubr.bf16.mxu0 %v878
    %3824 = vmatmul.mubr.bf16.gmra.mrb[0].mxu0 %v877
    %v3825 = vpop.f32.mrb[0].mxu0
    %v3826 = vadd.f32 %v3785, %v3825
    %v3827 = vpop.f32.mrb[0].mxu0
    %v3828 = vpop.f32.mrb[0].mxu0
    %v3829 = vadd.f32 %v3788, %v3828
    %v3830 = vpop.f32.mrb[0].mxu0
    %3831 = vdwg.mxu0
    %3832 = vmatprep.subr.bf16.mxu0 0
    %3833 = vmatpush1.bf16.msra.mxu0 %v2639
    %3834 = vmatprep.subr.bf16.mxu0 0
    %3835 = vmatpush1.bf16.msra.mxu0 %v2646
    %3836 = vmatprep.subr.bf16.mxu0 0
    %3837 = vmatpush1.bf16.msra.mxu0 %v2653
    %3838 = vmatprep.subr.bf16.mxu0 0
    %3839 = vmatpush1.bf16.msra.mxu0 %v2660
    %3840 = vmatprep.subr.bf16.mxu0 0
    %3841 = vmatpush1.bf16.msra.mxu0 %v2667
    %3842 = vmatprep.subr.bf16.mxu0 0
    %3843 = vmatpush1.bf16.msra.mxu0 %v2674
    %3844 = vmatprep.subr.bf16.mxu0 0
    %3845 = vmatpush1.bf16.msra.mxu0 %v2681
    %3846 = vmatprep.subr.bf16.mxu0 0
    %3847 = vmatpush1.bf16.msra.mxu0 %v2688
    %3848 = vmatprep.subr.bf16.mxu0 0
    %3849 = vmatpush1.bf16.msra.mxu0 %v2695
    %3850 = vmatprep.subr.bf16.mxu0 0
    %3851 = vmatpush1.bf16.msra.mxu0 %v2702
    %3852 = vmatprep.subr.bf16.mxu0 0
    %3853 = vmatpush1.bf16.msra.mxu0 %v2709
    %3854 = vmatprep.subr.bf16.mxu0 0
    %3855 = vmatpush1.bf16.msra.mxu0 %v2716
    %3856 = vmatprep.subr.bf16.mxu0 0
    %3857 = vmatpush1.bf16.msra.mxu0 %v2723
    %3858 = vmatprep.subr.bf16.mxu0 0
    %3859 = vmatpush1.bf16.msra.mxu0 %v2730
    %3860 = vmatprep.subr.bf16.mxu0 0
    %3861 = vmatpush1.bf16.msra.mxu0 %v2737
    %3862 = vmatprep.subr.bf16.mxu0 0
    %3863 = vmatpush1.bf16.msra.mxu0 %v2744
    %3864 = vmatprep.mubr.bf16.mxu0 %v880
    %3865 = vmatmul.mubr.bf16.gmra.mrb[0].mxu0 %v879
    %v3866 = vpop.f32.mrb[0].mxu0
    %v3867 = vadd.f32 %v3826, %v3866
    %v3868 = vpop.f32.mrb[0].mxu0
    %v3869 = vpop.f32.mrb[0].mxu0
    %v3870 = vadd.f32 %v3829, %v3869
    %v3871 = vpop.f32.mrb[0].mxu0
    %3872 = vdwg.mxu0
    %v3873 = vmax.f32 %v3357, 0.0
    %v3874 = vmax.f32 %v3359, 0.0
    %v3875 = vmax.f32 %v3529, 0.0
    %v3876 = vmax.f32 %v3531, 0.0
    %v3877 = vmax.f32 %v3701, 0.0
    %v3878 = vmax.f32 %v3703, 0.0
    %v3879 = vmax.f32 %v3867, 0.0
    %v3880 = vmax.f32 %v3361, 0.0
    %v3881 = vmax.f32 %v3363, 0.0
    %v3882 = vmax.f32 %v3533, 0.0
    %v3883 = vmax.f32 %v3535, 0.0
    %v3884 = vmax.f32 %v3705, 0.0
    %v3885 = vmax.f32 %v3707, 0.0
    %v3886 = vmax.f32 %v3870, 0.0
    %v3887 = vpack.c.bf16 %v3880, %v3873
    %v3888 = vpack.c.bf16 %v3881, %v3874
    %v3889 = vpack.c.bf16 %v3882, %v3875
    %v3890 = vpack.c.bf16 %v3883, %v3876
    %v3891 = vpack.c.bf16 %v3884, %v3877
    %v3892 = vpack.c.bf16 %v3885, %v3878
    %v3893 = vpack.c.bf16 %v3886, %v3879
    %v3894 = vld [vmem:[#allocation10] sm:$0xff]
    %v3895 = vld [vmem:[#allocation10 + $0x8] sm:$0xff]
    %v3896 = vld [vmem:[#allocation10 + $0x10] sm:$0xff]
    %v3897 = vld [vmem:[#allocation10 + $0x18] sm:$0xff]
    %v3898 = vld [vmem:[#allocation10 + $0x20] sm:$0xff]
    %v3899 = vld [vmem:[#allocation10 + $0x28] sm:$0xff]
    %v3900 = vld [vmem:[#allocation10 + $0x30] sm:$0xff]
    %v3901 = vld [vmem:[#allocation10 + $0x38] sm:$0xff]
    %v3902 = vld [vmem:[#allocation10 + $0x40] sm:$0xff]
    %v3903 = vld [vmem:[#allocation10 + $0x48] sm:$0xff]
    %v3904 = vld [vmem:[#allocation10 + $0x50] sm:$0xff]
    %v3905 = vld [vmem:[#allocation10 + $0x58] sm:$0xff]
    %v3906 = vld [vmem:[#allocation10 + $0x60] sm:$0xff]
    %v3907 = vld [vmem:[#allocation10 + $0x68] sm:$0xff]
    %v3908 = vld [vmem:[#allocation10 + $0x70] sm:$0xff]
    %v3909 = vld [vmem:[#allocation10 + $0x78] sm:$0xff]
    %v3910 = vld [vmem:[#allocation10 + $0x80] sm:$0xff]
    %v3911 = vld [vmem:[#allocation10 + $0x88] sm:$0xff]
    %v3912 = vld [vmem:[#allocation10 + $0x90] sm:$0xff]
    %v3913 = vld [vmem:[#allocation10 + $0x98] sm:$0xff]
    %v3914 = vld [vmem:[#allocation10 + $0xa0] sm:$0xff]
    %v3915 = vld [vmem:[#allocation10 + $0xa8] sm:$0xff]
    %v3916 = vld [vmem:[#allocation10 + $0xb0] sm:$0xff]
    %v3917 = vld [vmem:[#allocation10 + $0xb8] sm:$0xff]
    %v3918 = vld [vmem:[#allocation10 + $0xc0] sm:$0xff]
    %v3919 = vld [vmem:[#allocation10 + $0xc8] sm:$0xff]
    %v3920 = vld [vmem:[#allocation10 + $0xd0] sm:$0xff]
    %v3921 = vld [vmem:[#allocation10 + $0xd8] sm:$0xff]
    %v3922 = vld [vmem:[#allocation10 + $0xe0] sm:$0xff]
    %v3923 = vld [vmem:[#allocation10 + $0xe8] sm:$0xff]
    %v3924 = vld [vmem:[#allocation10 + $0xf0] sm:$0xff]
    %v3925 = vld [vmem:[#allocation10 + $0xf8] sm:$0xff]
    %v3926 = vld [vmem:[#allocation10 + $0x100] sm:$0xff]
    %v3927 = vld [vmem:[#allocation10 + $0x108] sm:$0xff]
    %v3928 = vld [vmem:[#allocation10 + $0x110] sm:$0xff]
    %v3929 = vld [vmem:[#allocation10 + $0x118] sm:$0xff]
    %v3930 = vld [vmem:[#allocation10 + $0x120] sm:$0xff]
    %v3931 = vld [vmem:[#allocation10 + $0x128] sm:$0xff]
    %v3932 = vld [vmem:[#allocation10 + $0x130] sm:$0xff]
    %v3933 = vld [vmem:[#allocation10 + $0x138] sm:$0xff]
    %v3934 = vld [vmem:[#allocation10 + $0x140] sm:$0xff]
    %v3935 = vld [vmem:[#allocation10 + $0x148] sm:$0xff]
    %v3936 = vld [vmem:[#allocation10 + $0x150] sm:$0xff]
    %v3937 = vld [vmem:[#allocation10 + $0x158] sm:$0xff]
    %v3938 = vld [vmem:[#allocation10 + $0x160] sm:$0xff]
    %v3939 = vld [vmem:[#allocation10 + $0x168] sm:$0xff]
    %v3940 = vld [vmem:[#allocation10 + $0x170] sm:$0xff]
    %v3941 = vld [vmem:[#allocation10 + $0x178] sm:$0xff]
    %v3942 = vld [vmem:[#allocation10 + $0x180] sm:$0xff]
    %v3943 = vld [vmem:[#allocation10 + $0x188] sm:$0xff]
    %v3944 = vld [vmem:[#allocation10 + $0x190] sm:$0xff]
    %v3945 = vld [vmem:[#allocation10 + $0x198] sm:$0xff]
    %v3946 = vld [vmem:[#allocation10 + $0x1a0] sm:$0xff]
    %v3947 = vld [vmem:[#allocation10 + $0x1a8] sm:$0xff]
    %v3948 = vld [vmem:[#allocation10 + $0x1b0] sm:$0xff]
    %v3949 = vld [vmem:[#allocation10 + $0x1b8] sm:$0xff]
    %v3950 = vld [vmem:[#allocation10 + $0x1c0] sm:$0xff]
    %v3951 = vld [vmem:[#allocation10 + $0x1c8] sm:$0xff]
    %v3952 = vld [vmem:[#allocation10 + $0x1d0] sm:$0xff]
    %v3953 = vld [vmem:[#allocation10 + $0x1d8] sm:$0xff]
    %v3954 = vld [vmem:[#allocation10 + $0x1e0] sm:$0xff]
    %v3955 = vld [vmem:[#allocation10 + $0x1e8] sm:$0xff]
    %v3956 = vld [vmem:[#allocation10 + $0x1f0] sm:$0xff]
    %v3957 = vld [vmem:[#allocation10 + $0x1f8] sm:$0xff]
    %v3958 = vld [vmem:[#allocation10 + $0x200] sm:$0xff]
    %v3959 = vld [vmem:[#allocation10 + $0x208] sm:$0xff]
    %v3960 = vld [vmem:[#allocation10 + $0x210] sm:$0xff]
    %v3961 = vld [vmem:[#allocation10 + $0x218] sm:$0xff]
    %v3962 = vld [vmem:[#allocation10 + $0x220] sm:$0xff]
    %v3963 = vld [vmem:[#allocation10 + $0x228] sm:$0xff]
    %v3964 = vld [vmem:[#allocation10 + $0x230] sm:$0xff]
    %v3965 = vld [vmem:[#allocation10 + $0x238] sm:$0xff]
    %v3966 = vld [vmem:[#allocation10 + $0x240] sm:$0xff]
    %v3967 = vld [vmem:[#allocation10 + $0x248] sm:$0xff]
    %v3968 = vld [vmem:[#allocation10 + $0x250] sm:$0xff]
    %v3969 = vld [vmem:[#allocation10 + $0x258] sm:$0xff]
    %v3970 = vld [vmem:[#allocation10 + $0x260] sm:$0xff]
    %v3971 = vld [vmem:[#allocation10 + $0x268] sm:$0xff]
    %v3972 = vld [vmem:[#allocation10 + $0x270] sm:$0xff]
    %v3973 = vld [vmem:[#allocation10 + $0x278] sm:$0xff]
    %v3974 = vld [vmem:[#allocation10 + $0x280] sm:$0xff]
    %v3975 = vld [vmem:[#allocation10 + $0x288] sm:$0xff]
    %v3976 = vld [vmem:[#allocation10 + $0x290] sm:$0xff]
    %v3977 = vld [vmem:[#allocation10 + $0x298] sm:$0xff]
    %v3978 = vld [vmem:[#allocation10 + $0x2a0] sm:$0xff]
    %v3979 = vld [vmem:[#allocation10 + $0x2a8] sm:$0xff]
    %v3980 = vld [vmem:[#allocation10 + $0x2b0] sm:$0xff]
    %v3981 = vld [vmem:[#allocation10 + $0x2b8] sm:$0xff]
    %v3982 = vld [vmem:[#allocation10 + $0x2c0] sm:$0xff]
    %v3983 = vld [vmem:[#allocation10 + $0x2c8] sm:$0xff]
    %v3984 = vld [vmem:[#allocation10 + $0x2d0] sm:$0xff]
    %v3985 = vld [vmem:[#allocation10 + $0x2d8] sm:$0xff]
    %v3986 = vld [vmem:[#allocation10 + $0x2e0] sm:$0xff]
    %v3987 = vld [vmem:[#allocation10 + $0x2e8] sm:$0xff]
    %v3988 = vld [vmem:[#allocation10 + $0x2f0] sm:$0xff]
    %v3989 = vld [vmem:[#allocation10 + $0x2f8] sm:$0xff]
    %v3990 = vld [vmem:[#allocation10 + $0x300] sm:$0xff]
    %v3991 = vld [vmem:[#allocation10 + $0x308] sm:$0xff]
    %v3992 = vld [vmem:[#allocation10 + $0x310] sm:$0xff]
    %v3993 = vld [vmem:[#allocation10 + $0x318] sm:$0xff]
    %v3994 = vld [vmem:[#allocation10 + $0x320] sm:$0xff]
    %v3995 = vld [vmem:[#allocation10 + $0x328] sm:$0xff]
    %v3996 = vld [vmem:[#allocation10 + $0x330] sm:$0xff]
    %v3997 = vld [vmem:[#allocation10 + $0x338] sm:$0xff]
    %v3998 = vld [vmem:[#allocation10 + $0x340] sm:$0xff]
    %v3999 = vld [vmem:[#allocation10 + $0x348] sm:$0xff]
    %v4000 = vld [vmem:[#allocation10 + $0x350] sm:$0xff]
    %v4001 = vld [vmem:[#allocation10 + $0x358] sm:$0xff]
    %v4002 = vld [vmem:[#allocation10 + $0x360] sm:$0xff]
    %v4003 = vld [vmem:[#allocation10 + $0x368] sm:$0xff]
    %v4004 = vld [vmem:[#allocation10 + $0x370] sm:$0xff]
    %v4005 = vld [vmem:[#allocation10 + $0x378] sm:$0xff]
    %v4006 = vld [vmem:[#allocation10 + $0x380] sm:$0xff]
    %v4007 = vld [vmem:[#allocation10 + $0x388] sm:$0xff]
    %v4008 = vld [vmem:[#allocation10 + $0x390] sm:$0xff]
    %v4009 = vld [vmem:[#allocation10 + $0x398] sm:$0xff]
    %v4010 = vld [vmem:[#allocation10 + $0x3a0] sm:$0xff]
    %v4011 = vld [vmem:[#allocation10 + $0x3a8] sm:$0xff]
    %v4012 = vld [vmem:[#allocation10 + $0x3b0] sm:$0xff]
    %v4013 = vld [vmem:[#allocation10 + $0x3b8] sm:$0xff]
    %v4014 = vld [vmem:[#allocation10 + $0x3c0] sm:$0xff]
    %v4015 = vld [vmem:[#allocation10 + $0x3c8] sm:$0xff]
    %v4016 = vld [vmem:[#allocation10 + $0x3d0] sm:$0xff]
    %v4017 = vld [vmem:[#allocation10 + $0x3d8] sm:$0xff]
    %v4018 = vld [vmem:[#allocation10 + $0x3e0] sm:$0xff]
    %v4019 = vld [vmem:[#allocation10 + $0x3e8] sm:$0xff]
    %v4020 = vld [vmem:[#allocation10 + $0x3f0] sm:$0xff]
    %v4021 = vld [vmem:[#allocation10 + $0x3f8] sm:$0xff]
    %v4022 = vld [vmem:[#allocation10 + $0x400] sm:$0xff]
    %v4023 = vld [vmem:[#allocation10 + $0x408] sm:$0xff]
    %v4024 = vld [vmem:[#allocation10 + $0x410] sm:$0xff]
    %v4025 = vld [vmem:[#allocation10 + $0x418] sm:$0xff]
    %v4026 = vld [vmem:[#allocation10 + $0x420] sm:$0xff]
    %v4027 = vld [vmem:[#allocation10 + $0x428] sm:$0xff]
    %v4028 = vld [vmem:[#allocation10 + $0x430] sm:$0xff]
    %v4029 = vld [vmem:[#allocation10 + $0x438] sm:$0xff]
    %v4030 = vld [vmem:[#allocation10 + $0x440] sm:$0xff]
    %v4031 = vld [vmem:[#allocation10 + $0x448] sm:$0xff]
    %v4032 = vld [vmem:[#allocation10 + $0x450] sm:$0xff]
    %v4033 = vld [vmem:[#allocation10 + $0x458] sm:$0xff]
    %v4034 = vld [vmem:[#allocation10 + $0x460] sm:$0xff]
    %v4035 = vld [vmem:[#allocation10 + $0x468] sm:$0xff]
    %v4036 = vld [vmem:[#allocation10 + $0x470] sm:$0xff]
    %v4037 = vld [vmem:[#allocation10 + $0x478] sm:$0xff]
    %v4038 = vld [vmem:[#allocation10 + $0x480] sm:$0xff]
    %v4039 = vld [vmem:[#allocation10 + $0x488] sm:$0xff]
    %v4040 = vld [vmem:[#allocation10 + $0x490] sm:$0xff]
    %v4041 = vld [vmem:[#allocation10 + $0x498] sm:$0xff]
    %v4042 = vld [vmem:[#allocation10 + $0x4a0] sm:$0xff]
    %v4043 = vld [vmem:[#allocation10 + $0x4a8] sm:$0xff]
    %v4044 = vld [vmem:[#allocation10 + $0x4b0] sm:$0xff]
    %v4045 = vld [vmem:[#allocation10 + $0x4b8] sm:$0xff]
    %v4046 = vld [vmem:[#allocation10 + $0x4c0] sm:$0xff]
    %v4047 = vld [vmem:[#allocation10 + $0x4c8] sm:$0xff]
    %v4048 = vld [vmem:[#allocation10 + $0x4d0] sm:$0xff]
    %v4049 = vld [vmem:[#allocation10 + $0x4d8] sm:$0xff]
    %v4050 = vld [vmem:[#allocation10 + $0x4e0] sm:$0xff]
    %v4051 = vld [vmem:[#allocation10 + $0x4e8] sm:$0xff]
    %v4052 = vld [vmem:[#allocation10 + $0x4f0] sm:$0xff]
    %v4053 = vld [vmem:[#allocation10 + $0x4f8] sm:$0xff]
    %v4054 = vld [vmem:[#allocation10 + $0x500] sm:$0xff]
    %v4055 = vld [vmem:[#allocation10 + $0x508] sm:$0xff]
    %v4056 = vld [vmem:[#allocation10 + $0x510] sm:$0xff]
    %v4057 = vld [vmem:[#allocation10 + $0x518] sm:$0xff]
    %v4058 = vld [vmem:[#allocation10 + $0x520] sm:$0xff]
    %v4059 = vld [vmem:[#allocation10 + $0x528] sm:$0xff]
    %v4060 = vld [vmem:[#allocation10 + $0x530] sm:$0xff]
    %v4061 = vld [vmem:[#allocation10 + $0x538] sm:$0xff]
    %v4062 = vld [vmem:[#allocation10 + $0x540] sm:$0xff]
    %v4063 = vld [vmem:[#allocation10 + $0x548] sm:$0xff]
    %v4064 = vld [vmem:[#allocation10 + $0x550] sm:$0xff]
    %v4065 = vld [vmem:[#allocation10 + $0x558] sm:$0xff]
    %v4066 = vld [vmem:[#allocation10 + $0x560] sm:$0xff]
    %v4067 = vld [vmem:[#allocation10 + $0x568] sm:$0xff]
    %v4068 = vld [vmem:[#allocation10 + $0x570] sm:$0xff]
    %v4069 = vld [vmem:[#allocation10 + $0x578] sm:$0xff]
    %v4070 = vld [vmem:[#allocation10 + $0x580] sm:$0xff]
    %v4071 = vld [vmem:[#allocation10 + $0x588] sm:$0xff]
    %v4072 = vld [vmem:[#allocation10 + $0x590] sm:$0xff]
    %v4073 = vld [vmem:[#allocation10 + $0x598] sm:$0xff]
    %v4074 = vld [vmem:[#allocation10 + $0x5a0] sm:$0xff]
    %v4075 = vld [vmem:[#allocation10 + $0x5a8] sm:$0xff]
    %v4076 = vld [vmem:[#allocation10 + $0x5b0] sm:$0xff]
    %v4077 = vld [vmem:[#allocation10 + $0x5b8] sm:$0xff]
    %v4078 = vld [vmem:[#allocation10 + $0x5c0] sm:$0xff]
    %v4079 = vld [vmem:[#allocation10 + $0x5c8] sm:$0xff]
    %v4080 = vld [vmem:[#allocation10 + $0x5d0] sm:$0xff]
    %v4081 = vld [vmem:[#allocation10 + $0x5d8] sm:$0xff]
    %v4082 = vld [vmem:[#allocation10 + $0x5e0] sm:$0xff]
    %v4083 = vld [vmem:[#allocation10 + $0x5e8] sm:$0xff]
    %v4084 = vld [vmem:[#allocation10 + $0x5f0] sm:$0xff]
    %v4085 = vld [vmem:[#allocation10 + $0x5f8] sm:$0xff]
    %v4086 = vld [vmem:[#allocation10 + $0x600] sm:$0xff]
    %v4087 = vld [vmem:[#allocation10 + $0x608] sm:$0xff]
    %v4088 = vld [vmem:[#allocation10 + $0x610] sm:$0xff]
    %v4089 = vld [vmem:[#allocation10 + $0x618] sm:$0xff]
    %v4090 = vld [vmem:[#allocation10 + $0x620] sm:$0xff]
    %v4091 = vld [vmem:[#allocation10 + $0x628] sm:$0xff]
    %v4092 = vld [vmem:[#allocation10 + $0x630] sm:$0xff]
    %v4093 = vld [vmem:[#allocation10 + $0x638] sm:$0xff]
    %v4094 = vld [vmem:[#allocation10 + $0x640] sm:$0xff]
    %v4095 = vld [vmem:[#allocation10 + $0x648] sm:$0xff]
    %v4096 = vld [vmem:[#allocation10 + $0x650] sm:$0xff]
    %v4097 = vld [vmem:[#allocation10 + $0x658] sm:$0xff]
    %v4098 = vld [vmem:[#allocation10 + $0x660] sm:$0xff]
    %v4099 = vld [vmem:[#allocation10 + $0x668] sm:$0xff]
    %v4100 = vld [vmem:[#allocation10 + $0x670] sm:$0xff]
    %v4101 = vld [vmem:[#allocation10 + $0x678] sm:$0xff]
    %v4102 = vld [vmem:[#allocation10 + $0x680] sm:$0xff]
    %v4103 = vld [vmem:[#allocation10 + $0x688] sm:$0xff]
    %v4104 = vld [vmem:[#allocation10 + $0x690] sm:$0xff]
    %v4105 = vld [vmem:[#allocation10 + $0x698] sm:$0xff]
    %v4106 = vld [vmem:[#allocation10 + $0x6a0] sm:$0xff]
    %v4107 = vld [vmem:[#allocation10 + $0x6a8] sm:$0xff]
    %v4108 = vld [vmem:[#allocation10 + $0x6b0] sm:$0xff]
    %v4109 = vld [vmem:[#allocation10 + $0x6b8] sm:$0xff]
    %v4110 = vld [vmem:[#allocation10 + $0x6c0] sm:$0xff]
    %v4111 = vld [vmem:[#allocation10 + $0x6c8] sm:$0xff]
    %v4112 = vld [vmem:[#allocation10 + $0x6d0] sm:$0xff]
    %v4113 = vld [vmem:[#allocation10 + $0x6d8] sm:$0xff]
    %v4114 = vld [vmem:[#allocation10 + $0x6e0] sm:$0xff]
    %v4115 = vld [vmem:[#allocation10 + $0x6e8] sm:$0xff]
    %v4116 = vld [vmem:[#allocation10 + $0x6f0] sm:$0xff]
    %v4117 = vld [vmem:[#allocation10 + $0x6f8] sm:$0xff]
    %v4118 = vld [vmem:[#allocation11] sm:$0xf]
    %v4120 = vlaneseq
    %v4121 = vshrl.u32 %v4120, 7
    %v4122 = vsub.s32 0, %v4121
    %v4123 = vrot.slane %v4118, %v4122
    %v4124 = vlaneseq
    %v4125 = vshrl.u32 %v4124, 7
    %v4126 = vsub.s32 1, %v4125
    %v4127 = vrot.slane %v4118, %v4126
    %v4128 = vlaneseq
    %v4129 = vshrl.u32 %v4128, 7
    %v4130 = vsub.s32 2, %v4129
    %v4131 = vrot.slane %v4118, %v4130
    %v4132 = vlaneseq
    %v4133 = vshrl.u32 %v4132, 7
    %v4134 = vsub.s32 3, %v4133
    %v4135 = vrot.slane %v4118, %v4134
    %v4364 = vunpack.c.l.b16 %v3894
    %v4365 = vunpack.c.h.b16 %v3894
    %v4366 = vunpack.c.l.b16 %v3895
    %v4367 = vunpack.c.h.b16 %v3895
    %v4368 = vunpack.c.l.b16 %v3896
    %v4369 = vunpack.c.h.b16 %v3896
    %v4370 = vunpack.c.l.b16 %v3897
    %v4371 = vunpack.c.h.b16 %v3897
    %v4372 = vunpack.c.l.b16 %v3898
    %v4373 = vunpack.c.h.b16 %v3898
    %v4374 = vunpack.c.l.b16 %v3899
    %v4375 = vunpack.c.h.b16 %v3899
    %v4376 = vunpack.c.l.b16 %v3900
    %v4377 = vunpack.c.h.b16 %v3900
    %v4378 = vunpack.c.l.b16 %v3901
    %v4379 = vunpack.c.h.b16 %v3901
    %v4380 = vunpack.c.l.b16 %v3902
    %v4381 = vunpack.c.h.b16 %v3902
    %v4382 = vunpack.c.l.b16 %v3903
    %v4383 = vunpack.c.h.b16 %v3903
    %v4384 = vunpack.c.l.b16 %v3904
    %v4385 = vunpack.c.h.b16 %v3904
    %v4386 = vunpack.c.l.b16 %v3905
    %v4387 = vunpack.c.h.b16 %v3905
    %v4388 = vunpack.c.l.b16 %v3906
    %v4389 = vunpack.c.h.b16 %v3906
    %v4390 = vunpack.c.l.b16 %v3907
    %v4391 = vunpack.c.h.b16 %v3907
    %v4392 = vunpack.c.l.b16 %v3908
    %v4393 = vunpack.c.h.b16 %v3908
    %v4394 = vunpack.c.l.b16 %v3909
    %v4395 = vunpack.c.h.b16 %v3909
    %v4396 = vunpack.c.l.b16 %v3910
    %v4397 = vunpack.c.h.b16 %v3910
    %v4398 = vunpack.c.l.b16 %v3911
    %v4399 = vunpack.c.h.b16 %v3911
    %v4400 = vunpack.c.l.b16 %v3912
    %v4401 = vunpack.c.h.b16 %v3912
    %v4402 = vunpack.c.l.b16 %v3913
    %v4403 = vunpack.c.h.b16 %v3913
    %v4404 = vunpack.c.l.b16 %v3914
    %v4405 = vunpack.c.h.b16 %v3914
    %v4406 = vunpack.c.l.b16 %v3915
    %v4407 = vunpack.c.h.b16 %v3915
    %v4408 = vunpack.c.l.b16 %v3916
    %v4409 = vunpack.c.h.b16 %v3916
    %v4410 = vunpack.c.l.b16 %v3917
    %v4411 = vunpack.c.h.b16 %v3917
    %v4412 = vunpack.c.l.b16 %v3918
    %v4413 = vunpack.c.h.b16 %v3918
    %v4414 = vunpack.c.l.b16 %v3919
    %v4415 = vunpack.c.h.b16 %v3919
    %v4416 = vunpack.c.l.b16 %v3920
    %v4417 = vunpack.c.h.b16 %v3920
    %v4418 = vunpack.c.l.b16 %v3921
    %v4419 = vunpack.c.h.b16 %v3921
    %v4420 = vunpack.c.l.b16 %v3922
    %v4421 = vunpack.c.h.b16 %v3922
    %v4422 = vunpack.c.l.b16 %v3923
    %v4423 = vunpack.c.h.b16 %v3923
    %v4424 = vunpack.c.l.b16 %v3924
    %v4425 = vunpack.c.h.b16 %v3924
    %v4426 = vunpack.c.l.b16 %v3925
    %v4427 = vunpack.c.h.b16 %v3925
    %v4428 = vunpack.c.l.b16 %v3926
    %v4429 = vunpack.c.h.b16 %v3926
    %v4430 = vunpack.c.l.b16 %v3927
    %v4431 = vunpack.c.h.b16 %v3927
    %v4432 = vunpack.c.l.b16 %v3928
    %v4433 = vunpack.c.h.b16 %v3928
    %v4434 = vunpack.c.l.b16 %v3929
    %v4435 = vunpack.c.h.b16 %v3929
    %v4436 = vunpack.c.l.b16 %v3930
    %v4437 = vunpack.c.h.b16 %v3930
    %v4438 = vunpack.c.l.b16 %v3931
    %v4439 = vunpack.c.h.b16 %v3931
    %v4440 = vunpack.c.l.b16 %v3932
    %v4441 = vunpack.c.h.b16 %v3932
    %v4442 = vunpack.c.l.b16 %v3933
    %v4443 = vunpack.c.h.b16 %v3933
    %v4444 = vunpack.c.l.b16 %v3934
    %v4445 = vunpack.c.h.b16 %v3934
    %v4446 = vunpack.c.l.b16 %v3935
    %v4447 = vunpack.c.h.b16 %v3935
    %v4448 = vunpack.c.l.b16 %v3936
    %v4449 = vunpack.c.h.b16 %v3936
    %v4450 = vunpack.c.l.b16 %v3937
    %v4451 = vunpack.c.h.b16 %v3937
    %v4452 = vunpack.c.l.b16 %v3938
    %v4453 = vunpack.c.h.b16 %v3938
    %v4454 = vunpack.c.l.b16 %v3939
    %v4455 = vunpack.c.h.b16 %v3939
    %v4456 = vunpack.c.l.b16 %v3940
    %v4457 = vunpack.c.h.b16 %v3940
    %v4458 = vunpack.c.l.b16 %v3941
    %v4459 = vunpack.c.h.b16 %v3941
    %v4460 = vunpack.c.l.b16 %v3942
    %v4461 = vunpack.c.h.b16 %v3942
    %v4462 = vunpack.c.l.b16 %v3943
    %v4463 = vunpack.c.h.b16 %v3943
    %v4464 = vunpack.c.l.b16 %v3944
    %v4465 = vunpack.c.h.b16 %v3944
    %v4466 = vunpack.c.l.b16 %v3945
    %v4467 = vunpack.c.h.b16 %v3945
    %v4468 = vunpack.c.l.b16 %v3946
    %v4469 = vunpack.c.h.b16 %v3946
    %v4470 = vunpack.c.l.b16 %v3947
    %v4471 = vunpack.c.h.b16 %v3947
    %v4472 = vunpack.c.l.b16 %v3948
    %v4473 = vunpack.c.h.b16 %v3948
    %v4474 = vunpack.c.l.b16 %v3949
    %v4475 = vunpack.c.h.b16 %v3949
    %v4476 = vunpack.c.l.b16 %v3950
    %v4477 = vunpack.c.h.b16 %v3950
    %v4478 = vunpack.c.l.b16 %v3951
    %v4479 = vunpack.c.h.b16 %v3951
    %v4480 = vunpack.c.l.b16 %v3952
    %v4481 = vunpack.c.h.b16 %v3952
    %v4482 = vunpack.c.l.b16 %v3953
    %v4483 = vunpack.c.h.b16 %v3953
    %v4484 = vunpack.c.l.b16 %v3954
    %v4485 = vunpack.c.h.b16 %v3954
    %v4486 = vunpack.c.l.b16 %v3955
    %v4487 = vunpack.c.h.b16 %v3955
    %v4488 = vunpack.c.l.b16 %v3956
    %v4489 = vunpack.c.h.b16 %v3956
    %v4490 = vunpack.c.l.b16 %v3957
    %v4491 = vunpack.c.h.b16 %v3957
    %v4492 = vunpack.c.l.b16 %v3958
    %v4493 = vunpack.c.h.b16 %v3958
    %v4494 = vunpack.c.l.b16 %v3959
    %v4495 = vunpack.c.h.b16 %v3959
    %v4496 = vunpack.c.l.b16 %v3960
    %v4497 = vunpack.c.h.b16 %v3960
    %v4498 = vunpack.c.l.b16 %v3961
    %v4499 = vunpack.c.h.b16 %v3961
    %v4500 = vunpack.c.l.b16 %v3962
    %v4501 = vunpack.c.h.b16 %v3962
    %v4502 = vunpack.c.l.b16 %v3963
    %v4503 = vunpack.c.h.b16 %v3963
    %v4504 = vunpack.c.l.b16 %v3964
    %v4505 = vunpack.c.h.b16 %v3964
    %v4506 = vunpack.c.l.b16 %v3965
    %v4507 = vunpack.c.h.b16 %v3965
    %v4508 = vunpack.c.l.b16 %v3966
    %v4509 = vunpack.c.h.b16 %v3966
    %v4510 = vunpack.c.l.b16 %v3967
    %v4511 = vunpack.c.h.b16 %v3967
    %v4512 = vunpack.c.l.b16 %v3968
    %v4513 = vunpack.c.h.b16 %v3968
    %v4514 = vunpack.c.l.b16 %v3969
    %v4515 = vunpack.c.h.b16 %v3969
    %v4516 = vunpack.c.l.b16 %v3970
    %v4517 = vunpack.c.h.b16 %v3970
    %v4518 = vunpack.c.l.b16 %v3971
    %v4519 = vunpack.c.h.b16 %v3971
    %v4520 = vunpack.c.l.b16 %v3972
    %v4521 = vunpack.c.h.b16 %v3972
    %v4522 = vunpack.c.l.b16 %v3973
    %v4523 = vunpack.c.h.b16 %v3973
    %v4524 = vunpack.c.l.b16 %v3974
    %v4525 = vunpack.c.h.b16 %v3974
    %v4526 = vunpack.c.l.b16 %v3975
    %v4527 = vunpack.c.h.b16 %v3975
    %v4528 = vunpack.c.l.b16 %v3976
    %v4529 = vunpack.c.h.b16 %v3976
    %v4530 = vunpack.c.l.b16 %v3977
    %v4531 = vunpack.c.h.b16 %v3977
    %v4532 = vunpack.c.l.b16 %v3978
    %v4533 = vunpack.c.h.b16 %v3978
    %v4534 = vunpack.c.l.b16 %v3979
    %v4535 = vunpack.c.h.b16 %v3979
    %v4536 = vunpack.c.l.b16 %v3980
    %v4537 = vunpack.c.h.b16 %v3980
    %v4538 = vunpack.c.l.b16 %v3981
    %v4539 = vunpack.c.h.b16 %v3981
    %v4540 = vunpack.c.l.b16 %v3982
    %v4541 = vunpack.c.h.b16 %v3982
    %v4542 = vunpack.c.l.b16 %v3983
    %v4543 = vunpack.c.h.b16 %v3983
    %v4544 = vunpack.c.l.b16 %v3984
    %v4545 = vunpack.c.h.b16 %v3984
    %v4546 = vunpack.c.l.b16 %v3985
    %v4547 = vunpack.c.h.b16 %v3985
    %v4548 = vunpack.c.l.b16 %v3986
    %v4549 = vunpack.c.h.b16 %v3986
    %v4550 = vunpack.c.l.b16 %v3987
    %v4551 = vunpack.c.h.b16 %v3987
    %v4552 = vunpack.c.l.b16 %v3988
    %v4553 = vunpack.c.h.b16 %v3988
    %v4554 = vunpack.c.l.b16 %v3989
    %v4555 = vunpack.c.h.b16 %v3989
    %v4556 = vunpack.c.l.b16 %v3990
    %v4557 = vunpack.c.h.b16 %v3990
    %v4558 = vunpack.c.l.b16 %v3991
    %v4559 = vunpack.c.h.b16 %v3991
    %v4560 = vunpack.c.l.b16 %v3992
    %v4561 = vunpack.c.h.b16 %v3992
    %v4562 = vunpack.c.l.b16 %v3993
    %v4563 = vunpack.c.h.b16 %v3993
    %v4564 = vunpack.c.l.b16 %v3994
    %v4565 = vunpack.c.h.b16 %v3994
    %v4566 = vunpack.c.l.b16 %v3995
    %v4567 = vunpack.c.h.b16 %v3995
    %v4568 = vunpack.c.l.b16 %v3996
    %v4569 = vunpack.c.h.b16 %v3996
    %v4570 = vunpack.c.l.b16 %v3997
    %v4571 = vunpack.c.h.b16 %v3997
    %v4572 = vunpack.c.l.b16 %v3998
    %v4573 = vunpack.c.h.b16 %v3998
    %v4574 = vunpack.c.l.b16 %v3999
    %v4575 = vunpack.c.h.b16 %v3999
    %v4576 = vunpack.c.l.b16 %v4000
    %v4577 = vunpack.c.h.b16 %v4000
    %v4578 = vunpack.c.l.b16 %v4001
    %v4579 = vunpack.c.h.b16 %v4001
    %v4580 = vunpack.c.l.b16 %v4002
    %v4581 = vunpack.c.h.b16 %v4002
    %v4582 = vunpack.c.l.b16 %v4003
    %v4583 = vunpack.c.h.b16 %v4003
    %v4584 = vunpack.c.l.b16 %v4004
    %v4585 = vunpack.c.h.b16 %v4004
    %v4586 = vunpack.c.l.b16 %v4005
    %v4587 = vunpack.c.h.b16 %v4005
    %v4588 = vunpack.c.l.b16 %v4006
    %v4589 = vunpack.c.h.b16 %v4006
    %v4590 = vunpack.c.l.b16 %v4007
    %v4591 = vunpack.c.h.b16 %v4007
    %v4592 = vunpack.c.l.b16 %v4008
    %v4593 = vunpack.c.h.b16 %v4008
    %v4594 = vunpack.c.l.b16 %v4009
    %v4595 = vunpack.c.h.b16 %v4009
    %v4596 = vunpack.c.l.b16 %v4010
    %v4597 = vunpack.c.h.b16 %v4010
    %v4598 = vunpack.c.l.b16 %v4011
    %v4599 = vunpack.c.h.b16 %v4011
    %v4600 = vunpack.c.l.b16 %v4012
    %v4601 = vunpack.c.h.b16 %v4012
    %v4602 = vunpack.c.l.b16 %v4013
    %v4603 = vunpack.c.h.b16 %v4013
    %v4604 = vunpack.c.l.b16 %v4014
    %v4605 = vunpack.c.h.b16 %v4014
    %v4606 = vunpack.c.l.b16 %v4015
    %v4607 = vunpack.c.h.b16 %v4015
    %v4608 = vunpack.c.l.b16 %v4016
    %v4609 = vunpack.c.h.b16 %v4016
    %v4610 = vunpack.c.l.b16 %v4017
    %v4611 = vunpack.c.h.b16 %v4017
    %v4612 = vunpack.c.l.b16 %v4018
    %v4613 = vunpack.c.h.b16 %v4018
    %v4614 = vunpack.c.l.b16 %v4019
    %v4615 = vunpack.c.h.b16 %v4019
    %v4616 = vunpack.c.l.b16 %v4020
    %v4617 = vunpack.c.h.b16 %v4020
    %v4618 = vunpack.c.l.b16 %v4021
    %v4619 = vunpack.c.h.b16 %v4021
    %v4620 = vunpack.c.l.b16 %v4022
    %v4621 = vunpack.c.h.b16 %v4022
    %v4622 = vunpack.c.l.b16 %v4023
    %v4623 = vunpack.c.h.b16 %v4023
    %v4624 = vunpack.c.l.b16 %v4024
    %v4625 = vunpack.c.h.b16 %v4024
    %v4626 = vunpack.c.l.b16 %v4025
    %v4627 = vunpack.c.h.b16 %v4025
    %v4628 = vunpack.c.l.b16 %v4026
    %v4629 = vunpack.c.h.b16 %v4026
    %v4630 = vunpack.c.l.b16 %v4027
    %v4631 = vunpack.c.h.b16 %v4027
    %v4632 = vunpack.c.l.b16 %v4028
    %v4633 = vunpack.c.h.b16 %v4028
    %v4634 = vunpack.c.l.b16 %v4029
    %v4635 = vunpack.c.h.b16 %v4029
    %v4636 = vunpack.c.l.b16 %v4030
    %v4637 = vunpack.c.h.b16 %v4030
    %v4638 = vunpack.c.l.b16 %v4031
    %v4639 = vunpack.c.h.b16 %v4031
    %v4640 = vunpack.c.l.b16 %v4032
    %v4641 = vunpack.c.h.b16 %v4032
    %v4642 = vunpack.c.l.b16 %v4033
    %v4643 = vunpack.c.h.b16 %v4033
    %v4644 = vunpack.c.l.b16 %v4034
    %v4645 = vunpack.c.h.b16 %v4034
    %v4646 = vunpack.c.l.b16 %v4035
    %v4647 = vunpack.c.h.b16 %v4035
    %v4648 = vunpack.c.l.b16 %v4036
    %v4649 = vunpack.c.h.b16 %v4036
    %v4650 = vunpack.c.l.b16 %v4037
    %v4651 = vunpack.c.h.b16 %v4037
    %v4652 = vunpack.c.l.b16 %v4038
    %v4653 = vunpack.c.h.b16 %v4038
    %v4654 = vunpack.c.l.b16 %v4039
    %v4655 = vunpack.c.h.b16 %v4039
    %v4656 = vunpack.c.l.b16 %v4040
    %v4657 = vunpack.c.h.b16 %v4040
    %v4658 = vunpack.c.l.b16 %v4041
    %v4659 = vunpack.c.h.b16 %v4041
    %v4660 = vunpack.c.l.b16 %v4042
    %v4661 = vunpack.c.h.b16 %v4042
    %v4662 = vunpack.c.l.b16 %v4043
    %v4663 = vunpack.c.h.b16 %v4043
    %v4664 = vunpack.c.l.b16 %v4044
    %v4665 = vunpack.c.h.b16 %v4044
    %v4666 = vunpack.c.l.b16 %v4045
    %v4667 = vunpack.c.h.b16 %v4045
    %v4668 = vunpack.c.l.b16 %v4046
    %v4669 = vunpack.c.h.b16 %v4046
    %v4670 = vunpack.c.l.b16 %v4047
    %v4671 = vunpack.c.h.b16 %v4047
    %v4672 = vunpack.c.l.b16 %v4048
    %v4673 = vunpack.c.h.b16 %v4048
    %v4674 = vunpack.c.l.b16 %v4049
    %v4675 = vunpack.c.h.b16 %v4049
    %v4676 = vunpack.c.l.b16 %v4050
    %v4677 = vunpack.c.h.b16 %v4050
    %v4678 = vunpack.c.l.b16 %v4051
    %v4679 = vunpack.c.h.b16 %v4051
    %v4680 = vunpack.c.l.b16 %v4052
    %v4681 = vunpack.c.h.b16 %v4052
    %v4682 = vunpack.c.l.b16 %v4053
    %v4683 = vunpack.c.h.b16 %v4053
    %v4684 = vunpack.c.l.b16 %v4054
    %v4685 = vunpack.c.h.b16 %v4054
    %v4686 = vunpack.c.l.b16 %v4055
    %v4687 = vunpack.c.h.b16 %v4055
    %v4688 = vunpack.c.l.b16 %v4056
    %v4689 = vunpack.c.h.b16 %v4056
    %v4690 = vunpack.c.l.b16 %v4057
    %v4691 = vunpack.c.h.b16 %v4057
    %v4692 = vunpack.c.l.b16 %v4058
    %v4693 = vunpack.c.h.b16 %v4058
    %v4694 = vunpack.c.l.b16 %v4059
    %v4695 = vunpack.c.h.b16 %v4059
    %v4696 = vunpack.c.l.b16 %v4060
    %v4697 = vunpack.c.h.b16 %v4060
    %v4698 = vunpack.c.l.b16 %v4061
    %v4699 = vunpack.c.h.b16 %v4061
    %v4700 = vunpack.c.l.b16 %v4062
    %v4701 = vunpack.c.h.b16 %v4062
    %v4702 = vunpack.c.l.b16 %v4063
    %v4703 = vunpack.c.h.b16 %v4063
    %v4704 = vunpack.c.l.b16 %v4064
    %v4705 = vunpack.c.h.b16 %v4064
    %v4706 = vunpack.c.l.b16 %v4065
    %v4707 = vunpack.c.h.b16 %v4065
    %v4708 = vunpack.c.l.b16 %v4066
    %v4709 = vunpack.c.h.b16 %v4066
    %v4710 = vunpack.c.l.b16 %v4067
    %v4711 = vunpack.c.h.b16 %v4067
    %v4712 = vunpack.c.l.b16 %v4068
    %v4713 = vunpack.c.h.b16 %v4068
    %v4714 = vunpack.c.l.b16 %v4069
    %v4715 = vunpack.c.h.b16 %v4069
    %v4716 = vunpack.c.l.b16 %v4070
    %v4717 = vunpack.c.h.b16 %v4070
    %v4718 = vunpack.c.l.b16 %v4071
    %v4719 = vunpack.c.h.b16 %v4071
    %v4720 = vunpack.c.l.b16 %v4072
    %v4721 = vunpack.c.h.b16 %v4072
    %v4722 = vunpack.c.l.b16 %v4073
    %v4723 = vunpack.c.h.b16 %v4073
    %v4724 = vunpack.c.l.b16 %v4074
    %v4725 = vunpack.c.h.b16 %v4074
    %v4726 = vunpack.c.l.b16 %v4075
    %v4727 = vunpack.c.h.b16 %v4075
    %v4728 = vunpack.c.l.b16 %v4076
    %v4729 = vunpack.c.h.b16 %v4076
    %v4730 = vunpack.c.l.b16 %v4077
    %v4731 = vunpack.c.h.b16 %v4077
    %v4732 = vunpack.c.l.b16 %v4078
    %v4733 = vunpack.c.h.b16 %v4078
    %v4734 = vunpack.c.l.b16 %v4079
    %v4735 = vunpack.c.h.b16 %v4079
    %v4736 = vunpack.c.l.b16 %v4080
    %v4737 = vunpack.c.h.b16 %v4080
    %v4738 = vunpack.c.l.b16 %v4081
    %v4739 = vunpack.c.h.b16 %v4081
    %v4740 = vunpack.c.l.b16 %v4082
    %v4741 = vunpack.c.h.b16 %v4082
    %v4742 = vunpack.c.l.b16 %v4083
    %v4743 = vunpack.c.h.b16 %v4083
    %v4744 = vunpack.c.l.b16 %v4084
    %v4745 = vunpack.c.h.b16 %v4084
    %v4746 = vunpack.c.l.b16 %v4085
    %v4747 = vunpack.c.h.b16 %v4085
    %v4748 = vunpack.c.l.b16 %v4086
    %v4749 = vunpack.c.h.b16 %v4086
    %v4750 = vunpack.c.l.b16 %v4087
    %v4751 = vunpack.c.h.b16 %v4087
    %v4752 = vunpack.c.l.b16 %v4088
    %v4753 = vunpack.c.h.b16 %v4088
    %v4754 = vunpack.c.l.b16 %v4089
    %v4755 = vunpack.c.h.b16 %v4089
    %v4756 = vunpack.c.l.b16 %v4090
    %v4757 = vunpack.c.h.b16 %v4090
    %v4758 = vunpack.c.l.b16 %v4091
    %v4759 = vunpack.c.h.b16 %v4091
    %v4760 = vunpack.c.l.b16 %v4092
    %v4761 = vunpack.c.h.b16 %v4092
    %v4762 = vunpack.c.l.b16 %v4093
    %v4763 = vunpack.c.h.b16 %v4093
    %v4764 = vunpack.c.l.b16 %v4094
    %v4765 = vunpack.c.h.b16 %v4094
    %v4766 = vunpack.c.l.b16 %v4095
    %v4767 = vunpack.c.h.b16 %v4095
    %v4768 = vunpack.c.l.b16 %v4096
    %v4769 = vunpack.c.h.b16 %v4096
    %v4770 = vunpack.c.l.b16 %v4097
    %v4771 = vunpack.c.h.b16 %v4097
    %v4772 = vunpack.c.l.b16 %v4098
    %v4773 = vunpack.c.h.b16 %v4098
    %v4774 = vunpack.c.l.b16 %v4099
    %v4775 = vunpack.c.h.b16 %v4099
    %v4776 = vunpack.c.l.b16 %v4100
    %v4777 = vunpack.c.h.b16 %v4100
    %v4778 = vunpack.c.l.b16 %v4101
    %v4779 = vunpack.c.h.b16 %v4101
    %v4780 = vunpack.c.l.b16 %v4102
    %v4781 = vunpack.c.h.b16 %v4102
    %v4782 = vunpack.c.l.b16 %v4103
    %v4783 = vunpack.c.h.b16 %v4103
    %v4784 = vunpack.c.l.b16 %v4104
    %v4785 = vunpack.c.h.b16 %v4104
    %v4786 = vunpack.c.l.b16 %v4105
    %v4787 = vunpack.c.h.b16 %v4105
    %v4788 = vunpack.c.l.b16 %v4106
    %v4789 = vunpack.c.h.b16 %v4106
    %v4790 = vunpack.c.l.b16 %v4107
    %v4791 = vunpack.c.h.b16 %v4107
    %v4792 = vunpack.c.l.b16 %v4108
    %v4793 = vunpack.c.h.b16 %v4108
    %v4794 = vunpack.c.l.b16 %v4109
    %v4795 = vunpack.c.h.b16 %v4109
    %v4796 = vunpack.c.l.b16 %v4110
    %v4797 = vunpack.c.h.b16 %v4110
    %v4798 = vunpack.c.l.b16 %v4111
    %v4799 = vunpack.c.h.b16 %v4111
    %v4800 = vunpack.c.l.b16 %v4112
    %v4801 = vunpack.c.h.b16 %v4112
    %v4802 = vunpack.c.l.b16 %v4113
    %v4803 = vunpack.c.h.b16 %v4113
    %v4804 = vunpack.c.l.b16 %v4114
    %v4805 = vunpack.c.h.b16 %v4114
    %v4806 = vunpack.c.l.b16 %v4115
    %v4807 = vunpack.c.h.b16 %v4115
    %v4808 = vunpack.c.l.b16 %v4116
    %v4809 = vunpack.c.h.b16 %v4116
    %v4810 = vunpack.c.l.b16 %v4117
    %v4811 = vunpack.c.h.b16 %v4117
    %v4812 = vpack.c.b16 %v4368, %v4364
    %v4813 = vpack.c.b16 %v4369, %v4365
    %v4814 = vpack.c.b16 %v4370, %v4366
    %v4815 = vpack.c.b16 %v4371, %v4367
    %v4816 = vpack.c.b16 %v4376, %v4372
    %v4817 = vpack.c.b16 %v4377, %v4373
    %v4818 = vpack.c.b16 %v4378, %v4374
    %v4819 = vpack.c.b16 %v4379, %v4375
    %v4820 = vpack.c.b16 %v4384, %v4380
    %v4821 = vpack.c.b16 %v4385, %v4381
    %v4822 = vpack.c.b16 %v4386, %v4382
    %v4823 = vpack.c.b16 %v4387, %v4383
    %v4824 = vpack.c.b16 %v4392, %v4388
    %v4825 = vpack.c.b16 %v4393, %v4389
    %v4826 = vpack.c.b16 %v4394, %v4390
    %v4827 = vpack.c.b16 %v4395, %v4391
    %v4828 = vpack.c.b16 %v4400, %v4396
    %v4829 = vpack.c.b16 %v4401, %v4397
    %v4830 = vpack.c.b16 %v4402, %v4398
    %v4831 = vpack.c.b16 %v4403, %v4399
    %v4832 = vpack.c.b16 %v4408, %v4404
    %v4833 = vpack.c.b16 %v4409, %v4405
    %v4834 = vpack.c.b16 %v4410, %v4406
    %v4835 = vpack.c.b16 %v4411, %v4407
    %v4836 = vpack.c.b16 %v4416, %v4412
    %v4837 = vpack.c.b16 %v4417, %v4413
    %v4838 = vpack.c.b16 %v4418, %v4414
    %v4839 = vpack.c.b16 %v4419, %v4415
    %v4840 = vpack.c.b16 %v4424, %v4420
    %v4841 = vpack.c.b16 %v4425, %v4421
    %v4842 = vpack.c.b16 %v4426, %v4422
    %v4843 = vpack.c.b16 %v4427, %v4423
    %v4844 = vpack.c.b16 %v4432, %v4428
    %v4845 = vpack.c.b16 %v4433, %v4429
    %v4846 = vpack.c.b16 %v4434, %v4430
    %v4847 = vpack.c.b16 %v4435, %v4431
    %v4848 = vpack.c.b16 %v4440, %v4436
    %v4849 = vpack.c.b16 %v4441, %v4437
    %v4850 = vpack.c.b16 %v4442, %v4438
    %v4851 = vpack.c.b16 %v4443, %v4439
    %v4852 = vpack.c.b16 %v4448, %v4444
    %v4853 = vpack.c.b16 %v4449, %v4445
    %v4854 = vpack.c.b16 %v4450, %v4446
    %v4855 = vpack.c.b16 %v4451, %v4447
    %v4856 = vpack.c.b16 %v4456, %v4452
    %v4857 = vpack.c.b16 %v4457, %v4453
    %v4858 = vpack.c.b16 %v4458, %v4454
    %v4859 = vpack.c.b16 %v4459, %v4455
    %v4860 = vpack.c.b16 %v4464, %v4460
    %v4861 = vpack.c.b16 %v4465, %v4461
    %v4862 = vpack.c.b16 %v4466, %v4462
    %v4863 = vpack.c.b16 %v4467, %v4463
    %v4864 = vpack.c.b16 %v4472, %v4468
    %v4865 = vpack.c.b16 %v4473, %v4469
    %v4866 = vpack.c.b16 %v4474, %v4470
    %v4867 = vpack.c.b16 %v4475, %v4471
    %v4868 = vpack.c.b16 %v4480, %v4476
    %v4869 = vpack.c.b16 %v4481, %v4477
    %v4870 = vpack.c.b16 %v4482, %v4478
    %v4871 = vpack.c.b16 %v4483, %v4479
    %v4872 = vpack.c.b16 %v4488, %v4484
    %v4873 = vpack.c.b16 %v4489, %v4485
    %v4874 = vpack.c.b16 %v4490, %v4486
    %v4875 = vpack.c.b16 %v4491, %v4487
    %v4876 = vpack.c.b16 %v4496, %v4492
    %v4877 = vpack.c.b16 %v4497, %v4493
    %v4878 = vpack.c.b16 %v4498, %v4494
    %v4879 = vpack.c.b16 %v4499, %v4495
    %v4880 = vpack.c.b16 %v4504, %v4500
    %v4881 = vpack.c.b16 %v4505, %v4501
    %v4882 = vpack.c.b16 %v4506, %v4502
    %v4883 = vpack.c.b16 %v4507, %v4503
    %v4884 = vpack.c.b16 %v4512, %v4508
    %v4885 = vpack.c.b16 %v4513, %v4509
    %v4886 = vpack.c.b16 %v4514, %v4510
    %v4887 = vpack.c.b16 %v4515, %v4511
    %v4888 = vpack.c.b16 %v4520, %v4516
    %v4889 = vpack.c.b16 %v4521, %v4517
    %v4890 = vpack.c.b16 %v4522, %v4518
    %v4891 = vpack.c.b16 %v4523, %v4519
    %v4892 = vpack.c.b16 %v4528, %v4524
    %v4893 = vpack.c.b16 %v4529, %v4525
    %v4894 = vpack.c.b16 %v4530, %v4526
    %v4895 = vpack.c.b16 %v4531, %v4527
    %v4896 = vpack.c.b16 %v4536, %v4532
    %v4897 = vpack.c.b16 %v4537, %v4533
    %v4898 = vpack.c.b16 %v4538, %v4534
    %v4899 = vpack.c.b16 %v4539, %v4535
    %v4900 = vpack.c.b16 %v4544, %v4540
    %v4901 = vpack.c.b16 %v4545, %v4541
    %v4902 = vpack.c.b16 %v4546, %v4542
    %v4903 = vpack.c.b16 %v4547, %v4543
    %v4904 = vpack.c.b16 %v4552, %v4548
    %v4905 = vpack.c.b16 %v4553, %v4549
    %v4906 = vpack.c.b16 %v4554, %v4550
    %v4907 = vpack.c.b16 %v4555, %v4551
    %v4908 = vpack.c.b16 %v4560, %v4556
    %v4909 = vpack.c.b16 %v4561, %v4557
    %v4910 = vpack.c.b16 %v4562, %v4558
    %v4911 = vpack.c.b16 %v4563, %v4559
    %v4912 = vpack.c.b16 %v4568, %v4564
    %v4913 = vpack.c.b16 %v4569, %v4565
    %v4914 = vpack.c.b16 %v4570, %v4566
    %v4915 = vpack.c.b16 %v4571, %v4567
    %v4916 = vpack.c.b16 %v4576, %v4572
    %v4917 = vpack.c.b16 %v4577, %v4573
    %v4918 = vpack.c.b16 %v4578, %v4574
    %v4919 = vpack.c.b16 %v4579, %v4575
    %v4920 = vpack.c.b16 %v4584, %v4580
    %v4921 = vpack.c.b16 %v4585, %v4581
    %v4922 = vpack.c.b16 %v4586, %v4582
    %v4923 = vpack.c.b16 %v4587, %v4583
    %v4924 = vpack.c.b16 %v4592, %v4588
    %v4925 = vpack.c.b16 %v4593, %v4589
    %v4926 = vpack.c.b16 %v4594, %v4590
    %v4927 = vpack.c.b16 %v4595, %v4591
    %v4928 = vpack.c.b16 %v4600, %v4596
    %v4929 = vpack.c.b16 %v4601, %v4597
    %v4930 = vpack.c.b16 %v4602, %v4598
    %v4931 = vpack.c.b16 %v4603, %v4599
    %v4932 = vpack.c.b16 %v4608, %v4604
    %v4933 = vpack.c.b16 %v4609, %v4605
    %v4934 = vpack.c.b16 %v4610, %v4606
    %v4935 = vpack.c.b16 %v4611, %v4607
    %v4936 = vpack.c.b16 %v4616, %v4612
    %v4937 = vpack.c.b16 %v4617, %v4613
    %v4938 = vpack.c.b16 %v4618, %v4614
    %v4939 = vpack.c.b16 %v4619, %v4615
    %v4940 = vpack.c.b16 %v4624, %v4620
    %v4941 = vpack.c.b16 %v4625, %v4621
    %v4942 = vpack.c.b16 %v4626, %v4622
    %v4943 = vpack.c.b16 %v4627, %v4623
    %v4944 = vpack.c.b16 %v4632, %v4628
    %v4945 = vpack.c.b16 %v4633, %v4629
    %v4946 = vpack.c.b16 %v4634, %v4630
    %v4947 = vpack.c.b16 %v4635, %v4631
    %v4948 = vpack.c.b16 %v4640, %v4636
    %v4949 = vpack.c.b16 %v4641, %v4637
    %v4950 = vpack.c.b16 %v4642, %v4638
    %v4951 = vpack.c.b16 %v4643, %v4639
    %v4952 = vpack.c.b16 %v4648, %v4644
    %v4953 = vpack.c.b16 %v4649, %v4645
    %v4954 = vpack.c.b16 %v4650, %v4646
    %v4955 = vpack.c.b16 %v4651, %v4647
    %v4956 = vpack.c.b16 %v4656, %v4652
    %v4957 = vpack.c.b16 %v4657, %v4653
    %v4958 = vpack.c.b16 %v4658, %v4654
    %v4959 = vpack.c.b16 %v4659, %v4655
    %v4960 = vpack.c.b16 %v4664, %v4660
    %v4961 = vpack.c.b16 %v4665, %v4661
    %v4962 = vpack.c.b16 %v4666, %v4662
    %v4963 = vpack.c.b16 %v4667, %v4663
    %v4964 = vpack.c.b16 %v4672, %v4668
    %v4965 = vpack.c.b16 %v4673, %v4669
    %v4966 = vpack.c.b16 %v4674, %v4670
    %v4967 = vpack.c.b16 %v4675, %v4671
    %v4968 = vpack.c.b16 %v4680, %v4676
    %v4969 = vpack.c.b16 %v4681, %v4677
    %v4970 = vpack.c.b16 %v4682, %v4678
    %v4971 = vpack.c.b16 %v4683, %v4679
    %v4972 = vpack.c.b16 %v4688, %v4684
    %v4973 = vpack.c.b16 %v4689, %v4685
    %v4974 = vpack.c.b16 %v4690, %v4686
    %v4975 = vpack.c.b16 %v4691, %v4687
    %v4976 = vpack.c.b16 %v4696, %v4692
    %v4977 = vpack.c.b16 %v4697, %v4693
    %v4978 = vpack.c.b16 %v4698, %v4694
    %v4979 = vpack.c.b16 %v4699, %v4695
    %v4980 = vpack.c.b16 %v4704, %v4700
    %v4981 = vpack.c.b16 %v4705, %v4701
    %v4982 = vpack.c.b16 %v4706, %v4702
    %v4983 = vpack.c.b16 %v4707, %v4703
    %v4984 = vpack.c.b16 %v4712, %v4708
    %v4985 = vpack.c.b16 %v4713, %v4709
    %v4986 = vpack.c.b16 %v4714, %v4710
    %v4987 = vpack.c.b16 %v4715, %v4711
    %v4988 = vpack.c.b16 %v4720, %v4716
    %v4989 = vpack.c.b16 %v4721, %v4717
    %v4990 = vpack.c.b16 %v4722, %v4718
    %v4991 = vpack.c.b16 %v4723, %v4719
    %v4992 = vpack.c.b16 %v4728, %v4724
    %v4993 = vpack.c.b16 %v4729, %v4725
    %v4994 = vpack.c.b16 %v4730, %v4726
    %v4995 = vpack.c.b16 %v4731, %v4727
    %v4996 = vpack.c.b16 %v4736, %v4732
    %v4997 = vpack.c.b16 %v4737, %v4733
    %v4998 = vpack.c.b16 %v4738, %v4734
    %v4999 = vpack.c.b16 %v4739, %v4735
    %v5000 = vpack.c.b16 %v4744, %v4740
    %v5001 = vpack.c.b16 %v4745, %v4741
    %v5002 = vpack.c.b16 %v4746, %v4742
    %v5003 = vpack.c.b16 %v4747, %v4743
    %v5004 = vpack.c.b16 %v4752, %v4748
    %v5005 = vpack.c.b16 %v4753, %v4749
    %v5006 = vpack.c.b16 %v4754, %v4750
    %v5007 = vpack.c.b16 %v4755, %v4751
    %v5008 = vpack.c.b16 %v4760, %v4756
    %v5009 = vpack.c.b16 %v4761, %v4757
    %v5010 = vpack.c.b16 %v4762, %v4758
    %v5011 = vpack.c.b16 %v4763, %v4759
    %v5012 = vpack.c.b16 %v4768, %v4764
    %v5013 = vpack.c.b16 %v4769, %v4765
    %v5014 = vpack.c.b16 %v4770, %v4766
    %v5015 = vpack.c.b16 %v4771, %v4767
    %v5016 = vpack.c.b16 %v4776, %v4772
    %v5017 = vpack.c.b16 %v4777, %v4773
    %v5018 = vpack.c.b16 %v4778, %v4774
    %v5019 = vpack.c.b16 %v4779, %v4775
    %v5020 = vpack.c.b16 %v4784, %v4780
    %v5021 = vpack.c.b16 %v4785, %v4781
    %v5022 = vpack.c.b16 %v4786, %v4782
    %v5023 = vpack.c.b16 %v4787, %v4783
    %v5024 = vpack.c.b16 %v4792, %v4788
    %v5025 = vpack.c.b16 %v4793, %v4789
    %v5026 = vpack.c.b16 %v4794, %v4790
    %v5027 = vpack.c.b16 %v4795, %v4791
    %v5028 = vpack.c.b16 %v4800, %v4796
    %v5029 = vpack.c.b16 %v4801, %v4797
    %v5030 = vpack.c.b16 %v4802, %v4798
    %v5031 = vpack.c.b16 %v4803, %v4799
    %v5032 = vpack.c.b16 %v4808, %v4804
    %v5033 = vpack.c.b16 %v4809, %v4805
    %v5034 = vpack.c.b16 %v4810, %v4806
    %v5035 = vpack.c.b16 %v4811, %v4807
    %5260 = vmatprep.subr.bf16.mxu0 %v4813
    %5261 = vmatpush1.bf16.msra.mxu0 %v4812
    %5262 = vmatprep.subr.bf16.mxu0 %v4817
    %5263 = vmatpush1.bf16.msra.mxu0 %v4816
    %5264 = vmatprep.subr.bf16.mxu0 %v4821
    %5265 = vmatpush1.bf16.msra.mxu0 %v4820
    %5266 = vmatprep.subr.bf16.mxu0 %v4825
    %5267 = vmatpush1.bf16.msra.mxu0 %v4824
    %5268 = vmatprep.subr.bf16.mxu0 %v4829
    %5269 = vmatpush1.bf16.msra.mxu0 %v4828
    %5270 = vmatprep.subr.bf16.mxu0 %v4833
    %5271 = vmatpush1.bf16.msra.mxu0 %v4832
    %5272 = vmatprep.subr.bf16.mxu0 %v4837
    %5273 = vmatpush1.bf16.msra.mxu0 %v4836
    %5274 = vmatprep.subr.bf16.mxu0 %v4841
    %5275 = vmatpush1.bf16.msra.mxu0 %v4840
    %5276 = vmatprep.subr.bf16.mxu0 %v4845
    %5277 = vmatpush1.bf16.msra.mxu0 %v4844
    %5278 = vmatprep.subr.bf16.mxu0 %v4849
    %5279 = vmatpush1.bf16.msra.mxu0 %v4848
    %5280 = vmatprep.subr.bf16.mxu0 %v4853
    %5281 = vmatpush1.bf16.msra.mxu0 %v4852
    %5282 = vmatprep.subr.bf16.mxu0 %v4857
    %5283 = vmatpush1.bf16.msra.mxu0 %v4856
    %5284 = vmatprep.subr.bf16.mxu0 %v4861
    %5285 = vmatpush1.bf16.msra.mxu0 %v4860
    %5286 = vmatprep.subr.bf16.mxu0 %v4865
    %5287 = vmatpush1.bf16.msra.mxu0 %v4864
    %5288 = vmatprep.subr.bf16.mxu0 %v4869
    %5289 = vmatpush1.bf16.msra.mxu0 %v4868
    %5290 = vmatprep.subr.bf16.mxu0 %v4873
    %5291 = vmatpush1.bf16.msra.mxu0 %v4872
    %5292 = vmatprep.mubr.bf16.mxu0 %v3888
    %5293 = vmatmul.mubr.bf16.gmra.mrb[0].mxu0 %v3887
    %v5294 = vpop.f32.mrb[0].mxu0
    %v5295 = vadd.f32 %v4123, %v5294
    %v5296 = vpop.f32.mrb[0].mxu0
    %v5297 = vadd.f32 %v4127, %v5296
    %v5298 = vpop.f32.mrb[0].mxu0
    %v5299 = vadd.f32 %v4123, %v5298
    %v5300 = vpop.f32.mrb[0].mxu0
    %v5301 = vadd.f32 %v4127, %v5300
    %5302 = vdwg.mxu0
    %5303 = vmatprep.subr.bf16.mxu0 %v4877
    %5304 = vmatpush1.bf16.msra.mxu0 %v4876
    %5305 = vmatprep.subr.bf16.mxu0 %v4881
    %5306 = vmatpush1.bf16.msra.mxu0 %v4880
    %5307 = vmatprep.subr.bf16.mxu0 %v4885
    %5308 = vmatpush1.bf16.msra.mxu0 %v4884
    %5309 = vmatprep.subr.bf16.mxu0 %v4889
    %5310 = vmatpush1.bf16.msra.mxu0 %v4888
    %5311 = vmatprep.subr.bf16.mxu0 %v4893
    %5312 = vmatpush1.bf16.msra.mxu0 %v4892
    %5313 = vmatprep.subr.bf16.mxu0 %v4897
    %5314 = vmatpush1.bf16.msra.mxu0 %v4896
    %5315 = vmatprep.subr.bf16.mxu0 %v4901
    %5316 = vmatpush1.bf16.msra.mxu0 %v4900
    %5317 = vmatprep.subr.bf16.mxu0 %v4905
    %5318 = vmatpush1.bf16.msra.mxu0 %v4904
    %5319 = vmatprep.subr.bf16.mxu0 %v4909
    %5320 = vmatpush1.bf16.msra.mxu0 %v4908
    %5321 = vmatprep.subr.bf16.mxu0 %v4913
    %5322 = vmatpush1.bf16.msra.mxu0 %v4912
    %5323 = vmatprep.subr.bf16.mxu0 %v4917
    %5324 = vmatpush1.bf16.msra.mxu0 %v4916
    %5325 = vmatprep.subr.bf16.mxu0 %v4921
    %5326 = vmatpush1.bf16.msra.mxu0 %v4920
    %5327 = vmatprep.subr.bf16.mxu0 %v4925
    %5328 = vmatpush1.bf16.msra.mxu0 %v4924
    %5329 = vmatprep.subr.bf16.mxu0 %v4929
    %5330 = vmatpush1.bf16.msra.mxu0 %v4928
    %5331 = vmatprep.subr.bf16.mxu0 %v4933
    %5332 = vmatpush1.bf16.msra.mxu0 %v4932
    %5333 = vmatprep.subr.bf16.mxu0 %v4937
    %5334 = vmatpush1.bf16.msra.mxu0 %v4936
    %5335 = vmatprep.mubr.bf16.mxu0 %v3890
    %5336 = vmatmul.mubr.bf16.gmra.mrb[0].mxu0 %v3889
    %v5337 = vpop.f32.mrb[0].mxu0
    %v5338 = vadd.f32 %v5295, %v5337
    %v5339 = vpop.f32.mrb[0].mxu0
    %v5340 = vadd.f32 %v5297, %v5339
    %v5341 = vpop.f32.mrb[0].mxu0
    %v5342 = vadd.f32 %v5299, %v5341
    %v5343 = vpop.f32.mrb[0].mxu0
    %v5344 = vadd.f32 %v5301, %v5343
    %5345 = vdwg.mxu0
    %5346 = vmatprep.subr.bf16.mxu0 %v4941
    %5347 = vmatpush1.bf16.msra.mxu0 %v4940
    %5348 = vmatprep.subr.bf16.mxu0 %v4945
    %5349 = vmatpush1.bf16.msra.mxu0 %v4944
    %5350 = vmatprep.subr.bf16.mxu0 %v4949
    %5351 = vmatpush1.bf16.msra.mxu0 %v4948
    %5352 = vmatprep.subr.bf16.mxu0 %v4953
    %5353 = vmatpush1.bf16.msra.mxu0 %v4952
    %5354 = vmatprep.subr.bf16.mxu0 %v4957
    %5355 = vmatpush1.bf16.msra.mxu0 %v4956
    %5356 = vmatprep.subr.bf16.mxu0 %v4961
    %5357 = vmatpush1.bf16.msra.mxu0 %v4960
    %5358 = vmatprep.subr.bf16.mxu0 %v4965
    %5359 = vmatpush1.bf16.msra.mxu0 %v4964
    %5360 = vmatprep.subr.bf16.mxu0 %v4969
    %5361 = vmatpush1.bf16.msra.mxu0 %v4968
    %5362 = vmatprep.subr.bf16.mxu0 %v4973
    %5363 = vmatpush1.bf16.msra.mxu0 %v4972
    %5364 = vmatprep.subr.bf16.mxu0 %v4977
    %5365 = vmatpush1.bf16.msra.mxu0 %v4976
    %5366 = vmatprep.subr.bf16.mxu0 %v4981
    %5367 = vmatpush1.bf16.msra.mxu0 %v4980
    %5368 = vmatprep.subr.bf16.mxu0 %v4985
    %5369 = vmatpush1.bf16.msra.mxu0 %v4984
    %5370 = vmatprep.subr.bf16.mxu0 %v4989
    %5371 = vmatpush1.bf16.msra.mxu0 %v4988
    %5372 = vmatprep.subr.bf16.mxu0 %v4993
    %5373 = vmatpush1.bf16.msra.mxu0 %v4992
    %5374 = vmatprep.subr.bf16.mxu0 %v4997
    %5375 = vmatpush1.bf16.msra.mxu0 %v4996
    %5376 = vmatprep.subr.bf16.mxu0 %v5001
    %5377 = vmatpush1.bf16.msra.mxu0 %v5000
    %5378 = vmatprep.mubr.bf16.mxu0 %v3892
    %5379 = vmatmul.mubr.bf16.gmra.mrb[0].mxu0 %v3891
    %v5380 = vpop.f32.mrb[0].mxu0
    %v5381 = vadd.f32 %v5338, %v5380
    %v5382 = vpop.f32.mrb[0].mxu0
    %v5383 = vadd.f32 %v5340, %v5382
    %v5384 = vpop.f32.mrb[0].mxu0
    %v5385 = vadd.f32 %v5342, %v5384
    %v5386 = vpop.f32.mrb[0].mxu0
    %v5387 = vadd.f32 %v5344, %v5386
    %5388 = vdwg.mxu0
    %5389 = vmatprep.subr.bf16.mxu0 %v5005
    %5390 = vmatpush1.bf16.msra.mxu0 %v5004
    %5391 = vmatprep.subr.bf16.mxu0 %v5009
    %5392 = vmatpush1.bf16.msra.mxu0 %v5008
    %5393 = vmatprep.subr.bf16.mxu0 %v5013
    %5394 = vmatpush1.bf16.msra.mxu0 %v5012
    %5395 = vmatprep.subr.bf16.mxu0 %v5017
    %5396 = vmatpush1.bf16.msra.mxu0 %v5016
    %5397 = vmatprep.subr.bf16.mxu0 %v5021
    %5398 = vmatpush1.bf16.msra.mxu0 %v5020
    %5399 = vmatprep.subr.bf16.mxu0 %v5025
    %5400 = vmatpush1.bf16.msra.mxu0 %v5024
    %5401 = vmatprep.subr.bf16.mxu0 %v5029
    %5402 = vmatpush1.bf16.msra.mxu0 %v5028
    %5403 = vmatprep.subr.bf16.mxu0 %v5033
    %5404 = vmatpush1.bf16.msra.mxu0 %v5032
    %5405 = vmatprep.subr.bf16.mxu0 0
    %5406 = vmatpush1.bf16.msra.mxu0 0
    %5407 = vmatprep.subr.bf16.mxu0 0
    %5408 = vmatpush1.bf16.msra.mxu0 0
    %5409 = vmatprep.subr.bf16.mxu0 0
    %5410 = vmatpush1.bf16.msra.mxu0 0
    %5411 = vmatprep.subr.bf16.mxu0 0
    %5412 = vmatpush1.bf16.msra.mxu0 0
    %5413 = vmatprep.subr.bf16.mxu0 0
    %5414 = vmatpush1.bf16.msra.mxu0 0
    %5415 = vmatprep.subr.bf16.mxu0 0
    %5416 = vmatpush1.bf16.msra.mxu0 0
    %5417 = vmatprep.subr.bf16.mxu0 0
    %5418 = vmatpush1.bf16.msra.mxu0 0
    %5419 = vmatprep.subr.bf16.mxu0 0
    %5420 = vmatpush1.bf16.msra.mxu0 0
    %5421 = vmatprep.mubr.bf16.mxu0 0
    %5422 = vmatmul.mubr.bf16.gmra.mrb[0].mxu0 %v3893
    %v5423 = vpop.f32.mrb[0].mxu0
    %v5424 = vadd.f32 %v5381, %v5423
    %v5425 = vpop.f32.mrb[0].mxu0
    %v5426 = vadd.f32 %v5383, %v5425
    %v5427 = vpop.f32.mrb[0].mxu0
    %v5428 = vadd.f32 %v5385, %v5427
    %v5429 = vpop.f32.mrb[0].mxu0
    %v5430 = vadd.f32 %v5387, %v5429
    %5431 = vdwg.mxu0
    %5432 = vmatprep.subr.bf16.mxu0 %v4815
    %5433 = vmatpush1.bf16.msra.mxu0 %v4814
    %5434 = vmatprep.subr.bf16.mxu0 %v4819
    %5435 = vmatpush1.bf16.msra.mxu0 %v4818
    %5436 = vmatprep.subr.bf16.mxu0 %v4823
    %5437 = vmatpush1.bf16.msra.mxu0 %v4822
    %5438 = vmatprep.subr.bf16.mxu0 %v4827
    %5439 = vmatpush1.bf16.msra.mxu0 %v4826
    %5440 = vmatprep.subr.bf16.mxu0 %v4831
    %5441 = vmatpush1.bf16.msra.mxu0 %v4830
    %5442 = vmatprep.subr.bf16.mxu0 %v4835
    %5443 = vmatpush1.bf16.msra.mxu0 %v4834
    %5444 = vmatprep.subr.bf16.mxu0 %v4839
    %5445 = vmatpush1.bf16.msra.mxu0 %v4838
    %5446 = vmatprep.subr.bf16.mxu0 %v4843
    %5447 = vmatpush1.bf16.msra.mxu0 %v4842
    %5448 = vmatprep.subr.bf16.mxu0 %v4847
    %5449 = vmatpush1.bf16.msra.mxu0 %v4846
    %5450 = vmatprep.subr.bf16.mxu0 %v4851
    %5451 = vmatpush1.bf16.msra.mxu0 %v4850
    %5452 = vmatprep.subr.bf16.mxu0 %v4855
    %5453 = vmatpush1.bf16.msra.mxu0 %v4854
    %5454 = vmatprep.subr.bf16.mxu0 %v4859
    %5455 = vmatpush1.bf16.msra.mxu0 %v4858
    %5456 = vmatprep.subr.bf16.mxu0 %v4863
    %5457 = vmatpush1.bf16.msra.mxu0 %v4862
    %5458 = vmatprep.subr.bf16.mxu0 %v4867
    %5459 = vmatpush1.bf16.msra.mxu0 %v4866
    %5460 = vmatprep.subr.bf16.mxu0 %v4871
    %5461 = vmatpush1.bf16.msra.mxu0 %v4870
    %5462 = vmatprep.subr.bf16.mxu0 %v4875
    %5463 = vmatpush1.bf16.msra.mxu0 %v4874
    %5464 = vmatprep.mubr.bf16.mxu0 %v3888
    %5465 = vmatmul.mubr.bf16.gmra.mrb[0].mxu0 %v3887
    %v5466 = vpop.f32.mrb[0].mxu0
    %v5467 = vadd.f32 %v4131, %v5466
    %v5468 = vpop.f32.mrb[0].mxu0
    %v5469 = vadd.f32 %v4135, %v5468
    %v5470 = vpop.f32.mrb[0].mxu0
    %v5471 = vadd.f32 %v4131, %v5470
    %v5472 = vpop.f32.mrb[0].mxu0
    %v5473 = vadd.f32 %v4135, %v5472
    %5474 = vdwg.mxu0
    %5475 = vmatprep.subr.bf16.mxu0 %v4879
    %5476 = vmatpush1.bf16.msra.mxu0 %v4878
    %5477 = vmatprep.subr.bf16.mxu0 %v4883
    %5478 = vmatpush1.bf16.msra.mxu0 %v4882
    %5479 = vmatprep.subr.bf16.mxu0 %v4887
    %5480 = vmatpush1.bf16.msra.mxu0 %v4886
    %5481 = vmatprep.subr.bf16.mxu0 %v4891
    %5482 = vmatpush1.bf16.msra.mxu0 %v4890
    %5483 = vmatprep.subr.bf16.mxu0 %v4895
    %5484 = vmatpush1.bf16.msra.mxu0 %v4894
    %5485 = vmatprep.subr.bf16.mxu0 %v4899
    %5486 = vmatpush1.bf16.msra.mxu0 %v4898
    %5487 = vmatprep.subr.bf16.mxu0 %v4903
    %5488 = vmatpush1.bf16.msra.mxu0 %v4902
    %5489 = vmatprep.subr.bf16.mxu0 %v4907
    %5490 = vmatpush1.bf16.msra.mxu0 %v4906
    %5491 = vmatprep.subr.bf16.mxu0 %v4911
    %5492 = vmatpush1.bf16.msra.mxu0 %v4910
    %5493 = vmatprep.subr.bf16.mxu0 %v4915
    %5494 = vmatpush1.bf16.msra.mxu0 %v4914
    %5495 = vmatprep.subr.bf16.mxu0 %v4919
    %5496 = vmatpush1.bf16.msra.mxu0 %v4918
    %5497 = vmatprep.subr.bf16.mxu0 %v4923
    %5498 = vmatpush1.bf16.msra.mxu0 %v4922
    %5499 = vmatprep.subr.bf16.mxu0 %v4927
    %5500 = vmatpush1.bf16.msra.mxu0 %v4926
    %5501 = vmatprep.subr.bf16.mxu0 %v4931
    %5502 = vmatpush1.bf16.msra.mxu0 %v4930
    %5503 = vmatprep.subr.bf16.mxu0 %v4935
    %5504 = vmatpush1.bf16.msra.mxu0 %v4934
    %5505 = vmatprep.subr.bf16.mxu0 %v4939
    %5506 = vmatpush1.bf16.msra.mxu0 %v4938
    %5507 = vmatprep.mubr.bf16.mxu0 %v3890
    %5508 = vmatmul.mubr.bf16.gmra.mrb[0].mxu0 %v3889
    %v5509 = vpop.f32.mrb[0].mxu0
    %v5510 = vadd.f32 %v5467, %v5509
    %v5511 = vpop.f32.mrb[0].mxu0
    %v5512 = vadd.f32 %v5469, %v5511
    %v5513 = vpop.f32.mrb[0].mxu0
    %v5514 = vadd.f32 %v5471, %v5513
    %v5515 = vpop.f32.mrb[0].mxu0
    %v5516 = vadd.f32 %v5473, %v5515
    %5517 = vdwg.mxu0
    %5518 = vmatprep.subr.bf16.mxu0 %v4943
    %5519 = vmatpush1.bf16.msra.mxu0 %v4942
    %5520 = vmatprep.subr.bf16.mxu0 %v4947
    %5521 = vmatpush1.bf16.msra.mxu0 %v4946
    %5522 = vmatprep.subr.bf16.mxu0 %v4951
    %5523 = vmatpush1.bf16.msra.mxu0 %v4950
    %5524 = vmatprep.subr.bf16.mxu0 %v4955
    %5525 = vmatpush1.bf16.msra.mxu0 %v4954
    %5526 = vmatprep.subr.bf16.mxu0 %v4959
    %5527 = vmatpush1.bf16.msra.mxu0 %v4958
    %5528 = vmatprep.subr.bf16.mxu0 %v4963
    %5529 = vmatpush1.bf16.msra.mxu0 %v4962
    %5530 = vmatprep.subr.bf16.mxu0 %v4967
    %5531 = vmatpush1.bf16.msra.mxu0 %v4966
    %5532 = vmatprep.subr.bf16.mxu0 %v4971
    %5533 = vmatpush1.bf16.msra.mxu0 %v4970
    %5534 = vmatprep.subr.bf16.mxu0 %v4975
    %5535 = vmatpush1.bf16.msra.mxu0 %v4974
    %5536 = vmatprep.subr.bf16.mxu0 %v4979
    %5537 = vmatpush1.bf16.msra.mxu0 %v4978
    %5538 = vmatprep.subr.bf16.mxu0 %v4983
    %5539 = vmatpush1.bf16.msra.mxu0 %v4982
    %5540 = vmatprep.subr.bf16.mxu0 %v4987
    %5541 = vmatpush1.bf16.msra.mxu0 %v4986
    %5542 = vmatprep.subr.bf16.mxu0 %v4991
    %5543 = vmatpush1.bf16.msra.mxu0 %v4990
    %5544 = vmatprep.subr.bf16.mxu0 %v4995
    %5545 = vmatpush1.bf16.msra.mxu0 %v4994
    %5546 = vmatprep.subr.bf16.mxu0 %v4999
    %5547 = vmatpush1.bf16.msra.mxu0 %v4998
    %5548 = vmatprep.subr.bf16.mxu0 %v5003
    %5549 = vmatpush1.bf16.msra.mxu0 %v5002
    %5550 = vmatprep.mubr.bf16.mxu0 %v3892
    %5551 = vmatmul.mubr.bf16.gmra.mrb[0].mxu0 %v3891
    %v5552 = vpop.f32.mrb[0].mxu0
    %v5553 = vadd.f32 %v5510, %v5552
    %v5554 = vpop.f32.mrb[0].mxu0
    %v5555 = vadd.f32 %v5512, %v5554
    %v5556 = vpop.f32.mrb[0].mxu0
    %v5557 = vadd.f32 %v5514, %v5556
    %v5558 = vpop.f32.mrb[0].mxu0
    %v5559 = vadd.f32 %v5516, %v5558
    %5560 = vdwg.mxu0
    %5561 = vmatprep.subr.bf16.mxu0 %v5007
    %5562 = vmatpush1.bf16.msra.mxu0 %v5006
    %5563 = vmatprep.subr.bf16.mxu0 %v5011
    %5564 = vmatpush1.bf16.msra.mxu0 %v5010
    %5565 = vmatprep.subr.bf16.mxu0 %v5015
    %5566 = vmatpush1.bf16.msra.mxu0 %v5014
    %5567 = vmatprep.subr.bf16.mxu0 %v5019
    %5568 = vmatpush1.bf16.msra.mxu0 %v5018
    %5569 = vmatprep.subr.bf16.mxu0 %v5023
    %5570 = vmatpush1.bf16.msra.mxu0 %v5022
    %5571 = vmatprep.subr.bf16.mxu0 %v5027
    %5572 = vmatpush1.bf16.msra.mxu0 %v5026
    %5573 = vmatprep.subr.bf16.mxu0 %v5031
    %5574 = vmatpush1.bf16.msra.mxu0 %v5030
    %5575 = vmatprep.subr.bf16.mxu0 %v5035
    %5576 = vmatpush1.bf16.msra.mxu0 %v5034
    %5577 = vmatprep.subr.bf16.mxu0 0
    %5578 = vmatpush1.bf16.msra.mxu0 0
    %5579 = vmatprep.subr.bf16.mxu0 0
    %5580 = vmatpush1.bf16.msra.mxu0 0
    %5581 = vmatprep.subr.bf16.mxu0 0
    %5582 = vmatpush1.bf16.msra.mxu0 0
    %5583 = vmatprep.subr.bf16.mxu0 0
    %5584 = vmatpush1.bf16.msra.mxu0 0
    %5585 = vmatprep.subr.bf16.mxu0 0
    %5586 = vmatpush1.bf16.msra.mxu0 0
    %5587 = vmatprep.subr.bf16.mxu0 0
    %5588 = vmatpush1.bf16.msra.mxu0 0
    %5589 = vmatprep.subr.bf16.mxu0 0
    %5590 = vmatpush1.bf16.msra.mxu0 0
    %5591 = vmatprep.subr.bf16.mxu0 0
    %5592 = vmatpush1.bf16.msra.mxu0 0
    %5593 = vmatprep.mubr.bf16.mxu0 0
    %5594 = vmatmul.mubr.bf16.gmra.mrb[0].mxu0 %v3893
    %v5595 = vpop.f32.mrb[0].mxu0
    %v5596 = vadd.f32 %v5553, %v5595
    %v5597 = vpop.f32.mrb[0].mxu0
    %v5598 = vadd.f32 %v5555, %v5597
    %v5599 = vpop.f32.mrb[0].mxu0
    %v5600 = vadd.f32 %v5557, %v5599
    %v5601 = vpop.f32.mrb[0].mxu0
    %v5602 = vadd.f32 %v5559, %v5601
    %5603 = vdwg.mxu0
    %v5604 = vmax.f32 %v5424, 0.0
    %v5605 = vmax.f32 %v5426, 0.0
    %v5606 = vmax.f32 %v5596, 0.0
    %v5607 = vmax.f32 %v5598, 0.0
    %v5608 = vmax.f32 %v5428, 0.0
    %v5609 = vmax.f32 %v5430, 0.0
    %v5610 = vmax.f32 %v5600, 0.0
    %v5611 = vmax.f32 %v5602, 0.0
    %v5612 = vpack.c.bf16 %v5608, %v5604
    %v5613 = vpack.c.bf16 %v5609, %v5605
    %v5614 = vpack.c.bf16 %v5610, %v5606
    %v5615 = vpack.c.bf16 %v5611, %v5607
    %v5616 = vld [vmem:[#allocation13] sm:$0xff]
    %v5617 = vld [vmem:[#allocation13 + $0x8] sm:$0xf]
    %v5618 = vld [vmem:[#allocation13 + $0xc] sm:$0xff]
    %v5619 = vld [vmem:[#allocation13 + $0x14] sm:$0xf]
    %v5620 = vld [vmem:[#allocation13 + $0x18] sm:$0xff]
    %v5621 = vld [vmem:[#allocation13 + $0x20] sm:$0xf]
    %v5622 = vld [vmem:[#allocation13 + $0x24] sm:$0xff]
    %v5623 = vld [vmem:[#allocation13 + $0x2c] sm:$0xf]
    %v5624 = vld [vmem:[#allocation13 + $0x30] sm:$0xff]
    %v5625 = vld [vmem:[#allocation13 + $0x38] sm:$0xf]
    %v5626 = vld [vmem:[#allocation13 + $0x3c] sm:$0xff]
    %v5627 = vld [vmem:[#allocation13 + $0x44] sm:$0xf]
    %v5628 = vld [vmem:[#allocation13 + $0x48] sm:$0xff]
    %v5629 = vld [vmem:[#allocation13 + $0x50] sm:$0xf]
    %v5630 = vld [vmem:[#allocation13 + $0x54] sm:$0xff]
    %v5631 = vld [vmem:[#allocation13 + $0x5c] sm:$0xf]
    %v5632 = vld [vmem:[#allocation13 + $0x60] sm:$0xff]
    %v5633 = vld [vmem:[#allocation13 + $0x68] sm:$0xf]
    %v5634 = vld [vmem:[#allocation13 + $0x6c] sm:$0xff]
    %v5635 = vld [vmem:[#allocation13 + $0x74] sm:$0xf]
    %v5636 = vld [vmem:[#allocation13 + $0x78] sm:$0xff]
    %v5637 = vld [vmem:[#allocation13 + $0x80] sm:$0xf]
    %v5638 = vld [vmem:[#allocation13 + $0x84] sm:$0xff]
    %v5639 = vld [vmem:[#allocation13 + $0x8c] sm:$0xf]
    %v5640 = vld [vmem:[#allocation13 + $0x90] sm:$0xff]
    %v5641 = vld [vmem:[#allocation13 + $0x98] sm:$0xf]
    %v5642 = vld [vmem:[#allocation13 + $0x9c] sm:$0xff]
    %v5643 = vld [vmem:[#allocation13 + $0xa4] sm:$0xf]
    %v5644 = vld [vmem:[#allocation13 + $0xa8] sm:$0xff]
    %v5645 = vld [vmem:[#allocation13 + $0xb0] sm:$0xf]
    %v5646 = vld [vmem:[#allocation13 + $0xb4] sm:$0xff]
    %v5647 = vld [vmem:[#allocation13 + $0xbc] sm:$0xf]
    %v5648 = vld [vmem:[#allocation13 + $0xc0] sm:$0xff]
    %v5649 = vld [vmem:[#allocation13 + $0xc8] sm:$0xf]
    %v5650 = vld [vmem:[#allocation13 + $0xcc] sm:$0xff]
    %v5651 = vld [vmem:[#allocation13 + $0xd4] sm:$0xf]
    %v5652 = vld [vmem:[#allocation13 + $0xd8] sm:$0xff]
    %v5653 = vld [vmem:[#allocation13 + $0xe0] sm:$0xf]
    %v5654 = vld [vmem:[#allocation13 + $0xe4] sm:$0xff]
    %v5655 = vld [vmem:[#allocation13 + $0xec] sm:$0xf]
    %v5656 = vld [vmem:[#allocation13 + $0xf0] sm:$0xff]
    %v5657 = vld [vmem:[#allocation13 + $0xf8] sm:$0xf]
    %v5658 = vld [vmem:[#allocation13 + $0xfc] sm:$0xff]
    %v5659 = vld [vmem:[#allocation13 + $0x104] sm:$0xf]
    %v5660 = vld [vmem:[#allocation13 + $0x108] sm:$0xff]
    %v5661 = vld [vmem:[#allocation13 + $0x110] sm:$0xf]
    %v5662 = vld [vmem:[#allocation13 + $0x114] sm:$0xff]
    %v5663 = vld [vmem:[#allocation13 + $0x11c] sm:$0xf]
    %v5664 = vld [vmem:[#allocation13 + $0x120] sm:$0xff]
    %v5665 = vld [vmem:[#allocation13 + $0x128] sm:$0xf]
    %v5666 = vld [vmem:[#allocation13 + $0x12c] sm:$0xff]
    %v5667 = vld [vmem:[#allocation13 + $0x134] sm:$0xf]
    %v5668 = vld [vmem:[#allocation13 + $0x138] sm:$0xff]
    %v5669 = vld [vmem:[#allocation13 + $0x140] sm:$0xf]
    %v5670 = vld [vmem:[#allocation13 + $0x144] sm:$0xff]
    %v5671 = vld [vmem:[#allocation13 + $0x14c] sm:$0xf]
    %v5672 = vld [vmem:[#allocation13 + $0x150] sm:$0xff]
    %v5673 = vld [vmem:[#allocation13 + $0x158] sm:$0xf]
    %v5674 = vld [vmem:[#allocation13 + $0x15c] sm:$0xff]
    %v5675 = vld [vmem:[#allocation13 + $0x164] sm:$0xf]
    %v5676 = vld [vmem:[#allocation13 + $0x168] sm:$0xff]
    %v5677 = vld [vmem:[#allocation13 + $0x170] sm:$0xf]
    %v5678 = vld [vmem:[#allocation13 + $0x174] sm:$0xff]
    %v5679 = vld [vmem:[#allocation13 + $0x17c] sm:$0xf]
    %v5680 = vld [vmem:[#allocation13 + $0x180] sm:$0xff]
    %v5681 = vld [vmem:[#allocation13 + $0x188] sm:$0xf]
    %v5682 = vld [vmem:[#allocation13 + $0x18c] sm:$0xff]
    %v5683 = vld [vmem:[#allocation13 + $0x194] sm:$0xf]
    %v5684 = vld [vmem:[#allocation13 + $0x198] sm:$0xff]
    %v5685 = vld [vmem:[#allocation13 + $0x1a0] sm:$0xf]
    %v5686 = vld [vmem:[#allocation13 + $0x1a4] sm:$0xff]
    %v5687 = vld [vmem:[#allocation13 + $0x1ac] sm:$0xf]
    %v5688 = vld [vmem:[#allocation13 + $0x1b0] sm:$0xff]
    %v5689 = vld [vmem:[#allocation13 + $0x1b8] sm:$0xf]
    %v5690 = vld [vmem:[#allocation13 + $0x1bc] sm:$0xff]
    %v5691 = vld [vmem:[#allocation13 + $0x1c4] sm:$0xf]
    %v5692 = vld [vmem:[#allocation13 + $0x1c8] sm:$0xff]
    %v5693 = vld [vmem:[#allocation13 + $0x1d0] sm:$0xf]
    %v5694 = vld [vmem:[#allocation13 + $0x1d4] sm:$0xff]
    %v5695 = vld [vmem:[#allocation13 + $0x1dc] sm:$0xf]
    %v5696 = vld [vmem:[#allocation13 + $0x1e0] sm:$0xff]
    %v5697 = vld [vmem:[#allocation13 + $0x1e8] sm:$0xf]
    %v5698 = vld [vmem:[#allocation13 + $0x1ec] sm:$0xff]
    %v5699 = vld [vmem:[#allocation13 + $0x1f4] sm:$0xf]
    %v5700 = vld [vmem:[#allocation13 + $0x1f8] sm:$0xff]
    %v5701 = vld [vmem:[#allocation13 + $0x200] sm:$0xf]
    %v5702 = vld [vmem:[#allocation13 + $0x204] sm:$0xff]
    %v5703 = vld [vmem:[#allocation13 + $0x20c] sm:$0xf]
    %v5704 = vld [vmem:[#allocation13 + $0x210] sm:$0xff]
    %v5705 = vld [vmem:[#allocation13 + $0x218] sm:$0xf]
    %v5706 = vld [vmem:[#allocation13 + $0x21c] sm:$0xff]
    %v5707 = vld [vmem:[#allocation13 + $0x224] sm:$0xf]
    %v5708 = vld [vmem:[#allocation13 + $0x228] sm:$0xff]
    %v5709 = vld [vmem:[#allocation13 + $0x230] sm:$0xf]
    %v5710 = vld [vmem:[#allocation13 + $0x234] sm:$0xff]
    %v5711 = vld [vmem:[#allocation13 + $0x23c] sm:$0xf]
    %v5712 = vld [vmem:[#allocation13 + $0x240] sm:$0xff]
    %v5713 = vld [vmem:[#allocation13 + $0x248] sm:$0xf]
    %v5714 = vld [vmem:[#allocation13 + $0x24c] sm:$0xff]
    %v5715 = vld [vmem:[#allocation13 + $0x254] sm:$0xf]
    %v5716 = vld [vmem:[#allocation13 + $0x258] sm:$0xff]
    %v5717 = vld [vmem:[#allocation13 + $0x260] sm:$0xf]
    %v5718 = vld [vmem:[#allocation13 + $0x264] sm:$0xff]
    %v5719 = vld [vmem:[#allocation13 + $0x26c] sm:$0xf]
    %v5720 = vld [vmem:[#allocation13 + $0x270] sm:$0xff]
    %v5721 = vld [vmem:[#allocation13 + $0x278] sm:$0xf]
    %v5722 = vld [vmem:[#allocation13 + $0x27c] sm:$0xff]
    %v5723 = vld [vmem:[#allocation13 + $0x284] sm:$0xf]
    %v5724 = vld [vmem:[#allocation13 + $0x288] sm:$0xff]
    %v5725 = vld [vmem:[#allocation13 + $0x290] sm:$0xf]
    %v5726 = vld [vmem:[#allocation13 + $0x294] sm:$0xff]
    %v5727 = vld [vmem:[#allocation13 + $0x29c] sm:$0xf]
    %v5728 = vld [vmem:[#allocation13 + $0x2a0] sm:$0xff]
    %v5729 = vld [vmem:[#allocation13 + $0x2a8] sm:$0xf]
    %v5730 = vld [vmem:[#allocation13 + $0x2ac] sm:$0xff]
    %v5731 = vld [vmem:[#allocation13 + $0x2b4] sm:$0xf]
    %v5732 = vld [vmem:[#allocation13 + $0x2b8] sm:$0xff]
    %v5733 = vld [vmem:[#allocation13 + $0x2c0] sm:$0xf]
    %v5734 = vld [vmem:[#allocation13 + $0x2c4] sm:$0xff]
    %v5735 = vld [vmem:[#allocation13 + $0x2cc] sm:$0xf]
    %v5736 = vld [vmem:[#allocation13 + $0x2d0] sm:$0xff]
    %v5737 = vld [vmem:[#allocation13 + $0x2d8] sm:$0xf]
    %v5738 = vld [vmem:[#allocation13 + $0x2dc] sm:$0xff]
    %v5739 = vld [vmem:[#allocation13 + $0x2e4] sm:$0xf]
    %v5740 = vld [vmem:[#allocation13 + $0x2e8] sm:$0xff]
    %v5741 = vld [vmem:[#allocation13 + $0x2f0] sm:$0xf]
    %v5742 = vld [vmem:[#allocation13 + $0x2f4] sm:$0xff]
    %v5743 = vld [vmem:[#allocation13 + $0x2fc] sm:$0xf]
    %v5744 = vld [vmem:[#allocation14] sm:$0x7]
    %v5746 = vlaneseq
    %v5747 = vshrl.u32 %v5746, 7
    %v5748 = vsub.s32 0, %v5747
    %v5749 = vrot.slane %v5744, %v5748
    %v5750 = vlaneseq
    %v5751 = vshrl.u32 %v5750, 7
    %v5752 = vsub.s32 1, %v5751
    %v5753 = vrot.slane %v5744, %v5752
    %v5754 = vlaneseq
    %v5755 = vshrl.u32 %v5754, 7
    %v5756 = vsub.s32 2, %v5755
    %v5757 = vrot.slane %v5744, %v5756
    %v5889 = vunpack.c.l.b16 %v5616
    %v5890 = vunpack.c.h.b16 %v5616
    %v5891 = vunpack.c.l.b16 %v5617
    %v5892 = vunpack.c.l.b16 %v5618
    %v5893 = vunpack.c.h.b16 %v5618
    %v5894 = vunpack.c.l.b16 %v5619
    %v5895 = vunpack.c.l.b16 %v5620
    %v5896 = vunpack.c.h.b16 %v5620
    %v5897 = vunpack.c.l.b16 %v5621
    %v5898 = vunpack.c.l.b16 %v5622
    %v5899 = vunpack.c.h.b16 %v5622
    %v5900 = vunpack.c.l.b16 %v5623
    %v5901 = vunpack.c.l.b16 %v5624
    %v5902 = vunpack.c.h.b16 %v5624
    %v5903 = vunpack.c.l.b16 %v5625
    %v5904 = vunpack.c.l.b16 %v5626
    %v5905 = vunpack.c.h.b16 %v5626
    %v5906 = vunpack.c.l.b16 %v5627
    %v5907 = vunpack.c.l.b16 %v5628
    %v5908 = vunpack.c.h.b16 %v5628
    %v5909 = vunpack.c.l.b16 %v5629
    %v5910 = vunpack.c.l.b16 %v5630
    %v5911 = vunpack.c.h.b16 %v5630
    %v5912 = vunpack.c.l.b16 %v5631
    %v5913 = vunpack.c.l.b16 %v5632
    %v5914 = vunpack.c.h.b16 %v5632
    %v5915 = vunpack.c.l.b16 %v5633
    %v5916 = vunpack.c.l.b16 %v5634
    %v5917 = vunpack.c.h.b16 %v5634
    %v5918 = vunpack.c.l.b16 %v5635
    %v5919 = vunpack.c.l.b16 %v5636
    %v5920 = vunpack.c.h.b16 %v5636
    %v5921 = vunpack.c.l.b16 %v5637
    %v5922 = vunpack.c.l.b16 %v5638
    %v5923 = vunpack.c.h.b16 %v5638
    %v5924 = vunpack.c.l.b16 %v5639
    %v5925 = vunpack.c.l.b16 %v5640
    %v5926 = vunpack.c.h.b16 %v5640
    %v5927 = vunpack.c.l.b16 %v5641
    %v5928 = vunpack.c.l.b16 %v5642
    %v5929 = vunpack.c.h.b16 %v5642
    %v5930 = vunpack.c.l.b16 %v5643
    %v5931 = vunpack.c.l.b16 %v5644
    %v5932 = vunpack.c.h.b16 %v5644
    %v5933 = vunpack.c.l.b16 %v5645
    %v5934 = vunpack.c.l.b16 %v5646
    %v5935 = vunpack.c.h.b16 %v5646
    %v5936 = vunpack.c.l.b16 %v5647
    %v5937 = vunpack.c.l.b16 %v5648
    %v5938 = vunpack.c.h.b16 %v5648
    %v5939 = vunpack.c.l.b16 %v5649
    %v5940 = vunpack.c.l.b16 %v5650
    %v5941 = vunpack.c.h.b16 %v5650
    %v5942 = vunpack.c.l.b16 %v5651
    %v5943 = vunpack.c.l.b16 %v5652
    %v5944 = vunpack.c.h.b16 %v5652
    %v5945 = vunpack.c.l.b16 %v5653
    %v5946 = vunpack.c.l.b16 %v5654
    %v5947 = vunpack.c.h.b16 %v5654
    %v5948 = vunpack.c.l.b16 %v5655
    %v5949 = vunpack.c.l.b16 %v5656
    %v5950 = vunpack.c.h.b16 %v5656
    %v5951 = vunpack.c.l.b16 %v5657
    %v5952 = vunpack.c.l.b16 %v5658
    %v5953 = vunpack.c.h.b16 %v5658
    %v5954 = vunpack.c.l.b16 %v5659
    %v5955 = vunpack.c.l.b16 %v5660
    %v5956 = vunpack.c.h.b16 %v5660
    %v5957 = vunpack.c.l.b16 %v5661
    %v5958 = vunpack.c.l.b16 %v5662
    %v5959 = vunpack.c.h.b16 %v5662
    %v5960 = vunpack.c.l.b16 %v5663
    %v5961 = vunpack.c.l.b16 %v5664
    %v5962 = vunpack.c.h.b16 %v5664
    %v5963 = vunpack.c.l.b16 %v5665
    %v5964 = vunpack.c.l.b16 %v5666
    %v5965 = vunpack.c.h.b16 %v5666
    %v5966 = vunpack.c.l.b16 %v5667
    %v5967 = vunpack.c.l.b16 %v5668
    %v5968 = vunpack.c.h.b16 %v5668
    %v5969 = vunpack.c.l.b16 %v5669
    %v5970 = vunpack.c.l.b16 %v5670
    %v5971 = vunpack.c.h.b16 %v5670
    %v5972 = vunpack.c.l.b16 %v5671
    %v5973 = vunpack.c.l.b16 %v5672
    %v5974 = vunpack.c.h.b16 %v5672
    %v5975 = vunpack.c.l.b16 %v5673
    %v5976 = vunpack.c.l.b16 %v5674
    %v5977 = vunpack.c.h.b16 %v5674
    %v5978 = vunpack.c.l.b16 %v5675
    %v5979 = vunpack.c.l.b16 %v5676
    %v5980 = vunpack.c.h.b16 %v5676
    %v5981 = vunpack.c.l.b16 %v5677
    %v5982 = vunpack.c.l.b16 %v5678
    %v5983 = vunpack.c.h.b16 %v5678
    %v5984 = vunpack.c.l.b16 %v5679
    %v5985 = vunpack.c.l.b16 %v5680
    %v5986 = vunpack.c.h.b16 %v5680
    %v5987 = vunpack.c.l.b16 %v5681
    %v5988 = vunpack.c.l.b16 %v5682
    %v5989 = vunpack.c.h.b16 %v5682
    %v5990 = vunpack.c.l.b16 %v5683
    %v5991 = vunpack.c.l.b16 %v5684
    %v5992 = vunpack.c.h.b16 %v5684
    %v5993 = vunpack.c.l.b16 %v5685
    %v5994 = vunpack.c.l.b16 %v5686
    %v5995 = vunpack.c.h.b16 %v5686
    %v5996 = vunpack.c.l.b16 %v5687
    %v5997 = vunpack.c.l.b16 %v5688
    %v5998 = vunpack.c.h.b16 %v5688
    %v5999 = vunpack.c.l.b16 %v5689
    %v6000 = vunpack.c.l.b16 %v5690
    %v6001 = vunpack.c.h.b16 %v5690
    %v6002 = vunpack.c.l.b16 %v5691
    %v6003 = vunpack.c.l.b16 %v5692
    %v6004 = vunpack.c.h.b16 %v5692
    %v6005 = vunpack.c.l.b16 %v5693
    %v6006 = vunpack.c.l.b16 %v5694
    %v6007 = vunpack.c.h.b16 %v5694
    %v6008 = vunpack.c.l.b16 %v5695
    %v6009 = vunpack.c.l.b16 %v5696
    %v6010 = vunpack.c.h.b16 %v5696
    %v6011 = vunpack.c.l.b16 %v5697
    %v6012 = vunpack.c.l.b16 %v5698
    %v6013 = vunpack.c.h.b16 %v5698
    %v6014 = vunpack.c.l.b16 %v5699
    %v6015 = vunpack.c.l.b16 %v5700
    %v6016 = vunpack.c.h.b16 %v5700
    %v6017 = vunpack.c.l.b16 %v5701
    %v6018 = vunpack.c.l.b16 %v5702
    %v6019 = vunpack.c.h.b16 %v5702
    %v6020 = vunpack.c.l.b16 %v5703
    %v6021 = vunpack.c.l.b16 %v5704
    %v6022 = vunpack.c.h.b16 %v5704
    %v6023 = vunpack.c.l.b16 %v5705
    %v6024 = vunpack.c.l.b16 %v5706
    %v6025 = vunpack.c.h.b16 %v5706
    %v6026 = vunpack.c.l.b16 %v5707
    %v6027 = vunpack.c.l.b16 %v5708
    %v6028 = vunpack.c.h.b16 %v5708
    %v6029 = vunpack.c.l.b16 %v5709
    %v6030 = vunpack.c.l.b16 %v5710
    %v6031 = vunpack.c.h.b16 %v5710
    %v6032 = vunpack.c.l.b16 %v5711
    %v6033 = vunpack.c.l.b16 %v5712
    %v6034 = vunpack.c.h.b16 %v5712
    %v6035 = vunpack.c.l.b16 %v5713
    %v6036 = vunpack.c.l.b16 %v5714
    %v6037 = vunpack.c.h.b16 %v5714
    %v6038 = vunpack.c.l.b16 %v5715
    %v6039 = vunpack.c.l.b16 %v5716
    %v6040 = vunpack.c.h.b16 %v5716
    %v6041 = vunpack.c.l.b16 %v5717
    %v6042 = vunpack.c.l.b16 %v5718
    %v6043 = vunpack.c.h.b16 %v5718
    %v6044 = vunpack.c.l.b16 %v5719
    %v6045 = vunpack.c.l.b16 %v5720
    %v6046 = vunpack.c.h.b16 %v5720
    %v6047 = vunpack.c.l.b16 %v5721
    %v6048 = vunpack.c.l.b16 %v5722
    %v6049 = vunpack.c.h.b16 %v5722
    %v6050 = vunpack.c.l.b16 %v5723
    %v6051 = vunpack.c.l.b16 %v5724
    %v6052 = vunpack.c.h.b16 %v5724
    %v6053 = vunpack.c.l.b16 %v5725
    %v6054 = vunpack.c.l.b16 %v5726
    %v6055 = vunpack.c.h.b16 %v5726
    %v6056 = vunpack.c.l.b16 %v5727
    %v6057 = vunpack.c.l.b16 %v5728
    %v6058 = vunpack.c.h.b16 %v5728
    %v6059 = vunpack.c.l.b16 %v5729
    %v6060 = vunpack.c.l.b16 %v5730
    %v6061 = vunpack.c.h.b16 %v5730
    %v6062 = vunpack.c.l.b16 %v5731
    %v6063 = vunpack.c.l.b16 %v5732
    %v6064 = vunpack.c.h.b16 %v5732
    %v6065 = vunpack.c.l.b16 %v5733
    %v6066 = vunpack.c.l.b16 %v5734
    %v6067 = vunpack.c.h.b16 %v5734
    %v6068 = vunpack.c.l.b16 %v5735
    %v6069 = vunpack.c.l.b16 %v5736
    %v6070 = vunpack.c.h.b16 %v5736
    %v6071 = vunpack.c.l.b16 %v5737
    %v6072 = vunpack.c.l.b16 %v5738
    %v6073 = vunpack.c.h.b16 %v5738
    %v6074 = vunpack.c.l.b16 %v5739
    %v6075 = vunpack.c.l.b16 %v5740
    %v6076 = vunpack.c.h.b16 %v5740
    %v6077 = vunpack.c.l.b16 %v5741
    %v6078 = vunpack.c.l.b16 %v5742
    %v6079 = vunpack.c.h.b16 %v5742
    %v6080 = vunpack.c.l.b16 %v5743
    %v6081 = vpack.c.b16 %v5892, %v5889
    %v6082 = vpack.c.b16 %v5893, %v5890
    %v6083 = vpack.c.b16 %v5894, %v5891
    %v6084 = vpack.c.b16 %v5898, %v5895
    %v6085 = vpack.c.b16 %v5899, %v5896
    %v6086 = vpack.c.b16 %v5900, %v5897
    %v6087 = vpack.c.b16 %v5904, %v5901
    %v6088 = vpack.c.b16 %v5905, %v5902
    %v6089 = vpack.c.b16 %v5906, %v5903
    %v6090 = vpack.c.b16 %v5910, %v5907
    %v6091 = vpack.c.b16 %v5911, %v5908
    %v6092 = vpack.c.b16 %v5912, %v5909
    %v6093 = vpack.c.b16 %v5916, %v5913
    %v6094 = vpack.c.b16 %v5917, %v5914
    %v6095 = vpack.c.b16 %v5918, %v5915
    %v6096 = vpack.c.b16 %v5922, %v5919
    %v6097 = vpack.c.b16 %v5923, %v5920
    %v6098 = vpack.c.b16 %v5924, %v5921
    %v6099 = vpack.c.b16 %v5928, %v5925
    %v6100 = vpack.c.b16 %v5929, %v5926
    %v6101 = vpack.c.b16 %v5930, %v5927
    %v6102 = vpack.c.b16 %v5934, %v5931
    %v6103 = vpack.c.b16 %v5935, %v5932
    %v6104 = vpack.c.b16 %v5936, %v5933
    %v6105 = vpack.c.b16 %v5940, %v5937
    %v6106 = vpack.c.b16 %v5941, %v5938
    %v6107 = vpack.c.b16 %v5942, %v5939
    %v6108 = vpack.c.b16 %v5946, %v5943
    %v6109 = vpack.c.b16 %v5947, %v5944
    %v6110 = vpack.c.b16 %v5948, %v5945
    %v6111 = vpack.c.b16 %v5952, %v5949
    %v6112 = vpack.c.b16 %v5953, %v5950
    %v6113 = vpack.c.b16 %v5954, %v5951
    %v6114 = vpack.c.b16 %v5958, %v5955
    %v6115 = vpack.c.b16 %v5959, %v5956
    %v6116 = vpack.c.b16 %v5960, %v5957
    %v6117 = vpack.c.b16 %v5964, %v5961
    %v6118 = vpack.c.b16 %v5965, %v5962
    %v6119 = vpack.c.b16 %v5966, %v5963
    %v6120 = vpack.c.b16 %v5970, %v5967
    %v6121 = vpack.c.b16 %v5971, %v5968
    %v6122 = vpack.c.b16 %v5972, %v5969
    %v6123 = vpack.c.b16 %v5976, %v5973
    %v6124 = vpack.c.b16 %v5977, %v5974
    %v6125 = vpack.c.b16 %v5978, %v5975
    %v6126 = vpack.c.b16 %v5982, %v5979
    %v6127 = vpack.c.b16 %v5983, %v5980
    %v6128 = vpack.c.b16 %v5984, %v5981
    %v6129 = vpack.c.b16 %v5988, %v5985
    %v6130 = vpack.c.b16 %v5989, %v5986
    %v6131 = vpack.c.b16 %v5990, %v5987
    %v6132 = vpack.c.b16 %v5994, %v5991
    %v6133 = vpack.c.b16 %v5995, %v5992
    %v6134 = vpack.c.b16 %v5996, %v5993
    %v6135 = vpack.c.b16 %v6000, %v5997
    %v6136 = vpack.c.b16 %v6001, %v5998
    %v6137 = vpack.c.b16 %v6002, %v5999
    %v6138 = vpack.c.b16 %v6006, %v6003
    %v6139 = vpack.c.b16 %v6007, %v6004
    %v6140 = vpack.c.b16 %v6008, %v6005
    %v6141 = vpack.c.b16 %v6012, %v6009
    %v6142 = vpack.c.b16 %v6013, %v6010
    %v6143 = vpack.c.b16 %v6014, %v6011
    %v6144 = vpack.c.b16 %v6018, %v6015
    %v6145 = vpack.c.b16 %v6019, %v6016
    %v6146 = vpack.c.b16 %v6020, %v6017
    %v6147 = vpack.c.b16 %v6024, %v6021
    %v6148 = vpack.c.b16 %v6025, %v6022
    %v6149 = vpack.c.b16 %v6026, %v6023
    %v6150 = vpack.c.b16 %v6030, %v6027
    %v6151 = vpack.c.b16 %v6031, %v6028
    %v6152 = vpack.c.b16 %v6032, %v6029
    %v6153 = vpack.c.b16 %v6036, %v6033
    %v6154 = vpack.c.b16 %v6037, %v6034
    %v6155 = vpack.c.b16 %v6038, %v6035
    %v6156 = vpack.c.b16 %v6042, %v6039
    %v6157 = vpack.c.b16 %v6043, %v6040
    %v6158 = vpack.c.b16 %v6044, %v6041
    %v6159 = vpack.c.b16 %v6048, %v6045
    %v6160 = vpack.c.b16 %v6049, %v6046
    %v6161 = vpack.c.b16 %v6050, %v6047
    %v6162 = vpack.c.b16 %v6054, %v6051
    %v6163 = vpack.c.b16 %v6055, %v6052
    %v6164 = vpack.c.b16 %v6056, %v6053
    %v6165 = vpack.c.b16 %v6060, %v6057
    %v6166 = vpack.c.b16 %v6061, %v6058
    %v6167 = vpack.c.b16 %v6062, %v6059
    %v6168 = vpack.c.b16 %v6066, %v6063
    %v6169 = vpack.c.b16 %v6067, %v6064
    %v6170 = vpack.c.b16 %v6068, %v6065
    %v6171 = vpack.c.b16 %v6072, %v6069
    %v6172 = vpack.c.b16 %v6073, %v6070
    %v6173 = vpack.c.b16 %v6074, %v6071
    %v6174 = vpack.c.b16 %v6078, %v6075
    %v6175 = vpack.c.b16 %v6079, %v6076
    %v6176 = vpack.c.b16 %v6080, %v6077
    %6273 = vmatprep.subr.bf16.mxu0 %v6082
    %6274 = vmatpush1.bf16.msra.mxu0 %v6081
    %6275 = vmatprep.subr.bf16.mxu0 %v6085
    %6276 = vmatpush1.bf16.msra.mxu0 %v6084
    %6277 = vmatprep.subr.bf16.mxu0 %v6088
    %6278 = vmatpush1.bf16.msra.mxu0 %v6087
    %6279 = vmatprep.subr.bf16.mxu0 %v6091
    %6280 = vmatpush1.bf16.msra.mxu0 %v6090
    %6281 = vmatprep.subr.bf16.mxu0 %v6094
    %6282 = vmatpush1.bf16.msra.mxu0 %v6093
    %6283 = vmatprep.subr.bf16.mxu0 %v6097
    %6284 = vmatpush1.bf16.msra.mxu0 %v6096
    %6285 = vmatprep.subr.bf16.mxu0 %v6100
    %6286 = vmatpush1.bf16.msra.mxu0 %v6099
    %6287 = vmatprep.subr.bf16.mxu0 %v6103
    %6288 = vmatpush1.bf16.msra.mxu0 %v6102
    %6289 = vmatprep.subr.bf16.mxu0 %v6106
    %6290 = vmatpush1.bf16.msra.mxu0 %v6105
    %6291 = vmatprep.subr.bf16.mxu0 %v6109
    %6292 = vmatpush1.bf16.msra.mxu0 %v6108
    %6293 = vmatprep.subr.bf16.mxu0 %v6112
    %6294 = vmatpush1.bf16.msra.mxu0 %v6111
    %6295 = vmatprep.subr.bf16.mxu0 %v6115
    %6296 = vmatpush1.bf16.msra.mxu0 %v6114
    %6297 = vmatprep.subr.bf16.mxu0 %v6118
    %6298 = vmatpush1.bf16.msra.mxu0 %v6117
    %6299 = vmatprep.subr.bf16.mxu0 %v6121
    %6300 = vmatpush1.bf16.msra.mxu0 %v6120
    %6301 = vmatprep.subr.bf16.mxu0 %v6124
    %6302 = vmatpush1.bf16.msra.mxu0 %v6123
    %6303 = vmatprep.subr.bf16.mxu0 %v6127
    %6304 = vmatpush1.bf16.msra.mxu0 %v6126
    %6305 = vmatprep.mubr.bf16.mxu0 %v5613
    %6306 = vmatmul.mubr.bf16.gmra.mrb[0].mxu0 %v5612
    %v6307 = vpop.f32.mrb[0].mxu0
    %v6308 = vadd.f32 %v5749, %v6307
    %v6309 = vpop.f32.mrb[0].mxu0
    %v6310 = vadd.f32 %v5753, %v6309
    %v6311 = vpop.f32.mrb[0].mxu0
    %v6312 = vadd.f32 %v5749, %v6311
    %v6313 = vpop.f32.mrb[0].mxu0
    %v6314 = vadd.f32 %v5753, %v6313
    %6315 = vdwg.mxu0
    %6316 = vmatprep.subr.bf16.mxu0 %v6130
    %6317 = vmatpush1.bf16.msra.mxu0 %v6129
    %6318 = vmatprep.subr.bf16.mxu0 %v6133
    %6319 = vmatpush1.bf16.msra.mxu0 %v6132
    %6320 = vmatprep.subr.bf16.mxu0 %v6136
    %6321 = vmatpush1.bf16.msra.mxu0 %v6135
    %6322 = vmatprep.subr.bf16.mxu0 %v6139
    %6323 = vmatpush1.bf16.msra.mxu0 %v6138
    %6324 = vmatprep.subr.bf16.mxu0 %v6142
    %6325 = vmatpush1.bf16.msra.mxu0 %v6141
    %6326 = vmatprep.subr.bf16.mxu0 %v6145
    %6327 = vmatpush1.bf16.msra.mxu0 %v6144
    %6328 = vmatprep.subr.bf16.mxu0 %v6148
    %6329 = vmatpush1.bf16.msra.mxu0 %v6147
    %6330 = vmatprep.subr.bf16.mxu0 %v6151
    %6331 = vmatpush1.bf16.msra.mxu0 %v6150
    %6332 = vmatprep.subr.bf16.mxu0 %v6154
    %6333 = vmatpush1.bf16.msra.mxu0 %v6153
    %6334 = vmatprep.subr.bf16.mxu0 %v6157
    %6335 = vmatpush1.bf16.msra.mxu0 %v6156
    %6336 = vmatprep.subr.bf16.mxu0 %v6160
    %6337 = vmatpush1.bf16.msra.mxu0 %v6159
    %6338 = vmatprep.subr.bf16.mxu0 %v6163
    %6339 = vmatpush1.bf16.msra.mxu0 %v6162
    %6340 = vmatprep.subr.bf16.mxu0 %v6166
    %6341 = vmatpush1.bf16.msra.mxu0 %v6165
    %6342 = vmatprep.subr.bf16.mxu0 %v6169
    %6343 = vmatpush1.bf16.msra.mxu0 %v6168
    %6344 = vmatprep.subr.bf16.mxu0 %v6172
    %6345 = vmatpush1.bf16.msra.mxu0 %v6171
    %6346 = vmatprep.subr.bf16.mxu0 %v6175
    %6347 = vmatpush1.bf16.msra.mxu0 %v6174
    %6348 = vmatprep.mubr.bf16.mxu0 %v5615
    %6349 = vmatmul.mubr.bf16.gmra.mrb[0].mxu0 %v5614
    %v6350 = vpop.f32.mrb[0].mxu0
    %v6351 = vadd.f32 %v6308, %v6350
    %v6352 = vpop.f32.mrb[0].mxu0
    %v6353 = vadd.f32 %v6310, %v6352
    %v6354 = vpop.f32.mrb[0].mxu0
    %v6355 = vadd.f32 %v6312, %v6354
    %v6356 = vpop.f32.mrb[0].mxu0
    %v6357 = vadd.f32 %v6314, %v6356
    %6358 = vdwg.mxu0
    %6359 = vmatprep.subr.bf16.mxu0 0
    %6360 = vmatpush1.bf16.msra.mxu0 %v6083
    %6361 = vmatprep.subr.bf16.mxu0 0
    %6362 = vmatpush1.bf16.msra.mxu0 %v6086
    %6363 = vmatprep.subr.bf16.mxu0 0
    %6364 = vmatpush1.bf16.msra.mxu0 %v6089
    %6365 = vmatprep.subr.bf16.mxu0 0
    %6366 = vmatpush1.bf16.msra.mxu0 %v6092
    %6367 = vmatprep.subr.bf16.mxu0 0
    %6368 = vmatpush1.bf16.msra.mxu0 %v6095
    %6369 = vmatprep.subr.bf16.mxu0 0
    %6370 = vmatpush1.bf16.msra.mxu0 %v6098
    %6371 = vmatprep.subr.bf16.mxu0 0
    %6372 = vmatpush1.bf16.msra.mxu0 %v6101
    %6373 = vmatprep.subr.bf16.mxu0 0
    %6374 = vmatpush1.bf16.msra.mxu0 %v6104
    %6375 = vmatprep.subr.bf16.mxu0 0
    %6376 = vmatpush1.bf16.msra.mxu0 %v6107
    %6377 = vmatprep.subr.bf16.mxu0 0
    %6378 = vmatpush1.bf16.msra.mxu0 %v6110
    %6379 = vmatprep.subr.bf16.mxu0 0
    %6380 = vmatpush1.bf16.msra.mxu0 %v6113
    %6381 = vmatprep.subr.bf16.mxu0 0
    %6382 = vmatpush1.bf16.msra.mxu0 %v6116
    %6383 = vmatprep.subr.bf16.mxu0 0
    %6384 = vmatpush1.bf16.msra.mxu0 %v6119
    %6385 = vmatprep.subr.bf16.mxu0 0
    %6386 = vmatpush1.bf16.msra.mxu0 %v6122
    %6387 = vmatprep.subr.bf16.mxu0 0
    %6388 = vmatpush1.bf16.msra.mxu0 %v6125
    %6389 = vmatprep.subr.bf16.mxu0 0
    %6390 = vmatpush1.bf16.msra.mxu0 %v6128
    %6391 = vmatprep.mubr.bf16.mxu0 %v5613
    %6392 = vmatmul.mubr.bf16.gmra.mrb[0].mxu0 %v5612
    %v6393 = vpop.f32.mrb[0].mxu0
    %v6394 = vadd.f32 %v5757, %v6393
    %v6395 = vpop.f32.mrb[0].mxu0
    %v6396 = vpop.f32.mrb[0].mxu0
    %v6397 = vadd.f32 %v5757, %v6396
    %v6398 = vpop.f32.mrb[0].mxu0
    %6399 = vdwg.mxu0
    %6400 = vmatprep.subr.bf16.mxu0 0
    %6401 = vmatpush1.bf16.msra.mxu0 %v6131
    %6402 = vmatprep.subr.bf16.mxu0 0
    %6403 = vmatpush1.bf16.msra.mxu0 %v6134
    %6404 = vmatprep.subr.bf16.mxu0 0
    %6405 = vmatpush1.bf16.msra.mxu0 %v6137
    %6406 = vmatprep.subr.bf16.mxu0 0
    %6407 = vmatpush1.bf16.msra.mxu0 %v6140
    %6408 = vmatprep.subr.bf16.mxu0 0
    %6409 = vmatpush1.bf16.msra.mxu0 %v6143
    %6410 = vmatprep.subr.bf16.mxu0 0
    %6411 = vmatpush1.bf16.msra.mxu0 %v6146
    %6412 = vmatprep.subr.bf16.mxu0 0
    %6413 = vmatpush1.bf16.msra.mxu0 %v6149
    %6414 = vmatprep.subr.bf16.mxu0 0
    %6415 = vmatpush1.bf16.msra.mxu0 %v6152
    %6416 = vmatprep.subr.bf16.mxu0 0
    %6417 = vmatpush1.bf16.msra.mxu0 %v6155
    %6418 = vmatprep.subr.bf16.mxu0 0
    %6419 = vmatpush1.bf16.msra.mxu0 %v6158
    %6420 = vmatprep.subr.bf16.mxu0 0
    %6421 = vmatpush1.bf16.msra.mxu0 %v6161
    %6422 = vmatprep.subr.bf16.mxu0 0
    %6423 = vmatpush1.bf16.msra.mxu0 %v6164
    %6424 = vmatprep.subr.bf16.mxu0 0
    %6425 = vmatpush1.bf16.msra.mxu0 %v6167
    %6426 = vmatprep.subr.bf16.mxu0 0
    %6427 = vmatpush1.bf16.msra.mxu0 %v6170
    %6428 = vmatprep.subr.bf16.mxu0 0
    %6429 = vmatpush1.bf16.msra.mxu0 %v6173
    %6430 = vmatprep.subr.bf16.mxu0 0
    %6431 = vmatpush1.bf16.msra.mxu0 %v6176
    %6432 = vmatprep.mubr.bf16.mxu0 %v5615
    %6433 = vmatmul.mubr.bf16.gmra.mrb[0].mxu0 %v5614
    %v6434 = vpop.f32.mrb[0].mxu0
    %v6435 = vadd.f32 %v6394, %v6434
    %v6436 = vpop.f32.mrb[0].mxu0
    %v6437 = vpop.f32.mrb[0].mxu0
    %v6438 = vadd.f32 %v6397, %v6437
    %v6439 = vpop.f32.mrb[0].mxu0
    %6440 = vdwg.mxu0
    %v6441 = vmax.f32 %v6351, 0.0
    %v6442 = vmax.f32 %v6353, 0.0
    %v6443 = vmax.f32 %v6435, 0.0
    %v6444 = vmax.f32 %v6355, 0.0
    %v6445 = vmax.f32 %v6357, 0.0
    %v6446 = vmax.f32 %v6438, 0.0
    %v6447 = vpack.c.bf16 %v6444, %v6441
    %v6448 = vpack.c.bf16 %v6445, %v6442
    %v6449 = vpack.c.bf16 %v6446, %v6443
    %v6450 = vld [vmem:[#allocation16] sm:$0xff]
    %v6451 = vld [vmem:[#allocation16 + $0x8] sm:$0xff]
    %v6452 = vld [vmem:[#allocation16 + $0x10] sm:$0xff]
    %v6453 = vld [vmem:[#allocation16 + $0x18] sm:$0xff]
    %v6454 = vld [vmem:[#allocation16 + $0x20] sm:$0xff]
    %v6455 = vld [vmem:[#allocation16 + $0x28] sm:$0xff]
    %v6456 = vld [vmem:[#allocation16 + $0x30] sm:$0xff]
    %v6457 = vld [vmem:[#allocation16 + $0x38] sm:$0xff]
    %v6458 = vld [vmem:[#allocation16 + $0x40] sm:$0xff]
    %v6459 = vld [vmem:[#allocation16 + $0x48] sm:$0xff]
    %v6460 = vld [vmem:[#allocation16 + $0x50] sm:$0xff]
    %v6461 = vld [vmem:[#allocation16 + $0x58] sm:$0xff]
    %v6462 = vld [vmem:[#allocation16 + $0x60] sm:$0xff]
    %v6463 = vld [vmem:[#allocation16 + $0x68] sm:$0xff]
    %v6464 = vld [vmem:[#allocation16 + $0x70] sm:$0xff]
    %v6465 = vld [vmem:[#allocation16 + $0x78] sm:$0xff]
    %v6466 = vld [vmem:[#allocation16 + $0x80] sm:$0xff]
    %v6467 = vld [vmem:[#allocation16 + $0x88] sm:$0xff]
    %v6468 = vld [vmem:[#allocation16 + $0x90] sm:$0xff]
    %v6469 = vld [vmem:[#allocation16 + $0x98] sm:$0xff]
    %v6470 = vld [vmem:[#allocation16 + $0xa0] sm:$0xff]
    %v6471 = vld [vmem:[#allocation16 + $0xa8] sm:$0xff]
    %v6472 = vld [vmem:[#allocation16 + $0xb0] sm:$0xff]
    %v6473 = vld [vmem:[#allocation16 + $0xb8] sm:$0xff]
    %v6474 = vld [vmem:[#allocation16 + $0xc0] sm:$0xff]
    %v6475 = vld [vmem:[#allocation16 + $0xc8] sm:$0xff]
    %v6476 = vld [vmem:[#allocation16 + $0xd0] sm:$0xff]
    %v6477 = vld [vmem:[#allocation16 + $0xd8] sm:$0xff]
    %v6478 = vld [vmem:[#allocation16 + $0xe0] sm:$0xff]
    %v6479 = vld [vmem:[#allocation16 + $0xe8] sm:$0xff]
    %v6480 = vld [vmem:[#allocation16 + $0xf0] sm:$0xff]
    %v6481 = vld [vmem:[#allocation16 + $0xf8] sm:$0xff]
    %v6482 = vld [vmem:[#allocation16 + $0x100] sm:$0xff]
    %v6483 = vld [vmem:[#allocation16 + $0x108] sm:$0xff]
    %v6484 = vld [vmem:[#allocation16 + $0x110] sm:$0xff]
    %v6485 = vld [vmem:[#allocation16 + $0x118] sm:$0xff]
    %v6486 = vld [vmem:[#allocation16 + $0x120] sm:$0xff]
    %v6487 = vld [vmem:[#allocation16 + $0x128] sm:$0xff]
    %v6488 = vld [vmem:[#allocation16 + $0x130] sm:$0xff]
    %v6489 = vld [vmem:[#allocation16 + $0x138] sm:$0xff]
    %v6490 = vld [vmem:[#allocation16 + $0x140] sm:$0xff]
    %v6491 = vld [vmem:[#allocation16 + $0x148] sm:$0xff]
    %v6492 = vld [vmem:[#allocation16 + $0x150] sm:$0xff]
    %v6493 = vld [vmem:[#allocation16 + $0x158] sm:$0xff]
    %v6494 = vld [vmem:[#allocation16 + $0x160] sm:$0xff]
    %v6495 = vld [vmem:[#allocation16 + $0x168] sm:$0xff]
    %v6496 = vld [vmem:[#allocation16 + $0x170] sm:$0xff]
    %v6497 = vld [vmem:[#allocation16 + $0x178] sm:$0xff]
    %v6498 = vld [vmem:[#allocation17] sm:$0x3]
    %v6500 = vlaneseq
    %v6501 = vshrl.u32 %v6500, 7
    %v6502 = vsub.s32 0, %v6501
    %v6503 = vrot.slane %v6498, %v6502
    %v6504 = vlaneseq
    %v6505 = vshrl.u32 %v6504, 7
    %v6506 = vsub.s32 1, %v6505
    %v6507 = vrot.slane %v6498, %v6506
    %v6558 = vunpack.c.l.b16 %v6450
    %v6559 = vunpack.c.h.b16 %v6450
    %v6560 = vunpack.c.l.b16 %v6451
    %v6561 = vunpack.c.h.b16 %v6451
    %v6562 = vunpack.c.l.b16 %v6452
    %v6563 = vunpack.c.h.b16 %v6452
    %v6564 = vunpack.c.l.b16 %v6453
    %v6565 = vunpack.c.h.b16 %v6453
    %v6566 = vunpack.c.l.b16 %v6454
    %v6567 = vunpack.c.h.b16 %v6454
    %v6568 = vunpack.c.l.b16 %v6455
    %v6569 = vunpack.c.h.b16 %v6455
    %v6570 = vunpack.c.l.b16 %v6456
    %v6571 = vunpack.c.h.b16 %v6456
    %v6572 = vunpack.c.l.b16 %v6457
    %v6573 = vunpack.c.h.b16 %v6457
    %v6574 = vunpack.c.l.b16 %v6458
    %v6575 = vunpack.c.h.b16 %v6458
    %v6576 = vunpack.c.l.b16 %v6459
    %v6577 = vunpack.c.h.b16 %v6459
    %v6578 = vunpack.c.l.b16 %v6460
    %v6579 = vunpack.c.h.b16 %v6460
    %v6580 = vunpack.c.l.b16 %v6461
    %v6581 = vunpack.c.h.b16 %v6461
    %v6582 = vunpack.c.l.b16 %v6462
    %v6583 = vunpack.c.h.b16 %v6462
    %v6584 = vunpack.c.l.b16 %v6463
    %v6585 = vunpack.c.h.b16 %v6463
    %v6586 = vunpack.c.l.b16 %v6464
    %v6587 = vunpack.c.h.b16 %v6464
    %v6588 = vunpack.c.l.b16 %v6465
    %v6589 = vunpack.c.h.b16 %v6465
    %v6590 = vunpack.c.l.b16 %v6466
    %v6591 = vunpack.c.h.b16 %v6466
    %v6592 = vunpack.c.l.b16 %v6467
    %v6593 = vunpack.c.h.b16 %v6467
    %v6594 = vunpack.c.l.b16 %v6468
    %v6595 = vunpack.c.h.b16 %v6468
    %v6596 = vunpack.c.l.b16 %v6469
    %v6597 = vunpack.c.h.b16 %v6469
    %v6598 = vunpack.c.l.b16 %v6470
    %v6599 = vunpack.c.h.b16 %v6470
    %v6600 = vunpack.c.l.b16 %v6471
    %v6601 = vunpack.c.h.b16 %v6471
    %v6602 = vunpack.c.l.b16 %v6472
    %v6603 = vunpack.c.h.b16 %v6472
    %v6604 = vunpack.c.l.b16 %v6473
    %v6605 = vunpack.c.h.b16 %v6473
    %v6606 = vunpack.c.l.b16 %v6474
    %v6607 = vunpack.c.h.b16 %v6474
    %v6608 = vunpack.c.l.b16 %v6475
    %v6609 = vunpack.c.h.b16 %v6475
    %v6610 = vunpack.c.l.b16 %v6476
    %v6611 = vunpack.c.h.b16 %v6476
    %v6612 = vunpack.c.l.b16 %v6477
    %v6613 = vunpack.c.h.b16 %v6477
    %v6614 = vunpack.c.l.b16 %v6478
    %v6615 = vunpack.c.h.b16 %v6478
    %v6616 = vunpack.c.l.b16 %v6479
    %v6617 = vunpack.c.h.b16 %v6479
    %v6618 = vunpack.c.l.b16 %v6480
    %v6619 = vunpack.c.h.b16 %v6480
    %v6620 = vunpack.c.l.b16 %v6481
    %v6621 = vunpack.c.h.b16 %v6481
    %v6622 = vunpack.c.l.b16 %v6482
    %v6623 = vunpack.c.h.b16 %v6482
    %v6624 = vunpack.c.l.b16 %v6483
    %v6625 = vunpack.c.h.b16 %v6483
    %v6626 = vunpack.c.l.b16 %v6484
    %v6627 = vunpack.c.h.b16 %v6484
    %v6628 = vunpack.c.l.b16 %v6485
    %v6629 = vunpack.c.h.b16 %v6485
    %v6630 = vunpack.c.l.b16 %v6486
    %v6631 = vunpack.c.h.b16 %v6486
    %v6632 = vunpack.c.l.b16 %v6487
    %v6633 = vunpack.c.h.b16 %v6487
    %v6634 = vunpack.c.l.b16 %v6488
    %v6635 = vunpack.c.h.b16 %v6488
    %v6636 = vunpack.c.l.b16 %v6489
    %v6637 = vunpack.c.h.b16 %v6489
    %v6638 = vunpack.c.l.b16 %v6490
    %v6639 = vunpack.c.h.b16 %v6490
    %v6640 = vunpack.c.l.b16 %v6491
    %v6641 = vunpack.c.h.b16 %v6491
    %v6642 = vunpack.c.l.b16 %v6492
    %v6643 = vunpack.c.h.b16 %v6492
    %v6644 = vunpack.c.l.b16 %v6493
    %v6645 = vunpack.c.h.b16 %v6493
    %v6646 = vunpack.c.l.b16 %v6494
    %v6647 = vunpack.c.h.b16 %v6494
    %v6648 = vunpack.c.l.b16 %v6495
    %v6649 = vunpack.c.h.b16 %v6495
    %v6650 = vunpack.c.l.b16 %v6496
    %v6651 = vunpack.c.h.b16 %v6496
    %v6652 = vunpack.c.l.b16 %v6497
    %v6653 = vunpack.c.h.b16 %v6497
    %v6654 = vpack.c.b16 %v6560, %v6558
    %v6655 = vpack.c.b16 %v6561, %v6559
    %v6656 = vpack.c.b16 %v6564, %v6562
    %v6657 = vpack.c.b16 %v6565, %v6563
    %v6658 = vpack.c.b16 %v6568, %v6566
    %v6659 = vpack.c.b16 %v6569, %v6567
    %v6660 = vpack.c.b16 %v6572, %v6570
    %v6661 = vpack.c.b16 %v6573, %v6571
    %v6662 = vpack.c.b16 %v6576, %v6574
    %v6663 = vpack.c.b16 %v6577, %v6575
    %v6664 = vpack.c.b16 %v6580, %v6578
    %v6665 = vpack.c.b16 %v6581, %v6579
    %v6666 = vpack.c.b16 %v6584, %v6582
    %v6667 = vpack.c.b16 %v6585, %v6583
    %v6668 = vpack.c.b16 %v6588, %v6586
    %v6669 = vpack.c.b16 %v6589, %v6587
    %v6670 = vpack.c.b16 %v6592, %v6590
    %v6671 = vpack.c.b16 %v6593, %v6591
    %v6672 = vpack.c.b16 %v6596, %v6594
    %v6673 = vpack.c.b16 %v6597, %v6595
    %v6674 = vpack.c.b16 %v6600, %v6598
    %v6675 = vpack.c.b16 %v6601, %v6599
    %v6676 = vpack.c.b16 %v6604, %v6602
    %v6677 = vpack.c.b16 %v6605, %v6603
    %v6678 = vpack.c.b16 %v6608, %v6606
    %v6679 = vpack.c.b16 %v6609, %v6607
    %v6680 = vpack.c.b16 %v6612, %v6610
    %v6681 = vpack.c.b16 %v6613, %v6611
    %v6682 = vpack.c.b16 %v6616, %v6614
    %v6683 = vpack.c.b16 %v6617, %v6615
    %v6684 = vpack.c.b16 %v6620, %v6618
    %v6685 = vpack.c.b16 %v6621, %v6619
    %v6686 = vpack.c.b16 %v6624, %v6622
    %v6687 = vpack.c.b16 %v6625, %v6623
    %v6688 = vpack.c.b16 %v6628, %v6626
    %v6689 = vpack.c.b16 %v6629, %v6627
    %v6690 = vpack.c.b16 %v6632, %v6630
    %v6691 = vpack.c.b16 %v6633, %v6631
    %v6692 = vpack.c.b16 %v6636, %v6634
    %v6693 = vpack.c.b16 %v6637, %v6635
    %v6694 = vpack.c.b16 %v6640, %v6638
    %v6695 = vpack.c.b16 %v6641, %v6639
    %v6696 = vpack.c.b16 %v6644, %v6642
    %v6697 = vpack.c.b16 %v6645, %v6643
    %v6698 = vpack.c.b16 %v6648, %v6646
    %v6699 = vpack.c.b16 %v6649, %v6647
    %v6700 = vpack.c.b16 %v6652, %v6650
    %v6701 = vpack.c.b16 %v6653, %v6651
    %6750 = vmatprep.subr.bf16.mxu0 %v6655
    %6751 = vmatpush1.bf16.msra.mxu0 %v6654
    %6752 = vmatprep.subr.bf16.mxu0 %v6657
    %6753 = vmatpush1.bf16.msra.mxu0 %v6656
    %6754 = vmatprep.subr.bf16.mxu0 %v6659
    %6755 = vmatpush1.bf16.msra.mxu0 %v6658
    %6756 = vmatprep.subr.bf16.mxu0 %v6661
    %6757 = vmatpush1.bf16.msra.mxu0 %v6660
    %6758 = vmatprep.subr.bf16.mxu0 %v6663
    %6759 = vmatpush1.bf16.msra.mxu0 %v6662
    %6760 = vmatprep.subr.bf16.mxu0 %v6665
    %6761 = vmatpush1.bf16.msra.mxu0 %v6664
    %6762 = vmatprep.subr.bf16.mxu0 %v6667
    %6763 = vmatpush1.bf16.msra.mxu0 %v6666
    %6764 = vmatprep.subr.bf16.mxu0 %v6669
    %6765 = vmatpush1.bf16.msra.mxu0 %v6668
    %6766 = vmatprep.subr.bf16.mxu0 %v6671
    %6767 = vmatpush1.bf16.msra.mxu0 %v6670
    %6768 = vmatprep.subr.bf16.mxu0 %v6673
    %6769 = vmatpush1.bf16.msra.mxu0 %v6672
    %6770 = vmatprep.subr.bf16.mxu0 %v6675
    %6771 = vmatpush1.bf16.msra.mxu0 %v6674
    %6772 = vmatprep.subr.bf16.mxu0 %v6677
    %6773 = vmatpush1.bf16.msra.mxu0 %v6676
    %6774 = vmatprep.subr.bf16.mxu0 %v6679
    %6775 = vmatpush1.bf16.msra.mxu0 %v6678
    %6776 = vmatprep.subr.bf16.mxu0 %v6681
    %6777 = vmatpush1.bf16.msra.mxu0 %v6680
    %6778 = vmatprep.subr.bf16.mxu0 %v6683
    %6779 = vmatpush1.bf16.msra.mxu0 %v6682
    %6780 = vmatprep.subr.bf16.mxu0 %v6685
    %6781 = vmatpush1.bf16.msra.mxu0 %v6684
    %6782 = vmatprep.mubr.bf16.mxu0 %v6448
    %6783 = vmatmul.mubr.bf16.gmra.mrb[0].mxu0 %v6447
    %v6784 = vpop.f32.mrb[0].mxu0
    %v6785 = vadd.f32 %v6503, %v6784
    %v6786 = vpop.f32.mrb[0].mxu0
    %v6787 = vadd.f32 %v6507, %v6786
    %v6788 = vpop.f32.mrb[0].mxu0
    %v6789 = vadd.f32 %v6503, %v6788
    %v6790 = vpop.f32.mrb[0].mxu0
    %v6791 = vadd.f32 %v6507, %v6790
    %6792 = vdwg.mxu0
    %6793 = vmatprep.subr.bf16.mxu0 %v6687
    %6794 = vmatpush1.bf16.msra.mxu0 %v6686
    %6795 = vmatprep.subr.bf16.mxu0 %v6689
    %6796 = vmatpush1.bf16.msra.mxu0 %v6688
    %6797 = vmatprep.subr.bf16.mxu0 %v6691
    %6798 = vmatpush1.bf16.msra.mxu0 %v6690
    %6799 = vmatprep.subr.bf16.mxu0 %v6693
    %6800 = vmatpush1.bf16.msra.mxu0 %v6692
    %6801 = vmatprep.subr.bf16.mxu0 %v6695
    %6802 = vmatpush1.bf16.msra.mxu0 %v6694
    %6803 = vmatprep.subr.bf16.mxu0 %v6697
    %6804 = vmatpush1.bf16.msra.mxu0 %v6696
    %6805 = vmatprep.subr.bf16.mxu0 %v6699
    %6806 = vmatpush1.bf16.msra.mxu0 %v6698
    %6807 = vmatprep.subr.bf16.mxu0 %v6701
    %6808 = vmatpush1.bf16.msra.mxu0 %v6700
    %6809 = vmatprep.subr.bf16.mxu0 0
    %6810 = vmatpush1.bf16.msra.mxu0 0
    %6811 = vmatprep.subr.bf16.mxu0 0
    %6812 = vmatpush1.bf16.msra.mxu0 0
    %6813 = vmatprep.subr.bf16.mxu0 0
    %6814 = vmatpush1.bf16.msra.mxu0 0
    %6815 = vmatprep.subr.bf16.mxu0 0
    %6816 = vmatpush1.bf16.msra.mxu0 0
    %6817 = vmatprep.subr.bf16.mxu0 0
    %6818 = vmatpush1.bf16.msra.mxu0 0
    %6819 = vmatprep.subr.bf16.mxu0 0
    %6820 = vmatpush1.bf16.msra.mxu0 0
    %6821 = vmatprep.subr.bf16.mxu0 0
    %6822 = vmatpush1.bf16.msra.mxu0 0
    %6823 = vmatprep.subr.bf16.mxu0 0
    %6824 = vmatpush1.bf16.msra.mxu0 0
    %6825 = vmatprep.mubr.bf16.mxu0 0
    %6826 = vmatmul.mubr.bf16.gmra.mrb[0].mxu0 %v6449
    %v6827 = vpop.f32.mrb[0].mxu0
    %v6828 = vadd.f32 %v6785, %v6827
    %v6829 = vpop.f32.mrb[0].mxu0
    %v6830 = vadd.f32 %v6787, %v6829
    %v6831 = vpop.f32.mrb[0].mxu0
    %v6832 = vadd.f32 %v6789, %v6831
    %v6833 = vpop.f32.mrb[0].mxu0
    %v6834 = vadd.f32 %v6791, %v6833
    %6835 = vdwg.mxu0
    %v6836 = vmul.f32 %v6830, 0.5
    %v6837 = vmul.f32 %v6834, 0.5
    %v6838 = vmul.f32 %v6836, 1.442695
    %v6839 = vpow.pop %v6838
    %v6840 = vmul.f32 %v6837, 1.442695
    %v6841 = vpow.pop %v6840
    %v6842 = vld [vmem:[#allocation5] sm:$0xff]
    %v6843 = vld [vmem:[#allocation5 + $0x8] sm:$0xff]
    %v6844 = vmul.f32 %v6842, %v6839
    %v6845 = vmul.f32 %v6843, %v6841
    %v6846 = vadd.f32 %v6844, %v6828
    %v6847 = vadd.f32 %v6845, %v6832
    %v6848 = vpack.c.bf16 %v6847, %v6846
    %v6849 = vld [vmem:[#allocation19] sm:$0xff]
    %v6850 = vld [vmem:[#allocation19 + $0x8] sm:$0xf]
    %v6851 = vld [vmem:[#allocation19 + $0xc] sm:$0xff]
    %v6852 = vld [vmem:[#allocation19 + $0x14] sm:$0xf]
    %v6853 = vld [vmem:[#allocation19 + $0x18] sm:$0xff]
    %v6854 = vld [vmem:[#allocation19 + $0x20] sm:$0xf]
    %v6855 = vld [vmem:[#allocation19 + $0x24] sm:$0xff]
    %v6856 = vld [vmem:[#allocation19 + $0x2c] sm:$0xf]
    %v6857 = vld [vmem:[#allocation19 + $0x30] sm:$0xff]
    %v6858 = vld [vmem:[#allocation19 + $0x38] sm:$0xf]
    %v6859 = vld [vmem:[#allocation19 + $0x3c] sm:$0xff]
    %v6860 = vld [vmem:[#allocation19 + $0x44] sm:$0xf]
    %v6861 = vld [vmem:[#allocation19 + $0x48] sm:$0xff]
    %v6862 = vld [vmem:[#allocation19 + $0x50] sm:$0xf]
    %v6863 = vld [vmem:[#allocation19 + $0x54] sm:$0xff]
    %v6864 = vld [vmem:[#allocation19 + $0x5c] sm:$0xf]
    %v6865 = vld [vmem:[#allocation19 + $0x60] sm:$0xff]
    %v6866 = vld [vmem:[#allocation19 + $0x68] sm:$0xf]
    %v6867 = vld [vmem:[#allocation19 + $0x6c] sm:$0xff]
    %v6868 = vld [vmem:[#allocation19 + $0x74] sm:$0xf]
    %v6869 = vld [vmem:[#allocation19 + $0x78] sm:$0xff]
    %v6870 = vld [vmem:[#allocation19 + $0x80] sm:$0xf]
    %v6871 = vld [vmem:[#allocation19 + $0x84] sm:$0xff]
    %v6872 = vld [vmem:[#allocation19 + $0x8c] sm:$0xf]
    %v6873 = vld [vmem:[#allocation19 + $0x90] sm:$0xff]
    %v6874 = vld [vmem:[#allocation19 + $0x98] sm:$0xf]
    %v6875 = vld [vmem:[#allocation19 + $0x9c] sm:$0xff]
    %v6876 = vld [vmem:[#allocation19 + $0xa4] sm:$0xf]
    %v6877 = vld [vmem:[#allocation19 + $0xa8] sm:$0xff]
    %v6878 = vld [vmem:[#allocation19 + $0xb0] sm:$0xf]
    %v6879 = vld [vmem:[#allocation19 + $0xb4] sm:$0xff]
    %v6880 = vld [vmem:[#allocation19 + $0xbc] sm:$0xf]
    %v6881 = vld [vmem:[#allocation20] sm:$0x7]
    %v6883 = vlaneseq
    %v6884 = vshrl.u32 %v6883, 7
    %v6885 = vsub.s32 0, %v6884
    %v6886 = vrot.slane %v6881, %v6885
    %v6887 = vlaneseq
    %v6888 = vshrl.u32 %v6887, 7
    %v6889 = vsub.s32 1, %v6888
    %v6890 = vrot.slane %v6881, %v6889
    %v6891 = vlaneseq
    %v6892 = vshrl.u32 %v6891, 7
    %v6893 = vsub.s32 2, %v6892
    %v6894 = vrot.slane %v6881, %v6893
    %v6930 = vunpack.c.l.b16 %v6849
    %v6931 = vunpack.c.h.b16 %v6849
    %v6932 = vunpack.c.l.b16 %v6850
    %v6933 = vunpack.c.l.b16 %v6851
    %v6934 = vunpack.c.h.b16 %v6851
    %v6935 = vunpack.c.l.b16 %v6852
    %v6936 = vunpack.c.l.b16 %v6853
    %v6937 = vunpack.c.h.b16 %v6853
    %v6938 = vunpack.c.l.b16 %v6854
    %v6939 = vunpack.c.l.b16 %v6855
    %v6940 = vunpack.c.h.b16 %v6855
    %v6941 = vunpack.c.l.b16 %v6856
    %v6942 = vunpack.c.l.b16 %v6857
    %v6943 = vunpack.c.h.b16 %v6857
    %v6944 = vunpack.c.l.b16 %v6858
    %v6945 = vunpack.c.l.b16 %v6859
    %v6946 = vunpack.c.h.b16 %v6859
    %v6947 = vunpack.c.l.b16 %v6860
    %v6948 = vunpack.c.l.b16 %v6861
    %v6949 = vunpack.c.h.b16 %v6861
    %v6950 = vunpack.c.l.b16 %v6862
    %v6951 = vunpack.c.l.b16 %v6863
    %v6952 = vunpack.c.h.b16 %v6863
    %v6953 = vunpack.c.l.b16 %v6864
    %v6954 = vunpack.c.l.b16 %v6865
    %v6955 = vunpack.c.h.b16 %v6865
    %v6956 = vunpack.c.l.b16 %v6866
    %v6957 = vunpack.c.l.b16 %v6867
    %v6958 = vunpack.c.h.b16 %v6867
    %v6959 = vunpack.c.l.b16 %v6868
    %v6960 = vunpack.c.l.b16 %v6869
    %v6961 = vunpack.c.h.b16 %v6869
    %v6962 = vunpack.c.l.b16 %v6870
    %v6963 = vunpack.c.l.b16 %v6871
    %v6964 = vunpack.c.h.b16 %v6871
    %v6965 = vunpack.c.l.b16 %v6872
    %v6966 = vunpack.c.l.b16 %v6873
    %v6967 = vunpack.c.h.b16 %v6873
    %v6968 = vunpack.c.l.b16 %v6874
    %v6969 = vunpack.c.l.b16 %v6875
    %v6970 = vunpack.c.h.b16 %v6875
    %v6971 = vunpack.c.l.b16 %v6876
    %v6972 = vunpack.c.l.b16 %v6877
    %v6973 = vunpack.c.h.b16 %v6877
    %v6974 = vunpack.c.l.b16 %v6878
    %v6975 = vunpack.c.l.b16 %v6879
    %v6976 = vunpack.c.h.b16 %v6879
    %v6977 = vunpack.c.l.b16 %v6880
    %v6978 = vpack.c.b16 %v6933, %v6930
    %v6979 = vpack.c.b16 %v6934, %v6931
    %v6980 = vpack.c.b16 %v6935, %v6932
    %v6981 = vpack.c.b16 %v6939, %v6936
    %v6982 = vpack.c.b16 %v6940, %v6937
    %v6983 = vpack.c.b16 %v6941, %v6938
    %v6984 = vpack.c.b16 %v6945, %v6942
    %v6985 = vpack.c.b16 %v6946, %v6943
    %v6986 = vpack.c.b16 %v6947, %v6944
    %v6987 = vpack.c.b16 %v6951, %v6948
    %v6988 = vpack.c.b16 %v6952, %v6949
    %v6989 = vpack.c.b16 %v6953, %v6950
    %v6990 = vpack.c.b16 %v6957, %v6954
    %v6991 = vpack.c.b16 %v6958, %v6955
    %v6992 = vpack.c.b16 %v6959, %v6956
    %v6993 = vpack.c.b16 %v6963, %v6960
    %v6994 = vpack.c.b16 %v6964, %v6961
    %v6995 = vpack.c.b16 %v6965, %v6962
    %v6996 = vpack.c.b16 %v6969, %v6966
    %v6997 = vpack.c.b16 %v6970, %v6967
    %v6998 = vpack.c.b16 %v6971, %v6968
    %v6999 = vpack.c.b16 %v6975, %v6972
    %v7000 = vpack.c.b16 %v6976, %v6973
    %v7001 = vpack.c.b16 %v6977, %v6974
    %7026 = vmatprep.subr.bf16.mxu0 %v6979
    %7027 = vmatpush1.bf16.msra.mxu0 %v6978
    %7028 = vmatprep.subr.bf16.mxu0 %v6982
    %7029 = vmatpush1.bf16.msra.mxu0 %v6981
    %7030 = vmatprep.subr.bf16.mxu0 %v6985
    %7031 = vmatpush1.bf16.msra.mxu0 %v6984
    %7032 = vmatprep.subr.bf16.mxu0 %v6988
    %7033 = vmatpush1.bf16.msra.mxu0 %v6987
    %7034 = vmatprep.subr.bf16.mxu0 %v6991
    %7035 = vmatpush1.bf16.msra.mxu0 %v6990
    %7036 = vmatprep.subr.bf16.mxu0 %v6994
    %7037 = vmatpush1.bf16.msra.mxu0 %v6993
    %7038 = vmatprep.subr.bf16.mxu0 %v6997
    %7039 = vmatpush1.bf16.msra.mxu0 %v6996
    %7040 = vmatprep.subr.bf16.mxu0 %v7000
    %7041 = vmatpush1.bf16.msra.mxu0 %v6999
    %7042 = vmatprep.subr.bf16.mxu0 0
    %7043 = vmatpush1.bf16.msra.mxu0 0
    %7044 = vmatprep.subr.bf16.mxu0 0
    %7045 = vmatpush1.bf16.msra.mxu0 0
    %7046 = vmatprep.subr.bf16.mxu0 0
    %7047 = vmatpush1.bf16.msra.mxu0 0
    %7048 = vmatprep.subr.bf16.mxu0 0
    %7049 = vmatpush1.bf16.msra.mxu0 0
    %7050 = vmatprep.subr.bf16.mxu0 0
    %7051 = vmatpush1.bf16.msra.mxu0 0
    %7052 = vmatprep.subr.bf16.mxu0 0
    %7053 = vmatpush1.bf16.msra.mxu0 0
    %7054 = vmatprep.subr.bf16.mxu0 0
    %7055 = vmatpush1.bf16.msra.mxu0 0
    %7056 = vmatprep.subr.bf16.mxu0 0
    %7057 = vmatpush1.bf16.msra.mxu0 0
    %7058 = vmatprep.mubr.bf16.mxu0 0
    %7059 = vmatmul.mubr.bf16.gmra.mrb[0].mxu0 %v6848
    %v7060 = vpop.f32.mrb[0].mxu0
    %v7061 = vadd.f32 %v6886, %v7060
    %v7062 = vpop.f32.mrb[0].mxu0
    %v7063 = vadd.f32 %v6890, %v7062
    %v7064 = vpop.f32.mrb[0].mxu0
    %v7065 = vadd.f32 %v6886, %v7064
    %v7066 = vpop.f32.mrb[0].mxu0
    %v7067 = vadd.f32 %v6890, %v7066
    %7068 = vdwg.mxu0
    %7069 = vmatprep.subr.bf16.mxu0 0
    %7070 = vmatpush1.bf16.msra.mxu0 %v6980
    %7071 = vmatprep.subr.bf16.mxu0 0
    %7072 = vmatpush1.bf16.msra.mxu0 %v6983
    %7073 = vmatprep.subr.bf16.mxu0 0
    %7074 = vmatpush1.bf16.msra.mxu0 %v6986
    %7075 = vmatprep.subr.bf16.mxu0 0
    %7076 = vmatpush1.bf16.msra.mxu0 %v6989
    %7077 = vmatprep.subr.bf16.mxu0 0
    %7078 = vmatpush1.bf16.msra.mxu0 %v6992
    %7079 = vmatprep.subr.bf16.mxu0 0
    %7080 = vmatpush1.bf16.msra.mxu0 %v6995
    %7081 = vmatprep.subr.bf16.mxu0 0
    %7082 = vmatpush1.bf16.msra.mxu0 %v6998
    %7083 = vmatprep.subr.bf16.mxu0 0
    %7084 = vmatpush1.bf16.msra.mxu0 %v7001
    %7085 = vmatprep.subr.bf16.mxu0 0
    %7086 = vmatpush1.bf16.msra.mxu0 0
    %7087 = vmatprep.subr.bf16.mxu0 0
    %7088 = vmatpush1.bf16.msra.mxu0 0
    %7089 = vmatprep.subr.bf16.mxu0 0
    %7090 = vmatpush1.bf16.msra.mxu0 0
    %7091 = vmatprep.subr.bf16.mxu0 0
    %7092 = vmatpush1.bf16.msra.mxu0 0
    %7093 = vmatprep.subr.bf16.mxu0 0
    %7094 = vmatpush1.bf16.msra.mxu0 0
    %7095 = vmatprep.subr.bf16.mxu0 0
    %7096 = vmatpush1.bf16.msra.mxu0 0
    %7097 = vmatprep.subr.bf16.mxu0 0
    %7098 = vmatpush1.bf16.msra.mxu0 0
    %7099 = vmatprep.subr.bf16.mxu0 0
    %7100 = vmatpush1.bf16.msra.mxu0 0
    %7101 = vmatprep.mubr.bf16.mxu0 0
    %7102 = vmatmul.mubr.bf16.gmra.mrb[0].mxu0 %v6848
    %v7103 = vpop.f32.mrb[0].mxu0
    %v7104 = vadd.f32 %v6894, %v7103
    %v7105 = vpop.f32.mrb[0].mxu0
    %v7106 = vpop.f32.mrb[0].mxu0
    %v7107 = vadd.f32 %v6894, %v7106
    %v7108 = vpop.f32.mrb[0].mxu0
    %7109 = vdwg.mxu0
    %v7110 = vmax.f32 %v7061, 0.0
    %v7111 = vmax.f32 %v7063, 0.0
    %v7112 = vmax.f32 %v7104, 0.0
    %v7113 = vmax.f32 %v7065, 0.0
    %v7114 = vmax.f32 %v7067, 0.0
    %v7115 = vmax.f32 %v7107, 0.0
    %v7116 = vpack.c.bf16 %v7113, %v7110
    %v7117 = vpack.c.bf16 %v7114, %v7111
    %v7118 = vpack.c.bf16 %v7115, %v7112
    %v7119 = vld [vmem:[#allocation22] sm:$0xff]
    %v7120 = vld [vmem:[#allocation22 + $0x8] sm:$0xff]
    %v7121 = vld [vmem:[#allocation22 + $0x10] sm:$0xff]
    %v7122 = vld [vmem:[#allocation22 + $0x18] sm:$0xff]
    %v7123 = vld [vmem:[#allocation22 + $0x20] sm:$0xff]
    %v7124 = vld [vmem:[#allocation22 + $0x28] sm:$0xff]
    %v7125 = vld [vmem:[#allocation22 + $0x30] sm:$0xff]
    %v7126 = vld [vmem:[#allocation22 + $0x38] sm:$0xff]
    %v7127 = vld [vmem:[#allocation22 + $0x40] sm:$0xff]
    %v7128 = vld [vmem:[#allocation22 + $0x48] sm:$0xff]
    %v7129 = vld [vmem:[#allocation22 + $0x50] sm:$0xff]
    %v7130 = vld [vmem:[#allocation22 + $0x58] sm:$0xff]
    %v7131 = vld [vmem:[#allocation22 + $0x60] sm:$0xff]
    %v7132 = vld [vmem:[#allocation22 + $0x68] sm:$0xff]
    %v7133 = vld [vmem:[#allocation22 + $0x70] sm:$0xff]
    %v7134 = vld [vmem:[#allocation22 + $0x78] sm:$0xff]
    %v7135 = vld [vmem:[#allocation22 + $0x80] sm:$0xff]
    %v7136 = vld [vmem:[#allocation22 + $0x88] sm:$0xff]
    %v7137 = vld [vmem:[#allocation22 + $0x90] sm:$0xff]
    %v7138 = vld [vmem:[#allocation22 + $0x98] sm:$0xff]
    %v7139 = vld [vmem:[#allocation22 + $0xa0] sm:$0xff]
    %v7140 = vld [vmem:[#allocation22 + $0xa8] sm:$0xff]
    %v7141 = vld [vmem:[#allocation22 + $0xb0] sm:$0xff]
    %v7142 = vld [vmem:[#allocation22 + $0xb8] sm:$0xff]
    %v7143 = vld [vmem:[#allocation22 + $0xc0] sm:$0xff]
    %v7144 = vld [vmem:[#allocation22 + $0xc8] sm:$0xff]
    %v7145 = vld [vmem:[#allocation22 + $0xd0] sm:$0xff]
    %v7146 = vld [vmem:[#allocation22 + $0xd8] sm:$0xff]
    %v7147 = vld [vmem:[#allocation22 + $0xe0] sm:$0xff]
    %v7148 = vld [vmem:[#allocation22 + $0xe8] sm:$0xff]
    %v7149 = vld [vmem:[#allocation22 + $0xf0] sm:$0xff]
    %v7150 = vld [vmem:[#allocation22 + $0xf8] sm:$0xff]
    %v7151 = vld [vmem:[#allocation22 + $0x100] sm:$0xff]
    %v7152 = vld [vmem:[#allocation22 + $0x108] sm:$0xff]
    %v7153 = vld [vmem:[#allocation22 + $0x110] sm:$0xff]
    %v7154 = vld [vmem:[#allocation22 + $0x118] sm:$0xff]
    %v7155 = vld [vmem:[#allocation22 + $0x120] sm:$0xff]
    %v7156 = vld [vmem:[#allocation22 + $0x128] sm:$0xff]
    %v7157 = vld [vmem:[#allocation22 + $0x130] sm:$0xff]
    %v7158 = vld [vmem:[#allocation22 + $0x138] sm:$0xff]
    %v7159 = vld [vmem:[#allocation22 + $0x140] sm:$0xff]
    %v7160 = vld [vmem:[#allocation22 + $0x148] sm:$0xff]
    %v7161 = vld [vmem:[#allocation22 + $0x150] sm:$0xff]
    %v7162 = vld [vmem:[#allocation22 + $0x158] sm:$0xff]
    %v7163 = vld [vmem:[#allocation22 + $0x160] sm:$0xff]
    %v7164 = vld [vmem:[#allocation22 + $0x168] sm:$0xff]
    %v7165 = vld [vmem:[#allocation22 + $0x170] sm:$0xff]
    %v7166 = vld [vmem:[#allocation22 + $0x178] sm:$0xff]
    %v7167 = vld [vmem:[#allocation22 + $0x180] sm:$0xff]
    %v7168 = vld [vmem:[#allocation22 + $0x188] sm:$0xff]
    %v7169 = vld [vmem:[#allocation22 + $0x190] sm:$0xff]
    %v7170 = vld [vmem:[#allocation22 + $0x198] sm:$0xff]
    %v7171 = vld [vmem:[#allocation22 + $0x1a0] sm:$0xff]
    %v7172 = vld [vmem:[#allocation22 + $0x1a8] sm:$0xff]
    %v7173 = vld [vmem:[#allocation22 + $0x1b0] sm:$0xff]
    %v7174 = vld [vmem:[#allocation22 + $0x1b8] sm:$0xff]
    %v7175 = vld [vmem:[#allocation22 + $0x1c0] sm:$0xff]
    %v7176 = vld [vmem:[#allocation22 + $0x1c8] sm:$0xff]
    %v7177 = vld [vmem:[#allocation22 + $0x1d0] sm:$0xff]
    %v7178 = vld [vmem:[#allocation22 + $0x1d8] sm:$0xff]
    %v7179 = vld [vmem:[#allocation22 + $0x1e0] sm:$0xff]
    %v7180 = vld [vmem:[#allocation22 + $0x1e8] sm:$0xff]
    %v7181 = vld [vmem:[#allocation22 + $0x1f0] sm:$0xff]
    %v7182 = vld [vmem:[#allocation22 + $0x1f8] sm:$0xff]
    %v7183 = vld [vmem:[#allocation22 + $0x200] sm:$0xff]
    %v7184 = vld [vmem:[#allocation22 + $0x208] sm:$0xff]
    %v7185 = vld [vmem:[#allocation22 + $0x210] sm:$0xff]
    %v7186 = vld [vmem:[#allocation22 + $0x218] sm:$0xff]
    %v7187 = vld [vmem:[#allocation22 + $0x220] sm:$0xff]
    %v7188 = vld [vmem:[#allocation22 + $0x228] sm:$0xff]
    %v7189 = vld [vmem:[#allocation22 + $0x230] sm:$0xff]
    %v7190 = vld [vmem:[#allocation22 + $0x238] sm:$0xff]
    %v7191 = vld [vmem:[#allocation22 + $0x240] sm:$0xff]
    %v7192 = vld [vmem:[#allocation22 + $0x248] sm:$0xff]
    %v7193 = vld [vmem:[#allocation22 + $0x250] sm:$0xff]
    %v7194 = vld [vmem:[#allocation22 + $0x258] sm:$0xff]
    %v7195 = vld [vmem:[#allocation22 + $0x260] sm:$0xff]
    %v7196 = vld [vmem:[#allocation22 + $0x268] sm:$0xff]
    %v7197 = vld [vmem:[#allocation22 + $0x270] sm:$0xff]
    %v7198 = vld [vmem:[#allocation22 + $0x278] sm:$0xff]
    %v7199 = vld [vmem:[#allocation22 + $0x280] sm:$0xff]
    %v7200 = vld [vmem:[#allocation22 + $0x288] sm:$0xff]
    %v7201 = vld [vmem:[#allocation22 + $0x290] sm:$0xff]
    %v7202 = vld [vmem:[#allocation22 + $0x298] sm:$0xff]
    %v7203 = vld [vmem:[#allocation22 + $0x2a0] sm:$0xff]
    %v7204 = vld [vmem:[#allocation22 + $0x2a8] sm:$0xff]
    %v7205 = vld [vmem:[#allocation22 + $0x2b0] sm:$0xff]
    %v7206 = vld [vmem:[#allocation22 + $0x2b8] sm:$0xff]
    %v7207 = vld [vmem:[#allocation22 + $0x2c0] sm:$0xff]
    %v7208 = vld [vmem:[#allocation22 + $0x2c8] sm:$0xff]
    %v7209 = vld [vmem:[#allocation22 + $0x2d0] sm:$0xff]
    %v7210 = vld [vmem:[#allocation22 + $0x2d8] sm:$0xff]
    %v7211 = vld [vmem:[#allocation22 + $0x2e0] sm:$0xff]
    %v7212 = vld [vmem:[#allocation22 + $0x2e8] sm:$0xff]
    %v7213 = vld [vmem:[#allocation22 + $0x2f0] sm:$0xff]
    %v7214 = vld [vmem:[#allocation22 + $0x2f8] sm:$0xff]
    %v7215 = vld [vmem:[#allocation23] sm:$0xf]
    %v7217 = vlaneseq
    %v7218 = vshrl.u32 %v7217, 7
    %v7219 = vsub.s32 0, %v7218
    %v7220 = vrot.slane %v7215, %v7219
    %v7221 = vlaneseq
    %v7222 = vshrl.u32 %v7221, 7
    %v7223 = vsub.s32 1, %v7222
    %v7224 = vrot.slane %v7215, %v7223
    %v7225 = vlaneseq
    %v7226 = vshrl.u32 %v7225, 7
    %v7227 = vsub.s32 2, %v7226
    %v7228 = vrot.slane %v7215, %v7227
    %v7229 = vlaneseq
    %v7230 = vshrl.u32 %v7229, 7
    %v7231 = vsub.s32 3, %v7230
    %v7232 = vrot.slane %v7215, %v7231
    %v7333 = vunpack.c.l.b16 %v7119
    %v7334 = vunpack.c.h.b16 %v7119
    %v7335 = vunpack.c.l.b16 %v7120
    %v7336 = vunpack.c.h.b16 %v7120
    %v7337 = vunpack.c.l.b16 %v7121
    %v7338 = vunpack.c.h.b16 %v7121
    %v7339 = vunpack.c.l.b16 %v7122
    %v7340 = vunpack.c.h.b16 %v7122
    %v7341 = vunpack.c.l.b16 %v7123
    %v7342 = vunpack.c.h.b16 %v7123
    %v7343 = vunpack.c.l.b16 %v7124
    %v7344 = vunpack.c.h.b16 %v7124
    %v7345 = vunpack.c.l.b16 %v7125
    %v7346 = vunpack.c.h.b16 %v7125
    %v7347 = vunpack.c.l.b16 %v7126
    %v7348 = vunpack.c.h.b16 %v7126
    %v7349 = vunpack.c.l.b16 %v7127
    %v7350 = vunpack.c.h.b16 %v7127
    %v7351 = vunpack.c.l.b16 %v7128
    %v7352 = vunpack.c.h.b16 %v7128
    %v7353 = vunpack.c.l.b16 %v7129
    %v7354 = vunpack.c.h.b16 %v7129
    %v7355 = vunpack.c.l.b16 %v7130
    %v7356 = vunpack.c.h.b16 %v7130
    %v7357 = vunpack.c.l.b16 %v7131
    %v7358 = vunpack.c.h.b16 %v7131
    %v7359 = vunpack.c.l.b16 %v7132
    %v7360 = vunpack.c.h.b16 %v7132
    %v7361 = vunpack.c.l.b16 %v7133
    %v7362 = vunpack.c.h.b16 %v7133
    %v7363 = vunpack.c.l.b16 %v7134
    %v7364 = vunpack.c.h.b16 %v7134
    %v7365 = vunpack.c.l.b16 %v7135
    %v7366 = vunpack.c.h.b16 %v7135
    %v7367 = vunpack.c.l.b16 %v7136
    %v7368 = vunpack.c.h.b16 %v7136
    %v7369 = vunpack.c.l.b16 %v7137
    %v7370 = vunpack.c.h.b16 %v7137
    %v7371 = vunpack.c.l.b16 %v7138
    %v7372 = vunpack.c.h.b16 %v7138
    %v7373 = vunpack.c.l.b16 %v7139
    %v7374 = vunpack.c.h.b16 %v7139
    %v7375 = vunpack.c.l.b16 %v7140
    %v7376 = vunpack.c.h.b16 %v7140
    %v7377 = vunpack.c.l.b16 %v7141
    %v7378 = vunpack.c.h.b16 %v7141
    %v7379 = vunpack.c.l.b16 %v7142
    %v7380 = vunpack.c.h.b16 %v7142
    %v7381 = vunpack.c.l.b16 %v7143
    %v7382 = vunpack.c.h.b16 %v7143
    %v7383 = vunpack.c.l.b16 %v7144
    %v7384 = vunpack.c.h.b16 %v7144
    %v7385 = vunpack.c.l.b16 %v7145
    %v7386 = vunpack.c.h.b16 %v7145
    %v7387 = vunpack.c.l.b16 %v7146
    %v7388 = vunpack.c.h.b16 %v7146
    %v7389 = vunpack.c.l.b16 %v7147
    %v7390 = vunpack.c.h.b16 %v7147
    %v7391 = vunpack.c.l.b16 %v7148
    %v7392 = vunpack.c.h.b16 %v7148
    %v7393 = vunpack.c.l.b16 %v7149
    %v7394 = vunpack.c.h.b16 %v7149
    %v7395 = vunpack.c.l.b16 %v7150
    %v7396 = vunpack.c.h.b16 %v7150
    %v7397 = vunpack.c.l.b16 %v7151
    %v7398 = vunpack.c.h.b16 %v7151
    %v7399 = vunpack.c.l.b16 %v7152
    %v7400 = vunpack.c.h.b16 %v7152
    %v7401 = vunpack.c.l.b16 %v7153
    %v7402 = vunpack.c.h.b16 %v7153
    %v7403 = vunpack.c.l.b16 %v7154
    %v7404 = vunpack.c.h.b16 %v7154
    %v7405 = vunpack.c.l.b16 %v7155
    %v7406 = vunpack.c.h.b16 %v7155
    %v7407 = vunpack.c.l.b16 %v7156
    %v7408 = vunpack.c.h.b16 %v7156
    %v7409 = vunpack.c.l.b16 %v7157
    %v7410 = vunpack.c.h.b16 %v7157
    %v7411 = vunpack.c.l.b16 %v7158
    %v7412 = vunpack.c.h.b16 %v7158
    %v7413 = vunpack.c.l.b16 %v7159
    %v7414 = vunpack.c.h.b16 %v7159
    %v7415 = vunpack.c.l.b16 %v7160
    %v7416 = vunpack.c.h.b16 %v7160
    %v7417 = vunpack.c.l.b16 %v7161
    %v7418 = vunpack.c.h.b16 %v7161
    %v7419 = vunpack.c.l.b16 %v7162
    %v7420 = vunpack.c.h.b16 %v7162
    %v7421 = vunpack.c.l.b16 %v7163
    %v7422 = vunpack.c.h.b16 %v7163
    %v7423 = vunpack.c.l.b16 %v7164
    %v7424 = vunpack.c.h.b16 %v7164
    %v7425 = vunpack.c.l.b16 %v7165
    %v7426 = vunpack.c.h.b16 %v7165
    %v7427 = vunpack.c.l.b16 %v7166
    %v7428 = vunpack.c.h.b16 %v7166
    %v7429 = vunpack.c.l.b16 %v7167
    %v7430 = vunpack.c.h.b16 %v7167
    %v7431 = vunpack.c.l.b16 %v7168
    %v7432 = vunpack.c.h.b16 %v7168
    %v7433 = vunpack.c.l.b16 %v7169
    %v7434 = vunpack.c.h.b16 %v7169
    %v7435 = vunpack.c.l.b16 %v7170
    %v7436 = vunpack.c.h.b16 %v7170
    %v7437 = vunpack.c.l.b16 %v7171
    %v7438 = vunpack.c.h.b16 %v7171
    %v7439 = vunpack.c.l.b16 %v7172
    %v7440 = vunpack.c.h.b16 %v7172
    %v7441 = vunpack.c.l.b16 %v7173
    %v7442 = vunpack.c.h.b16 %v7173
    %v7443 = vunpack.c.l.b16 %v7174
    %v7444 = vunpack.c.h.b16 %v7174
    %v7445 = vunpack.c.l.b16 %v7175
    %v7446 = vunpack.c.h.b16 %v7175
    %v7447 = vunpack.c.l.b16 %v7176
    %v7448 = vunpack.c.h.b16 %v7176
    %v7449 = vunpack.c.l.b16 %v7177
    %v7450 = vunpack.c.h.b16 %v7177
    %v7451 = vunpack.c.l.b16 %v7178
    %v7452 = vunpack.c.h.b16 %v7178
    %v7453 = vunpack.c.l.b16 %v7179
    %v7454 = vunpack.c.h.b16 %v7179
    %v7455 = vunpack.c.l.b16 %v7180
    %v7456 = vunpack.c.h.b16 %v7180
    %v7457 = vunpack.c.l.b16 %v7181
    %v7458 = vunpack.c.h.b16 %v7181
    %v7459 = vunpack.c.l.b16 %v7182
    %v7460 = vunpack.c.h.b16 %v7182
    %v7461 = vunpack.c.l.b16 %v7183
    %v7462 = vunpack.c.h.b16 %v7183
    %v7463 = vunpack.c.l.b16 %v7184
    %v7464 = vunpack.c.h.b16 %v7184
    %v7465 = vunpack.c.l.b16 %v7185
    %v7466 = vunpack.c.h.b16 %v7185
    %v7467 = vunpack.c.l.b16 %v7186
    %v7468 = vunpack.c.h.b16 %v7186
    %v7469 = vunpack.c.l.b16 %v7187
    %v7470 = vunpack.c.h.b16 %v7187
    %v7471 = vunpack.c.l.b16 %v7188
    %v7472 = vunpack.c.h.b16 %v7188
    %v7473 = vunpack.c.l.b16 %v7189
    %v7474 = vunpack.c.h.b16 %v7189
    %v7475 = vunpack.c.l.b16 %v7190
    %v7476 = vunpack.c.h.b16 %v7190
    %v7477 = vunpack.c.l.b16 %v7191
    %v7478 = vunpack.c.h.b16 %v7191
    %v7479 = vunpack.c.l.b16 %v7192
    %v7480 = vunpack.c.h.b16 %v7192
    %v7481 = vunpack.c.l.b16 %v7193
    %v7482 = vunpack.c.h.b16 %v7193
    %v7483 = vunpack.c.l.b16 %v7194
    %v7484 = vunpack.c.h.b16 %v7194
    %v7485 = vunpack.c.l.b16 %v7195
    %v7486 = vunpack.c.h.b16 %v7195
    %v7487 = vunpack.c.l.b16 %v7196
    %v7488 = vunpack.c.h.b16 %v7196
    %v7489 = vunpack.c.l.b16 %v7197
    %v7490 = vunpack.c.h.b16 %v7197
    %v7491 = vunpack.c.l.b16 %v7198
    %v7492 = vunpack.c.h.b16 %v7198
    %v7493 = vunpack.c.l.b16 %v7199
    %v7494 = vunpack.c.h.b16 %v7199
    %v7495 = vunpack.c.l.b16 %v7200
    %v7496 = vunpack.c.h.b16 %v7200
    %v7497 = vunpack.c.l.b16 %v7201
    %v7498 = vunpack.c.h.b16 %v7201
    %v7499 = vunpack.c.l.b16 %v7202
    %v7500 = vunpack.c.h.b16 %v7202
    %v7501 = vunpack.c.l.b16 %v7203
    %v7502 = vunpack.c.h.b16 %v7203
    %v7503 = vunpack.c.l.b16 %v7204
    %v7504 = vunpack.c.h.b16 %v7204
    %v7505 = vunpack.c.l.b16 %v7205
    %v7506 = vunpack.c.h.b16 %v7205
    %v7507 = vunpack.c.l.b16 %v7206
    %v7508 = vunpack.c.h.b16 %v7206
    %v7509 = vunpack.c.l.b16 %v7207
    %v7510 = vunpack.c.h.b16 %v7207
    %v7511 = vunpack.c.l.b16 %v7208
    %v7512 = vunpack.c.h.b16 %v7208
    %v7513 = vunpack.c.l.b16 %v7209
    %v7514 = vunpack.c.h.b16 %v7209
    %v7515 = vunpack.c.l.b16 %v7210
    %v7516 = vunpack.c.h.b16 %v7210
    %v7517 = vunpack.c.l.b16 %v7211
    %v7518 = vunpack.c.h.b16 %v7211
    %v7519 = vunpack.c.l.b16 %v7212
    %v7520 = vunpack.c.h.b16 %v7212
    %v7521 = vunpack.c.l.b16 %v7213
    %v7522 = vunpack.c.h.b16 %v7213
    %v7523 = vunpack.c.l.b16 %v7214
    %v7524 = vunpack.c.h.b16 %v7214
    %v7525 = vpack.c.b16 %v7337, %v7333
    %v7526 = vpack.c.b16 %v7338, %v7334
    %v7527 = vpack.c.b16 %v7339, %v7335
    %v7528 = vpack.c.b16 %v7340, %v7336
    %v7529 = vpack.c.b16 %v7345, %v7341
    %v7530 = vpack.c.b16 %v7346, %v7342
    %v7531 = vpack.c.b16 %v7347, %v7343
    %v7532 = vpack.c.b16 %v7348, %v7344
    %v7533 = vpack.c.b16 %v7353, %v7349
    %v7534 = vpack.c.b16 %v7354, %v7350
    %v7535 = vpack.c.b16 %v7355, %v7351
    %v7536 = vpack.c.b16 %v7356, %v7352
    %v7537 = vpack.c.b16 %v7361, %v7357
    %v7538 = vpack.c.b16 %v7362, %v7358
    %v7539 = vpack.c.b16 %v7363, %v7359
    %v7540 = vpack.c.b16 %v7364, %v7360
    %v7541 = vpack.c.b16 %v7369, %v7365
    %v7542 = vpack.c.b16 %v7370, %v7366
    %v7543 = vpack.c.b16 %v7371, %v7367
    %v7544 = vpack.c.b16 %v7372, %v7368
    %v7545 = vpack.c.b16 %v7377, %v7373
    %v7546 = vpack.c.b16 %v7378, %v7374
    %v7547 = vpack.c.b16 %v7379, %v7375
    %v7548 = vpack.c.b16 %v7380, %v7376
    %v7549 = vpack.c.b16 %v7385, %v7381
    %v7550 = vpack.c.b16 %v7386, %v7382
    %v7551 = vpack.c.b16 %v7387, %v7383
    %v7552 = vpack.c.b16 %v7388, %v7384
    %v7553 = vpack.c.b16 %v7393, %v7389
    %v7554 = vpack.c.b16 %v7394, %v7390
    %v7555 = vpack.c.b16 %v7395, %v7391
    %v7556 = vpack.c.b16 %v7396, %v7392
    %v7557 = vpack.c.b16 %v7401, %v7397
    %v7558 = vpack.c.b16 %v7402, %v7398
    %v7559 = vpack.c.b16 %v7403, %v7399
    %v7560 = vpack.c.b16 %v7404, %v7400
    %v7561 = vpack.c.b16 %v7409, %v7405
    %v7562 = vpack.c.b16 %v7410, %v7406
    %v7563 = vpack.c.b16 %v7411, %v7407
    %v7564 = vpack.c.b16 %v7412, %v7408
    %v7565 = vpack.c.b16 %v7417, %v7413
    %v7566 = vpack.c.b16 %v7418, %v7414
    %v7567 = vpack.c.b16 %v7419, %v7415
    %v7568 = vpack.c.b16 %v7420, %v7416
    %v7569 = vpack.c.b16 %v7425, %v7421
    %v7570 = vpack.c.b16 %v7426, %v7422
    %v7571 = vpack.c.b16 %v7427, %v7423
    %v7572 = vpack.c.b16 %v7428, %v7424
    %v7573 = vpack.c.b16 %v7433, %v7429
    %v7574 = vpack.c.b16 %v7434, %v7430
    %v7575 = vpack.c.b16 %v7435, %v7431
    %v7576 = vpack.c.b16 %v7436, %v7432
    %v7577 = vpack.c.b16 %v7441, %v7437
    %v7578 = vpack.c.b16 %v7442, %v7438
    %v7579 = vpack.c.b16 %v7443, %v7439
    %v7580 = vpack.c.b16 %v7444, %v7440
    %v7581 = vpack.c.b16 %v7449, %v7445
    %v7582 = vpack.c.b16 %v7450, %v7446
    %v7583 = vpack.c.b16 %v7451, %v7447
    %v7584 = vpack.c.b16 %v7452, %v7448
    %v7585 = vpack.c.b16 %v7457, %v7453
    %v7586 = vpack.c.b16 %v7458, %v7454
    %v7587 = vpack.c.b16 %v7459, %v7455
    %v7588 = vpack.c.b16 %v7460, %v7456
    %v7589 = vpack.c.b16 %v7465, %v7461
    %v7590 = vpack.c.b16 %v7466, %v7462
    %v7591 = vpack.c.b16 %v7467, %v7463
    %v7592 = vpack.c.b16 %v7468, %v7464
    %v7593 = vpack.c.b16 %v7473, %v7469
    %v7594 = vpack.c.b16 %v7474, %v7470
    %v7595 = vpack.c.b16 %v7475, %v7471
    %v7596 = vpack.c.b16 %v7476, %v7472
    %v7597 = vpack.c.b16 %v7481, %v7477
    %v7598 = vpack.c.b16 %v7482, %v7478
    %v7599 = vpack.c.b16 %v7483, %v7479
    %v7600 = vpack.c.b16 %v7484, %v7480
    %v7601 = vpack.c.b16 %v7489, %v7485
    %v7602 = vpack.c.b16 %v7490, %v7486
    %v7603 = vpack.c.b16 %v7491, %v7487
    %v7604 = vpack.c.b16 %v7492, %v7488
    %v7605 = vpack.c.b16 %v7497, %v7493
    %v7606 = vpack.c.b16 %v7498, %v7494
    %v7607 = vpack.c.b16 %v7499, %v7495
    %v7608 = vpack.c.b16 %v7500, %v7496
    %v7609 = vpack.c.b16 %v7505, %v7501
    %v7610 = vpack.c.b16 %v7506, %v7502
    %v7611 = vpack.c.b16 %v7507, %v7503
    %v7612 = vpack.c.b16 %v7508, %v7504
    %v7613 = vpack.c.b16 %v7513, %v7509
    %v7614 = vpack.c.b16 %v7514, %v7510
    %v7615 = vpack.c.b16 %v7515, %v7511
    %v7616 = vpack.c.b16 %v7516, %v7512
    %v7617 = vpack.c.b16 %v7521, %v7517
    %v7618 = vpack.c.b16 %v7522, %v7518
    %v7619 = vpack.c.b16 %v7523, %v7519
    %v7620 = vpack.c.b16 %v7524, %v7520
    %7717 = vmatprep.subr.bf16.mxu0 %v7526
    %7718 = vmatpush1.bf16.msra.mxu0 %v7525
    %7719 = vmatprep.subr.bf16.mxu0 %v7530
    %7720 = vmatpush1.bf16.msra.mxu0 %v7529
    %7721 = vmatprep.subr.bf16.mxu0 %v7534
    %7722 = vmatpush1.bf16.msra.mxu0 %v7533
    %7723 = vmatprep.subr.bf16.mxu0 %v7538
    %7724 = vmatpush1.bf16.msra.mxu0 %v7537
    %7725 = vmatprep.subr.bf16.mxu0 %v7542
    %7726 = vmatpush1.bf16.msra.mxu0 %v7541
    %7727 = vmatprep.subr.bf16.mxu0 %v7546
    %7728 = vmatpush1.bf16.msra.mxu0 %v7545
    %7729 = vmatprep.subr.bf16.mxu0 %v7550
    %7730 = vmatpush1.bf16.msra.mxu0 %v7549
    %7731 = vmatprep.subr.bf16.mxu0 %v7554
    %7732 = vmatpush1.bf16.msra.mxu0 %v7553
    %7733 = vmatprep.subr.bf16.mxu0 %v7558
    %7734 = vmatpush1.bf16.msra.mxu0 %v7557
    %7735 = vmatprep.subr.bf16.mxu0 %v7562
    %7736 = vmatpush1.bf16.msra.mxu0 %v7561
    %7737 = vmatprep.subr.bf16.mxu0 %v7566
    %7738 = vmatpush1.bf16.msra.mxu0 %v7565
    %7739 = vmatprep.subr.bf16.mxu0 %v7570
    %7740 = vmatpush1.bf16.msra.mxu0 %v7569
    %7741 = vmatprep.subr.bf16.mxu0 %v7574
    %7742 = vmatpush1.bf16.msra.mxu0 %v7573
    %7743 = vmatprep.subr.bf16.mxu0 %v7578
    %7744 = vmatpush1.bf16.msra.mxu0 %v7577
    %7745 = vmatprep.subr.bf16.mxu0 %v7582
    %7746 = vmatpush1.bf16.msra.mxu0 %v7581
    %7747 = vmatprep.subr.bf16.mxu0 %v7586
    %7748 = vmatpush1.bf16.msra.mxu0 %v7585
    %7749 = vmatprep.mubr.bf16.mxu0 %v7117
    %7750 = vmatmul.mubr.bf16.gmra.mrb[0].mxu0 %v7116
    %v7751 = vpop.f32.mrb[0].mxu0
    %v7752 = vadd.f32 %v7220, %v7751
    %v7753 = vpop.f32.mrb[0].mxu0
    %v7754 = vadd.f32 %v7224, %v7753
    %v7755 = vpop.f32.mrb[0].mxu0
    %v7756 = vadd.f32 %v7220, %v7755
    %v7757 = vpop.f32.mrb[0].mxu0
    %v7758 = vadd.f32 %v7224, %v7757
    %7759 = vdwg.mxu0
    %7760 = vmatprep.subr.bf16.mxu0 %v7590
    %7761 = vmatpush1.bf16.msra.mxu0 %v7589
    %7762 = vmatprep.subr.bf16.mxu0 %v7594
    %7763 = vmatpush1.bf16.msra.mxu0 %v7593
    %7764 = vmatprep.subr.bf16.mxu0 %v7598
    %7765 = vmatpush1.bf16.msra.mxu0 %v7597
    %7766 = vmatprep.subr.bf16.mxu0 %v7602
    %7767 = vmatpush1.bf16.msra.mxu0 %v7601
    %7768 = vmatprep.subr.bf16.mxu0 %v7606
    %7769 = vmatpush1.bf16.msra.mxu0 %v7605
    %7770 = vmatprep.subr.bf16.mxu0 %v7610
    %7771 = vmatpush1.bf16.msra.mxu0 %v7609
    %7772 = vmatprep.subr.bf16.mxu0 %v7614
    %7773 = vmatpush1.bf16.msra.mxu0 %v7613
    %7774 = vmatprep.subr.bf16.mxu0 %v7618
    %7775 = vmatpush1.bf16.msra.mxu0 %v7617
    %7776 = vmatprep.subr.bf16.mxu0 0
    %7777 = vmatpush1.bf16.msra.mxu0 0
    %7778 = vmatprep.subr.bf16.mxu0 0
    %7779 = vmatpush1.bf16.msra.mxu0 0
    %7780 = vmatprep.subr.bf16.mxu0 0
    %7781 = vmatpush1.bf16.msra.mxu0 0
    %7782 = vmatprep.subr.bf16.mxu0 0
    %7783 = vmatpush1.bf16.msra.mxu0 0
    %7784 = vmatprep.subr.bf16.mxu0 0
    %7785 = vmatpush1.bf16.msra.mxu0 0
    %7786 = vmatprep.subr.bf16.mxu0 0
    %7787 = vmatpush1.bf16.msra.mxu0 0
    %7788 = vmatprep.subr.bf16.mxu0 0
    %7789 = vmatpush1.bf16.msra.mxu0 0
    %7790 = vmatprep.subr.bf16.mxu0 0
    %7791 = vmatpush1.bf16.msra.mxu0 0
    %7792 = vmatprep.mubr.bf16.mxu0 0
    %7793 = vmatmul.mubr.bf16.gmra.mrb[0].mxu0 %v7118
    %v7794 = vpop.f32.mrb[0].mxu0
    %v7795 = vadd.f32 %v7752, %v7794
    %v7796 = vpop.f32.mrb[0].mxu0
    %v7797 = vadd.f32 %v7754, %v7796
    %v7798 = vpop.f32.mrb[0].mxu0
    %v7799 = vadd.f32 %v7756, %v7798
    %v7800 = vpop.f32.mrb[0].mxu0
    %v7801 = vadd.f32 %v7758, %v7800
    %7802 = vdwg.mxu0
    %7803 = vmatprep.subr.bf16.mxu0 %v7528
    %7804 = vmatpush1.bf16.msra.mxu0 %v7527
    %7805 = vmatprep.subr.bf16.mxu0 %v7532
    %7806 = vmatpush1.bf16.msra.mxu0 %v7531
    %7807 = vmatprep.subr.bf16.mxu0 %v7536
    %7808 = vmatpush1.bf16.msra.mxu0 %v7535
    %7809 = vmatprep.subr.bf16.mxu0 %v7540
    %7810 = vmatpush1.bf16.msra.mxu0 %v7539
    %7811 = vmatprep.subr.bf16.mxu0 %v7544
    %7812 = vmatpush1.bf16.msra.mxu0 %v7543
    %7813 = vmatprep.subr.bf16.mxu0 %v7548
    %7814 = vmatpush1.bf16.msra.mxu0 %v7547
    %7815 = vmatprep.subr.bf16.mxu0 %v7552
    %7816 = vmatpush1.bf16.msra.mxu0 %v7551
    %7817 = vmatprep.subr.bf16.mxu0 %v7556
    %7818 = vmatpush1.bf16.msra.mxu0 %v7555
    %7819 = vmatprep.subr.bf16.mxu0 %v7560
    %7820 = vmatpush1.bf16.msra.mxu0 %v7559
    %7821 = vmatprep.subr.bf16.mxu0 %v7564
    %7822 = vmatpush1.bf16.msra.mxu0 %v7563
    %7823 = vmatprep.subr.bf16.mxu0 %v7568
    %7824 = vmatpush1.bf16.msra.mxu0 %v7567
    %7825 = vmatprep.subr.bf16.mxu0 %v7572
    %7826 = vmatpush1.bf16.msra.mxu0 %v7571
    %7827 = vmatprep.subr.bf16.mxu0 %v7576
    %7828 = vmatpush1.bf16.msra.mxu0 %v7575
    %7829 = vmatprep.subr.bf16.mxu0 %v7580
    %7830 = vmatpush1.bf16.msra.mxu0 %v7579
    %7831 = vmatprep.subr.bf16.mxu0 %v7584
    %7832 = vmatpush1.bf16.msra.mxu0 %v7583
    %7833 = vmatprep.subr.bf16.mxu0 %v7588
    %7834 = vmatpush1.bf16.msra.mxu0 %v7587
    %7835 = vmatprep.mubr.bf16.mxu0 %v7117
    %7836 = vmatmul.mubr.bf16.gmra.mrb[0].mxu0 %v7116
    %v7837 = vpop.f32.mrb[0].mxu0
    %v7838 = vadd.f32 %v7228, %v7837
    %v7839 = vpop.f32.mrb[0].mxu0
    %v7840 = vadd.f32 %v7232, %v7839
    %v7841 = vpop.f32.mrb[0].mxu0
    %v7842 = vadd.f32 %v7228, %v7841
    %v7843 = vpop.f32.mrb[0].mxu0
    %v7844 = vadd.f32 %v7232, %v7843
    %7845 = vdwg.mxu0
    %7846 = vmatprep.subr.bf16.mxu0 %v7592
    %7847 = vmatpush1.bf16.msra.mxu0 %v7591
    %7848 = vmatprep.subr.bf16.mxu0 %v7596
    %7849 = vmatpush1.bf16.msra.mxu0 %v7595
    %7850 = vmatprep.subr.bf16.mxu0 %v7600
    %7851 = vmatpush1.bf16.msra.mxu0 %v7599
    %7852 = vmatprep.subr.bf16.mxu0 %v7604
    %7853 = vmatpush1.bf16.msra.mxu0 %v7603
    %7854 = vmatprep.subr.bf16.mxu0 %v7608
    %7855 = vmatpush1.bf16.msra.mxu0 %v7607
    %7856 = vmatprep.subr.bf16.mxu0 %v7612
    %7857 = vmatpush1.bf16.msra.mxu0 %v7611
    %7858 = vmatprep.subr.bf16.mxu0 %v7616
    %7859 = vmatpush1.bf16.msra.mxu0 %v7615
    %7860 = vmatprep.subr.bf16.mxu0 %v7620
    %7861 = vmatpush1.bf16.msra.mxu0 %v7619
    %7862 = vmatprep.subr.bf16.mxu0 0
    %7863 = vmatpush1.bf16.msra.mxu0 0
    %7864 = vmatprep.subr.bf16.mxu0 0
    %7865 = vmatpush1.bf16.msra.mxu0 0
    %7866 = vmatprep.subr.bf16.mxu0 0
    %7867 = vmatpush1.bf16.msra.mxu0 0
    %7868 = vmatprep.subr.bf16.mxu0 0
    %7869 = vmatpush1.bf16.msra.mxu0 0
    %7870 = vmatprep.subr.bf16.mxu0 0
    %7871 = vmatpush1.bf16.msra.mxu0 0
    %7872 = vmatprep.subr.bf16.mxu0 0
    %7873 = vmatpush1.bf16.msra.mxu0 0
    %7874 = vmatprep.subr.bf16.mxu0 0
    %7875 = vmatpush1.bf16.msra.mxu0 0
    %7876 = vmatprep.subr.bf16.mxu0 0
    %7877 = vmatpush1.bf16.msra.mxu0 0
    %7878 = vmatprep.mubr.bf16.mxu0 0
    %7879 = vmatmul.mubr.bf16.gmra.mrb[0].mxu0 %v7118
    %v7880 = vpop.f32.mrb[0].mxu0
    %v7881 = vadd.f32 %v7838, %v7880
    %v7882 = vpop.f32.mrb[0].mxu0
    %v7883 = vadd.f32 %v7840, %v7882
    %v7884 = vpop.f32.mrb[0].mxu0
    %v7885 = vadd.f32 %v7842, %v7884
    %v7886 = vpop.f32.mrb[0].mxu0
    %v7887 = vadd.f32 %v7844, %v7886
    %7888 = vdwg.mxu0
    %v7889 = vmax.f32 %v7795, 0.0
    %v7890 = vmax.f32 %v7797, 0.0
    %v7891 = vmax.f32 %v7881, 0.0
    %v7892 = vmax.f32 %v7883, 0.0
    %v7893 = vmax.f32 %v7799, 0.0
    %v7894 = vmax.f32 %v7801, 0.0
    %v7895 = vmax.f32 %v7885, 0.0
    %v7896 = vmax.f32 %v7887, 0.0
    %v7897 = vpack.c.bf16 %v7893, %v7889
    %v7898 = vpack.c.bf16 %v7894, %v7890
    %v7899 = vpack.c.bf16 %v7895, %v7891
    %v7900 = vpack.c.bf16 %v7896, %v7892
    %v7901 = vld [vmem:[#allocation25] sm:$0xff]
    %v7902 = vld [vmem:[#allocation25 + $0x8] sm:$0xff]
    %v7903 = vld [vmem:[#allocation25 + $0x10] sm:$0xff]
    %v7904 = vld [vmem:[#allocation25 + $0x18] sm:$0xf]
    %v7905 = vld [vmem:[#allocation25 + $0x1c] sm:$0xff]
    %v7906 = vld [vmem:[#allocation25 + $0x24] sm:$0xff]
    %v7907 = vld [vmem:[#allocation25 + $0x2c] sm:$0xff]
    %v7908 = vld [vmem:[#allocation25 + $0x34] sm:$0xf]
    %v7909 = vld [vmem:[#allocation25 + $0x38] sm:$0xff]
    %v7910 = vld [vmem:[#allocation25 + $0x40] sm:$0xff]
    %v7911 = vld [vmem:[#allocation25 + $0x48] sm:$0xff]
    %v7912 = vld [vmem:[#allocation25 + $0x50] sm:$0xf]
    %v7913 = vld [vmem:[#allocation25 + $0x54] sm:$0xff]
    %v7914 = vld [vmem:[#allocation25 + $0x5c] sm:$0xff]
    %v7915 = vld [vmem:[#allocation25 + $0x64] sm:$0xff]
    %v7916 = vld [vmem:[#allocation25 + $0x6c] sm:$0xf]
    %v7917 = vld [vmem:[#allocation25 + $0x70] sm:$0xff]
    %v7918 = vld [vmem:[#allocation25 + $0x78] sm:$0xff]
    %v7919 = vld [vmem:[#allocation25 + $0x80] sm:$0xff]
    %v7920 = vld [vmem:[#allocation25 + $0x88] sm:$0xf]
    %v7921 = vld [vmem:[#allocation25 + $0x8c] sm:$0xff]
    %v7922 = vld [vmem:[#allocation25 + $0x94] sm:$0xff]
    %v7923 = vld [vmem:[#allocation25 + $0x9c] sm:$0xff]
    %v7924 = vld [vmem:[#allocation25 + $0xa4] sm:$0xf]
    %v7925 = vld [vmem:[#allocation25 + $0xa8] sm:$0xff]
    %v7926 = vld [vmem:[#allocation25 + $0xb0] sm:$0xff]
    %v7927 = vld [vmem:[#allocation25 + $0xb8] sm:$0xff]
    %v7928 = vld [vmem:[#allocation25 + $0xc0] sm:$0xf]
    %v7929 = vld [vmem:[#allocation25 + $0xc4] sm:$0xff]
    %v7930 = vld [vmem:[#allocation25 + $0xcc] sm:$0xff]
    %v7931 = vld [vmem:[#allocation25 + $0xd4] sm:$0xff]
    %v7932 = vld [vmem:[#allocation25 + $0xdc] sm:$0xf]
    %v7933 = vld [vmem:[#allocation25 + $0xe0] sm:$0xff]
    %v7934 = vld [vmem:[#allocation25 + $0xe8] sm:$0xff]
    %v7935 = vld [vmem:[#allocation25 + $0xf0] sm:$0xff]
    %v7936 = vld [vmem:[#allocation25 + $0xf8] sm:$0xf]
    %v7937 = vld [vmem:[#allocation25 + $0xfc] sm:$0xff]
    %v7938 = vld [vmem:[#allocation25 + $0x104] sm:$0xff]
    %v7939 = vld [vmem:[#allocation25 + $0x10c] sm:$0xff]
    %v7940 = vld [vmem:[#allocation25 + $0x114] sm:$0xf]
    %v7941 = vld [vmem:[#allocation25 + $0x118] sm:$0xff]
    %v7942 = vld [vmem:[#allocation25 + $0x120] sm:$0xff]
    %v7943 = vld [vmem:[#allocation25 + $0x128] sm:$0xff]
    %v7944 = vld [vmem:[#allocation25 + $0x130] sm:$0xf]
    %v7945 = vld [vmem:[#allocation25 + $0x134] sm:$0xff]
    %v7946 = vld [vmem:[#allocation25 + $0x13c] sm:$0xff]
    %v7947 = vld [vmem:[#allocation25 + $0x144] sm:$0xff]
    %v7948 = vld [vmem:[#allocation25 + $0x14c] sm:$0xf]
    %v7949 = vld [vmem:[#allocation25 + $0x150] sm:$0xff]
    %v7950 = vld [vmem:[#allocation25 + $0x158] sm:$0xff]
    %v7951 = vld [vmem:[#allocation25 + $0x160] sm:$0xff]
    %v7952 = vld [vmem:[#allocation25 + $0x168] sm:$0xf]
    %v7953 = vld [vmem:[#allocation25 + $0x16c] sm:$0xff]
    %v7954 = vld [vmem:[#allocation25 + $0x174] sm:$0xff]
    %v7955 = vld [vmem:[#allocation25 + $0x17c] sm:$0xff]
    %v7956 = vld [vmem:[#allocation25 + $0x184] sm:$0xf]
    %v7957 = vld [vmem:[#allocation25 + $0x188] sm:$0xff]
    %v7958 = vld [vmem:[#allocation25 + $0x190] sm:$0xff]
    %v7959 = vld [vmem:[#allocation25 + $0x198] sm:$0xff]
    %v7960 = vld [vmem:[#allocation25 + $0x1a0] sm:$0xf]
    %v7961 = vld [vmem:[#allocation25 + $0x1a4] sm:$0xff]
    %v7962 = vld [vmem:[#allocation25 + $0x1ac] sm:$0xff]
    %v7963 = vld [vmem:[#allocation25 + $0x1b4] sm:$0xff]
    %v7964 = vld [vmem:[#allocation25 + $0x1bc] sm:$0xf]
    %v7965 = vld [vmem:[#allocation25 + $0x1c0] sm:$0xff]
    %v7966 = vld [vmem:[#allocation25 + $0x1c8] sm:$0xff]
    %v7967 = vld [vmem:[#allocation25 + $0x1d0] sm:$0xff]
    %v7968 = vld [vmem:[#allocation25 + $0x1d8] sm:$0xf]
    %v7969 = vld [vmem:[#allocation25 + $0x1dc] sm:$0xff]
    %v7970 = vld [vmem:[#allocation25 + $0x1e4] sm:$0xff]
    %v7971 = vld [vmem:[#allocation25 + $0x1ec] sm:$0xff]
    %v7972 = vld [vmem:[#allocation25 + $0x1f4] sm:$0xf]
    %v7973 = vld [vmem:[#allocation25 + $0x1f8] sm:$0xff]
    %v7974 = vld [vmem:[#allocation25 + $0x200] sm:$0xff]
    %v7975 = vld [vmem:[#allocation25 + $0x208] sm:$0xff]
    %v7976 = vld [vmem:[#allocation25 + $0x210] sm:$0xf]
    %v7977 = vld [vmem:[#allocation25 + $0x214] sm:$0xff]
    %v7978 = vld [vmem:[#allocation25 + $0x21c] sm:$0xff]
    %v7979 = vld [vmem:[#allocation25 + $0x224] sm:$0xff]
    %v7980 = vld [vmem:[#allocation25 + $0x22c] sm:$0xf]
    %v7981 = vld [vmem:[#allocation25 + $0x230] sm:$0xff]
    %v7982 = vld [vmem:[#allocation25 + $0x238] sm:$0xff]
    %v7983 = vld [vmem:[#allocation25 + $0x240] sm:$0xff]
    %v7984 = vld [vmem:[#allocation25 + $0x248] sm:$0xf]
    %v7985 = vld [vmem:[#allocation25 + $0x24c] sm:$0xff]
    %v7986 = vld [vmem:[#allocation25 + $0x254] sm:$0xff]
    %v7987 = vld [vmem:[#allocation25 + $0x25c] sm:$0xff]
    %v7988 = vld [vmem:[#allocation25 + $0x264] sm:$0xf]
    %v7989 = vld [vmem:[#allocation25 + $0x268] sm:$0xff]
    %v7990 = vld [vmem:[#allocation25 + $0x270] sm:$0xff]
    %v7991 = vld [vmem:[#allocation25 + $0x278] sm:$0xff]
    %v7992 = vld [vmem:[#allocation25 + $0x280] sm:$0xf]
    %v7993 = vld [vmem:[#allocation25 + $0x284] sm:$0xff]
    %v7994 = vld [vmem:[#allocation25 + $0x28c] sm:$0xff]
    %v7995 = vld [vmem:[#allocation25 + $0x294] sm:$0xff]
    %v7996 = vld [vmem:[#allocation25 + $0x29c] sm:$0xf]
    %v7997 = vld [vmem:[#allocation25 + $0x2a0] sm:$0xff]
    %v7998 = vld [vmem:[#allocation25 + $0x2a8] sm:$0xff]
    %v7999 = vld [vmem:[#allocation25 + $0x2b0] sm:$0xff]
    %v8000 = vld [vmem:[#allocation25 + $0x2b8] sm:$0xf]
    %v8001 = vld [vmem:[#allocation25 + $0x2bc] sm:$0xff]
    %v8002 = vld [vmem:[#allocation25 + $0x2c4] sm:$0xff]
    %v8003 = vld [vmem:[#allocation25 + $0x2cc] sm:$0xff]
    %v8004 = vld [vmem:[#allocation25 + $0x2d4] sm:$0xf]
    %v8005 = vld [vmem:[#allocation25 + $0x2d8] sm:$0xff]
    %v8006 = vld [vmem:[#allocation25 + $0x2e0] sm:$0xff]
    %v8007 = vld [vmem:[#allocation25 + $0x2e8] sm:$0xff]
    %v8008 = vld [vmem:[#allocation25 + $0x2f0] sm:$0xf]
    %v8009 = vld [vmem:[#allocation25 + $0x2f4] sm:$0xff]
    %v8010 = vld [vmem:[#allocation25 + $0x2fc] sm:$0xff]
    %v8011 = vld [vmem:[#allocation25 + $0x304] sm:$0xff]
    %v8012 = vld [vmem:[#allocation25 + $0x30c] sm:$0xf]
    %v8013 = vld [vmem:[#allocation25 + $0x310] sm:$0xff]
    %v8014 = vld [vmem:[#allocation25 + $0x318] sm:$0xff]
    %v8015 = vld [vmem:[#allocation25 + $0x320] sm:$0xff]
    %v8016 = vld [vmem:[#allocation25 + $0x328] sm:$0xf]
    %v8017 = vld [vmem:[#allocation25 + $0x32c] sm:$0xff]
    %v8018 = vld [vmem:[#allocation25 + $0x334] sm:$0xff]
    %v8019 = vld [vmem:[#allocation25 + $0x33c] sm:$0xff]
    %v8020 = vld [vmem:[#allocation25 + $0x344] sm:$0xf]
    %v8021 = vld [vmem:[#allocation25 + $0x348] sm:$0xff]
    %v8022 = vld [vmem:[#allocation25 + $0x350] sm:$0xff]
    %v8023 = vld [vmem:[#allocation25 + $0x358] sm:$0xff]
    %v8024 = vld [vmem:[#allocation25 + $0x360] sm:$0xf]
    %v8025 = vld [vmem:[#allocation25 + $0x364] sm:$0xff]
    %v8026 = vld [vmem:[#allocation25 + $0x36c] sm:$0xff]
    %v8027 = vld [vmem:[#allocation25 + $0x374] sm:$0xff]
    %v8028 = vld [vmem:[#allocation25 + $0x37c] sm:$0xf]
    %v8029 = vld [vmem:[#allocation25 + $0x380] sm:$0xff]
    %v8030 = vld [vmem:[#allocation25 + $0x388] sm:$0xff]
    %v8031 = vld [vmem:[#allocation25 + $0x390] sm:$0xff]
    %v8032 = vld [vmem:[#allocation25 + $0x398] sm:$0xf]
    %v8033 = vld [vmem:[#allocation25 + $0x39c] sm:$0xff]
    %v8034 = vld [vmem:[#allocation25 + $0x3a4] sm:$0xff]
    %v8035 = vld [vmem:[#allocation25 + $0x3ac] sm:$0xff]
    %v8036 = vld [vmem:[#allocation25 + $0x3b4] sm:$0xf]
    %v8037 = vld [vmem:[#allocation25 + $0x3b8] sm:$0xff]
    %v8038 = vld [vmem:[#allocation25 + $0x3c0] sm:$0xff]
    %v8039 = vld [vmem:[#allocation25 + $0x3c8] sm:$0xff]
    %v8040 = vld [vmem:[#allocation25 + $0x3d0] sm:$0xf]
    %v8041 = vld [vmem:[#allocation25 + $0x3d4] sm:$0xff]
    %v8042 = vld [vmem:[#allocation25 + $0x3dc] sm:$0xff]
    %v8043 = vld [vmem:[#allocation25 + $0x3e4] sm:$0xff]
    %v8044 = vld [vmem:[#allocation25 + $0x3ec] sm:$0xf]
    %v8045 = vld [vmem:[#allocation25 + $0x3f0] sm:$0xff]
    %v8046 = vld [vmem:[#allocation25 + $0x3f8] sm:$0xff]
    %v8047 = vld [vmem:[#allocation25 + $0x400] sm:$0xff]
    %v8048 = vld [vmem:[#allocation25 + $0x408] sm:$0xf]
    %v8049 = vld [vmem:[#allocation25 + $0x40c] sm:$0xff]
    %v8050 = vld [vmem:[#allocation25 + $0x414] sm:$0xff]
    %v8051 = vld [vmem:[#allocation25 + $0x41c] sm:$0xff]
    %v8052 = vld [vmem:[#allocation25 + $0x424] sm:$0xf]
    %v8053 = vld [vmem:[#allocation25 + $0x428] sm:$0xff]
    %v8054 = vld [vmem:[#allocation25 + $0x430] sm:$0xff]
    %v8055 = vld [vmem:[#allocation25 + $0x438] sm:$0xff]
    %v8056 = vld [vmem:[#allocation25 + $0x440] sm:$0xf]
    %v8057 = vld [vmem:[#allocation25 + $0x444] sm:$0xff]
    %v8058 = vld [vmem:[#allocation25 + $0x44c] sm:$0xff]
    %v8059 = vld [vmem:[#allocation25 + $0x454] sm:$0xff]
    %v8060 = vld [vmem:[#allocation25 + $0x45c] sm:$0xf]
    %v8061 = vld [vmem:[#allocation25 + $0x460] sm:$0xff]
    %v8062 = vld [vmem:[#allocation25 + $0x468] sm:$0xff]
    %v8063 = vld [vmem:[#allocation25 + $0x470] sm:$0xff]
    %v8064 = vld [vmem:[#allocation25 + $0x478] sm:$0xf]
    %v8065 = vld [vmem:[#allocation25 + $0x47c] sm:$0xff]
    %v8066 = vld [vmem:[#allocation25 + $0x484] sm:$0xff]
    %v8067 = vld [vmem:[#allocation25 + $0x48c] sm:$0xff]
    %v8068 = vld [vmem:[#allocation25 + $0x494] sm:$0xf]
    %v8069 = vld [vmem:[#allocation25 + $0x498] sm:$0xff]
    %v8070 = vld [vmem:[#allocation25 + $0x4a0] sm:$0xff]
    %v8071 = vld [vmem:[#allocation25 + $0x4a8] sm:$0xff]
    %v8072 = vld [vmem:[#allocation25 + $0x4b0] sm:$0xf]
    %v8073 = vld [vmem:[#allocation25 + $0x4b4] sm:$0xff]
    %v8074 = vld [vmem:[#allocation25 + $0x4bc] sm:$0xff]
    %v8075 = vld [vmem:[#allocation25 + $0x4c4] sm:$0xff]
    %v8076 = vld [vmem:[#allocation25 + $0x4cc] sm:$0xf]
    %v8077 = vld [vmem:[#allocation25 + $0x4d0] sm:$0xff]
    %v8078 = vld [vmem:[#allocation25 + $0x4d8] sm:$0xff]
    %v8079 = vld [vmem:[#allocation25 + $0x4e0] sm:$0xff]
    %v8080 = vld [vmem:[#allocation25 + $0x4e8] sm:$0xf]
    %v8081 = vld [vmem:[#allocation25 + $0x4ec] sm:$0xff]
    %v8082 = vld [vmem:[#allocation25 + $0x4f4] sm:$0xff]
    %v8083 = vld [vmem:[#allocation25 + $0x4fc] sm:$0xff]
    %v8084 = vld [vmem:[#allocation25 + $0x504] sm:$0xf]
    %v8085 = vld [vmem:[#allocation25 + $0x508] sm:$0xff]
    %v8086 = vld [vmem:[#allocation25 + $0x510] sm:$0xff]
    %v8087 = vld [vmem:[#allocation25 + $0x518] sm:$0xff]
    %v8088 = vld [vmem:[#allocation25 + $0x520] sm:$0xf]
    %v8089 = vld [vmem:[#allocation25 + $0x524] sm:$0xff]
    %v8090 = vld [vmem:[#allocation25 + $0x52c] sm:$0xff]
    %v8091 = vld [vmem:[#allocation25 + $0x534] sm:$0xff]
    %v8092 = vld [vmem:[#allocation25 + $0x53c] sm:$0xf]
    %v8093 = vld [vmem:[#allocation25 + $0x540] sm:$0xff]
    %v8094 = vld [vmem:[#allocation25 + $0x548] sm:$0xff]
    %v8095 = vld [vmem:[#allocation25 + $0x550] sm:$0xff]
    %v8096 = vld [vmem:[#allocation25 + $0x558] sm:$0xf]
    %v8097 = vld [vmem:[#allocation25 + $0x55c] sm:$0xff]
    %v8098 = vld [vmem:[#allocation25 + $0x564] sm:$0xff]
    %v8099 = vld [vmem:[#allocation25 + $0x56c] sm:$0xff]
    %v8100 = vld [vmem:[#allocation25 + $0x574] sm:$0xf]
    %v8101 = vld [vmem:[#allocation25 + $0x578] sm:$0xff]
    %v8102 = vld [vmem:[#allocation25 + $0x580] sm:$0xff]
    %v8103 = vld [vmem:[#allocation25 + $0x588] sm:$0xff]
    %v8104 = vld [vmem:[#allocation25 + $0x590] sm:$0xf]
    %v8105 = vld [vmem:[#allocation25 + $0x594] sm:$0xff]
    %v8106 = vld [vmem:[#allocation25 + $0x59c] sm:$0xff]
    %v8107 = vld [vmem:[#allocation25 + $0x5a4] sm:$0xff]
    %v8108 = vld [vmem:[#allocation25 + $0x5ac] sm:$0xf]
    %v8109 = vld [vmem:[#allocation25 + $0x5b0] sm:$0xff]
    %v8110 = vld [vmem:[#allocation25 + $0x5b8] sm:$0xff]
    %v8111 = vld [vmem:[#allocation25 + $0x5c0] sm:$0xff]
    %v8112 = vld [vmem:[#allocation25 + $0x5c8] sm:$0xf]
    %v8113 = vld [vmem:[#allocation25 + $0x5cc] sm:$0xff]
    %v8114 = vld [vmem:[#allocation25 + $0x5d4] sm:$0xff]
    %v8115 = vld [vmem:[#allocation25 + $0x5dc] sm:$0xff]
    %v8116 = vld [vmem:[#allocation25 + $0x5e4] sm:$0xf]
    %v8117 = vld [vmem:[#allocation25 + $0x5e8] sm:$0xff]
    %v8118 = vld [vmem:[#allocation25 + $0x5f0] sm:$0xff]
    %v8119 = vld [vmem:[#allocation25 + $0x5f8] sm:$0xff]
    %v8120 = vld [vmem:[#allocation25 + $0x600] sm:$0xf]
    %v8121 = vld [vmem:[#allocation25 + $0x604] sm:$0xff]
    %v8122 = vld [vmem:[#allocation25 + $0x60c] sm:$0xff]
    %v8123 = vld [vmem:[#allocation25 + $0x614] sm:$0xff]
    %v8124 = vld [vmem:[#allocation25 + $0x61c] sm:$0xf]
    %v8125 = vld [vmem:[#allocation25 + $0x620] sm:$0xff]
    %v8126 = vld [vmem:[#allocation25 + $0x628] sm:$0xff]
    %v8127 = vld [vmem:[#allocation25 + $0x630] sm:$0xff]
    %v8128 = vld [vmem:[#allocation25 + $0x638] sm:$0xf]
    %v8129 = vld [vmem:[#allocation25 + $0x63c] sm:$0xff]
    %v8130 = vld [vmem:[#allocation25 + $0x644] sm:$0xff]
    %v8131 = vld [vmem:[#allocation25 + $0x64c] sm:$0xff]
    %v8132 = vld [vmem:[#allocation25 + $0x654] sm:$0xf]
    %v8133 = vld [vmem:[#allocation25 + $0x658] sm:$0xff]
    %v8134 = vld [vmem:[#allocation25 + $0x660] sm:$0xff]
    %v8135 = vld [vmem:[#allocation25 + $0x668] sm:$0xff]
    %v8136 = vld [vmem:[#allocation25 + $0x670] sm:$0xf]
    %v8137 = vld [vmem:[#allocation25 + $0x674] sm:$0xff]
    %v8138 = vld [vmem:[#allocation25 + $0x67c] sm:$0xff]
    %v8139 = vld [vmem:[#allocation25 + $0x684] sm:$0xff]
    %v8140 = vld [vmem:[#allocation25 + $0x68c] sm:$0xf]
    %v8141 = vld [vmem:[#allocation25 + $0x690] sm:$0xff]
    %v8142 = vld [vmem:[#allocation25 + $0x698] sm:$0xff]
    %v8143 = vld [vmem:[#allocation25 + $0x6a0] sm:$0xff]
    %v8144 = vld [vmem:[#allocation25 + $0x6a8] sm:$0xf]
    %v8145 = vld [vmem:[#allocation25 + $0x6ac] sm:$0xff]
    %v8146 = vld [vmem:[#allocation25 + $0x6b4] sm:$0xff]
    %v8147 = vld [vmem:[#allocation25 + $0x6bc] sm:$0xff]
    %v8148 = vld [vmem:[#allocation25 + $0x6c4] sm:$0xf]
    %v8149 = vld [vmem:[#allocation25 + $0x6c8] sm:$0xff]
    %v8150 = vld [vmem:[#allocation25 + $0x6d0] sm:$0xff]
    %v8151 = vld [vmem:[#allocation25 + $0x6d8] sm:$0xff]
    %v8152 = vld [vmem:[#allocation25 + $0x6e0] sm:$0xf]
    %v8153 = vld [vmem:[#allocation25 + $0x6e4] sm:$0xff]
    %v8154 = vld [vmem:[#allocation25 + $0x6ec] sm:$0xff]
    %v8155 = vld [vmem:[#allocation25 + $0x6f4] sm:$0xff]
    %v8156 = vld [vmem:[#allocation25 + $0x6fc] sm:$0xf]
    %v8157 = vld [vmem:[#allocation26] sm:$0xff]
    %v8159 = vlaneseq
    %v8160 = vshrl.u32 %v8159, 7
    %v8161 = vsub.s32 0, %v8160
    %v8162 = vrot.slane %v8157, %v8161
    %v8163 = vlaneseq
    %v8164 = vshrl.u32 %v8163, 7
    %v8165 = vsub.s32 1, %v8164
    %v8166 = vrot.slane %v8157, %v8165
    %v8167 = vlaneseq
    %v8168 = vshrl.u32 %v8167, 7
    %v8169 = vsub.s32 2, %v8168
    %v8170 = vrot.slane %v8157, %v8169
    %v8171 = vlaneseq
    %v8172 = vshrl.u32 %v8171, 7
    %v8173 = vsub.s32 3, %v8172
    %v8174 = vrot.slane %v8157, %v8173
    %v8175 = vlaneseq
    %v8176 = vshrl.u32 %v8175, 7
    %v8177 = vsub.s32 4, %v8176
    %v8178 = vrot.slane %v8157, %v8177
    %v8179 = vlaneseq
    %v8180 = vshrl.u32 %v8179, 7
    %v8181 = vsub.s32 5, %v8180
    %v8182 = vrot.slane %v8157, %v8181
    %v8183 = vlaneseq
    %v8184 = vshrl.u32 %v8183, 7
    %v8185 = vsub.s32 6, %v8184
    %v8186 = vrot.slane %v8157, %v8185
    %v8450 = vunpack.c.l.b16 %v7901
    %v8451 = vunpack.c.h.b16 %v7901
    %v8452 = vunpack.c.l.b16 %v7902
    %v8453 = vunpack.c.h.b16 %v7902
    %v8454 = vunpack.c.l.b16 %v7903
    %v8455 = vunpack.c.h.b16 %v7903
    %v8456 = vunpack.c.l.b16 %v7904
    %v8457 = vunpack.c.l.b16 %v7905
    %v8458 = vunpack.c.h.b16 %v7905
    %v8459 = vunpack.c.l.b16 %v7906
    %v8460 = vunpack.c.h.b16 %v7906
    %v8461 = vunpack.c.l.b16 %v7907
    %v8462 = vunpack.c.h.b16 %v7907
    %v8463 = vunpack.c.l.b16 %v7908
    %v8464 = vunpack.c.l.b16 %v7909
    %v8465 = vunpack.c.h.b16 %v7909
    %v8466 = vunpack.c.l.b16 %v7910
    %v8467 = vunpack.c.h.b16 %v7910
    %v8468 = vunpack.c.l.b16 %v7911
    %v8469 = vunpack.c.h.b16 %v7911
    %v8470 = vunpack.c.l.b16 %v7912
    %v8471 = vunpack.c.l.b16 %v7913
    %v8472 = vunpack.c.h.b16 %v7913
    %v8473 = vunpack.c.l.b16 %v7914
    %v8474 = vunpack.c.h.b16 %v7914
    %v8475 = vunpack.c.l.b16 %v7915
    %v8476 = vunpack.c.h.b16 %v7915
    %v8477 = vunpack.c.l.b16 %v7916
    %v8478 = vunpack.c.l.b16 %v7917
    %v8479 = vunpack.c.h.b16 %v7917
    %v8480 = vunpack.c.l.b16 %v7918
    %v8481 = vunpack.c.h.b16 %v7918
    %v8482 = vunpack.c.l.b16 %v7919
    %v8483 = vunpack.c.h.b16 %v7919
    %v8484 = vunpack.c.l.b16 %v7920
    %v8485 = vunpack.c.l.b16 %v7921
    %v8486 = vunpack.c.h.b16 %v7921
    %v8487 = vunpack.c.l.b16 %v7922
    %v8488 = vunpack.c.h.b16 %v7922
    %v8489 = vunpack.c.l.b16 %v7923
    %v8490 = vunpack.c.h.b16 %v7923
    %v8491 = vunpack.c.l.b16 %v7924
    %v8492 = vunpack.c.l.b16 %v7925
    %v8493 = vunpack.c.h.b16 %v7925
    %v8494 = vunpack.c.l.b16 %v7926
    %v8495 = vunpack.c.h.b16 %v7926
    %v8496 = vunpack.c.l.b16 %v7927
    %v8497 = vunpack.c.h.b16 %v7927
    %v8498 = vunpack.c.l.b16 %v7928
    %v8499 = vunpack.c.l.b16 %v7929
    %v8500 = vunpack.c.h.b16 %v7929
    %v8501 = vunpack.c.l.b16 %v7930
    %v8502 = vunpack.c.h.b16 %v7930
    %v8503 = vunpack.c.l.b16 %v7931
    %v8504 = vunpack.c.h.b16 %v7931
    %v8505 = vunpack.c.l.b16 %v7932
    %v8506 = vunpack.c.l.b16 %v7933
    %v8507 = vunpack.c.h.b16 %v7933
    %v8508 = vunpack.c.l.b16 %v7934
    %v8509 = vunpack.c.h.b16 %v7934
    %v8510 = vunpack.c.l.b16 %v7935
    %v8511 = vunpack.c.h.b16 %v7935
    %v8512 = vunpack.c.l.b16 %v7936
    %v8513 = vunpack.c.l.b16 %v7937
    %v8514 = vunpack.c.h.b16 %v7937
    %v8515 = vunpack.c.l.b16 %v7938
    %v8516 = vunpack.c.h.b16 %v7938
    %v8517 = vunpack.c.l.b16 %v7939
    %v8518 = vunpack.c.h.b16 %v7939
    %v8519 = vunpack.c.l.b16 %v7940
    %v8520 = vunpack.c.l.b16 %v7941
    %v8521 = vunpack.c.h.b16 %v7941
    %v8522 = vunpack.c.l.b16 %v7942
    %v8523 = vunpack.c.h.b16 %v7942
    %v8524 = vunpack.c.l.b16 %v7943
    %v8525 = vunpack.c.h.b16 %v7943
    %v8526 = vunpack.c.l.b16 %v7944
    %v8527 = vunpack.c.l.b16 %v7945
    %v8528 = vunpack.c.h.b16 %v7945
    %v8529 = vunpack.c.l.b16 %v7946
    %v8530 = vunpack.c.h.b16 %v7946
    %v8531 = vunpack.c.l.b16 %v7947
    %v8532 = vunpack.c.h.b16 %v7947
    %v8533 = vunpack.c.l.b16 %v7948
    %v8534 = vunpack.c.l.b16 %v7949
    %v8535 = vunpack.c.h.b16 %v7949
    %v8536 = vunpack.c.l.b16 %v7950
    %v8537 = vunpack.c.h.b16 %v7950
    %v8538 = vunpack.c.l.b16 %v7951
    %v8539 = vunpack.c.h.b16 %v7951
    %v8540 = vunpack.c.l.b16 %v7952
    %v8541 = vunpack.c.l.b16 %v7953
    %v8542 = vunpack.c.h.b16 %v7953
    %v8543 = vunpack.c.l.b16 %v7954
    %v8544 = vunpack.c.h.b16 %v7954
    %v8545 = vunpack.c.l.b16 %v7955
    %v8546 = vunpack.c.h.b16 %v7955
    %v8547 = vunpack.c.l.b16 %v7956
    %v8548 = vunpack.c.l.b16 %v7957
    %v8549 = vunpack.c.h.b16 %v7957
    %v8550 = vunpack.c.l.b16 %v7958
    %v8551 = vunpack.c.h.b16 %v7958
    %v8552 = vunpack.c.l.b16 %v7959
    %v8553 = vunpack.c.h.b16 %v7959
    %v8554 = vunpack.c.l.b16 %v7960
    %v8555 = vunpack.c.l.b16 %v7961
    %v8556 = vunpack.c.h.b16 %v7961
    %v8557 = vunpack.c.l.b16 %v7962
    %v8558 = vunpack.c.h.b16 %v7962
    %v8559 = vunpack.c.l.b16 %v7963
    %v8560 = vunpack.c.h.b16 %v7963
    %v8561 = vunpack.c.l.b16 %v7964
    %v8562 = vunpack.c.l.b16 %v7965
    %v8563 = vunpack.c.h.b16 %v7965
    %v8564 = vunpack.c.l.b16 %v7966
    %v8565 = vunpack.c.h.b16 %v7966
    %v8566 = vunpack.c.l.b16 %v7967
    %v8567 = vunpack.c.h.b16 %v7967
    %v8568 = vunpack.c.l.b16 %v7968
    %v8569 = vunpack.c.l.b16 %v7969
    %v8570 = vunpack.c.h.b16 %v7969
    %v8571 = vunpack.c.l.b16 %v7970
    %v8572 = vunpack.c.h.b16 %v7970
    %v8573 = vunpack.c.l.b16 %v7971
    %v8574 = vunpack.c.h.b16 %v7971
    %v8575 = vunpack.c.l.b16 %v7972
    %v8576 = vunpack.c.l.b16 %v7973
    %v8577 = vunpack.c.h.b16 %v7973
    %v8578 = vunpack.c.l.b16 %v7974
    %v8579 = vunpack.c.h.b16 %v7974
    %v8580 = vunpack.c.l.b16 %v7975
    %v8581 = vunpack.c.h.b16 %v7975
    %v8582 = vunpack.c.l.b16 %v7976
    %v8583 = vunpack.c.l.b16 %v7977
    %v8584 = vunpack.c.h.b16 %v7977
    %v8585 = vunpack.c.l.b16 %v7978
    %v8586 = vunpack.c.h.b16 %v7978
    %v8587 = vunpack.c.l.b16 %v7979
    %v8588 = vunpack.c.h.b16 %v7979
    %v8589 = vunpack.c.l.b16 %v7980
    %v8590 = vunpack.c.l.b16 %v7981
    %v8591 = vunpack.c.h.b16 %v7981
    %v8592 = vunpack.c.l.b16 %v7982
    %v8593 = vunpack.c.h.b16 %v7982
    %v8594 = vunpack.c.l.b16 %v7983
    %v8595 = vunpack.c.h.b16 %v7983
    %v8596 = vunpack.c.l.b16 %v7984
    %v8597 = vunpack.c.l.b16 %v7985
    %v8598 = vunpack.c.h.b16 %v7985
    %v8599 = vunpack.c.l.b16 %v7986
    %v8600 = vunpack.c.h.b16 %v7986
    %v8601 = vunpack.c.l.b16 %v7987
    %v8602 = vunpack.c.h.b16 %v7987
    %v8603 = vunpack.c.l.b16 %v7988
    %v8604 = vunpack.c.l.b16 %v7989
    %v8605 = vunpack.c.h.b16 %v7989
    %v8606 = vunpack.c.l.b16 %v7990
    %v8607 = vunpack.c.h.b16 %v7990
    %v8608 = vunpack.c.l.b16 %v7991
    %v8609 = vunpack.c.h.b16 %v7991
    %v8610 = vunpack.c.l.b16 %v7992
    %v8611 = vunpack.c.l.b16 %v7993
    %v8612 = vunpack.c.h.b16 %v7993
    %v8613 = vunpack.c.l.b16 %v7994
    %v8614 = vunpack.c.h.b16 %v7994
    %v8615 = vunpack.c.l.b16 %v7995
    %v8616 = vunpack.c.h.b16 %v7995
    %v8617 = vunpack.c.l.b16 %v7996
    %v8618 = vunpack.c.l.b16 %v7997
    %v8619 = vunpack.c.h.b16 %v7997
    %v8620 = vunpack.c.l.b16 %v7998
    %v8621 = vunpack.c.h.b16 %v7998
    %v8622 = vunpack.c.l.b16 %v7999
    %v8623 = vunpack.c.h.b16 %v7999
    %v8624 = vunpack.c.l.b16 %v8000
    %v8625 = vunpack.c.l.b16 %v8001
    %v8626 = vunpack.c.h.b16 %v8001
    %v8627 = vunpack.c.l.b16 %v8002
    %v8628 = vunpack.c.h.b16 %v8002
    %v8629 = vunpack.c.l.b16 %v8003
    %v8630 = vunpack.c.h.b16 %v8003
    %v8631 = vunpack.c.l.b16 %v8004
    %v8632 = vunpack.c.l.b16 %v8005
    %v8633 = vunpack.c.h.b16 %v8005
    %v8634 = vunpack.c.l.b16 %v8006
    %v8635 = vunpack.c.h.b16 %v8006
    %v8636 = vunpack.c.l.b16 %v8007
    %v8637 = vunpack.c.h.b16 %v8007
    %v8638 = vunpack.c.l.b16 %v8008
    %v8639 = vunpack.c.l.b16 %v8009
    %v8640 = vunpack.c.h.b16 %v8009
    %v8641 = vunpack.c.l.b16 %v8010
    %v8642 = vunpack.c.h.b16 %v8010
    %v8643 = vunpack.c.l.b16 %v8011
    %v8644 = vunpack.c.h.b16 %v8011
    %v8645 = vunpack.c.l.b16 %v8012
    %v8646 = vunpack.c.l.b16 %v8013
    %v8647 = vunpack.c.h.b16 %v8013
    %v8648 = vunpack.c.l.b16 %v8014
    %v8649 = vunpack.c.h.b16 %v8014
    %v8650 = vunpack.c.l.b16 %v8015
    %v8651 = vunpack.c.h.b16 %v8015
    %v8652 = vunpack.c.l.b16 %v8016
    %v8653 = vunpack.c.l.b16 %v8017
    %v8654 = vunpack.c.h.b16 %v8017
    %v8655 = vunpack.c.l.b16 %v8018
    %v8656 = vunpack.c.h.b16 %v8018
    %v8657 = vunpack.c.l.b16 %v8019
    %v8658 = vunpack.c.h.b16 %v8019
    %v8659 = vunpack.c.l.b16 %v8020
    %v8660 = vunpack.c.l.b16 %v8021
    %v8661 = vunpack.c.h.b16 %v8021
    %v8662 = vunpack.c.l.b16 %v8022
    %v8663 = vunpack.c.h.b16 %v8022
    %v8664 = vunpack.c.l.b16 %v8023
    %v8665 = vunpack.c.h.b16 %v8023
    %v8666 = vunpack.c.l.b16 %v8024
    %v8667 = vunpack.c.l.b16 %v8025
    %v8668 = vunpack.c.h.b16 %v8025
    %v8669 = vunpack.c.l.b16 %v8026
    %v8670 = vunpack.c.h.b16 %v8026
    %v8671 = vunpack.c.l.b16 %v8027
    %v8672 = vunpack.c.h.b16 %v8027
    %v8673 = vunpack.c.l.b16 %v8028
    %v8674 = vunpack.c.l.b16 %v8029
    %v8675 = vunpack.c.h.b16 %v8029
    %v8676 = vunpack.c.l.b16 %v8030
    %v8677 = vunpack.c.h.b16 %v8030
    %v8678 = vunpack.c.l.b16 %v8031
    %v8679 = vunpack.c.h.b16 %v8031
    %v8680 = vunpack.c.l.b16 %v8032
    %v8681 = vunpack.c.l.b16 %v8033
    %v8682 = vunpack.c.h.b16 %v8033
    %v8683 = vunpack.c.l.b16 %v8034
    %v8684 = vunpack.c.h.b16 %v8034
    %v8685 = vunpack.c.l.b16 %v8035
    %v8686 = vunpack.c.h.b16 %v8035
    %v8687 = vunpack.c.l.b16 %v8036
    %v8688 = vunpack.c.l.b16 %v8037
    %v8689 = vunpack.c.h.b16 %v8037
    %v8690 = vunpack.c.l.b16 %v8038
    %v8691 = vunpack.c.h.b16 %v8038
    %v8692 = vunpack.c.l.b16 %v8039
    %v8693 = vunpack.c.h.b16 %v8039
    %v8694 = vunpack.c.l.b16 %v8040
    %v8695 = vunpack.c.l.b16 %v8041
    %v8696 = vunpack.c.h.b16 %v8041
    %v8697 = vunpack.c.l.b16 %v8042
    %v8698 = vunpack.c.h.b16 %v8042
    %v8699 = vunpack.c.l.b16 %v8043
    %v8700 = vunpack.c.h.b16 %v8043
    %v8701 = vunpack.c.l.b16 %v8044
    %v8702 = vunpack.c.l.b16 %v8045
    %v8703 = vunpack.c.h.b16 %v8045
    %v8704 = vunpack.c.l.b16 %v8046
    %v8705 = vunpack.c.h.b16 %v8046
    %v8706 = vunpack.c.l.b16 %v8047
    %v8707 = vunpack.c.h.b16 %v8047
    %v8708 = vunpack.c.l.b16 %v8048
    %v8709 = vunpack.c.l.b16 %v8049
    %v8710 = vunpack.c.h.b16 %v8049
    %v8711 = vunpack.c.l.b16 %v8050
    %v8712 = vunpack.c.h.b16 %v8050
    %v8713 = vunpack.c.l.b16 %v8051
    %v8714 = vunpack.c.h.b16 %v8051
    %v8715 = vunpack.c.l.b16 %v8052
    %v8716 = vunpack.c.l.b16 %v8053
    %v8717 = vunpack.c.h.b16 %v8053
    %v8718 = vunpack.c.l.b16 %v8054
    %v8719 = vunpack.c.h.b16 %v8054
    %v8720 = vunpack.c.l.b16 %v8055
    %v8721 = vunpack.c.h.b16 %v8055
    %v8722 = vunpack.c.l.b16 %v8056
    %v8723 = vunpack.c.l.b16 %v8057
    %v8724 = vunpack.c.h.b16 %v8057
    %v8725 = vunpack.c.l.b16 %v8058
    %v8726 = vunpack.c.h.b16 %v8058
    %v8727 = vunpack.c.l.b16 %v8059
    %v8728 = vunpack.c.h.b16 %v8059
    %v8729 = vunpack.c.l.b16 %v8060
    %v8730 = vunpack.c.l.b16 %v8061
    %v8731 = vunpack.c.h.b16 %v8061
    %v8732 = vunpack.c.l.b16 %v8062
    %v8733 = vunpack.c.h.b16 %v8062
    %v8734 = vunpack.c.l.b16 %v8063
    %v8735 = vunpack.c.h.b16 %v8063
    %v8736 = vunpack.c.l.b16 %v8064
    %v8737 = vunpack.c.l.b16 %v8065
    %v8738 = vunpack.c.h.b16 %v8065
    %v8739 = vunpack.c.l.b16 %v8066
    %v8740 = vunpack.c.h.b16 %v8066
    %v8741 = vunpack.c.l.b16 %v8067
    %v8742 = vunpack.c.h.b16 %v8067
    %v8743 = vunpack.c.l.b16 %v8068
    %v8744 = vunpack.c.l.b16 %v8069
    %v8745 = vunpack.c.h.b16 %v8069
    %v8746 = vunpack.c.l.b16 %v8070
    %v8747 = vunpack.c.h.b16 %v8070
    %v8748 = vunpack.c.l.b16 %v8071
    %v8749 = vunpack.c.h.b16 %v8071
    %v8750 = vunpack.c.l.b16 %v8072
    %v8751 = vunpack.c.l.b16 %v8073
    %v8752 = vunpack.c.h.b16 %v8073
    %v8753 = vunpack.c.l.b16 %v8074
    %v8754 = vunpack.c.h.b16 %v8074
    %v8755 = vunpack.c.l.b16 %v8075
    %v8756 = vunpack.c.h.b16 %v8075
    %v8757 = vunpack.c.l.b16 %v8076
    %v8758 = vunpack.c.l.b16 %v8077
    %v8759 = vunpack.c.h.b16 %v8077
    %v8760 = vunpack.c.l.b16 %v8078
    %v8761 = vunpack.c.h.b16 %v8078
    %v8762 = vunpack.c.l.b16 %v8079
    %v8763 = vunpack.c.h.b16 %v8079
    %v8764 = vunpack.c.l.b16 %v8080
    %v8765 = vunpack.c.l.b16 %v8081
    %v8766 = vunpack.c.h.b16 %v8081
    %v8767 = vunpack.c.l.b16 %v8082
    %v8768 = vunpack.c.h.b16 %v8082
    %v8769 = vunpack.c.l.b16 %v8083
    %v8770 = vunpack.c.h.b16 %v8083
    %v8771 = vunpack.c.l.b16 %v8084
    %v8772 = vunpack.c.l.b16 %v8085
    %v8773 = vunpack.c.h.b16 %v8085
    %v8774 = vunpack.c.l.b16 %v8086
    %v8775 = vunpack.c.h.b16 %v8086
    %v8776 = vunpack.c.l.b16 %v8087
    %v8777 = vunpack.c.h.b16 %v8087
    %v8778 = vunpack.c.l.b16 %v8088
    %v8779 = vunpack.c.l.b16 %v8089
    %v8780 = vunpack.c.h.b16 %v8089
    %v8781 = vunpack.c.l.b16 %v8090
    %v8782 = vunpack.c.h.b16 %v8090
    %v8783 = vunpack.c.l.b16 %v8091
    %v8784 = vunpack.c.h.b16 %v8091
    %v8785 = vunpack.c.l.b16 %v8092
    %v8786 = vunpack.c.l.b16 %v8093
    %v8787 = vunpack.c.h.b16 %v8093
    %v8788 = vunpack.c.l.b16 %v8094
    %v8789 = vunpack.c.h.b16 %v8094
    %v8790 = vunpack.c.l.b16 %v8095
    %v8791 = vunpack.c.h.b16 %v8095
    %v8792 = vunpack.c.l.b16 %v8096
    %v8793 = vunpack.c.l.b16 %v8097
    %v8794 = vunpack.c.h.b16 %v8097
    %v8795 = vunpack.c.l.b16 %v8098
    %v8796 = vunpack.c.h.b16 %v8098
    %v8797 = vunpack.c.l.b16 %v8099
    %v8798 = vunpack.c.h.b16 %v8099
    %v8799 = vunpack.c.l.b16 %v8100
    %v8800 = vunpack.c.l.b16 %v8101
    %v8801 = vunpack.c.h.b16 %v8101
    %v8802 = vunpack.c.l.b16 %v8102
    %v8803 = vunpack.c.h.b16 %v8102
    %v8804 = vunpack.c.l.b16 %v8103
    %v8805 = vunpack.c.h.b16 %v8103
    %v8806 = vunpack.c.l.b16 %v8104
    %v8807 = vunpack.c.l.b16 %v8105
    %v8808 = vunpack.c.h.b16 %v8105
    %v8809 = vunpack.c.l.b16 %v8106
    %v8810 = vunpack.c.h.b16 %v8106
    %v8811 = vunpack.c.l.b16 %v8107
    %v8812 = vunpack.c.h.b16 %v8107
    %v8813 = vunpack.c.l.b16 %v8108
    %v8814 = vunpack.c.l.b16 %v8109
    %v8815 = vunpack.c.h.b16 %v8109
    %v8816 = vunpack.c.l.b16 %v8110
    %v8817 = vunpack.c.h.b16 %v8110
    %v8818 = vunpack.c.l.b16 %v8111
    %v8819 = vunpack.c.h.b16 %v8111
    %v8820 = vunpack.c.l.b16 %v8112
    %v8821 = vunpack.c.l.b16 %v8113
    %v8822 = vunpack.c.h.b16 %v8113
    %v8823 = vunpack.c.l.b16 %v8114
    %v8824 = vunpack.c.h.b16 %v8114
    %v8825 = vunpack.c.l.b16 %v8115
    %v8826 = vunpack.c.h.b16 %v8115
    %v8827 = vunpack.c.l.b16 %v8116
    %v8828 = vunpack.c.l.b16 %v8117
    %v8829 = vunpack.c.h.b16 %v8117
    %v8830 = vunpack.c.l.b16 %v8118
    %v8831 = vunpack.c.h.b16 %v8118
    %v8832 = vunpack.c.l.b16 %v8119
    %v8833 = vunpack.c.h.b16 %v8119
    %v8834 = vunpack.c.l.b16 %v8120
    %v8835 = vunpack.c.l.b16 %v8121
    %v8836 = vunpack.c.h.b16 %v8121
    %v8837 = vunpack.c.l.b16 %v8122
    %v8838 = vunpack.c.h.b16 %v8122
    %v8839 = vunpack.c.l.b16 %v8123
    %v8840 = vunpack.c.h.b16 %v8123
    %v8841 = vunpack.c.l.b16 %v8124
    %v8842 = vunpack.c.l.b16 %v8125
    %v8843 = vunpack.c.h.b16 %v8125
    %v8844 = vunpack.c.l.b16 %v8126
    %v8845 = vunpack.c.h.b16 %v8126
    %v8846 = vunpack.c.l.b16 %v8127
    %v8847 = vunpack.c.h.b16 %v8127
    %v8848 = vunpack.c.l.b16 %v8128
    %v8849 = vunpack.c.l.b16 %v8129
    %v8850 = vunpack.c.h.b16 %v8129
    %v8851 = vunpack.c.l.b16 %v8130
    %v8852 = vunpack.c.h.b16 %v8130
    %v8853 = vunpack.c.l.b16 %v8131
    %v8854 = vunpack.c.h.b16 %v8131
    %v8855 = vunpack.c.l.b16 %v8132
    %v8856 = vunpack.c.l.b16 %v8133
    %v8857 = vunpack.c.h.b16 %v8133
    %v8858 = vunpack.c.l.b16 %v8134
    %v8859 = vunpack.c.h.b16 %v8134
    %v8860 = vunpack.c.l.b16 %v8135
    %v8861 = vunpack.c.h.b16 %v8135
    %v8862 = vunpack.c.l.b16 %v8136
    %v8863 = vunpack.c.l.b16 %v8137
    %v8864 = vunpack.c.h.b16 %v8137
    %v8865 = vunpack.c.l.b16 %v8138
    %v8866 = vunpack.c.h.b16 %v8138
    %v8867 = vunpack.c.l.b16 %v8139
    %v8868 = vunpack.c.h.b16 %v8139
    %v8869 = vunpack.c.l.b16 %v8140
    %v8870 = vunpack.c.l.b16 %v8141
    %v8871 = vunpack.c.h.b16 %v8141
    %v8872 = vunpack.c.l.b16 %v8142
    %v8873 = vunpack.c.h.b16 %v8142
    %v8874 = vunpack.c.l.b16 %v8143
    %v8875 = vunpack.c.h.b16 %v8143
    %v8876 = vunpack.c.l.b16 %v8144
    %v8877 = vunpack.c.l.b16 %v8145
    %v8878 = vunpack.c.h.b16 %v8145
    %v8879 = vunpack.c.l.b16 %v8146
    %v8880 = vunpack.c.h.b16 %v8146
    %v8881 = vunpack.c.l.b16 %v8147
    %v8882 = vunpack.c.h.b16 %v8147
    %v8883 = vunpack.c.l.b16 %v8148
    %v8884 = vunpack.c.l.b16 %v8149
    %v8885 = vunpack.c.h.b16 %v8149
    %v8886 = vunpack.c.l.b16 %v8150
    %v8887 = vunpack.c.h.b16 %v8150
    %v8888 = vunpack.c.l.b16 %v8151
    %v8889 = vunpack.c.h.b16 %v8151
    %v8890 = vunpack.c.l.b16 %v8152
    %v8891 = vunpack.c.l.b16 %v8153
    %v8892 = vunpack.c.h.b16 %v8153
    %v8893 = vunpack.c.l.b16 %v8154
    %v8894 = vunpack.c.h.b16 %v8154
    %v8895 = vunpack.c.l.b16 %v8155
    %v8896 = vunpack.c.h.b16 %v8155
    %v8897 = vunpack.c.l.b16 %v8156
    %v8898 = vpack.c.b16 %v8457, %v8450
    %v8899 = vpack.c.b16 %v8458, %v8451
    %v8900 = vpack.c.b16 %v8459, %v8452
    %v8901 = vpack.c.b16 %v8460, %v8453
    %v8902 = vpack.c.b16 %v8461, %v8454
    %v8903 = vpack.c.b16 %v8462, %v8455
    %v8904 = vpack.c.b16 %v8463, %v8456
    %v8905 = vpack.c.b16 %v8471, %v8464
    %v8906 = vpack.c.b16 %v8472, %v8465
    %v8907 = vpack.c.b16 %v8473, %v8466
    %v8908 = vpack.c.b16 %v8474, %v8467
    %v8909 = vpack.c.b16 %v8475, %v8468
    %v8910 = vpack.c.b16 %v8476, %v8469
    %v8911 = vpack.c.b16 %v8477, %v8470
    %v8912 = vpack.c.b16 %v8485, %v8478
    %v8913 = vpack.c.b16 %v8486, %v8479
    %v8914 = vpack.c.b16 %v8487, %v8480
    %v8915 = vpack.c.b16 %v8488, %v8481
    %v8916 = vpack.c.b16 %v8489, %v8482
    %v8917 = vpack.c.b16 %v8490, %v8483
    %v8918 = vpack.c.b16 %v8491, %v8484
    %v8919 = vpack.c.b16 %v8499, %v8492
    %v8920 = vpack.c.b16 %v8500, %v8493
    %v8921 = vpack.c.b16 %v8501, %v8494
    %v8922 = vpack.c.b16 %v8502, %v8495
    %v8923 = vpack.c.b16 %v8503, %v8496
    %v8924 = vpack.c.b16 %v8504, %v8497
    %v8925 = vpack.c.b16 %v8505, %v8498
    %v8926 = vpack.c.b16 %v8513, %v8506
    %v8927 = vpack.c.b16 %v8514, %v8507
    %v8928 = vpack.c.b16 %v8515, %v8508
    %v8929 = vpack.c.b16 %v8516, %v8509
    %v8930 = vpack.c.b16 %v8517, %v8510
    %v8931 = vpack.c.b16 %v8518, %v8511
    %v8932 = vpack.c.b16 %v8519, %v8512
    %v8933 = vpack.c.b16 %v8527, %v8520
    %v8934 = vpack.c.b16 %v8528, %v8521
    %v8935 = vpack.c.b16 %v8529, %v8522
    %v8936 = vpack.c.b16 %v8530, %v8523
    %v8937 = vpack.c.b16 %v8531, %v8524
    %v8938 = vpack.c.b16 %v8532, %v8525
    %v8939 = vpack.c.b16 %v8533, %v8526
    %v8940 = vpack.c.b16 %v8541, %v8534
    %v8941 = vpack.c.b16 %v8542, %v8535
    %v8942 = vpack.c.b16 %v8543, %v8536
    %v8943 = vpack.c.b16 %v8544, %v8537
    %v8944 = vpack.c.b16 %v8545, %v8538
    %v8945 = vpack.c.b16 %v8546, %v8539
    %v8946 = vpack.c.b16 %v8547, %v8540
    %v8947 = vpack.c.b16 %v8555, %v8548
    %v8948 = vpack.c.b16 %v8556, %v8549
    %v8949 = vpack.c.b16 %v8557, %v8550
    %v8950 = vpack.c.b16 %v8558, %v8551
    %v8951 = vpack.c.b16 %v8559, %v8552
    %v8952 = vpack.c.b16 %v8560, %v8553
    %v8953 = vpack.c.b16 %v8561, %v8554
    %v8954 = vpack.c.b16 %v8569, %v8562
    %v8955 = vpack.c.b16 %v8570, %v8563
    %v8956 = vpack.c.b16 %v8571, %v8564
    %v8957 = vpack.c.b16 %v8572, %v8565
    %v8958 = vpack.c.b16 %v8573, %v8566
    %v8959 = vpack.c.b16 %v8574, %v8567
    %v8960 = vpack.c.b16 %v8575, %v8568
    %v8961 = vpack.c.b16 %v8583, %v8576
    %v8962 = vpack.c.b16 %v8584, %v8577
    %v8963 = vpack.c.b16 %v8585, %v8578
    %v8964 = vpack.c.b16 %v8586, %v8579
    %v8965 = vpack.c.b16 %v8587, %v8580
    %v8966 = vpack.c.b16 %v8588, %v8581
    %v8967 = vpack.c.b16 %v8589, %v8582
    %v8968 = vpack.c.b16 %v8597, %v8590
    %v8969 = vpack.c.b16 %v8598, %v8591
    %v8970 = vpack.c.b16 %v8599, %v8592
    %v8971 = vpack.c.b16 %v8600, %v8593
    %v8972 = vpack.c.b16 %v8601, %v8594
    %v8973 = vpack.c.b16 %v8602, %v8595
    %v8974 = vpack.c.b16 %v8603, %v8596
    %v8975 = vpack.c.b16 %v8611, %v8604
    %v8976 = vpack.c.b16 %v8612, %v8605
    %v8977 = vpack.c.b16 %v8613, %v8606
    %v8978 = vpack.c.b16 %v8614, %v8607
    %v8979 = vpack.c.b16 %v8615, %v8608
    %v8980 = vpack.c.b16 %v8616, %v8609
    %v8981 = vpack.c.b16 %v8617, %v8610
    %v8982 = vpack.c.b16 %v8625, %v8618
    %v8983 = vpack.c.b16 %v8626, %v8619
    %v8984 = vpack.c.b16 %v8627, %v8620
    %v8985 = vpack.c.b16 %v8628, %v8621
    %v8986 = vpack.c.b16 %v8629, %v8622
    %v8987 = vpack.c.b16 %v8630, %v8623
    %v8988 = vpack.c.b16 %v8631, %v8624
    %v8989 = vpack.c.b16 %v8639, %v8632
    %v8990 = vpack.c.b16 %v8640, %v8633
    %v8991 = vpack.c.b16 %v8641, %v8634
    %v8992 = vpack.c.b16 %v8642, %v8635
    %v8993 = vpack.c.b16 %v8643, %v8636
    %v8994 = vpack.c.b16 %v8644, %v8637
    %v8995 = vpack.c.b16 %v8645, %v8638
    %v8996 = vpack.c.b16 %v8653, %v8646
    %v8997 = vpack.c.b16 %v8654, %v8647
    %v8998 = vpack.c.b16 %v8655, %v8648
    %v8999 = vpack.c.b16 %v8656, %v8649
    %v9000 = vpack.c.b16 %v8657, %v8650
    %v9001 = vpack.c.b16 %v8658, %v8651
    %v9002 = vpack.c.b16 %v8659, %v8652
    %v9003 = vpack.c.b16 %v8667, %v8660
    %v9004 = vpack.c.b16 %v8668, %v8661
    %v9005 = vpack.c.b16 %v8669, %v8662
    %v9006 = vpack.c.b16 %v8670, %v8663
    %v9007 = vpack.c.b16 %v8671, %v8664
    %v9008 = vpack.c.b16 %v8672, %v8665
    %v9009 = vpack.c.b16 %v8673, %v8666
    %v9010 = vpack.c.b16 %v8681, %v8674
    %v9011 = vpack.c.b16 %v8682, %v8675
    %v9012 = vpack.c.b16 %v8683, %v8676
    %v9013 = vpack.c.b16 %v8684, %v8677
    %v9014 = vpack.c.b16 %v8685, %v8678
    %v9015 = vpack.c.b16 %v8686, %v8679
    %v9016 = vpack.c.b16 %v8687, %v8680
    %v9017 = vpack.c.b16 %v8695, %v8688
    %v9018 = vpack.c.b16 %v8696, %v8689
    %v9019 = vpack.c.b16 %v8697, %v8690
    %v9020 = vpack.c.b16 %v8698, %v8691
    %v9021 = vpack.c.b16 %v8699, %v8692
    %v9022 = vpack.c.b16 %v8700, %v8693
    %v9023 = vpack.c.b16 %v8701, %v8694
    %v9024 = vpack.c.b16 %v8709, %v8702
    %v9025 = vpack.c.b16 %v8710, %v8703
    %v9026 = vpack.c.b16 %v8711, %v8704
    %v9027 = vpack.c.b16 %v8712, %v8705
    %v9028 = vpack.c.b16 %v8713, %v8706
    %v9029 = vpack.c.b16 %v8714, %v8707
    %v9030 = vpack.c.b16 %v8715, %v8708
    %v9031 = vpack.c.b16 %v8723, %v8716
    %v9032 = vpack.c.b16 %v8724, %v8717
    %v9033 = vpack.c.b16 %v8725, %v8718
    %v9034 = vpack.c.b16 %v8726, %v8719
    %v9035 = vpack.c.b16 %v8727, %v8720
    %v9036 = vpack.c.b16 %v8728, %v8721
    %v9037 = vpack.c.b16 %v8729, %v8722
    %v9038 = vpack.c.b16 %v8737, %v8730
    %v9039 = vpack.c.b16 %v8738, %v8731
    %v9040 = vpack.c.b16 %v8739, %v8732
    %v9041 = vpack.c.b16 %v8740, %v8733
    %v9042 = vpack.c.b16 %v8741, %v8734
    %v9043 = vpack.c.b16 %v8742, %v8735
    %v9044 = vpack.c.b16 %v8743, %v8736
    %v9045 = vpack.c.b16 %v8751, %v8744
    %v9046 = vpack.c.b16 %v8752, %v8745
    %v9047 = vpack.c.b16 %v8753, %v8746
    %v9048 = vpack.c.b16 %v8754, %v8747
    %v9049 = vpack.c.b16 %v8755, %v8748
    %v9050 = vpack.c.b16 %v8756, %v8749
    %v9051 = vpack.c.b16 %v8757, %v8750
    %v9052 = vpack.c.b16 %v8765, %v8758
    %v9053 = vpack.c.b16 %v8766, %v8759
    %v9054 = vpack.c.b16 %v8767, %v8760
    %v9055 = vpack.c.b16 %v8768, %v8761
    %v9056 = vpack.c.b16 %v8769, %v8762
    %v9057 = vpack.c.b16 %v8770, %v8763
    %v9058 = vpack.c.b16 %v8771, %v8764
    %v9059 = vpack.c.b16 %v8779, %v8772
    %v9060 = vpack.c.b16 %v8780, %v8773
    %v9061 = vpack.c.b16 %v8781, %v8774
    %v9062 = vpack.c.b16 %v8782, %v8775
    %v9063 = vpack.c.b16 %v8783, %v8776
    %v9064 = vpack.c.b16 %v8784, %v8777
    %v9065 = vpack.c.b16 %v8785, %v8778
    %v9066 = vpack.c.b16 %v8793, %v8786
    %v9067 = vpack.c.b16 %v8794, %v8787
    %v9068 = vpack.c.b16 %v8795, %v8788
    %v9069 = vpack.c.b16 %v8796, %v8789
    %v9070 = vpack.c.b16 %v8797, %v8790
    %v9071 = vpack.c.b16 %v8798, %v8791
    %v9072 = vpack.c.b16 %v8799, %v8792
    %v9073 = vpack.c.b16 %v8807, %v8800
    %v9074 = vpack.c.b16 %v8808, %v8801
    %v9075 = vpack.c.b16 %v8809, %v8802
    %v9076 = vpack.c.b16 %v8810, %v8803
    %v9077 = vpack.c.b16 %v8811, %v8804
    %v9078 = vpack.c.b16 %v8812, %v8805
    %v9079 = vpack.c.b16 %v8813, %v8806
    %v9080 = vpack.c.b16 %v8821, %v8814
    %v9081 = vpack.c.b16 %v8822, %v8815
    %v9082 = vpack.c.b16 %v8823, %v8816
    %v9083 = vpack.c.b16 %v8824, %v8817
    %v9084 = vpack.c.b16 %v8825, %v8818
    %v9085 = vpack.c.b16 %v8826, %v8819
    %v9086 = vpack.c.b16 %v8827, %v8820
    %v9087 = vpack.c.b16 %v8835, %v8828
    %v9088 = vpack.c.b16 %v8836, %v8829
    %v9089 = vpack.c.b16 %v8837, %v8830
    %v9090 = vpack.c.b16 %v8838, %v8831
    %v9091 = vpack.c.b16 %v8839, %v8832
    %v9092 = vpack.c.b16 %v8840, %v8833
    %v9093 = vpack.c.b16 %v8841, %v8834
    %v9094 = vpack.c.b16 %v8849, %v8842
    %v9095 = vpack.c.b16 %v8850, %v8843
    %v9096 = vpack.c.b16 %v8851, %v8844
    %v9097 = vpack.c.b16 %v8852, %v8845
    %v9098 = vpack.c.b16 %v8853, %v8846
    %v9099 = vpack.c.b16 %v8854, %v8847
    %v9100 = vpack.c.b16 %v8855, %v8848
    %v9101 = vpack.c.b16 %v8863, %v8856
    %v9102 = vpack.c.b16 %v8864, %v8857
    %v9103 = vpack.c.b16 %v8865, %v8858
    %v9104 = vpack.c.b16 %v8866, %v8859
    %v9105 = vpack.c.b16 %v8867, %v8860
    %v9106 = vpack.c.b16 %v8868, %v8861
    %v9107 = vpack.c.b16 %v8869, %v8862
    %v9108 = vpack.c.b16 %v8877, %v8870
    %v9109 = vpack.c.b16 %v8878, %v8871
    %v9110 = vpack.c.b16 %v8879, %v8872
    %v9111 = vpack.c.b16 %v8880, %v8873
    %v9112 = vpack.c.b16 %v8881, %v8874
    %v9113 = vpack.c.b16 %v8882, %v8875
    %v9114 = vpack.c.b16 %v8883, %v8876
    %v9115 = vpack.c.b16 %v8891, %v8884
    %v9116 = vpack.c.b16 %v8892, %v8885
    %v9117 = vpack.c.b16 %v8893, %v8886
    %v9118 = vpack.c.b16 %v8894, %v8887
    %v9119 = vpack.c.b16 %v8895, %v8888
    %v9120 = vpack.c.b16 %v8896, %v8889
    %v9121 = vpack.c.b16 %v8897, %v8890
    %9346 = vmatprep.subr.bf16.mxu0 %v8899
    %9347 = vmatpush1.bf16.msra.mxu0 %v8898
    %9348 = vmatprep.subr.bf16.mxu0 %v8906
    %9349 = vmatpush1.bf16.msra.mxu0 %v8905
    %9350 = vmatprep.subr.bf16.mxu0 %v8913
    %9351 = vmatpush1.bf16.msra.mxu0 %v8912
    %9352 = vmatprep.subr.bf16.mxu0 %v8920
    %9353 = vmatpush1.bf16.msra.mxu0 %v8919
    %9354 = vmatprep.subr.bf16.mxu0 %v8927
    %9355 = vmatpush1.bf16.msra.mxu0 %v8926
    %9356 = vmatprep.subr.bf16.mxu0 %v8934
    %9357 = vmatpush1.bf16.msra.mxu0 %v8933
    %9358 = vmatprep.subr.bf16.mxu0 %v8941
    %9359 = vmatpush1.bf16.msra.mxu0 %v8940
    %9360 = vmatprep.subr.bf16.mxu0 %v8948
    %9361 = vmatpush1.bf16.msra.mxu0 %v8947
    %9362 = vmatprep.subr.bf16.mxu0 %v8955
    %9363 = vmatpush1.bf16.msra.mxu0 %v8954
    %9364 = vmatprep.subr.bf16.mxu0 %v8962
    %9365 = vmatpush1.bf16.msra.mxu0 %v8961
    %9366 = vmatprep.subr.bf16.mxu0 %v8969
    %9367 = vmatpush1.bf16.msra.mxu0 %v8968
    %9368 = vmatprep.subr.bf16.mxu0 %v8976
    %9369 = vmatpush1.bf16.msra.mxu0 %v8975
    %9370 = vmatprep.subr.bf16.mxu0 %v8983
    %9371 = vmatpush1.bf16.msra.mxu0 %v8982
    %9372 = vmatprep.subr.bf16.mxu0 %v8990
    %9373 = vmatpush1.bf16.msra.mxu0 %v8989
    %9374 = vmatprep.subr.bf16.mxu0 %v8997
    %9375 = vmatpush1.bf16.msra.mxu0 %v8996
    %9376 = vmatprep.subr.bf16.mxu0 %v9004
    %9377 = vmatpush1.bf16.msra.mxu0 %v9003
    %9378 = vmatprep.mubr.bf16.mxu0 %v7898
    %9379 = vmatmul.mubr.bf16.gmra.mrb[0].mxu0 %v7897
    %v9380 = vpop.f32.mrb[0].mxu0
    %v9381 = vadd.f32 %v8162, %v9380
    %v9382 = vpop.f32.mrb[0].mxu0
    %v9383 = vadd.f32 %v8166, %v9382
    %v9384 = vpop.f32.mrb[0].mxu0
    %v9385 = vadd.f32 %v8162, %v9384
    %v9386 = vpop.f32.mrb[0].mxu0
    %v9387 = vadd.f32 %v8166, %v9386
    %9388 = vdwg.mxu0
    %9389 = vmatprep.subr.bf16.mxu0 %v9011
    %9390 = vmatpush1.bf16.msra.mxu0 %v9010
    %9391 = vmatprep.subr.bf16.mxu0 %v9018
    %9392 = vmatpush1.bf16.msra.mxu0 %v9017
    %9393 = vmatprep.subr.bf16.mxu0 %v9025
    %9394 = vmatpush1.bf16.msra.mxu0 %v9024
    %9395 = vmatprep.subr.bf16.mxu0 %v9032
    %9396 = vmatpush1.bf16.msra.mxu0 %v9031
    %9397 = vmatprep.subr.bf16.mxu0 %v9039
    %9398 = vmatpush1.bf16.msra.mxu0 %v9038
    %9399 = vmatprep.subr.bf16.mxu0 %v9046
    %9400 = vmatpush1.bf16.msra.mxu0 %v9045
    %9401 = vmatprep.subr.bf16.mxu0 %v9053
    %9402 = vmatpush1.bf16.msra.mxu0 %v9052
    %9403 = vmatprep.subr.bf16.mxu0 %v9060
    %9404 = vmatpush1.bf16.msra.mxu0 %v9059
    %9405 = vmatprep.subr.bf16.mxu0 %v9067
    %9406 = vmatpush1.bf16.msra.mxu0 %v9066
    %9407 = vmatprep.subr.bf16.mxu0 %v9074
    %9408 = vmatpush1.bf16.msra.mxu0 %v9073
    %9409 = vmatprep.subr.bf16.mxu0 %v9081
    %9410 = vmatpush1.bf16.msra.mxu0 %v9080
    %9411 = vmatprep.subr.bf16.mxu0 %v9088
    %9412 = vmatpush1.bf16.msra.mxu0 %v9087
    %9413 = vmatprep.subr.bf16.mxu0 %v9095
    %9414 = vmatpush1.bf16.msra.mxu0 %v9094
    %9415 = vmatprep.subr.bf16.mxu0 %v9102
    %9416 = vmatpush1.bf16.msra.mxu0 %v9101
    %9417 = vmatprep.subr.bf16.mxu0 %v9109
    %9418 = vmatpush1.bf16.msra.mxu0 %v9108
    %9419 = vmatprep.subr.bf16.mxu0 %v9116
    %9420 = vmatpush1.bf16.msra.mxu0 %v9115
    %9421 = vmatprep.mubr.bf16.mxu0 %v7900
    %9422 = vmatmul.mubr.bf16.gmra.mrb[0].mxu0 %v7899
    %v9423 = vpop.f32.mrb[0].mxu0
    %v9424 = vadd.f32 %v9381, %v9423
    %v9425 = vpop.f32.mrb[0].mxu0
    %v9426 = vadd.f32 %v9383, %v9425
    %v9427 = vpop.f32.mrb[0].mxu0
    %v9428 = vadd.f32 %v9385, %v9427
    %v9429 = vpop.f32.mrb[0].mxu0
    %v9430 = vadd.f32 %v9387, %v9429
    %9431 = vdwg.mxu0
    %9432 = vmatprep.subr.bf16.mxu0 %v8901
    %9433 = vmatpush1.bf16.msra.mxu0 %v8900
    %9434 = vmatprep.subr.bf16.mxu0 %v8908
    %9435 = vmatpush1.bf16.msra.mxu0 %v8907
    %9436 = vmatprep.subr.bf16.mxu0 %v8915
    %9437 = vmatpush1.bf16.msra.mxu0 %v8914
    %9438 = vmatprep.subr.bf16.mxu0 %v8922
    %9439 = vmatpush1.bf16.msra.mxu0 %v8921
    %9440 = vmatprep.subr.bf16.mxu0 %v8929
    %9441 = vmatpush1.bf16.msra.mxu0 %v8928
    %9442 = vmatprep.subr.bf16.mxu0 %v8936
    %9443 = vmatpush1.bf16.msra.mxu0 %v8935
    %9444 = vmatprep.subr.bf16.mxu0 %v8943
    %9445 = vmatpush1.bf16.msra.mxu0 %v8942
    %9446 = vmatprep.subr.bf16.mxu0 %v8950
    %9447 = vmatpush1.bf16.msra.mxu0 %v8949
    %9448 = vmatprep.subr.bf16.mxu0 %v8957
    %9449 = vmatpush1.bf16.msra.mxu0 %v8956
    %9450 = vmatprep.subr.bf16.mxu0 %v8964
    %9451 = vmatpush1.bf16.msra.mxu0 %v8963
    %9452 = vmatprep.subr.bf16.mxu0 %v8971
    %9453 = vmatpush1.bf16.msra.mxu0 %v8970
    %9454 = vmatprep.subr.bf16.mxu0 %v8978
    %9455 = vmatpush1.bf16.msra.mxu0 %v8977
    %9456 = vmatprep.subr.bf16.mxu0 %v8985
    %9457 = vmatpush1.bf16.msra.mxu0 %v8984
    %9458 = vmatprep.subr.bf16.mxu0 %v8992
    %9459 = vmatpush1.bf16.msra.mxu0 %v8991
    %9460 = vmatprep.subr.bf16.mxu0 %v8999
    %9461 = vmatpush1.bf16.msra.mxu0 %v8998
    %9462 = vmatprep.subr.bf16.mxu0 %v9006
    %9463 = vmatpush1.bf16.msra.mxu0 %v9005
    %9464 = vmatprep.mubr.bf16.mxu0 %v7898
    %9465 = vmatmul.mubr.bf16.gmra.mrb[0].mxu0 %v7897
    %v9466 = vpop.f32.mrb[0].mxu0
    %v9467 = vadd.f32 %v8170, %v9466
    %v9468 = vpop.f32.mrb[0].mxu0
    %v9469 = vadd.f32 %v8174, %v9468
    %v9470 = vpop.f32.mrb[0].mxu0
    %v9471 = vadd.f32 %v8170, %v9470
    %v9472 = vpop.f32.mrb[0].mxu0
    %v9473 = vadd.f32 %v8174, %v9472
    %9474 = vdwg.mxu0
    %9475 = vmatprep.subr.bf16.mxu0 %v9013
    %9476 = vmatpush1.bf16.msra.mxu0 %v9012
    %9477 = vmatprep.subr.bf16.mxu0 %v9020
    %9478 = vmatpush1.bf16.msra.mxu0 %v9019
    %9479 = vmatprep.subr.bf16.mxu0 %v9027
    %9480 = vmatpush1.bf16.msra.mxu0 %v9026
    %9481 = vmatprep.subr.bf16.mxu0 %v9034
    %9482 = vmatpush1.bf16.msra.mxu0 %v9033
    %9483 = vmatprep.subr.bf16.mxu0 %v9041
    %9484 = vmatpush1.bf16.msra.mxu0 %v9040
    %9485 = vmatprep.subr.bf16.mxu0 %v9048
    %9486 = vmatpush1.bf16.msra.mxu0 %v9047
    %9487 = vmatprep.subr.bf16.mxu0 %v9055
    %9488 = vmatpush1.bf16.msra.mxu0 %v9054
    %9489 = vmatprep.subr.bf16.mxu0 %v9062
    %9490 = vmatpush1.bf16.msra.mxu0 %v9061
    %9491 = vmatprep.subr.bf16.mxu0 %v9069
    %9492 = vmatpush1.bf16.msra.mxu0 %v9068
    %9493 = vmatprep.subr.bf16.mxu0 %v9076
    %9494 = vmatpush1.bf16.msra.mxu0 %v9075
    %9495 = vmatprep.subr.bf16.mxu0 %v9083
    %9496 = vmatpush1.bf16.msra.mxu0 %v9082
    %9497 = vmatprep.subr.bf16.mxu0 %v9090
    %9498 = vmatpush1.bf16.msra.mxu0 %v9089
    %9499 = vmatprep.subr.bf16.mxu0 %v9097
    %9500 = vmatpush1.bf16.msra.mxu0 %v9096
    %9501 = vmatprep.subr.bf16.mxu0 %v9104
    %9502 = vmatpush1.bf16.msra.mxu0 %v9103
    %9503 = vmatprep.subr.bf16.mxu0 %v9111
    %9504 = vmatpush1.bf16.msra.mxu0 %v9110
    %9505 = vmatprep.subr.bf16.mxu0 %v9118
    %9506 = vmatpush1.bf16.msra.mxu0 %v9117
    %9507 = vmatprep.mubr.bf16.mxu0 %v7900
    %9508 = vmatmul.mubr.bf16.gmra.mrb[0].mxu0 %v7899
    %v9509 = vpop.f32.mrb[0].mxu0
    %v9510 = vadd.f32 %v9467, %v9509
    %v9511 = vpop.f32.mrb[0].mxu0
    %v9512 = vadd.f32 %v9469, %v9511
    %v9513 = vpop.f32.mrb[0].mxu0
    %v9514 = vadd.f32 %v9471, %v9513
    %v9515 = vpop.f32.mrb[0].mxu0
    %v9516 = vadd.f32 %v9473, %v9515
    %9517 = vdwg.mxu0
    %9518 = vmatprep.subr.bf16.mxu0 %v8903
    %9519 = vmatpush1.bf16.msra.mxu0 %v8902
    %9520 = vmatprep.subr.bf16.mxu0 %v8910
    %9521 = vmatpush1.bf16.msra.mxu0 %v8909
    %9522 = vmatprep.subr.bf16.mxu0 %v8917
    %9523 = vmatpush1.bf16.msra.mxu0 %v8916
    %9524 = vmatprep.subr.bf16.mxu0 %v8924
    %9525 = vmatpush1.bf16.msra.mxu0 %v8923
    %9526 = vmatprep.subr.bf16.mxu0 %v8931
    %9527 = vmatpush1.bf16.msra.mxu0 %v8930
    %9528 = vmatprep.subr.bf16.mxu0 %v8938
    %9529 = vmatpush1.bf16.msra.mxu0 %v8937
    %9530 = vmatprep.subr.bf16.mxu0 %v8945
    %9531 = vmatpush1.bf16.msra.mxu0 %v8944
    %9532 = vmatprep.subr.bf16.mxu0 %v8952
    %9533 = vmatpush1.bf16.msra.mxu0 %v8951
    %9534 = vmatprep.subr.bf16.mxu0 %v8959
    %9535 = vmatpush1.bf16.msra.mxu0 %v8958
    %9536 = vmatprep.subr.bf16.mxu0 %v8966
    %9537 = vmatpush1.bf16.msra.mxu0 %v8965
    %9538 = vmatprep.subr.bf16.mxu0 %v8973
    %9539 = vmatpush1.bf16.msra.mxu0 %v8972
    %9540 = vmatprep.subr.bf16.mxu0 %v8980
    %9541 = vmatpush1.bf16.msra.mxu0 %v8979
    %9542 = vmatprep.subr.bf16.mxu0 %v8987
    %9543 = vmatpush1.bf16.msra.mxu0 %v8986
    %9544 = vmatprep.subr.bf16.mxu0 %v8994
    %9545 = vmatpush1.bf16.msra.mxu0 %v8993
    %9546 = vmatprep.subr.bf16.mxu0 %v9001
    %9547 = vmatpush1.bf16.msra.mxu0 %v9000
    %9548 = vmatprep.subr.bf16.mxu0 %v9008
    %9549 = vmatpush1.bf16.msra.mxu0 %v9007
    %9550 = vmatprep.mubr.bf16.mxu0 %v7898
    %9551 = vmatmul.mubr.bf16.gmra.mrb[0].mxu0 %v7897
    %v9552 = vpop.f32.mrb[0].mxu0
    %v9553 = vadd.f32 %v8178, %v9552
    %v9554 = vpop.f32.mrb[0].mxu0
    %v9555 = vadd.f32 %v8182, %v9554
    %v9556 = vpop.f32.mrb[0].mxu0
    %v9557 = vadd.f32 %v8178, %v9556
    %v9558 = vpop.f32.mrb[0].mxu0
    %v9559 = vadd.f32 %v8182, %v9558
    %9560 = vdwg.mxu0
    %9561 = vmatprep.subr.bf16.mxu0 %v9015
    %9562 = vmatpush1.bf16.msra.mxu0 %v9014
    %9563 = vmatprep.subr.bf16.mxu0 %v9022
    %9564 = vmatpush1.bf16.msra.mxu0 %v9021
    %9565 = vmatprep.subr.bf16.mxu0 %v9029
    %9566 = vmatpush1.bf16.msra.mxu0 %v9028
    %9567 = vmatprep.subr.bf16.mxu0 %v9036
    %9568 = vmatpush1.bf16.msra.mxu0 %v9035
    %9569 = vmatprep.subr.bf16.mxu0 %v9043
    %9570 = vmatpush1.bf16.msra.mxu0 %v9042
    %9571 = vmatprep.subr.bf16.mxu0 %v9050
    %9572 = vmatpush1.bf16.msra.mxu0 %v9049
    %9573 = vmatprep.subr.bf16.mxu0 %v9057
    %9574 = vmatpush1.bf16.msra.mxu0 %v9056
    %9575 = vmatprep.subr.bf16.mxu0 %v9064
    %9576 = vmatpush1.bf16.msra.mxu0 %v9063
    %9577 = vmatprep.subr.bf16.mxu0 %v9071
    %9578 = vmatpush1.bf16.msra.mxu0 %v9070
    %9579 = vmatprep.subr.bf16.mxu0 %v9078
    %9580 = vmatpush1.bf16.msra.mxu0 %v9077
    %9581 = vmatprep.subr.bf16.mxu0 %v9085
    %9582 = vmatpush1.bf16.msra.mxu0 %v9084
    %9583 = vmatprep.subr.bf16.mxu0 %v9092
    %9584 = vmatpush1.bf16.msra.mxu0 %v9091
    %9585 = vmatprep.subr.bf16.mxu0 %v9099
    %9586 = vmatpush1.bf16.msra.mxu0 %v9098
    %9587 = vmatprep.subr.bf16.mxu0 %v9106
    %9588 = vmatpush1.bf16.msra.mxu0 %v9105
    %9589 = vmatprep.subr.bf16.mxu0 %v9113
    %9590 = vmatpush1.bf16.msra.mxu0 %v9112
    %9591 = vmatprep.subr.bf16.mxu0 %v9120
    %9592 = vmatpush1.bf16.msra.mxu0 %v9119
    %9593 = vmatprep.mubr.bf16.mxu0 %v7900
    %9594 = vmatmul.mubr.bf16.gmra.mrb[0].mxu0 %v7899
    %v9595 = vpop.f32.mrb[0].mxu0
    %v9596 = vadd.f32 %v9553, %v9595
    %v9597 = vpop.f32.mrb[0].mxu0
    %v9598 = vadd.f32 %v9555, %v9597
    %v9599 = vpop.f32.mrb[0].mxu0
    %v9600 = vadd.f32 %v9557, %v9599
    %v9601 = vpop.f32.mrb[0].mxu0
    %v9602 = vadd.f32 %v9559, %v9601
    %9603 = vdwg.mxu0
    %9604 = vmatprep.subr.bf16.mxu0 0
    %9605 = vmatpush1.bf16.msra.mxu0 %v8904
    %9606 = vmatprep.subr.bf16.mxu0 0
    %9607 = vmatpush1.bf16.msra.mxu0 %v8911
    %9608 = vmatprep.subr.bf16.mxu0 0
    %9609 = vmatpush1.bf16.msra.mxu0 %v8918
    %9610 = vmatprep.subr.bf16.mxu0 0
    %9611 = vmatpush1.bf16.msra.mxu0 %v8925
    %9612 = vmatprep.subr.bf16.mxu0 0
    %9613 = vmatpush1.bf16.msra.mxu0 %v8932
    %9614 = vmatprep.subr.bf16.mxu0 0
    %9615 = vmatpush1.bf16.msra.mxu0 %v8939
    %9616 = vmatprep.subr.bf16.mxu0 0
    %9617 = vmatpush1.bf16.msra.mxu0 %v8946
    %9618 = vmatprep.subr.bf16.mxu0 0
    %9619 = vmatpush1.bf16.msra.mxu0 %v8953
    %9620 = vmatprep.subr.bf16.mxu0 0
    %9621 = vmatpush1.bf16.msra.mxu0 %v8960
    %9622 = vmatprep.subr.bf16.mxu0 0
    %9623 = vmatpush1.bf16.msra.mxu0 %v8967
    %9624 = vmatprep.subr.bf16.mxu0 0
    %9625 = vmatpush1.bf16.msra.mxu0 %v8974
    %9626 = vmatprep.subr.bf16.mxu0 0
    %9627 = vmatpush1.bf16.msra.mxu0 %v8981
    %9628 = vmatprep.subr.bf16.mxu0 0
    %9629 = vmatpush1.bf16.msra.mxu0 %v8988
    %9630 = vmatprep.subr.bf16.mxu0 0
    %9631 = vmatpush1.bf16.msra.mxu0 %v8995
    %9632 = vmatprep.subr.bf16.mxu0 0
    %9633 = vmatpush1.bf16.msra.mxu0 %v9002
    %9634 = vmatprep.subr.bf16.mxu0 0
    %9635 = vmatpush1.bf16.msra.mxu0 %v9009
    %9636 = vmatprep.mubr.bf16.mxu0 %v7898
    %9637 = vmatmul.mubr.bf16.gmra.mrb[0].mxu0 %v7897
    %v9638 = vpop.f32.mrb[0].mxu0
    %v9639 = vadd.f32 %v8186, %v9638
    %v9640 = vpop.f32.mrb[0].mxu0
    %v9641 = vpop.f32.mrb[0].mxu0
    %v9642 = vadd.f32 %v8186, %v9641
    %v9643 = vpop.f32.mrb[0].mxu0
    %9644 = vdwg.mxu0
    %9645 = vmatprep.subr.bf16.mxu0 0
    %9646 = vmatpush1.bf16.msra.mxu0 %v9016
    %9647 = vmatprep.subr.bf16.mxu0 0
    %9648 = vmatpush1.bf16.msra.mxu0 %v9023
    %9649 = vmatprep.subr.bf16.mxu0 0
    %9650 = vmatpush1.bf16.msra.mxu0 %v9030
    %9651 = vmatprep.subr.bf16.mxu0 0
    %9652 = vmatpush1.bf16.msra.mxu0 %v9037
    %9653 = vmatprep.subr.bf16.mxu0 0
    %9654 = vmatpush1.bf16.msra.mxu0 %v9044
    %9655 = vmatprep.subr.bf16.mxu0 0
    %9656 = vmatpush1.bf16.msra.mxu0 %v9051
    %9657 = vmatprep.subr.bf16.mxu0 0
    %9658 = vmatpush1.bf16.msra.mxu0 %v9058
    %9659 = vmatprep.subr.bf16.mxu0 0
    %9660 = vmatpush1.bf16.msra.mxu0 %v9065
    %9661 = vmatprep.subr.bf16.mxu0 0
    %9662 = vmatpush1.bf16.msra.mxu0 %v9072
    %9663 = vmatprep.subr.bf16.mxu0 0
    %9664 = vmatpush1.bf16.msra.mxu0 %v9079
    %9665 = vmatprep.subr.bf16.mxu0 0
    %9666 = vmatpush1.bf16.msra.mxu0 %v9086
    %9667 = vmatprep.subr.bf16.mxu0 0
    %9668 = vmatpush1.bf16.msra.mxu0 %v9093
    %9669 = vmatprep.subr.bf16.mxu0 0
    %9670 = vmatpush1.bf16.msra.mxu0 %v9100
    %9671 = vmatprep.subr.bf16.mxu0 0
    %9672 = vmatpush1.bf16.msra.mxu0 %v9107
    %9673 = vmatprep.subr.bf16.mxu0 0
    %9674 = vmatpush1.bf16.msra.mxu0 %v9114
    %9675 = vmatprep.subr.bf16.mxu0 0
    %9676 = vmatpush1.bf16.msra.mxu0 %v9121
    %9677 = vmatprep.mubr.bf16.mxu0 %v7900
    %9678 = vmatmul.mubr.bf16.gmra.mrb[0].mxu0 %v7899
    %v9679 = vpop.f32.mrb[0].mxu0
    %v9680 = vadd.f32 %v9639, %v9679
    %v9681 = vpop.f32.mrb[0].mxu0
    %v9682 = vpop.f32.mrb[0].mxu0
    %v9683 = vadd.f32 %v9642, %v9682
    %v9684 = vpop.f32.mrb[0].mxu0
    %9685 = vdwg.mxu0
    %v9686 = vmax.f32 %v9424, 0.0
    %v9687 = vmax.f32 %v9426, 0.0
    %v9688 = vmax.f32 %v9510, 0.0
    %v9689 = vmax.f32 %v9512, 0.0
    %v9690 = vmax.f32 %v9596, 0.0
    %v9691 = vmax.f32 %v9598, 0.0
    %v9692 = vmax.f32 %v9680, 0.0
    %v9693 = vmax.f32 %v9428, 0.0
    %v9694 = vmax.f32 %v9430, 0.0
    %v9695 = vmax.f32 %v9514, 0.0
    %v9696 = vmax.f32 %v9516, 0.0
    %v9697 = vmax.f32 %v9600, 0.0
    %v9698 = vmax.f32 %v9602, 0.0
    %v9699 = vmax.f32 %v9683, 0.0
    %v9700 = vpack.c.bf16 %v9693, %v9686
    %v9701 = vpack.c.bf16 %v9694, %v9687
    %v9702 = vpack.c.bf16 %v9695, %v9688
    %v9703 = vpack.c.bf16 %v9696, %v9689
    %v9704 = vpack.c.bf16 %v9697, %v9690
    %v9705 = vpack.c.bf16 %v9698, %v9691
    %v9706 = vpack.c.bf16 %v9699, %v9692
    %v9707 = vld [vmem:[#allocation28] sm:$0xff]
    %v9708 = vld [vmem:[#allocation28 + $0x8] sm:$0xff]
    %v9709 = vld [vmem:[#allocation28 + $0x10] sm:$0xff]
    %v9710 = vld [vmem:[#allocation28 + $0x18] sm:$0xff]
    %v9711 = vld [vmem:[#allocation28 + $0x20] sm:$0xff]
    %v9712 = vld [vmem:[#allocation28 + $0x28] sm:$0xff]
    %v9713 = vld [vmem:[#allocation28 + $0x30] sm:$0xff]
    %v9714 = vld [vmem:[#allocation28 + $0x38] sm:$0xff]
    %v9715 = vld [vmem:[#allocation28 + $0x40] sm:$0xff]
    %v9716 = vld [vmem:[#allocation28 + $0x48] sm:$0xff]
    %v9717 = vld [vmem:[#allocation28 + $0x50] sm:$0xff]
    %v9718 = vld [vmem:[#allocation28 + $0x58] sm:$0xff]
    %v9719 = vld [vmem:[#allocation28 + $0x60] sm:$0xff]
    %v9720 = vld [vmem:[#allocation28 + $0x68] sm:$0xff]
    %v9721 = vld [vmem:[#allocation28 + $0x70] sm:$0xff]
    %v9722 = vld [vmem:[#allocation28 + $0x78] sm:$0xff]
    %v9723 = vld [vmem:[#allocation28 + $0x80] sm:$0xff]
    %v9724 = vld [vmem:[#allocation28 + $0x88] sm:$0xff]
    %v9725 = vld [vmem:[#allocation28 + $0x90] sm:$0xff]
    %v9726 = vld [vmem:[#allocation28 + $0x98] sm:$0xff]
    %v9727 = vld [vmem:[#allocation28 + $0xa0] sm:$0xff]
    %v9728 = vld [vmem:[#allocation28 + $0xa8] sm:$0xff]
    %v9729 = vld [vmem:[#allocation28 + $0xb0] sm:$0xff]
    %v9730 = vld [vmem:[#allocation28 + $0xb8] sm:$0xff]
    %v9731 = vld [vmem:[#allocation28 + $0xc0] sm:$0xff]
    %v9732 = vld [vmem:[#allocation28 + $0xc8] sm:$0xff]
    %v9733 = vld [vmem:[#allocation28 + $0xd0] sm:$0xff]
    %v9734 = vld [vmem:[#allocation28 + $0xd8] sm:$0xff]
    %v9735 = vld [vmem:[#allocation28 + $0xe0] sm:$0xff]
    %v9736 = vld [vmem:[#allocation28 + $0xe8] sm:$0xff]
    %v9737 = vld [vmem:[#allocation28 + $0xf0] sm:$0xff]
    %v9738 = vld [vmem:[#allocation28 + $0xf8] sm:$0xff]
    %v9739 = vld [vmem:[#allocation28 + $0x100] sm:$0xff]
    %v9740 = vld [vmem:[#allocation28 + $0x108] sm:$0xff]
    %v9741 = vld [vmem:[#allocation28 + $0x110] sm:$0xff]
    %v9742 = vld [vmem:[#allocation28 + $0x118] sm:$0xff]
    %v9743 = vld [vmem:[#allocation28 + $0x120] sm:$0xff]
    %v9744 = vld [vmem:[#allocation28 + $0x128] sm:$0xff]
    %v9745 = vld [vmem:[#allocation28 + $0x130] sm:$0xff]
    %v9746 = vld [vmem:[#allocation28 + $0x138] sm:$0xff]
    %v9747 = vld [vmem:[#allocation28 + $0x140] sm:$0xff]
    %v9748 = vld [vmem:[#allocation28 + $0x148] sm:$0xff]
    %v9749 = vld [vmem:[#allocation28 + $0x150] sm:$0xff]
    %v9750 = vld [vmem:[#allocation28 + $0x158] sm:$0xff]
    %v9751 = vld [vmem:[#allocation28 + $0x160] sm:$0xff]
    %v9752 = vld [vmem:[#allocation28 + $0x168] sm:$0xff]
    %v9753 = vld [vmem:[#allocation28 + $0x170] sm:$0xff]
    %v9754 = vld [vmem:[#allocation28 + $0x178] sm:$0xff]
    %v9755 = vld [vmem:[#allocation28 + $0x180] sm:$0xff]
    %v9756 = vld [vmem:[#allocation28 + $0x188] sm:$0xff]
    %v9757 = vld [vmem:[#allocation28 + $0x190] sm:$0xff]
    %v9758 = vld [vmem:[#allocation28 + $0x198] sm:$0xff]
    %v9759 = vld [vmem:[#allocation28 + $0x1a0] sm:$0xff]
    %v9760 = vld [vmem:[#allocation28 + $0x1a8] sm:$0xff]
    %v9761 = vld [vmem:[#allocation28 + $0x1b0] sm:$0xff]
    %v9762 = vld [vmem:[#allocation28 + $0x1b8] sm:$0xff]
    %v9763 = vld [vmem:[#allocation28 + $0x1c0] sm:$0xff]
    %v9764 = vld [vmem:[#allocation28 + $0x1c8] sm:$0xff]
    %v9765 = vld [vmem:[#allocation28 + $0x1d0] sm:$0xff]
    %v9766 = vld [vmem:[#allocation28 + $0x1d8] sm:$0xff]
    %v9767 = vld [vmem:[#allocation28 + $0x1e0] sm:$0xff]
    %v9768 = vld [vmem:[#allocation28 + $0x1e8] sm:$0xff]
    %v9769 = vld [vmem:[#allocation28 + $0x1f0] sm:$0xff]
    %v9770 = vld [vmem:[#allocation28 + $0x1f8] sm:$0xff]
    %v9771 = vld [vmem:[#allocation28 + $0x200] sm:$0xff]
    %v9772 = vld [vmem:[#allocation28 + $0x208] sm:$0xff]
    %v9773 = vld [vmem:[#allocation28 + $0x210] sm:$0xff]
    %v9774 = vld [vmem:[#allocation28 + $0x218] sm:$0xff]
    %v9775 = vld [vmem:[#allocation28 + $0x220] sm:$0xff]
    %v9776 = vld [vmem:[#allocation28 + $0x228] sm:$0xff]
    %v9777 = vld [vmem:[#allocation28 + $0x230] sm:$0xff]
    %v9778 = vld [vmem:[#allocation28 + $0x238] sm:$0xff]
    %v9779 = vld [vmem:[#allocation28 + $0x240] sm:$0xff]
    %v9780 = vld [vmem:[#allocation28 + $0x248] sm:$0xff]
    %v9781 = vld [vmem:[#allocation28 + $0x250] sm:$0xff]
    %v9782 = vld [vmem:[#allocation28 + $0x258] sm:$0xff]
    %v9783 = vld [vmem:[#allocation28 + $0x260] sm:$0xff]
    %v9784 = vld [vmem:[#allocation28 + $0x268] sm:$0xff]
    %v9785 = vld [vmem:[#allocation28 + $0x270] sm:$0xff]
    %v9786 = vld [vmem:[#allocation28 + $0x278] sm:$0xff]
    %v9787 = vld [vmem:[#allocation28 + $0x280] sm:$0xff]
    %v9788 = vld [vmem:[#allocation28 + $0x288] sm:$0xff]
    %v9789 = vld [vmem:[#allocation28 + $0x290] sm:$0xff]
    %v9790 = vld [vmem:[#allocation28 + $0x298] sm:$0xff]
    %v9791 = vld [vmem:[#allocation28 + $0x2a0] sm:$0xff]
    %v9792 = vld [vmem:[#allocation28 + $0x2a8] sm:$0xff]
    %v9793 = vld [vmem:[#allocation28 + $0x2b0] sm:$0xff]
    %v9794 = vld [vmem:[#allocation28 + $0x2b8] sm:$0xff]
    %v9795 = vld [vmem:[#allocation28 + $0x2c0] sm:$0xff]
    %v9796 = vld [vmem:[#allocation28 + $0x2c8] sm:$0xff]
    %v9797 = vld [vmem:[#allocation28 + $0x2d0] sm:$0xff]
    %v9798 = vld [vmem:[#allocation28 + $0x2d8] sm:$0xff]
    %v9799 = vld [vmem:[#allocation28 + $0x2e0] sm:$0xff]
    %v9800 = vld [vmem:[#allocation28 + $0x2e8] sm:$0xff]
    %v9801 = vld [vmem:[#allocation28 + $0x2f0] sm:$0xff]
    %v9802 = vld [vmem:[#allocation28 + $0x2f8] sm:$0xff]
    %v9803 = vld [vmem:[#allocation28 + $0x300] sm:$0xff]
    %v9804 = vld [vmem:[#allocation28 + $0x308] sm:$0xff]
    %v9805 = vld [vmem:[#allocation28 + $0x310] sm:$0xff]
    %v9806 = vld [vmem:[#allocation28 + $0x318] sm:$0xff]
    %v9807 = vld [vmem:[#allocation28 + $0x320] sm:$0xff]
    %v9808 = vld [vmem:[#allocation28 + $0x328] sm:$0xff]
    %v9809 = vld [vmem:[#allocation28 + $0x330] sm:$0xff]
    %v9810 = vld [vmem:[#allocation28 + $0x338] sm:$0xff]
    %v9811 = vld [vmem:[#allocation28 + $0x340] sm:$0xff]
    %v9812 = vld [vmem:[#allocation28 + $0x348] sm:$0xff]
    %v9813 = vld [vmem:[#allocation28 + $0x350] sm:$0xff]
    %v9814 = vld [vmem:[#allocation28 + $0x358] sm:$0xff]
    %v9815 = vld [vmem:[#allocation28 + $0x360] sm:$0xff]
    %v9816 = vld [vmem:[#allocation28 + $0x368] sm:$0xff]
    %v9817 = vld [vmem:[#allocation28 + $0x370] sm:$0xff]
    %v9818 = vld [vmem:[#allocation28 + $0x378] sm:$0xff]
    %v9819 = vld [vmem:[#allocation28 + $0x380] sm:$0xff]
    %v9820 = vld [vmem:[#allocation28 + $0x388] sm:$0xff]
    %v9821 = vld [vmem:[#allocation28 + $0x390] sm:$0xff]
    %v9822 = vld [vmem:[#allocation28 + $0x398] sm:$0xff]
    %v9823 = vld [vmem:[#allocation28 + $0x3a0] sm:$0xff]
    %v9824 = vld [vmem:[#allocation28 + $0x3a8] sm:$0xff]
    %v9825 = vld [vmem:[#allocation28 + $0x3b0] sm:$0xff]
    %v9826 = vld [vmem:[#allocation28 + $0x3b8] sm:$0xff]
    %v9827 = vld [vmem:[#allocation28 + $0x3c0] sm:$0xff]
    %v9828 = vld [vmem:[#allocation28 + $0x3c8] sm:$0xff]
    %v9829 = vld [vmem:[#allocation28 + $0x3d0] sm:$0xff]
    %v9830 = vld [vmem:[#allocation28 + $0x3d8] sm:$0xff]
    %v9831 = vld [vmem:[#allocation28 + $0x3e0] sm:$0xff]
    %v9832 = vld [vmem:[#allocation28 + $0x3e8] sm:$0xff]
    %v9833 = vld [vmem:[#allocation28 + $0x3f0] sm:$0xff]
    %v9834 = vld [vmem:[#allocation28 + $0x3f8] sm:$0xff]
    %v9835 = vld [vmem:[#allocation28 + $0x400] sm:$0xff]
    %v9836 = vld [vmem:[#allocation28 + $0x408] sm:$0xff]
    %v9837 = vld [vmem:[#allocation28 + $0x410] sm:$0xff]
    %v9838 = vld [vmem:[#allocation28 + $0x418] sm:$0xff]
    %v9839 = vld [vmem:[#allocation28 + $0x420] sm:$0xff]
    %v9840 = vld [vmem:[#allocation28 + $0x428] sm:$0xff]
    %v9841 = vld [vmem:[#allocation28 + $0x430] sm:$0xff]
    %v9842 = vld [vmem:[#allocation28 + $0x438] sm:$0xff]
    %v9843 = vld [vmem:[#allocation28 + $0x440] sm:$0xff]
    %v9844 = vld [vmem:[#allocation28 + $0x448] sm:$0xff]
    %v9845 = vld [vmem:[#allocation28 + $0x450] sm:$0xff]
    %v9846 = vld [vmem:[#allocation28 + $0x458] sm:$0xff]
    %v9847 = vld [vmem:[#allocation28 + $0x460] sm:$0xff]
    %v9848 = vld [vmem:[#allocation28 + $0x468] sm:$0xff]
    %v9849 = vld [vmem:[#allocation28 + $0x470] sm:$0xff]
    %v9850 = vld [vmem:[#allocation28 + $0x478] sm:$0xff]
    %v9851 = vld [vmem:[#allocation28 + $0x480] sm:$0xff]
    %v9852 = vld [vmem:[#allocation28 + $0x488] sm:$0xff]
    %v9853 = vld [vmem:[#allocation28 + $0x490] sm:$0xff]
    %v9854 = vld [vmem:[#allocation28 + $0x498] sm:$0xff]
    %v9855 = vld [vmem:[#allocation28 + $0x4a0] sm:$0xff]
    %v9856 = vld [vmem:[#allocation28 + $0x4a8] sm:$0xff]
    %v9857 = vld [vmem:[#allocation28 + $0x4b0] sm:$0xff]
    %v9858 = vld [vmem:[#allocation28 + $0x4b8] sm:$0xff]
    %v9859 = vld [vmem:[#allocation28 + $0x4c0] sm:$0xff]
    %v9860 = vld [vmem:[#allocation28 + $0x4c8] sm:$0xff]
    %v9861 = vld [vmem:[#allocation28 + $0x4d0] sm:$0xff]
    %v9862 = vld [vmem:[#allocation28 + $0x4d8] sm:$0xff]
    %v9863 = vld [vmem:[#allocation28 + $0x4e0] sm:$0xff]
    %v9864 = vld [vmem:[#allocation28 + $0x4e8] sm:$0xff]
    %v9865 = vld [vmem:[#allocation28 + $0x4f0] sm:$0xff]
    %v9866 = vld [vmem:[#allocation28 + $0x4f8] sm:$0xff]
    %v9867 = vld [vmem:[#allocation28 + $0x500] sm:$0xff]
    %v9868 = vld [vmem:[#allocation28 + $0x508] sm:$0xff]
    %v9869 = vld [vmem:[#allocation28 + $0x510] sm:$0xff]
    %v9870 = vld [vmem:[#allocation28 + $0x518] sm:$0xff]
    %v9871 = vld [vmem:[#allocation28 + $0x520] sm:$0xff]
    %v9872 = vld [vmem:[#allocation28 + $0x528] sm:$0xff]
    %v9873 = vld [vmem:[#allocation28 + $0x530] sm:$0xff]
    %v9874 = vld [vmem:[#allocation28 + $0x538] sm:$0xff]
    %v9875 = vld [vmem:[#allocation28 + $0x540] sm:$0xff]
    %v9876 = vld [vmem:[#allocation28 + $0x548] sm:$0xff]
    %v9877 = vld [vmem:[#allocation28 + $0x550] sm:$0xff]
    %v9878 = vld [vmem:[#allocation28 + $0x558] sm:$0xff]
    %v9879 = vld [vmem:[#allocation28 + $0x560] sm:$0xff]
    %v9880 = vld [vmem:[#allocation28 + $0x568] sm:$0xff]
    %v9881 = vld [vmem:[#allocation28 + $0x570] sm:$0xff]
    %v9882 = vld [vmem:[#allocation28 + $0x578] sm:$0xff]
    %v9883 = vld [vmem:[#allocation28 + $0x580] sm:$0xff]
    %v9884 = vld [vmem:[#allocation28 + $0x588] sm:$0xff]
    %v9885 = vld [vmem:[#allocation28 + $0x590] sm:$0xff]
    %v9886 = vld [vmem:[#allocation28 + $0x598] sm:$0xff]
    %v9887 = vld [vmem:[#allocation28 + $0x5a0] sm:$0xff]
    %v9888 = vld [vmem:[#allocation28 + $0x5a8] sm:$0xff]
    %v9889 = vld [vmem:[#allocation28 + $0x5b0] sm:$0xff]
    %v9890 = vld [vmem:[#allocation28 + $0x5b8] sm:$0xff]
    %v9891 = vld [vmem:[#allocation28 + $0x5c0] sm:$0xff]
    %v9892 = vld [vmem:[#allocation28 + $0x5c8] sm:$0xff]
    %v9893 = vld [vmem:[#allocation28 + $0x5d0] sm:$0xff]
    %v9894 = vld [vmem:[#allocation28 + $0x5d8] sm:$0xff]
    %v9895 = vld [vmem:[#allocation28 + $0x5e0] sm:$0xff]
    %v9896 = vld [vmem:[#allocation28 + $0x5e8] sm:$0xff]
    %v9897 = vld [vmem:[#allocation28 + $0x5f0] sm:$0xff]
    %v9898 = vld [vmem:[#allocation28 + $0x5f8] sm:$0xff]
    %v9899 = vld [vmem:[#allocation28 + $0x600] sm:$0xff]
    %v9900 = vld [vmem:[#allocation28 + $0x608] sm:$0xff]
    %v9901 = vld [vmem:[#allocation28 + $0x610] sm:$0xff]
    %v9902 = vld [vmem:[#allocation28 + $0x618] sm:$0xff]
    %v9903 = vld [vmem:[#allocation28 + $0x620] sm:$0xff]
    %v9904 = vld [vmem:[#allocation28 + $0x628] sm:$0xff]
    %v9905 = vld [vmem:[#allocation28 + $0x630] sm:$0xff]
    %v9906 = vld [vmem:[#allocation28 + $0x638] sm:$0xff]
    %v9907 = vld [vmem:[#allocation28 + $0x640] sm:$0xff]
    %v9908 = vld [vmem:[#allocation28 + $0x648] sm:$0xff]
    %v9909 = vld [vmem:[#allocation28 + $0x650] sm:$0xff]
    %v9910 = vld [vmem:[#allocation28 + $0x658] sm:$0xff]
    %v9911 = vld [vmem:[#allocation28 + $0x660] sm:$0xff]
    %v9912 = vld [vmem:[#allocation28 + $0x668] sm:$0xff]
    %v9913 = vld [vmem:[#allocation28 + $0x670] sm:$0xff]
    %v9914 = vld [vmem:[#allocation28 + $0x678] sm:$0xff]
    %v9915 = vld [vmem:[#allocation28 + $0x680] sm:$0xff]
    %v9916 = vld [vmem:[#allocation28 + $0x688] sm:$0xff]
    %v9917 = vld [vmem:[#allocation28 + $0x690] sm:$0xff]
    %v9918 = vld [vmem:[#allocation28 + $0x698] sm:$0xff]
    %v9919 = vld [vmem:[#allocation28 + $0x6a0] sm:$0xff]
    %v9920 = vld [vmem:[#allocation28 + $0x6a8] sm:$0xff]
    %v9921 = vld [vmem:[#allocation28 + $0x6b0] sm:$0xff]
    %v9922 = vld [vmem:[#allocation28 + $0x6b8] sm:$0xff]
    %v9923 = vld [vmem:[#allocation28 + $0x6c0] sm:$0xff]
    %v9924 = vld [vmem:[#allocation28 + $0x6c8] sm:$0xff]
    %v9925 = vld [vmem:[#allocation28 + $0x6d0] sm:$0xff]
    %v9926 = vld [vmem:[#allocation28 + $0x6d8] sm:$0xff]
    %v9927 = vld [vmem:[#allocation28 + $0x6e0] sm:$0xff]
    %v9928 = vld [vmem:[#allocation28 + $0x6e8] sm:$0xff]
    %v9929 = vld [vmem:[#allocation28 + $0x6f0] sm:$0xff]
    %v9930 = vld [vmem:[#allocation28 + $0x6f8] sm:$0xff]
    %v9931 = vld [vmem:[#allocation28 + $0x700] sm:$0xff]
    %v9932 = vld [vmem:[#allocation28 + $0x708] sm:$0xff]
    %v9933 = vld [vmem:[#allocation28 + $0x710] sm:$0xff]
    %v9934 = vld [vmem:[#allocation28 + $0x718] sm:$0xff]
    %v9935 = vld [vmem:[#allocation28 + $0x720] sm:$0xff]
    %v9936 = vld [vmem:[#allocation28 + $0x728] sm:$0xff]
    %v9937 = vld [vmem:[#allocation28 + $0x730] sm:$0xff]
    %v9938 = vld [vmem:[#allocation28 + $0x738] sm:$0xff]
    %v9939 = vld [vmem:[#allocation28 + $0x740] sm:$0xff]
    %v9940 = vld [vmem:[#allocation28 + $0x748] sm:$0xff]
    %v9941 = vld [vmem:[#allocation28 + $0x750] sm:$0xff]
    %v9942 = vld [vmem:[#allocation28 + $0x758] sm:$0xff]
    %v9943 = vld [vmem:[#allocation28 + $0x760] sm:$0xff]
    %v9944 = vld [vmem:[#allocation28 + $0x768] sm:$0xff]
    %v9945 = vld [vmem:[#allocation28 + $0x770] sm:$0xff]
    %v9946 = vld [vmem:[#allocation28 + $0x778] sm:$0xff]
    %v9947 = vld [vmem:[#allocation28 + $0x780] sm:$0xff]
    %v9948 = vld [vmem:[#allocation28 + $0x788] sm:$0xff]
    %v9949 = vld [vmem:[#allocation28 + $0x790] sm:$0xff]
    %v9950 = vld [vmem:[#allocation28 + $0x798] sm:$0xff]
    %v9951 = vld [vmem:[#allocation28 + $0x7a0] sm:$0xff]
    %v9952 = vld [vmem:[#allocation28 + $0x7a8] sm:$0xff]
    %v9953 = vld [vmem:[#allocation28 + $0x7b0] sm:$0xff]
    %v9954 = vld [vmem:[#allocation28 + $0x7b8] sm:$0xff]
    %v9955 = vld [vmem:[#allocation28 + $0x7c0] sm:$0xff]
    %v9956 = vld [vmem:[#allocation28 + $0x7c8] sm:$0xff]
    %v9957 = vld [vmem:[#allocation28 + $0x7d0] sm:$0xff]
    %v9958 = vld [vmem:[#allocation28 + $0x7d8] sm:$0xff]
    %v9959 = vld [vmem:[#allocation28 + $0x7e0] sm:$0xff]
    %v9960 = vld [vmem:[#allocation28 + $0x7e8] sm:$0xff]
    %v9961 = vld [vmem:[#allocation28 + $0x7f0] sm:$0xff]
    %v9962 = vld [vmem:[#allocation28 + $0x7f8] sm:$0xff]
    %v9963 = vld [vmem:[#allocation28 + $0x800] sm:$0xff]
    %v9964 = vld [vmem:[#allocation28 + $0x808] sm:$0xff]
    %v9965 = vld [vmem:[#allocation28 + $0x810] sm:$0xff]
    %v9966 = vld [vmem:[#allocation28 + $0x818] sm:$0xff]
    %v9967 = vld [vmem:[#allocation28 + $0x820] sm:$0xff]
    %v9968 = vld [vmem:[#allocation28 + $0x828] sm:$0xff]
    %v9969 = vld [vmem:[#allocation28 + $0x830] sm:$0xff]
    %v9970 = vld [vmem:[#allocation28 + $0x838] sm:$0xff]
    %v9971 = vld [vmem:[#allocation28 + $0x840] sm:$0xff]
    %v9972 = vld [vmem:[#allocation28 + $0x848] sm:$0xff]
    %v9973 = vld [vmem:[#allocation28 + $0x850] sm:$0xff]
    %v9974 = vld [vmem:[#allocation28 + $0x858] sm:$0xff]
    %v9975 = vld [vmem:[#allocation28 + $0x860] sm:$0xff]
    %v9976 = vld [vmem:[#allocation28 + $0x868] sm:$0xff]
    %v9977 = vld [vmem:[#allocation28 + $0x870] sm:$0xff]
    %v9978 = vld [vmem:[#allocation28 + $0x878] sm:$0xff]
    %v9979 = vld [vmem:[#allocation28 + $0x880] sm:$0xff]
    %v9980 = vld [vmem:[#allocation28 + $0x888] sm:$0xff]
    %v9981 = vld [vmem:[#allocation28 + $0x890] sm:$0xff]
    %v9982 = vld [vmem:[#allocation28 + $0x898] sm:$0xff]
    %v9983 = vld [vmem:[#allocation28 + $0x8a0] sm:$0xff]
    %v9984 = vld [vmem:[#allocation28 + $0x8a8] sm:$0xff]
    %v9985 = vld [vmem:[#allocation28 + $0x8b0] sm:$0xff]
    %v9986 = vld [vmem:[#allocation28 + $0x8b8] sm:$0xff]
    %v9987 = vld [vmem:[#allocation28 + $0x8c0] sm:$0xff]
    %v9988 = vld [vmem:[#allocation28 + $0x8c8] sm:$0xff]
    %v9989 = vld [vmem:[#allocation28 + $0x8d0] sm:$0xff]
    %v9990 = vld [vmem:[#allocation28 + $0x8d8] sm:$0xff]
    %v9991 = vld [vmem:[#allocation28 + $0x8e0] sm:$0xff]
    %v9992 = vld [vmem:[#allocation28 + $0x8e8] sm:$0xff]
    %v9993 = vld [vmem:[#allocation28 + $0x8f0] sm:$0xff]
    %v9994 = vld [vmem:[#allocation28 + $0x8f8] sm:$0xff]
    %v9995 = vld [vmem:[#allocation28 + $0x900] sm:$0xff]
    %v9996 = vld [vmem:[#allocation28 + $0x908] sm:$0xff]
    %v9997 = vld [vmem:[#allocation28 + $0x910] sm:$0xff]
    %v9998 = vld [vmem:[#allocation28 + $0x918] sm:$0xff]
    %v9999 = vld [vmem:[#allocation28 + $0x920] sm:$0xff]
    %v10000 = vld [vmem:[#allocation28 + $0x928] sm:$0xff]
    %v10001 = vld [vmem:[#allocation28 + $0x930] sm:$0xff]
    %v10002 = vld [vmem:[#allocation28 + $0x938] sm:$0xff]
    %v10003 = vld [vmem:[#allocation28 + $0x940] sm:$0xff]
    %v10004 = vld [vmem:[#allocation28 + $0x948] sm:$0xff]
    %v10005 = vld [vmem:[#allocation28 + $0x950] sm:$0xff]
    %v10006 = vld [vmem:[#allocation28 + $0x958] sm:$0xff]
    %v10007 = vld [vmem:[#allocation28 + $0x960] sm:$0xff]
    %v10008 = vld [vmem:[#allocation28 + $0x968] sm:$0xff]
    %v10009 = vld [vmem:[#allocation28 + $0x970] sm:$0xff]
    %v10010 = vld [vmem:[#allocation28 + $0x978] sm:$0xff]
    %v10011 = vld [vmem:[#allocation28 + $0x980] sm:$0xff]
    %v10012 = vld [vmem:[#allocation28 + $0x988] sm:$0xff]
    %v10013 = vld [vmem:[#allocation28 + $0x990] sm:$0xff]
    %v10014 = vld [vmem:[#allocation28 + $0x998] sm:$0xff]
    %v10015 = vld [vmem:[#allocation28 + $0x9a0] sm:$0xff]
    %v10016 = vld [vmem:[#allocation28 + $0x9a8] sm:$0xff]
    %v10017 = vld [vmem:[#allocation28 + $0x9b0] sm:$0xff]
    %v10018 = vld [vmem:[#allocation28 + $0x9b8] sm:$0xff]
    %v10019 = vld [vmem:[#allocation28 + $0x9c0] sm:$0xff]
    %v10020 = vld [vmem:[#allocation28 + $0x9c8] sm:$0xff]
    %v10021 = vld [vmem:[#allocation28 + $0x9d0] sm:$0xff]
    %v10022 = vld [vmem:[#allocation28 + $0x9d8] sm:$0xff]
    %v10023 = vld [vmem:[#allocation28 + $0x9e0] sm:$0xff]
    %v10024 = vld [vmem:[#allocation28 + $0x9e8] sm:$0xff]
    %v10025 = vld [vmem:[#allocation28 + $0x9f0] sm:$0xff]
    %v10026 = vld [vmem:[#allocation28 + $0x9f8] sm:$0xff]
    %v10027 = vld [vmem:[#allocation28 + $0xa00] sm:$0xff]
    %v10028 = vld [vmem:[#allocation28 + $0xa08] sm:$0xff]
    %v10029 = vld [vmem:[#allocation28 + $0xa10] sm:$0xff]
    %v10030 = vld [vmem:[#allocation28 + $0xa18] sm:$0xff]
    %v10031 = vld [vmem:[#allocation28 + $0xa20] sm:$0xff]
    %v10032 = vld [vmem:[#allocation28 + $0xa28] sm:$0xff]
    %v10033 = vld [vmem:[#allocation28 + $0xa30] sm:$0xff]
    %v10034 = vld [vmem:[#allocation28 + $0xa38] sm:$0xff]
    %v10035 = vld [vmem:[#allocation28 + $0xa40] sm:$0xff]
    %v10036 = vld [vmem:[#allocation28 + $0xa48] sm:$0xff]
    %v10037 = vld [vmem:[#allocation28 + $0xa50] sm:$0xff]
    %v10038 = vld [vmem:[#allocation28 + $0xa58] sm:$0xff]
    %v10039 = vld [vmem:[#allocation28 + $0xa60] sm:$0xff]
    %v10040 = vld [vmem:[#allocation28 + $0xa68] sm:$0xff]
    %v10041 = vld [vmem:[#allocation28 + $0xa70] sm:$0xff]
    %v10042 = vld [vmem:[#allocation28 + $0xa78] sm:$0xff]
    %v10043 = vld [vmem:[#allocation28 + $0xa80] sm:$0xff]
    %v10044 = vld [vmem:[#allocation28 + $0xa88] sm:$0xff]
    %v10045 = vld [vmem:[#allocation28 + $0xa90] sm:$0xff]
    %v10046 = vld [vmem:[#allocation28 + $0xa98] sm:$0xff]
    %v10047 = vld [vmem:[#allocation28 + $0xaa0] sm:$0xff]
    %v10048 = vld [vmem:[#allocation28 + $0xaa8] sm:$0xff]
    %v10049 = vld [vmem:[#allocation28 + $0xab0] sm:$0xff]
    %v10050 = vld [vmem:[#allocation28 + $0xab8] sm:$0xff]
    %v10051 = vld [vmem:[#allocation28 + $0xac0] sm:$0xff]
    %v10052 = vld [vmem:[#allocation28 + $0xac8] sm:$0xff]
    %v10053 = vld [vmem:[#allocation28 + $0xad0] sm:$0xff]
    %v10054 = vld [vmem:[#allocation28 + $0xad8] sm:$0xff]
    %v10055 = vld [vmem:[#allocation28 + $0xae0] sm:$0xff]
    %v10056 = vld [vmem:[#allocation28 + $0xae8] sm:$0xff]
    %v10057 = vld [vmem:[#allocation28 + $0xaf0] sm:$0xff]
    %v10058 = vld [vmem:[#allocation28 + $0xaf8] sm:$0xff]
    %v10059 = vld [vmem:[#allocation28 + $0xb00] sm:$0xff]
    %v10060 = vld [vmem:[#allocation28 + $0xb08] sm:$0xff]
    %v10061 = vld [vmem:[#allocation28 + $0xb10] sm:$0xff]
    %v10062 = vld [vmem:[#allocation28 + $0xb18] sm:$0xff]
    %v10063 = vld [vmem:[#allocation28 + $0xb20] sm:$0xff]
    %v10064 = vld [vmem:[#allocation28 + $0xb28] sm:$0xff]
    %v10065 = vld [vmem:[#allocation28 + $0xb30] sm:$0xff]
    %v10066 = vld [vmem:[#allocation28 + $0xb38] sm:$0xff]
    %v10067 = vld [vmem:[#allocation28 + $0xb40] sm:$0xff]
    %v10068 = vld [vmem:[#allocation28 + $0xb48] sm:$0xff]
    %v10069 = vld [vmem:[#allocation28 + $0xb50] sm:$0xff]
    %v10070 = vld [vmem:[#allocation28 + $0xb58] sm:$0xff]
    %v10071 = vld [vmem:[#allocation28 + $0xb60] sm:$0xff]
    %v10072 = vld [vmem:[#allocation28 + $0xb68] sm:$0xff]
    %v10073 = vld [vmem:[#allocation28 + $0xb70] sm:$0xff]
    %v10074 = vld [vmem:[#allocation28 + $0xb78] sm:$0xff]
    %v10075 = vld [vmem:[#allocation28 + $0xb80] sm:$0xff]
    %v10076 = vld [vmem:[#allocation28 + $0xb88] sm:$0xff]
    %v10077 = vld [vmem:[#allocation28 + $0xb90] sm:$0xff]
    %v10078 = vld [vmem:[#allocation28 + $0xb98] sm:$0xff]
    %v10079 = vld [vmem:[#allocation28 + $0xba0] sm:$0xff]
    %v10080 = vld [vmem:[#allocation28 + $0xba8] sm:$0xff]
    %v10081 = vld [vmem:[#allocation28 + $0xbb0] sm:$0xff]
    %v10082 = vld [vmem:[#allocation28 + $0xbb8] sm:$0xff]
    %v10083 = vld [vmem:[#allocation28 + $0xbc0] sm:$0xff]
    %v10084 = vld [vmem:[#allocation28 + $0xbc8] sm:$0xff]
    %v10085 = vld [vmem:[#allocation28 + $0xbd0] sm:$0xff]
    %v10086 = vld [vmem:[#allocation28 + $0xbd8] sm:$0xff]
    %v10087 = vld [vmem:[#allocation28 + $0xbe0] sm:$0xff]
    %v10088 = vld [vmem:[#allocation28 + $0xbe8] sm:$0xff]
    %v10089 = vld [vmem:[#allocation28 + $0xbf0] sm:$0xff]
    %v10090 = vld [vmem:[#allocation28 + $0xbf8] sm:$0xff]
    %v10091 = vld [vmem:[#allocation28 + $0xc00] sm:$0xff]
    %v10092 = vld [vmem:[#allocation28 + $0xc08] sm:$0xff]
    %v10093 = vld [vmem:[#allocation28 + $0xc10] sm:$0xff]
    %v10094 = vld [vmem:[#allocation28 + $0xc18] sm:$0xff]
    %v10095 = vld [vmem:[#allocation28 + $0xc20] sm:$0xff]
    %v10096 = vld [vmem:[#allocation28 + $0xc28] sm:$0xff]
    %v10097 = vld [vmem:[#allocation28 + $0xc30] sm:$0xff]
    %v10098 = vld [vmem:[#allocation28 + $0xc38] sm:$0xff]
    %v10099 = vld [vmem:[#allocation28 + $0xc40] sm:$0xff]
    %v10100 = vld [vmem:[#allocation28 + $0xc48] sm:$0xff]
    %v10101 = vld [vmem:[#allocation28 + $0xc50] sm:$0xff]
    %v10102 = vld [vmem:[#allocation28 + $0xc58] sm:$0xff]
    %v10103 = vld [vmem:[#allocation28 + $0xc60] sm:$0xff]
    %v10104 = vld [vmem:[#allocation28 + $0xc68] sm:$0xff]
    %v10105 = vld [vmem:[#allocation28 + $0xc70] sm:$0xff]
    %v10106 = vld [vmem:[#allocation28 + $0xc78] sm:$0xff]
    %v10107 = vld [vmem:[#allocation28 + $0xc80] sm:$0xff]
    %v10108 = vld [vmem:[#allocation28 + $0xc88] sm:$0xff]
    %v10109 = vld [vmem:[#allocation28 + $0xc90] sm:$0xff]
    %v10110 = vld [vmem:[#allocation28 + $0xc98] sm:$0xff]
    %v10111 = vld [vmem:[#allocation28 + $0xca0] sm:$0xff]
    %v10112 = vld [vmem:[#allocation28 + $0xca8] sm:$0xff]
    %v10113 = vld [vmem:[#allocation28 + $0xcb0] sm:$0xff]
    %v10114 = vld [vmem:[#allocation28 + $0xcb8] sm:$0xff]
    %v10115 = vld [vmem:[#allocation28 + $0xcc0] sm:$0xff]
    %v10116 = vld [vmem:[#allocation28 + $0xcc8] sm:$0xff]
    %v10117 = vld [vmem:[#allocation28 + $0xcd0] sm:$0xff]
    %v10118 = vld [vmem:[#allocation28 + $0xcd8] sm:$0xff]
    %v10119 = vld [vmem:[#allocation28 + $0xce0] sm:$0xff]
    %v10120 = vld [vmem:[#allocation28 + $0xce8] sm:$0xff]
    %v10121 = vld [vmem:[#allocation28 + $0xcf0] sm:$0xff]
    %v10122 = vld [vmem:[#allocation28 + $0xcf8] sm:$0xff]
    %v10123 = vld [vmem:[#allocation28 + $0xd00] sm:$0xff]
    %v10124 = vld [vmem:[#allocation28 + $0xd08] sm:$0xff]
    %v10125 = vld [vmem:[#allocation28 + $0xd10] sm:$0xff]
    %v10126 = vld [vmem:[#allocation28 + $0xd18] sm:$0xff]
    %v10127 = vld [vmem:[#allocation28 + $0xd20] sm:$0xff]
    %v10128 = vld [vmem:[#allocation28 + $0xd28] sm:$0xff]
    %v10129 = vld [vmem:[#allocation28 + $0xd30] sm:$0xff]
    %v10130 = vld [vmem:[#allocation28 + $0xd38] sm:$0xff]
    %v10131 = vld [vmem:[#allocation28 + $0xd40] sm:$0xff]
    %v10132 = vld [vmem:[#allocation28 + $0xd48] sm:$0xff]
    %v10133 = vld [vmem:[#allocation28 + $0xd50] sm:$0xff]
    %v10134 = vld [vmem:[#allocation28 + $0xd58] sm:$0xff]
    %v10135 = vld [vmem:[#allocation28 + $0xd60] sm:$0xff]
    %v10136 = vld [vmem:[#allocation28 + $0xd68] sm:$0xff]
    %v10137 = vld [vmem:[#allocation28 + $0xd70] sm:$0xff]
    %v10138 = vld [vmem:[#allocation28 + $0xd78] sm:$0xff]
    %v10139 = vld [vmem:[#allocation28 + $0xd80] sm:$0xff]
    %v10140 = vld [vmem:[#allocation28 + $0xd88] sm:$0xff]
    %v10141 = vld [vmem:[#allocation28 + $0xd90] sm:$0xff]
    %v10142 = vld [vmem:[#allocation28 + $0xd98] sm:$0xff]
    %v10143 = vld [vmem:[#allocation28 + $0xda0] sm:$0xff]
    %v10144 = vld [vmem:[#allocation28 + $0xda8] sm:$0xff]
    %v10145 = vld [vmem:[#allocation28 + $0xdb0] sm:$0xff]
    %v10146 = vld [vmem:[#allocation28 + $0xdb8] sm:$0xff]
    %v10147 = vld [vmem:[#allocation28 + $0xdc0] sm:$0xff]
    %v10148 = vld [vmem:[#allocation28 + $0xdc8] sm:$0xff]
    %v10149 = vld [vmem:[#allocation28 + $0xdd0] sm:$0xff]
    %v10150 = vld [vmem:[#allocation28 + $0xdd8] sm:$0xff]
    %v10151 = vld [vmem:[#allocation28 + $0xde0] sm:$0xff]
    %v10152 = vld [vmem:[#allocation28 + $0xde8] sm:$0xff]
    %v10153 = vld [vmem:[#allocation28 + $0xdf0] sm:$0xff]
    %v10154 = vld [vmem:[#allocation28 + $0xdf8] sm:$0xff]
    %v10155 = vld [vmem:[#allocation29] sm:$0xff]
    %v10157 = vlaneseq
    %v10158 = vshrl.u32 %v10157, 7
    %v10159 = vsub.s32 0, %v10158
    %v10160 = vrot.slane %v10155, %v10159
    %v10161 = vlaneseq
    %v10162 = vshrl.u32 %v10161, 7
    %v10163 = vsub.s32 1, %v10162
    %v10164 = vrot.slane %v10155, %v10163
    %v10165 = vlaneseq
    %v10166 = vshrl.u32 %v10165, 7
    %v10167 = vsub.s32 2, %v10166
    %v10168 = vrot.slane %v10155, %v10167
    %v10169 = vlaneseq
    %v10170 = vshrl.u32 %v10169, 7
    %v10171 = vsub.s32 3, %v10170
    %v10172 = vrot.slane %v10155, %v10171
    %v10173 = vlaneseq
    %v10174 = vshrl.u32 %v10173, 7
    %v10175 = vsub.s32 4, %v10174
    %v10176 = vrot.slane %v10155, %v10175
    %v10177 = vlaneseq
    %v10178 = vshrl.u32 %v10177, 7
    %v10179 = vsub.s32 5, %v10178
    %v10180 = vrot.slane %v10155, %v10179
    %v10181 = vlaneseq
    %v10182 = vshrl.u32 %v10181, 7
    %v10183 = vsub.s32 6, %v10182
    %v10184 = vrot.slane %v10155, %v10183
    %v10185 = vlaneseq
    %v10186 = vshrl.u32 %v10185, 7
    %v10187 = vsub.s32 7, %v10186
    %v10188 = vrot.slane %v10155, %v10187
    %v10645 = vunpack.c.l.b16 %v9707
    %v10646 = vunpack.c.h.b16 %v9707
    %v10647 = vunpack.c.l.b16 %v9708
    %v10648 = vunpack.c.h.b16 %v9708
    %v10649 = vunpack.c.l.b16 %v9709
    %v10650 = vunpack.c.h.b16 %v9709
    %v10651 = vunpack.c.l.b16 %v9710
    %v10652 = vunpack.c.h.b16 %v9710
    %v10653 = vunpack.c.l.b16 %v9711
    %v10654 = vunpack.c.h.b16 %v9711
    %v10655 = vunpack.c.l.b16 %v9712
    %v10656 = vunpack.c.h.b16 %v9712
    %v10657 = vunpack.c.l.b16 %v9713
    %v10658 = vunpack.c.h.b16 %v9713
    %v10659 = vunpack.c.l.b16 %v9714
    %v10660 = vunpack.c.h.b16 %v9714
    %v10661 = vunpack.c.l.b16 %v9715
    %v10662 = vunpack.c.h.b16 %v9715
    %v10663 = vunpack.c.l.b16 %v9716
    %v10664 = vunpack.c.h.b16 %v9716
    %v10665 = vunpack.c.l.b16 %v9717
    %v10666 = vunpack.c.h.b16 %v9717
    %v10667 = vunpack.c.l.b16 %v9718
    %v10668 = vunpack.c.h.b16 %v9718
    %v10669 = vunpack.c.l.b16 %v9719
    %v10670 = vunpack.c.h.b16 %v9719
    %v10671 = vunpack.c.l.b16 %v9720
    %v10672 = vunpack.c.h.b16 %v9720
    %v10673 = vunpack.c.l.b16 %v9721
    %v10674 = vunpack.c.h.b16 %v9721
    %v10675 = vunpack.c.l.b16 %v9722
    %v10676 = vunpack.c.h.b16 %v9722
    %v10677 = vunpack.c.l.b16 %v9723
    %v10678 = vunpack.c.h.b16 %v9723
    %v10679 = vunpack.c.l.b16 %v9724
    %v10680 = vunpack.c.h.b16 %v9724
    %v10681 = vunpack.c.l.b16 %v9725
    %v10682 = vunpack.c.h.b16 %v9725
    %v10683 = vunpack.c.l.b16 %v9726
    %v10684 = vunpack.c.h.b16 %v9726
    %v10685 = vunpack.c.l.b16 %v9727
    %v10686 = vunpack.c.h.b16 %v9727
    %v10687 = vunpack.c.l.b16 %v9728
    %v10688 = vunpack.c.h.b16 %v9728
    %v10689 = vunpack.c.l.b16 %v9729
    %v10690 = vunpack.c.h.b16 %v9729
    %v10691 = vunpack.c.l.b16 %v9730
    %v10692 = vunpack.c.h.b16 %v9730
    %v10693 = vunpack.c.l.b16 %v9731
    %v10694 = vunpack.c.h.b16 %v9731
    %v10695 = vunpack.c.l.b16 %v9732
    %v10696 = vunpack.c.h.b16 %v9732
    %v10697 = vunpack.c.l.b16 %v9733
    %v10698 = vunpack.c.h.b16 %v9733
    %v10699 = vunpack.c.l.b16 %v9734
    %v10700 = vunpack.c.h.b16 %v9734
    %v10701 = vunpack.c.l.b16 %v9735
    %v10702 = vunpack.c.h.b16 %v9735
    %v10703 = vunpack.c.l.b16 %v9736
    %v10704 = vunpack.c.h.b16 %v9736
    %v10705 = vunpack.c.l.b16 %v9737
    %v10706 = vunpack.c.h.b16 %v9737
    %v10707 = vunpack.c.l.b16 %v9738
    %v10708 = vunpack.c.h.b16 %v9738
    %v10709 = vunpack.c.l.b16 %v9739
    %v10710 = vunpack.c.h.b16 %v9739
    %v10711 = vunpack.c.l.b16 %v9740
    %v10712 = vunpack.c.h.b16 %v9740
    %v10713 = vunpack.c.l.b16 %v9741
    %v10714 = vunpack.c.h.b16 %v9741
    %v10715 = vunpack.c.l.b16 %v9742
    %v10716 = vunpack.c.h.b16 %v9742
    %v10717 = vunpack.c.l.b16 %v9743
    %v10718 = vunpack.c.h.b16 %v9743
    %v10719 = vunpack.c.l.b16 %v9744
    %v10720 = vunpack.c.h.b16 %v9744
    %v10721 = vunpack.c.l.b16 %v9745
    %v10722 = vunpack.c.h.b16 %v9745
    %v10723 = vunpack.c.l.b16 %v9746
    %v10724 = vunpack.c.h.b16 %v9746
    %v10725 = vunpack.c.l.b16 %v9747
    %v10726 = vunpack.c.h.b16 %v9747
    %v10727 = vunpack.c.l.b16 %v9748
    %v10728 = vunpack.c.h.b16 %v9748
    %v10729 = vunpack.c.l.b16 %v9749
    %v10730 = vunpack.c.h.b16 %v9749
    %v10731 = vunpack.c.l.b16 %v9750
    %v10732 = vunpack.c.h.b16 %v9750
    %v10733 = vunpack.c.l.b16 %v9751
    %v10734 = vunpack.c.h.b16 %v9751
    %v10735 = vunpack.c.l.b16 %v9752
    %v10736 = vunpack.c.h.b16 %v9752
    %v10737 = vunpack.c.l.b16 %v9753
    %v10738 = vunpack.c.h.b16 %v9753
    %v10739 = vunpack.c.l.b16 %v9754
    %v10740 = vunpack.c.h.b16 %v9754
    %v10741 = vunpack.c.l.b16 %v9755
    %v10742 = vunpack.c.h.b16 %v9755
    %v10743 = vunpack.c.l.b16 %v9756
    %v10744 = vunpack.c.h.b16 %v9756
    %v10745 = vunpack.c.l.b16 %v9757
    %v10746 = vunpack.c.h.b16 %v9757
    %v10747 = vunpack.c.l.b16 %v9758
    %v10748 = vunpack.c.h.b16 %v9758
    %v10749 = vunpack.c.l.b16 %v9759
    %v10750 = vunpack.c.h.b16 %v9759
    %v10751 = vunpack.c.l.b16 %v9760
    %v10752 = vunpack.c.h.b16 %v9760
    %v10753 = vunpack.c.l.b16 %v9761
    %v10754 = vunpack.c.h.b16 %v9761
    %v10755 = vunpack.c.l.b16 %v9762
    %v10756 = vunpack.c.h.b16 %v9762
    %v10757 = vunpack.c.l.b16 %v9763
    %v10758 = vunpack.c.h.b16 %v9763
    %v10759 = vunpack.c.l.b16 %v9764
    %v10760 = vunpack.c.h.b16 %v9764
    %v10761 = vunpack.c.l.b16 %v9765
    %v10762 = vunpack.c.h.b16 %v9765
    %v10763 = vunpack.c.l.b16 %v9766
    %v10764 = vunpack.c.h.b16 %v9766
    %v10765 = vunpack.c.l.b16 %v9767
    %v10766 = vunpack.c.h.b16 %v9767
    %v10767 = vunpack.c.l.b16 %v9768
    %v10768 = vunpack.c.h.b16 %v9768
    %v10769 = vunpack.c.l.b16 %v9769
    %v10770 = vunpack.c.h.b16 %v9769
    %v10771 = vunpack.c.l.b16 %v9770
    %v10772 = vunpack.c.h.b16 %v9770
    %v10773 = vunpack.c.l.b16 %v9771
    %v10774 = vunpack.c.h.b16 %v9771
    %v10775 = vunpack.c.l.b16 %v9772
    %v10776 = vunpack.c.h.b16 %v9772
    %v10777 = vunpack.c.l.b16 %v9773
    %v10778 = vunpack.c.h.b16 %v9773
    %v10779 = vunpack.c.l.b16 %v9774
    %v10780 = vunpack.c.h.b16 %v9774
    %v10781 = vunpack.c.l.b16 %v9775
    %v10782 = vunpack.c.h.b16 %v9775
    %v10783 = vunpack.c.l.b16 %v9776
    %v10784 = vunpack.c.h.b16 %v9776
    %v10785 = vunpack.c.l.b16 %v9777
    %v10786 = vunpack.c.h.b16 %v9777
    %v10787 = vunpack.c.l.b16 %v9778
    %v10788 = vunpack.c.h.b16 %v9778
    %v10789 = vunpack.c.l.b16 %v9779
    %v10790 = vunpack.c.h.b16 %v9779
    %v10791 = vunpack.c.l.b16 %v9780
    %v10792 = vunpack.c.h.b16 %v9780
    %v10793 = vunpack.c.l.b16 %v9781
    %v10794 = vunpack.c.h.b16 %v9781
    %v10795 = vunpack.c.l.b16 %v9782
    %v10796 = vunpack.c.h.b16 %v9782
    %v10797 = vunpack.c.l.b16 %v9783
    %v10798 = vunpack.c.h.b16 %v9783
    %v10799 = vunpack.c.l.b16 %v9784
    %v10800 = vunpack.c.h.b16 %v9784
    %v10801 = vunpack.c.l.b16 %v9785
    %v10802 = vunpack.c.h.b16 %v9785
    %v10803 = vunpack.c.l.b16 %v9786
    %v10804 = vunpack.c.h.b16 %v9786
    %v10805 = vunpack.c.l.b16 %v9787
    %v10806 = vunpack.c.h.b16 %v9787
    %v10807 = vunpack.c.l.b16 %v9788
    %v10808 = vunpack.c.h.b16 %v9788
    %v10809 = vunpack.c.l.b16 %v9789
    %v10810 = vunpack.c.h.b16 %v9789
    %v10811 = vunpack.c.l.b16 %v9790
    %v10812 = vunpack.c.h.b16 %v9790
    %v10813 = vunpack.c.l.b16 %v9791
    %v10814 = vunpack.c.h.b16 %v9791
    %v10815 = vunpack.c.l.b16 %v9792
    %v10816 = vunpack.c.h.b16 %v9792
    %v10817 = vunpack.c.l.b16 %v9793
    %v10818 = vunpack.c.h.b16 %v9793
    %v10819 = vunpack.c.l.b16 %v9794
    %v10820 = vunpack.c.h.b16 %v9794
    %v10821 = vunpack.c.l.b16 %v9795
    %v10822 = vunpack.c.h.b16 %v9795
    %v10823 = vunpack.c.l.b16 %v9796
    %v10824 = vunpack.c.h.b16 %v9796
    %v10825 = vunpack.c.l.b16 %v9797
    %v10826 = vunpack.c.h.b16 %v9797
    %v10827 = vunpack.c.l.b16 %v9798
    %v10828 = vunpack.c.h.b16 %v9798
    %v10829 = vunpack.c.l.b16 %v9799
    %v10830 = vunpack.c.h.b16 %v9799
    %v10831 = vunpack.c.l.b16 %v9800
    %v10832 = vunpack.c.h.b16 %v9800
    %v10833 = vunpack.c.l.b16 %v9801
    %v10834 = vunpack.c.h.b16 %v9801
    %v10835 = vunpack.c.l.b16 %v9802
    %v10836 = vunpack.c.h.b16 %v9802
    %v10837 = vunpack.c.l.b16 %v9803
    %v10838 = vunpack.c.h.b16 %v9803
    %v10839 = vunpack.c.l.b16 %v9804
    %v10840 = vunpack.c.h.b16 %v9804
    %v10841 = vunpack.c.l.b16 %v9805
    %v10842 = vunpack.c.h.b16 %v9805
    %v10843 = vunpack.c.l.b16 %v9806
    %v10844 = vunpack.c.h.b16 %v9806
    %v10845 = vunpack.c.l.b16 %v9807
    %v10846 = vunpack.c.h.b16 %v9807
    %v10847 = vunpack.c.l.b16 %v9808
    %v10848 = vunpack.c.h.b16 %v9808
    %v10849 = vunpack.c.l.b16 %v9809
    %v10850 = vunpack.c.h.b16 %v9809
    %v10851 = vunpack.c.l.b16 %v9810
    %v10852 = vunpack.c.h.b16 %v9810
    %v10853 = vunpack.c.l.b16 %v9811
    %v10854 = vunpack.c.h.b16 %v9811
    %v10855 = vunpack.c.l.b16 %v9812
    %v10856 = vunpack.c.h.b16 %v9812
    %v10857 = vunpack.c.l.b16 %v9813
    %v10858 = vunpack.c.h.b16 %v9813
    %v10859 = vunpack.c.l.b16 %v9814
    %v10860 = vunpack.c.h.b16 %v9814
    %v10861 = vunpack.c.l.b16 %v9815
    %v10862 = vunpack.c.h.b16 %v9815
    %v10863 = vunpack.c.l.b16 %v9816
    %v10864 = vunpack.c.h.b16 %v9816
    %v10865 = vunpack.c.l.b16 %v9817
    %v10866 = vunpack.c.h.b16 %v9817
    %v10867 = vunpack.c.l.b16 %v9818
    %v10868 = vunpack.c.h.b16 %v9818
    %v10869 = vunpack.c.l.b16 %v9819
    %v10870 = vunpack.c.h.b16 %v9819
    %v10871 = vunpack.c.l.b16 %v9820
    %v10872 = vunpack.c.h.b16 %v9820
    %v10873 = vunpack.c.l.b16 %v9821
    %v10874 = vunpack.c.h.b16 %v9821
    %v10875 = vunpack.c.l.b16 %v9822
    %v10876 = vunpack.c.h.b16 %v9822
    %v10877 = vunpack.c.l.b16 %v9823
    %v10878 = vunpack.c.h.b16 %v9823
    %v10879 = vunpack.c.l.b16 %v9824
    %v10880 = vunpack.c.h.b16 %v9824
    %v10881 = vunpack.c.l.b16 %v9825
    %v10882 = vunpack.c.h.b16 %v9825
    %v10883 = vunpack.c.l.b16 %v9826
    %v10884 = vunpack.c.h.b16 %v9826
    %v10885 = vunpack.c.l.b16 %v9827
    %v10886 = vunpack.c.h.b16 %v9827
    %v10887 = vunpack.c.l.b16 %v9828
    %v10888 = vunpack.c.h.b16 %v9828
    %v10889 = vunpack.c.l.b16 %v9829
    %v10890 = vunpack.c.h.b16 %v9829
    %v10891 = vunpack.c.l.b16 %v9830
    %v10892 = vunpack.c.h.b16 %v9830
    %v10893 = vunpack.c.l.b16 %v9831
    %v10894 = vunpack.c.h.b16 %v9831
    %v10895 = vunpack.c.l.b16 %v9832
    %v10896 = vunpack.c.h.b16 %v9832
    %v10897 = vunpack.c.l.b16 %v9833
    %v10898 = vunpack.c.h.b16 %v9833
    %v10899 = vunpack.c.l.b16 %v9834
    %v10900 = vunpack.c.h.b16 %v9834
    %v10901 = vunpack.c.l.b16 %v9835
    %v10902 = vunpack.c.h.b16 %v9835
    %v10903 = vunpack.c.l.b16 %v9836
    %v10904 = vunpack.c.h.b16 %v9836
    %v10905 = vunpack.c.l.b16 %v9837
    %v10906 = vunpack.c.h.b16 %v9837
    %v10907 = vunpack.c.l.b16 %v9838
    %v10908 = vunpack.c.h.b16 %v9838
    %v10909 = vunpack.c.l.b16 %v9839
    %v10910 = vunpack.c.h.b16 %v9839
    %v10911 = vunpack.c.l.b16 %v9840
    %v10912 = vunpack.c.h.b16 %v9840
    %v10913 = vunpack.c.l.b16 %v9841
    %v10914 = vunpack.c.h.b16 %v9841
    %v10915 = vunpack.c.l.b16 %v9842
    %v10916 = vunpack.c.h.b16 %v9842
    %v10917 = vunpack.c.l.b16 %v9843
    %v10918 = vunpack.c.h.b16 %v9843
    %v10919 = vunpack.c.l.b16 %v9844
    %v10920 = vunpack.c.h.b16 %v9844
    %v10921 = vunpack.c.l.b16 %v9845
    %v10922 = vunpack.c.h.b16 %v9845
    %v10923 = vunpack.c.l.b16 %v9846
    %v10924 = vunpack.c.h.b16 %v9846
    %v10925 = vunpack.c.l.b16 %v9847
    %v10926 = vunpack.c.h.b16 %v9847
    %v10927 = vunpack.c.l.b16 %v9848
    %v10928 = vunpack.c.h.b16 %v9848
    %v10929 = vunpack.c.l.b16 %v9849
    %v10930 = vunpack.c.h.b16 %v9849
    %v10931 = vunpack.c.l.b16 %v9850
    %v10932 = vunpack.c.h.b16 %v9850
    %v10933 = vunpack.c.l.b16 %v9851
    %v10934 = vunpack.c.h.b16 %v9851
    %v10935 = vunpack.c.l.b16 %v9852
    %v10936 = vunpack.c.h.b16 %v9852
    %v10937 = vunpack.c.l.b16 %v9853
    %v10938 = vunpack.c.h.b16 %v9853
    %v10939 = vunpack.c.l.b16 %v9854
    %v10940 = vunpack.c.h.b16 %v9854
    %v10941 = vunpack.c.l.b16 %v9855
    %v10942 = vunpack.c.h.b16 %v9855
    %v10943 = vunpack.c.l.b16 %v9856
    %v10944 = vunpack.c.h.b16 %v9856
    %v10945 = vunpack.c.l.b16 %v9857
    %v10946 = vunpack.c.h.b16 %v9857
    %v10947 = vunpack.c.l.b16 %v9858
    %v10948 = vunpack.c.h.b16 %v9858
    %v10949 = vunpack.c.l.b16 %v9859
    %v10950 = vunpack.c.h.b16 %v9859
    %v10951 = vunpack.c.l.b16 %v9860
    %v10952 = vunpack.c.h.b16 %v9860
    %v10953 = vunpack.c.l.b16 %v9861
    %v10954 = vunpack.c.h.b16 %v9861
    %v10955 = vunpack.c.l.b16 %v9862
    %v10956 = vunpack.c.h.b16 %v9862
    %v10957 = vunpack.c.l.b16 %v9863
    %v10958 = vunpack.c.h.b16 %v9863
    %v10959 = vunpack.c.l.b16 %v9864
    %v10960 = vunpack.c.h.b16 %v9864
    %v10961 = vunpack.c.l.b16 %v9865
    %v10962 = vunpack.c.h.b16 %v9865
    %v10963 = vunpack.c.l.b16 %v9866
    %v10964 = vunpack.c.h.b16 %v9866
    %v10965 = vunpack.c.l.b16 %v9867
    %v10966 = vunpack.c.h.b16 %v9867
    %v10967 = vunpack.c.l.b16 %v9868
    %v10968 = vunpack.c.h.b16 %v9868
    %v10969 = vunpack.c.l.b16 %v9869
    %v10970 = vunpack.c.h.b16 %v9869
    %v10971 = vunpack.c.l.b16 %v9870
    %v10972 = vunpack.c.h.b16 %v9870
    %v10973 = vunpack.c.l.b16 %v9871
    %v10974 = vunpack.c.h.b16 %v9871
    %v10975 = vunpack.c.l.b16 %v9872
    %v10976 = vunpack.c.h.b16 %v9872
    %v10977 = vunpack.c.l.b16 %v9873
    %v10978 = vunpack.c.h.b16 %v9873
    %v10979 = vunpack.c.l.b16 %v9874
    %v10980 = vunpack.c.h.b16 %v9874
    %v10981 = vunpack.c.l.b16 %v9875
    %v10982 = vunpack.c.h.b16 %v9875
    %v10983 = vunpack.c.l.b16 %v9876
    %v10984 = vunpack.c.h.b16 %v9876
    %v10985 = vunpack.c.l.b16 %v9877
    %v10986 = vunpack.c.h.b16 %v9877
    %v10987 = vunpack.c.l.b16 %v9878
    %v10988 = vunpack.c.h.b16 %v9878
    %v10989 = vunpack.c.l.b16 %v9879
    %v10990 = vunpack.c.h.b16 %v9879
    %v10991 = vunpack.c.l.b16 %v9880
    %v10992 = vunpack.c.h.b16 %v9880
    %v10993 = vunpack.c.l.b16 %v9881
    %v10994 = vunpack.c.h.b16 %v9881
    %v10995 = vunpack.c.l.b16 %v9882
    %v10996 = vunpack.c.h.b16 %v9882
    %v10997 = vunpack.c.l.b16 %v9883
    %v10998 = vunpack.c.h.b16 %v9883
    %v10999 = vunpack.c.l.b16 %v9884
    %v11000 = vunpack.c.h.b16 %v9884
    %v11001 = vunpack.c.l.b16 %v9885
    %v11002 = vunpack.c.h.b16 %v9885
    %v11003 = vunpack.c.l.b16 %v9886
    %v11004 = vunpack.c.h.b16 %v9886
    %v11005 = vunpack.c.l.b16 %v9887
    %v11006 = vunpack.c.h.b16 %v9887
    %v11007 = vunpack.c.l.b16 %v9888
    %v11008 = vunpack.c.h.b16 %v9888
    %v11009 = vunpack.c.l.b16 %v9889
    %v11010 = vunpack.c.h.b16 %v9889
    %v11011 = vunpack.c.l.b16 %v9890
    %v11012 = vunpack.c.h.b16 %v9890
    %v11013 = vunpack.c.l.b16 %v9891
    %v11014 = vunpack.c.h.b16 %v9891
    %v11015 = vunpack.c.l.b16 %v9892
    %v11016 = vunpack.c.h.b16 %v9892
    %v11017 = vunpack.c.l.b16 %v9893
    %v11018 = vunpack.c.h.b16 %v9893
    %v11019 = vunpack.c.l.b16 %v9894
    %v11020 = vunpack.c.h.b16 %v9894
    %v11021 = vunpack.c.l.b16 %v9895
    %v11022 = vunpack.c.h.b16 %v9895
    %v11023 = vunpack.c.l.b16 %v9896
    %v11024 = vunpack.c.h.b16 %v9896
    %v11025 = vunpack.c.l.b16 %v9897
    %v11026 = vunpack.c.h.b16 %v9897
    %v11027 = vunpack.c.l.b16 %v9898
    %v11028 = vunpack.c.h.b16 %v9898
    %v11029 = vunpack.c.l.b16 %v9899
    %v11030 = vunpack.c.h.b16 %v9899
    %v11031 = vunpack.c.l.b16 %v9900
    %v11032 = vunpack.c.h.b16 %v9900
    %v11033 = vunpack.c.l.b16 %v9901
    %v11034 = vunpack.c.h.b16 %v9901
    %v11035 = vunpack.c.l.b16 %v9902
    %v11036 = vunpack.c.h.b16 %v9902
    %v11037 = vunpack.c.l.b16 %v9903
    %v11038 = vunpack.c.h.b16 %v9903
    %v11039 = vunpack.c.l.b16 %v9904
    %v11040 = vunpack.c.h.b16 %v9904
    %v11041 = vunpack.c.l.b16 %v9905
    %v11042 = vunpack.c.h.b16 %v9905
    %v11043 = vunpack.c.l.b16 %v9906
    %v11044 = vunpack.c.h.b16 %v9906
    %v11045 = vunpack.c.l.b16 %v9907
    %v11046 = vunpack.c.h.b16 %v9907
    %v11047 = vunpack.c.l.b16 %v9908
    %v11048 = vunpack.c.h.b16 %v9908
    %v11049 = vunpack.c.l.b16 %v9909
    %v11050 = vunpack.c.h.b16 %v9909
    %v11051 = vunpack.c.l.b16 %v9910
    %v11052 = vunpack.c.h.b16 %v9910
    %v11053 = vunpack.c.l.b16 %v9911
    %v11054 = vunpack.c.h.b16 %v9911
    %v11055 = vunpack.c.l.b16 %v9912
    %v11056 = vunpack.c.h.b16 %v9912
    %v11057 = vunpack.c.l.b16 %v9913
    %v11058 = vunpack.c.h.b16 %v9913
    %v11059 = vunpack.c.l.b16 %v9914
    %v11060 = vunpack.c.h.b16 %v9914
    %v11061 = vunpack.c.l.b16 %v9915
    %v11062 = vunpack.c.h.b16 %v9915
    %v11063 = vunpack.c.l.b16 %v9916
    %v11064 = vunpack.c.h.b16 %v9916
    %v11065 = vunpack.c.l.b16 %v9917
    %v11066 = vunpack.c.h.b16 %v9917
    %v11067 = vunpack.c.l.b16 %v9918
    %v11068 = vunpack.c.h.b16 %v9918
    %v11069 = vunpack.c.l.b16 %v9919
    %v11070 = vunpack.c.h.b16 %v9919
    %v11071 = vunpack.c.l.b16 %v9920
    %v11072 = vunpack.c.h.b16 %v9920
    %v11073 = vunpack.c.l.b16 %v9921
    %v11074 = vunpack.c.h.b16 %v9921
    %v11075 = vunpack.c.l.b16 %v9922
    %v11076 = vunpack.c.h.b16 %v9922
    %v11077 = vunpack.c.l.b16 %v9923
    %v11078 = vunpack.c.h.b16 %v9923
    %v11079 = vunpack.c.l.b16 %v9924
    %v11080 = vunpack.c.h.b16 %v9924
    %v11081 = vunpack.c.l.b16 %v9925
    %v11082 = vunpack.c.h.b16 %v9925
    %v11083 = vunpack.c.l.b16 %v9926
    %v11084 = vunpack.c.h.b16 %v9926
    %v11085 = vunpack.c.l.b16 %v9927
    %v11086 = vunpack.c.h.b16 %v9927
    %v11087 = vunpack.c.l.b16 %v9928
    %v11088 = vunpack.c.h.b16 %v9928
    %v11089 = vunpack.c.l.b16 %v9929
    %v11090 = vunpack.c.h.b16 %v9929
    %v11091 = vunpack.c.l.b16 %v9930
    %v11092 = vunpack.c.h.b16 %v9930
    %v11093 = vunpack.c.l.b16 %v9931
    %v11094 = vunpack.c.h.b16 %v9931
    %v11095 = vunpack.c.l.b16 %v9932
    %v11096 = vunpack.c.h.b16 %v9932
    %v11097 = vunpack.c.l.b16 %v9933
    %v11098 = vunpack.c.h.b16 %v9933
    %v11099 = vunpack.c.l.b16 %v9934
    %v11100 = vunpack.c.h.b16 %v9934
    %v11101 = vunpack.c.l.b16 %v9935
    %v11102 = vunpack.c.h.b16 %v9935
    %v11103 = vunpack.c.l.b16 %v9936
    %v11104 = vunpack.c.h.b16 %v9936
    %v11105 = vunpack.c.l.b16 %v9937
    %v11106 = vunpack.c.h.b16 %v9937
    %v11107 = vunpack.c.l.b16 %v9938
    %v11108 = vunpack.c.h.b16 %v9938
    %v11109 = vunpack.c.l.b16 %v9939
    %v11110 = vunpack.c.h.b16 %v9939
    %v11111 = vunpack.c.l.b16 %v9940
    %v11112 = vunpack.c.h.b16 %v9940
    %v11113 = vunpack.c.l.b16 %v9941
    %v11114 = vunpack.c.h.b16 %v9941
    %v11115 = vunpack.c.l.b16 %v9942
    %v11116 = vunpack.c.h.b16 %v9942
    %v11117 = vunpack.c.l.b16 %v9943
    %v11118 = vunpack.c.h.b16 %v9943
    %v11119 = vunpack.c.l.b16 %v9944
    %v11120 = vunpack.c.h.b16 %v9944
    %v11121 = vunpack.c.l.b16 %v9945
    %v11122 = vunpack.c.h.b16 %v9945
    %v11123 = vunpack.c.l.b16 %v9946
    %v11124 = vunpack.c.h.b16 %v9946
    %v11125 = vunpack.c.l.b16 %v9947
    %v11126 = vunpack.c.h.b16 %v9947
    %v11127 = vunpack.c.l.b16 %v9948
    %v11128 = vunpack.c.h.b16 %v9948
    %v11129 = vunpack.c.l.b16 %v9949
    %v11130 = vunpack.c.h.b16 %v9949
    %v11131 = vunpack.c.l.b16 %v9950
    %v11132 = vunpack.c.h.b16 %v9950
    %v11133 = vunpack.c.l.b16 %v9951
    %v11134 = vunpack.c.h.b16 %v9951
    %v11135 = vunpack.c.l.b16 %v9952
    %v11136 = vunpack.c.h.b16 %v9952
    %v11137 = vunpack.c.l.b16 %v9953
    %v11138 = vunpack.c.h.b16 %v9953
    %v11139 = vunpack.c.l.b16 %v9954
    %v11140 = vunpack.c.h.b16 %v9954
    %v11141 = vunpack.c.l.b16 %v9955
    %v11142 = vunpack.c.h.b16 %v9955
    %v11143 = vunpack.c.l.b16 %v9956
    %v11144 = vunpack.c.h.b16 %v9956
    %v11145 = vunpack.c.l.b16 %v9957
    %v11146 = vunpack.c.h.b16 %v9957
    %v11147 = vunpack.c.l.b16 %v9958
    %v11148 = vunpack.c.h.b16 %v9958
    %v11149 = vunpack.c.l.b16 %v9959
    %v11150 = vunpack.c.h.b16 %v9959
    %v11151 = vunpack.c.l.b16 %v9960
    %v11152 = vunpack.c.h.b16 %v9960
    %v11153 = vunpack.c.l.b16 %v9961
    %v11154 = vunpack.c.h.b16 %v9961
    %v11155 = vunpack.c.l.b16 %v9962
    %v11156 = vunpack.c.h.b16 %v9962
    %v11157 = vunpack.c.l.b16 %v9963
    %v11158 = vunpack.c.h.b16 %v9963
    %v11159 = vunpack.c.l.b16 %v9964
    %v11160 = vunpack.c.h.b16 %v9964
    %v11161 = vunpack.c.l.b16 %v9965
    %v11162 = vunpack.c.h.b16 %v9965
    %v11163 = vunpack.c.l.b16 %v9966
    %v11164 = vunpack.c.h.b16 %v9966
    %v11165 = vunpack.c.l.b16 %v9967
    %v11166 = vunpack.c.h.b16 %v9967
    %v11167 = vunpack.c.l.b16 %v9968
    %v11168 = vunpack.c.h.b16 %v9968
    %v11169 = vunpack.c.l.b16 %v9969
    %v11170 = vunpack.c.h.b16 %v9969
    %v11171 = vunpack.c.l.b16 %v9970
    %v11172 = vunpack.c.h.b16 %v9970
    %v11173 = vunpack.c.l.b16 %v9971
    %v11174 = vunpack.c.h.b16 %v9971
    %v11175 = vunpack.c.l.b16 %v9972
    %v11176 = vunpack.c.h.b16 %v9972
    %v11177 = vunpack.c.l.b16 %v9973
    %v11178 = vunpack.c.h.b16 %v9973
    %v11179 = vunpack.c.l.b16 %v9974
    %v11180 = vunpack.c.h.b16 %v9974
    %v11181 = vunpack.c.l.b16 %v9975
    %v11182 = vunpack.c.h.b16 %v9975
    %v11183 = vunpack.c.l.b16 %v9976
    %v11184 = vunpack.c.h.b16 %v9976
    %v11185 = vunpack.c.l.b16 %v9977
    %v11186 = vunpack.c.h.b16 %v9977
    %v11187 = vunpack.c.l.b16 %v9978
    %v11188 = vunpack.c.h.b16 %v9978
    %v11189 = vunpack.c.l.b16 %v9979
    %v11190 = vunpack.c.h.b16 %v9979
    %v11191 = vunpack.c.l.b16 %v9980
    %v11192 = vunpack.c.h.b16 %v9980
    %v11193 = vunpack.c.l.b16 %v9981
    %v11194 = vunpack.c.h.b16 %v9981
    %v11195 = vunpack.c.l.b16 %v9982
    %v11196 = vunpack.c.h.b16 %v9982
    %v11197 = vunpack.c.l.b16 %v9983
    %v11198 = vunpack.c.h.b16 %v9983
    %v11199 = vunpack.c.l.b16 %v9984
    %v11200 = vunpack.c.h.b16 %v9984
    %v11201 = vunpack.c.l.b16 %v9985
    %v11202 = vunpack.c.h.b16 %v9985
    %v11203 = vunpack.c.l.b16 %v9986
    %v11204 = vunpack.c.h.b16 %v9986
    %v11205 = vunpack.c.l.b16 %v9987
    %v11206 = vunpack.c.h.b16 %v9987
    %v11207 = vunpack.c.l.b16 %v9988
    %v11208 = vunpack.c.h.b16 %v9988
    %v11209 = vunpack.c.l.b16 %v9989
    %v11210 = vunpack.c.h.b16 %v9989
    %v11211 = vunpack.c.l.b16 %v9990
    %v11212 = vunpack.c.h.b16 %v9990
    %v11213 = vunpack.c.l.b16 %v9991
    %v11214 = vunpack.c.h.b16 %v9991
    %v11215 = vunpack.c.l.b16 %v9992
    %v11216 = vunpack.c.h.b16 %v9992
    %v11217 = vunpack.c.l.b16 %v9993
    %v11218 = vunpack.c.h.b16 %v9993
    %v11219 = vunpack.c.l.b16 %v9994
    %v11220 = vunpack.c.h.b16 %v9994
    %v11221 = vunpack.c.l.b16 %v9995
    %v11222 = vunpack.c.h.b16 %v9995
    %v11223 = vunpack.c.l.b16 %v9996
    %v11224 = vunpack.c.h.b16 %v9996
    %v11225 = vunpack.c.l.b16 %v9997
    %v11226 = vunpack.c.h.b16 %v9997
    %v11227 = vunpack.c.l.b16 %v9998
    %v11228 = vunpack.c.h.b16 %v9998
    %v11229 = vunpack.c.l.b16 %v9999
    %v11230 = vunpack.c.h.b16 %v9999
    %v11231 = vunpack.c.l.b16 %v10000
    %v11232 = vunpack.c.h.b16 %v10000
    %v11233 = vunpack.c.l.b16 %v10001
    %v11234 = vunpack.c.h.b16 %v10001
    %v11235 = vunpack.c.l.b16 %v10002
    %v11236 = vunpack.c.h.b16 %v10002
    %v11237 = vunpack.c.l.b16 %v10003
    %v11238 = vunpack.c.h.b16 %v10003
    %v11239 = vunpack.c.l.b16 %v10004
    %v11240 = vunpack.c.h.b16 %v10004
    %v11241 = vunpack.c.l.b16 %v10005
    %v11242 = vunpack.c.h.b16 %v10005
    %v11243 = vunpack.c.l.b16 %v10006
    %v11244 = vunpack.c.h.b16 %v10006
    %v11245 = vunpack.c.l.b16 %v10007
    %v11246 = vunpack.c.h.b16 %v10007
    %v11247 = vunpack.c.l.b16 %v10008
    %v11248 = vunpack.c.h.b16 %v10008
    %v11249 = vunpack.c.l.b16 %v10009
    %v11250 = vunpack.c.h.b16 %v10009
    %v11251 = vunpack.c.l.b16 %v10010
    %v11252 = vunpack.c.h.b16 %v10010
    %v11253 = vunpack.c.l.b16 %v10011
    %v11254 = vunpack.c.h.b16 %v10011
    %v11255 = vunpack.c.l.b16 %v10012
    %v11256 = vunpack.c.h.b16 %v10012
    %v11257 = vunpack.c.l.b16 %v10013
    %v11258 = vunpack.c.h.b16 %v10013
    %v11259 = vunpack.c.l.b16 %v10014
    %v11260 = vunpack.c.h.b16 %v10014
    %v11261 = vunpack.c.l.b16 %v10015
    %v11262 = vunpack.c.h.b16 %v10015
    %v11263 = vunpack.c.l.b16 %v10016
    %v11264 = vunpack.c.h.b16 %v10016
    %v11265 = vunpack.c.l.b16 %v10017
    %v11266 = vunpack.c.h.b16 %v10017
    %v11267 = vunpack.c.l.b16 %v10018
    %v11268 = vunpack.c.h.b16 %v10018
    %v11269 = vunpack.c.l.b16 %v10019
    %v11270 = vunpack.c.h.b16 %v10019
    %v11271 = vunpack.c.l.b16 %v10020
    %v11272 = vunpack.c.h.b16 %v10020
    %v11273 = vunpack.c.l.b16 %v10021
    %v11274 = vunpack.c.h.b16 %v10021
    %v11275 = vunpack.c.l.b16 %v10022
    %v11276 = vunpack.c.h.b16 %v10022
    %v11277 = vunpack.c.l.b16 %v10023
    %v11278 = vunpack.c.h.b16 %v10023
    %v11279 = vunpack.c.l.b16 %v10024
    %v11280 = vunpack.c.h.b16 %v10024
    %v11281 = vunpack.c.l.b16 %v10025
    %v11282 = vunpack.c.h.b16 %v10025
    %v11283 = vunpack.c.l.b16 %v10026
    %v11284 = vunpack.c.h.b16 %v10026
    %v11285 = vunpack.c.l.b16 %v10027
    %v11286 = vunpack.c.h.b16 %v10027
    %v11287 = vunpack.c.l.b16 %v10028
    %v11288 = vunpack.c.h.b16 %v10028
    %v11289 = vunpack.c.l.b16 %v10029
    %v11290 = vunpack.c.h.b16 %v10029
    %v11291 = vunpack.c.l.b16 %v10030
    %v11292 = vunpack.c.h.b16 %v10030
    %v11293 = vunpack.c.l.b16 %v10031
    %v11294 = vunpack.c.h.b16 %v10031
    %v11295 = vunpack.c.l.b16 %v10032
    %v11296 = vunpack.c.h.b16 %v10032
    %v11297 = vunpack.c.l.b16 %v10033
    %v11298 = vunpack.c.h.b16 %v10033
    %v11299 = vunpack.c.l.b16 %v10034
    %v11300 = vunpack.c.h.b16 %v10034
    %v11301 = vunpack.c.l.b16 %v10035
    %v11302 = vunpack.c.h.b16 %v10035
    %v11303 = vunpack.c.l.b16 %v10036
    %v11304 = vunpack.c.h.b16 %v10036
    %v11305 = vunpack.c.l.b16 %v10037
    %v11306 = vunpack.c.h.b16 %v10037
    %v11307 = vunpack.c.l.b16 %v10038
    %v11308 = vunpack.c.h.b16 %v10038
    %v11309 = vunpack.c.l.b16 %v10039
    %v11310 = vunpack.c.h.b16 %v10039
    %v11311 = vunpack.c.l.b16 %v10040
    %v11312 = vunpack.c.h.b16 %v10040
    %v11313 = vunpack.c.l.b16 %v10041
    %v11314 = vunpack.c.h.b16 %v10041
    %v11315 = vunpack.c.l.b16 %v10042
    %v11316 = vunpack.c.h.b16 %v10042
    %v11317 = vunpack.c.l.b16 %v10043
    %v11318 = vunpack.c.h.b16 %v10043
    %v11319 = vunpack.c.l.b16 %v10044
    %v11320 = vunpack.c.h.b16 %v10044
    %v11321 = vunpack.c.l.b16 %v10045
    %v11322 = vunpack.c.h.b16 %v10045
    %v11323 = vunpack.c.l.b16 %v10046
    %v11324 = vunpack.c.h.b16 %v10046
    %v11325 = vunpack.c.l.b16 %v10047
    %v11326 = vunpack.c.h.b16 %v10047
    %v11327 = vunpack.c.l.b16 %v10048
    %v11328 = vunpack.c.h.b16 %v10048
    %v11329 = vunpack.c.l.b16 %v10049
    %v11330 = vunpack.c.h.b16 %v10049
    %v11331 = vunpack.c.l.b16 %v10050
    %v11332 = vunpack.c.h.b16 %v10050
    %v11333 = vunpack.c.l.b16 %v10051
    %v11334 = vunpack.c.h.b16 %v10051
    %v11335 = vunpack.c.l.b16 %v10052
    %v11336 = vunpack.c.h.b16 %v10052
    %v11337 = vunpack.c.l.b16 %v10053
    %v11338 = vunpack.c.h.b16 %v10053
    %v11339 = vunpack.c.l.b16 %v10054
    %v11340 = vunpack.c.h.b16 %v10054
    %v11341 = vunpack.c.l.b16 %v10055
    %v11342 = vunpack.c.h.b16 %v10055
    %v11343 = vunpack.c.l.b16 %v10056
    %v11344 = vunpack.c.h.b16 %v10056
    %v11345 = vunpack.c.l.b16 %v10057
    %v11346 = vunpack.c.h.b16 %v10057
    %v11347 = vunpack.c.l.b16 %v10058
    %v11348 = vunpack.c.h.b16 %v10058
    %v11349 = vunpack.c.l.b16 %v10059
    %v11350 = vunpack.c.h.b16 %v10059
    %v11351 = vunpack.c.l.b16 %v10060
    %v11352 = vunpack.c.h.b16 %v10060
    %v11353 = vunpack.c.l.b16 %v10061
    %v11354 = vunpack.c.h.b16 %v10061
    %v11355 = vunpack.c.l.b16 %v10062
    %v11356 = vunpack.c.h.b16 %v10062
    %v11357 = vunpack.c.l.b16 %v10063
    %v11358 = vunpack.c.h.b16 %v10063
    %v11359 = vunpack.c.l.b16 %v10064
    %v11360 = vunpack.c.h.b16 %v10064
    %v11361 = vunpack.c.l.b16 %v10065
    %v11362 = vunpack.c.h.b16 %v10065
    %v11363 = vunpack.c.l.b16 %v10066
    %v11364 = vunpack.c.h.b16 %v10066
    %v11365 = vunpack.c.l.b16 %v10067
    %v11366 = vunpack.c.h.b16 %v10067
    %v11367 = vunpack.c.l.b16 %v10068
    %v11368 = vunpack.c.h.b16 %v10068
    %v11369 = vunpack.c.l.b16 %v10069
    %v11370 = vunpack.c.h.b16 %v10069
    %v11371 = vunpack.c.l.b16 %v10070
    %v11372 = vunpack.c.h.b16 %v10070
    %v11373 = vunpack.c.l.b16 %v10071
    %v11374 = vunpack.c.h.b16 %v10071
    %v11375 = vunpack.c.l.b16 %v10072
    %v11376 = vunpack.c.h.b16 %v10072
    %v11377 = vunpack.c.l.b16 %v10073
    %v11378 = vunpack.c.h.b16 %v10073
    %v11379 = vunpack.c.l.b16 %v10074
    %v11380 = vunpack.c.h.b16 %v10074
    %v11381 = vunpack.c.l.b16 %v10075
    %v11382 = vunpack.c.h.b16 %v10075
    %v11383 = vunpack.c.l.b16 %v10076
    %v11384 = vunpack.c.h.b16 %v10076
    %v11385 = vunpack.c.l.b16 %v10077
    %v11386 = vunpack.c.h.b16 %v10077
    %v11387 = vunpack.c.l.b16 %v10078
    %v11388 = vunpack.c.h.b16 %v10078
    %v11389 = vunpack.c.l.b16 %v10079
    %v11390 = vunpack.c.h.b16 %v10079
    %v11391 = vunpack.c.l.b16 %v10080
    %v11392 = vunpack.c.h.b16 %v10080
    %v11393 = vunpack.c.l.b16 %v10081
    %v11394 = vunpack.c.h.b16 %v10081
    %v11395 = vunpack.c.l.b16 %v10082
    %v11396 = vunpack.c.h.b16 %v10082
    %v11397 = vunpack.c.l.b16 %v10083
    %v11398 = vunpack.c.h.b16 %v10083
    %v11399 = vunpack.c.l.b16 %v10084
    %v11400 = vunpack.c.h.b16 %v10084
    %v11401 = vunpack.c.l.b16 %v10085
    %v11402 = vunpack.c.h.b16 %v10085
    %v11403 = vunpack.c.l.b16 %v10086
    %v11404 = vunpack.c.h.b16 %v10086
    %v11405 = vunpack.c.l.b16 %v10087
    %v11406 = vunpack.c.h.b16 %v10087
    %v11407 = vunpack.c.l.b16 %v10088
    %v11408 = vunpack.c.h.b16 %v10088
    %v11409 = vunpack.c.l.b16 %v10089
    %v11410 = vunpack.c.h.b16 %v10089
    %v11411 = vunpack.c.l.b16 %v10090
    %v11412 = vunpack.c.h.b16 %v10090
    %v11413 = vunpack.c.l.b16 %v10091
    %v11414 = vunpack.c.h.b16 %v10091
    %v11415 = vunpack.c.l.b16 %v10092
    %v11416 = vunpack.c.h.b16 %v10092
    %v11417 = vunpack.c.l.b16 %v10093
    %v11418 = vunpack.c.h.b16 %v10093
    %v11419 = vunpack.c.l.b16 %v10094
    %v11420 = vunpack.c.h.b16 %v10094
    %v11421 = vunpack.c.l.b16 %v10095
    %v11422 = vunpack.c.h.b16 %v10095
    %v11423 = vunpack.c.l.b16 %v10096
    %v11424 = vunpack.c.h.b16 %v10096
    %v11425 = vunpack.c.l.b16 %v10097
    %v11426 = vunpack.c.h.b16 %v10097
    %v11427 = vunpack.c.l.b16 %v10098
    %v11428 = vunpack.c.h.b16 %v10098
    %v11429 = vunpack.c.l.b16 %v10099
    %v11430 = vunpack.c.h.b16 %v10099
    %v11431 = vunpack.c.l.b16 %v10100
    %v11432 = vunpack.c.h.b16 %v10100
    %v11433 = vunpack.c.l.b16 %v10101
    %v11434 = vunpack.c.h.b16 %v10101
    %v11435 = vunpack.c.l.b16 %v10102
    %v11436 = vunpack.c.h.b16 %v10102
    %v11437 = vunpack.c.l.b16 %v10103
    %v11438 = vunpack.c.h.b16 %v10103
    %v11439 = vunpack.c.l.b16 %v10104
    %v11440 = vunpack.c.h.b16 %v10104
    %v11441 = vunpack.c.l.b16 %v10105
    %v11442 = vunpack.c.h.b16 %v10105
    %v11443 = vunpack.c.l.b16 %v10106
    %v11444 = vunpack.c.h.b16 %v10106
    %v11445 = vunpack.c.l.b16 %v10107
    %v11446 = vunpack.c.h.b16 %v10107
    %v11447 = vunpack.c.l.b16 %v10108
    %v11448 = vunpack.c.h.b16 %v10108
    %v11449 = vunpack.c.l.b16 %v10109
    %v11450 = vunpack.c.h.b16 %v10109
    %v11451 = vunpack.c.l.b16 %v10110
    %v11452 = vunpack.c.h.b16 %v10110
    %v11453 = vunpack.c.l.b16 %v10111
    %v11454 = vunpack.c.h.b16 %v10111
    %v11455 = vunpack.c.l.b16 %v10112
    %v11456 = vunpack.c.h.b16 %v10112
    %v11457 = vunpack.c.l.b16 %v10113
    %v11458 = vunpack.c.h.b16 %v10113
    %v11459 = vunpack.c.l.b16 %v10114
    %v11460 = vunpack.c.h.b16 %v10114
    %v11461 = vunpack.c.l.b16 %v10115
    %v11462 = vunpack.c.h.b16 %v10115
    %v11463 = vunpack.c.l.b16 %v10116
    %v11464 = vunpack.c.h.b16 %v10116
    %v11465 = vunpack.c.l.b16 %v10117
    %v11466 = vunpack.c.h.b16 %v10117
    %v11467 = vunpack.c.l.b16 %v10118
    %v11468 = vunpack.c.h.b16 %v10118
    %v11469 = vunpack.c.l.b16 %v10119
    %v11470 = vunpack.c.h.b16 %v10119
    %v11471 = vunpack.c.l.b16 %v10120
    %v11472 = vunpack.c.h.b16 %v10120
    %v11473 = vunpack.c.l.b16 %v10121
    %v11474 = vunpack.c.h.b16 %v10121
    %v11475 = vunpack.c.l.b16 %v10122
    %v11476 = vunpack.c.h.b16 %v10122
    %v11477 = vunpack.c.l.b16 %v10123
    %v11478 = vunpack.c.h.b16 %v10123
    %v11479 = vunpack.c.l.b16 %v10124
    %v11480 = vunpack.c.h.b16 %v10124
    %v11481 = vunpack.c.l.b16 %v10125
    %v11482 = vunpack.c.h.b16 %v10125
    %v11483 = vunpack.c.l.b16 %v10126
    %v11484 = vunpack.c.h.b16 %v10126
    %v11485 = vunpack.c.l.b16 %v10127
    %v11486 = vunpack.c.h.b16 %v10127
    %v11487 = vunpack.c.l.b16 %v10128
    %v11488 = vunpack.c.h.b16 %v10128
    %v11489 = vunpack.c.l.b16 %v10129
    %v11490 = vunpack.c.h.b16 %v10129
    %v11491 = vunpack.c.l.b16 %v10130
    %v11492 = vunpack.c.h.b16 %v10130
    %v11493 = vunpack.c.l.b16 %v10131
    %v11494 = vunpack.c.h.b16 %v10131
    %v11495 = vunpack.c.l.b16 %v10132
    %v11496 = vunpack.c.h.b16 %v10132
    %v11497 = vunpack.c.l.b16 %v10133
    %v11498 = vunpack.c.h.b16 %v10133
    %v11499 = vunpack.c.l.b16 %v10134
    %v11500 = vunpack.c.h.b16 %v10134
    %v11501 = vunpack.c.l.b16 %v10135
    %v11502 = vunpack.c.h.b16 %v10135
    %v11503 = vunpack.c.l.b16 %v10136
    %v11504 = vunpack.c.h.b16 %v10136
    %v11505 = vunpack.c.l.b16 %v10137
    %v11506 = vunpack.c.h.b16 %v10137
    %v11507 = vunpack.c.l.b16 %v10138
    %v11508 = vunpack.c.h.b16 %v10138
    %v11509 = vunpack.c.l.b16 %v10139
    %v11510 = vunpack.c.h.b16 %v10139
    %v11511 = vunpack.c.l.b16 %v10140
    %v11512 = vunpack.c.h.b16 %v10140
    %v11513 = vunpack.c.l.b16 %v10141
    %v11514 = vunpack.c.h.b16 %v10141
    %v11515 = vunpack.c.l.b16 %v10142
    %v11516 = vunpack.c.h.b16 %v10142
    %v11517 = vunpack.c.l.b16 %v10143
    %v11518 = vunpack.c.h.b16 %v10143
    %v11519 = vunpack.c.l.b16 %v10144
    %v11520 = vunpack.c.h.b16 %v10144
    %v11521 = vunpack.c.l.b16 %v10145
    %v11522 = vunpack.c.h.b16 %v10145
    %v11523 = vunpack.c.l.b16 %v10146
    %v11524 = vunpack.c.h.b16 %v10146
    %v11525 = vunpack.c.l.b16 %v10147
    %v11526 = vunpack.c.h.b16 %v10147
    %v11527 = vunpack.c.l.b16 %v10148
    %v11528 = vunpack.c.h.b16 %v10148
    %v11529 = vunpack.c.l.b16 %v10149
    %v11530 = vunpack.c.h.b16 %v10149
    %v11531 = vunpack.c.l.b16 %v10150
    %v11532 = vunpack.c.h.b16 %v10150
    %v11533 = vunpack.c.l.b16 %v10151
    %v11534 = vunpack.c.h.b16 %v10151
    %v11535 = vunpack.c.l.b16 %v10152
    %v11536 = vunpack.c.h.b16 %v10152
    %v11537 = vunpack.c.l.b16 %v10153
    %v11538 = vunpack.c.h.b16 %v10153
    %v11539 = vunpack.c.l.b16 %v10154
    %v11540 = vunpack.c.h.b16 %v10154
    %v11541 = vpack.c.b16 %v10653, %v10645
    %v11542 = vpack.c.b16 %v10654, %v10646
    %v11543 = vpack.c.b16 %v10655, %v10647
    %v11544 = vpack.c.b16 %v10656, %v10648
    %v11545 = vpack.c.b16 %v10657, %v10649
    %v11546 = vpack.c.b16 %v10658, %v10650
    %v11547 = vpack.c.b16 %v10659, %v10651
    %v11548 = vpack.c.b16 %v10660, %v10652
    %v11549 = vpack.c.b16 %v10669, %v10661
    %v11550 = vpack.c.b16 %v10670, %v10662
    %v11551 = vpack.c.b16 %v10671, %v10663
    %v11552 = vpack.c.b16 %v10672, %v10664
    %v11553 = vpack.c.b16 %v10673, %v10665
    %v11554 = vpack.c.b16 %v10674, %v10666
    %v11555 = vpack.c.b16 %v10675, %v10667
    %v11556 = vpack.c.b16 %v10676, %v10668
    %v11557 = vpack.c.b16 %v10685, %v10677
    %v11558 = vpack.c.b16 %v10686, %v10678
    %v11559 = vpack.c.b16 %v10687, %v10679
    %v11560 = vpack.c.b16 %v10688, %v10680
    %v11561 = vpack.c.b16 %v10689, %v10681
    %v11562 = vpack.c.b16 %v10690, %v10682
    %v11563 = vpack.c.b16 %v10691, %v10683
    %v11564 = vpack.c.b16 %v10692, %v10684
    %v11565 = vpack.c.b16 %v10701, %v10693
    %v11566 = vpack.c.b16 %v10702, %v10694
    %v11567 = vpack.c.b16 %v10703, %v10695
    %v11568 = vpack.c.b16 %v10704, %v10696
    %v11569 = vpack.c.b16 %v10705, %v10697
    %v11570 = vpack.c.b16 %v10706, %v10698
    %v11571 = vpack.c.b16 %v10707, %v10699
    %v11572 = vpack.c.b16 %v10708, %v10700
    %v11573 = vpack.c.b16 %v10717, %v10709
    %v11574 = vpack.c.b16 %v10718, %v10710
    %v11575 = vpack.c.b16 %v10719, %v10711
    %v11576 = vpack.c.b16 %v10720, %v10712
    %v11577 = vpack.c.b16 %v10721, %v10713
    %v11578 = vpack.c.b16 %v10722, %v10714
    %v11579 = vpack.c.b16 %v10723, %v10715
    %v11580 = vpack.c.b16 %v10724, %v10716
    %v11581 = vpack.c.b16 %v10733, %v10725
    %v11582 = vpack.c.b16 %v10734, %v10726
    %v11583 = vpack.c.b16 %v10735, %v10727
    %v11584 = vpack.c.b16 %v10736, %v10728
    %v11585 = vpack.c.b16 %v10737, %v10729
    %v11586 = vpack.c.b16 %v10738, %v10730
    %v11587 = vpack.c.b16 %v10739, %v10731
    %v11588 = vpack.c.b16 %v10740, %v10732
    %v11589 = vpack.c.b16 %v10749, %v10741
    %v11590 = vpack.c.b16 %v10750, %v10742
    %v11591 = vpack.c.b16 %v10751, %v10743
    %v11592 = vpack.c.b16 %v10752, %v10744
    %v11593 = vpack.c.b16 %v10753, %v10745
    %v11594 = vpack.c.b16 %v10754, %v10746
    %v11595 = vpack.c.b16 %v10755, %v10747
    %v11596 = vpack.c.b16 %v10756, %v10748
    %v11597 = vpack.c.b16 %v10765, %v10757
    %v11598 = vpack.c.b16 %v10766, %v10758
    %v11599 = vpack.c.b16 %v10767, %v10759
    %v11600 = vpack.c.b16 %v10768, %v10760
    %v11601 = vpack.c.b16 %v10769, %v10761
    %v11602 = vpack.c.b16 %v10770, %v10762
    %v11603 = vpack.c.b16 %v10771, %v10763
    %v11604 = vpack.c.b16 %v10772, %v10764
    %v11605 = vpack.c.b16 %v10781, %v10773
    %v11606 = vpack.c.b16 %v10782, %v10774
    %v11607 = vpack.c.b16 %v10783, %v10775
    %v11608 = vpack.c.b16 %v10784, %v10776
    %v11609 = vpack.c.b16 %v10785, %v10777
    %v11610 = vpack.c.b16 %v10786, %v10778
    %v11611 = vpack.c.b16 %v10787, %v10779
    %v11612 = vpack.c.b16 %v10788, %v10780
    %v11613 = vpack.c.b16 %v10797, %v10789
    %v11614 = vpack.c.b16 %v10798, %v10790
    %v11615 = vpack.c.b16 %v10799, %v10791
    %v11616 = vpack.c.b16 %v10800, %v10792
    %v11617 = vpack.c.b16 %v10801, %v10793
    %v11618 = vpack.c.b16 %v10802, %v10794
    %v11619 = vpack.c.b16 %v10803, %v10795
    %v11620 = vpack.c.b16 %v10804, %v10796
    %v11621 = vpack.c.b16 %v10813, %v10805
    %v11622 = vpack.c.b16 %v10814, %v10806
    %v11623 = vpack.c.b16 %v10815, %v10807
    %v11624 = vpack.c.b16 %v10816, %v10808
    %v11625 = vpack.c.b16 %v10817, %v10809
    %v11626 = vpack.c.b16 %v10818, %v10810
    %v11627 = vpack.c.b16 %v10819, %v10811
    %v11628 = vpack.c.b16 %v10820, %v10812
    %v11629 = vpack.c.b16 %v10829, %v10821
    %v11630 = vpack.c.b16 %v10830, %v10822
    %v11631 = vpack.c.b16 %v10831, %v10823
    %v11632 = vpack.c.b16 %v10832, %v10824
    %v11633 = vpack.c.b16 %v10833, %v10825
    %v11634 = vpack.c.b16 %v10834, %v10826
    %v11635 = vpack.c.b16 %v10835, %v10827
    %v11636 = vpack.c.b16 %v10836, %v10828
    %v11637 = vpack.c.b16 %v10845, %v10837
    %v11638 = vpack.c.b16 %v10846, %v10838
    %v11639 = vpack.c.b16 %v10847, %v10839
    %v11640 = vpack.c.b16 %v10848, %v10840
    %v11641 = vpack.c.b16 %v10849, %v10841
    %v11642 = vpack.c.b16 %v10850, %v10842
    %v11643 = vpack.c.b16 %v10851, %v10843
    %v11644 = vpack.c.b16 %v10852, %v10844
    %v11645 = vpack.c.b16 %v10861, %v10853
    %v11646 = vpack.c.b16 %v10862, %v10854
    %v11647 = vpack.c.b16 %v10863, %v10855
    %v11648 = vpack.c.b16 %v10864, %v10856
    %v11649 = vpack.c.b16 %v10865, %v10857
    %v11650 = vpack.c.b16 %v10866, %v10858
    %v11651 = vpack.c.b16 %v10867, %v10859
    %v11652 = vpack.c.b16 %v10868, %v10860
    %v11653 = vpack.c.b16 %v10877, %v10869
    %v11654 = vpack.c.b16 %v10878, %v10870
    %v11655 = vpack.c.b16 %v10879, %v10871
    %v11656 = vpack.c.b16 %v10880, %v10872
    %v11657 = vpack.c.b16 %v10881, %v10873
    %v11658 = vpack.c.b16 %v10882, %v10874
    %v11659 = vpack.c.b16 %v10883, %v10875
    %v11660 = vpack.c.b16 %v10884, %v10876
    %v11661 = vpack.c.b16 %v10893, %v10885
    %v11662 = vpack.c.b16 %v10894, %v10886
    %v11663 = vpack.c.b16 %v10895, %v10887
    %v11664 = vpack.c.b16 %v10896, %v10888
    %v11665 = vpack.c.b16 %v10897, %v10889
    %v11666 = vpack.c.b16 %v10898, %v10890
    %v11667 = vpack.c.b16 %v10899, %v10891
    %v11668 = vpack.c.b16 %v10900, %v10892
    %v11669 = vpack.c.b16 %v10909, %v10901
    %v11670 = vpack.c.b16 %v10910, %v10902
    %v11671 = vpack.c.b16 %v10911, %v10903
    %v11672 = vpack.c.b16 %v10912, %v10904
    %v11673 = vpack.c.b16 %v10913, %v10905
    %v11674 = vpack.c.b16 %v10914, %v10906
    %v11675 = vpack.c.b16 %v10915, %v10907
    %v11676 = vpack.c.b16 %v10916, %v10908
    %v11677 = vpack.c.b16 %v10925, %v10917
    %v11678 = vpack.c.b16 %v10926, %v10918
    %v11679 = vpack.c.b16 %v10927, %v10919
    %v11680 = vpack.c.b16 %v10928, %v10920
    %v11681 = vpack.c.b16 %v10929, %v10921
    %v11682 = vpack.c.b16 %v10930, %v10922
    %v11683 = vpack.c.b16 %v10931, %v10923
    %v11684 = vpack.c.b16 %v10932, %v10924
    %v11685 = vpack.c.b16 %v10941, %v10933
    %v11686 = vpack.c.b16 %v10942, %v10934
    %v11687 = vpack.c.b16 %v10943, %v10935
    %v11688 = vpack.c.b16 %v10944, %v10936
    %v11689 = vpack.c.b16 %v10945, %v10937
    %v11690 = vpack.c.b16 %v10946, %v10938
    %v11691 = vpack.c.b16 %v10947, %v10939
    %v11692 = vpack.c.b16 %v10948, %v10940
    %v11693 = vpack.c.b16 %v10957, %v10949
    %v11694 = vpack.c.b16 %v10958, %v10950
    %v11695 = vpack.c.b16 %v10959, %v10951
    %v11696 = vpack.c.b16 %v10960, %v10952
    %v11697 = vpack.c.b16 %v10961, %v10953
    %v11698 = vpack.c.b16 %v10962, %v10954
    %v11699 = vpack.c.b16 %v10963, %v10955
    %v11700 = vpack.c.b16 %v10964, %v10956
    %v11701 = vpack.c.b16 %v10973, %v10965
    %v11702 = vpack.c.b16 %v10974, %v10966
    %v11703 = vpack.c.b16 %v10975, %v10967
    %v11704 = vpack.c.b16 %v10976, %v10968
    %v11705 = vpack.c.b16 %v10977, %v10969
    %v11706 = vpack.c.b16 %v10978, %v10970
    %v11707 = vpack.c.b16 %v10979, %v10971
    %v11708 = vpack.c.b16 %v10980, %v10972
    %v11709 = vpack.c.b16 %v10989, %v10981
    %v11710 = vpack.c.b16 %v10990, %v10982
    %v11711 = vpack.c.b16 %v10991, %v10983
    %v11712 = vpack.c.b16 %v10992, %v10984
    %v11713 = vpack.c.b16 %v10993, %v10985
    %v11714 = vpack.c.b16 %v10994, %v10986
    %v11715 = vpack.c.b16 %v10995, %v10987
    %v11716 = vpack.c.b16 %v10996, %v10988
    %v11717 = vpack.c.b16 %v11005, %v10997
    %v11718 = vpack.c.b16 %v11006, %v10998
    %v11719 = vpack.c.b16 %v11007, %v10999
    %v11720 = vpack.c.b16 %v11008, %v11000
    %v11721 = vpack.c.b16 %v11009, %v11001
    %v11722 = vpack.c.b16 %v11010, %v11002
    %v11723 = vpack.c.b16 %v11011, %v11003
    %v11724 = vpack.c.b16 %v11012, %v11004
    %v11725 = vpack.c.b16 %v11021, %v11013
    %v11726 = vpack.c.b16 %v11022, %v11014
    %v11727 = vpack.c.b16 %v11023, %v11015
    %v11728 = vpack.c.b16 %v11024, %v11016
    %v11729 = vpack.c.b16 %v11025, %v11017
    %v11730 = vpack.c.b16 %v11026, %v11018
    %v11731 = vpack.c.b16 %v11027, %v11019
    %v11732 = vpack.c.b16 %v11028, %v11020
    %v11733 = vpack.c.b16 %v11037, %v11029
    %v11734 = vpack.c.b16 %v11038, %v11030
    %v11735 = vpack.c.b16 %v11039, %v11031
    %v11736 = vpack.c.b16 %v11040, %v11032
    %v11737 = vpack.c.b16 %v11041, %v11033
    %v11738 = vpack.c.b16 %v11042, %v11034
    %v11739 = vpack.c.b16 %v11043, %v11035
    %v11740 = vpack.c.b16 %v11044, %v11036
    %v11741 = vpack.c.b16 %v11053, %v11045
    %v11742 = vpack.c.b16 %v11054, %v11046
    %v11743 = vpack.c.b16 %v11055, %v11047
    %v11744 = vpack.c.b16 %v11056, %v11048
    %v11745 = vpack.c.b16 %v11057, %v11049
    %v11746 = vpack.c.b16 %v11058, %v11050
    %v11747 = vpack.c.b16 %v11059, %v11051
    %v11748 = vpack.c.b16 %v11060, %v11052
    %v11749 = vpack.c.b16 %v11069, %v11061
    %v11750 = vpack.c.b16 %v11070, %v11062
    %v11751 = vpack.c.b16 %v11071, %v11063
    %v11752 = vpack.c.b16 %v11072, %v11064
    %v11753 = vpack.c.b16 %v11073, %v11065
    %v11754 = vpack.c.b16 %v11074, %v11066
    %v11755 = vpack.c.b16 %v11075, %v11067
    %v11756 = vpack.c.b16 %v11076, %v11068
    %v11757 = vpack.c.b16 %v11085, %v11077
    %v11758 = vpack.c.b16 %v11086, %v11078
    %v11759 = vpack.c.b16 %v11087, %v11079
    %v11760 = vpack.c.b16 %v11088, %v11080
    %v11761 = vpack.c.b16 %v11089, %v11081
    %v11762 = vpack.c.b16 %v11090, %v11082
    %v11763 = vpack.c.b16 %v11091, %v11083
    %v11764 = vpack.c.b16 %v11092, %v11084
    %v11765 = vpack.c.b16 %v11101, %v11093
    %v11766 = vpack.c.b16 %v11102, %v11094
    %v11767 = vpack.c.b16 %v11103, %v11095
    %v11768 = vpack.c.b16 %v11104, %v11096
    %v11769 = vpack.c.b16 %v11105, %v11097
    %v11770 = vpack.c.b16 %v11106, %v11098
    %v11771 = vpack.c.b16 %v11107, %v11099
    %v11772 = vpack.c.b16 %v11108, %v11100
    %v11773 = vpack.c.b16 %v11117, %v11109
    %v11774 = vpack.c.b16 %v11118, %v11110
    %v11775 = vpack.c.b16 %v11119, %v11111
    %v11776 = vpack.c.b16 %v11120, %v11112
    %v11777 = vpack.c.b16 %v11121, %v11113
    %v11778 = vpack.c.b16 %v11122, %v11114
    %v11779 = vpack.c.b16 %v11123, %v11115
    %v11780 = vpack.c.b16 %v11124, %v11116
    %v11781 = vpack.c.b16 %v11133, %v11125
    %v11782 = vpack.c.b16 %v11134, %v11126
    %v11783 = vpack.c.b16 %v11135, %v11127
    %v11784 = vpack.c.b16 %v11136, %v11128
    %v11785 = vpack.c.b16 %v11137, %v11129
    %v11786 = vpack.c.b16 %v11138, %v11130
    %v11787 = vpack.c.b16 %v11139, %v11131
    %v11788 = vpack.c.b16 %v11140, %v11132
    %v11789 = vpack.c.b16 %v11149, %v11141
    %v11790 = vpack.c.b16 %v11150, %v11142
    %v11791 = vpack.c.b16 %v11151, %v11143
    %v11792 = vpack.c.b16 %v11152, %v11144
    %v11793 = vpack.c.b16 %v11153, %v11145
    %v11794 = vpack.c.b16 %v11154, %v11146
    %v11795 = vpack.c.b16 %v11155, %v11147
    %v11796 = vpack.c.b16 %v11156, %v11148
    %v11797 = vpack.c.b16 %v11165, %v11157
    %v11798 = vpack.c.b16 %v11166, %v11158
    %v11799 = vpack.c.b16 %v11167, %v11159
    %v11800 = vpack.c.b16 %v11168, %v11160
    %v11801 = vpack.c.b16 %v11169, %v11161
    %v11802 = vpack.c.b16 %v11170, %v11162
    %v11803 = vpack.c.b16 %v11171, %v11163
    %v11804 = vpack.c.b16 %v11172, %v11164
    %v11805 = vpack.c.b16 %v11181, %v11173
    %v11806 = vpack.c.b16 %v11182, %v11174
    %v11807 = vpack.c.b16 %v11183, %v11175
    %v11808 = vpack.c.b16 %v11184, %v11176
    %v11809 = vpack.c.b16 %v11185, %v11177
    %v11810 = vpack.c.b16 %v11186, %v11178
    %v11811 = vpack.c.b16 %v11187, %v11179
    %v11812 = vpack.c.b16 %v11188, %v11180
    %v11813 = vpack.c.b16 %v11197, %v11189
    %v11814 = vpack.c.b16 %v11198, %v11190
    %v11815 = vpack.c.b16 %v11199, %v11191
    %v11816 = vpack.c.b16 %v11200, %v11192
    %v11817 = vpack.c.b16 %v11201, %v11193
    %v11818 = vpack.c.b16 %v11202, %v11194
    %v11819 = vpack.c.b16 %v11203, %v11195
    %v11820 = vpack.c.b16 %v11204, %v11196
    %v11821 = vpack.c.b16 %v11213, %v11205
    %v11822 = vpack.c.b16 %v11214, %v11206
    %v11823 = vpack.c.b16 %v11215, %v11207
    %v11824 = vpack.c.b16 %v11216, %v11208
    %v11825 = vpack.c.b16 %v11217, %v11209
    %v11826 = vpack.c.b16 %v11218, %v11210
    %v11827 = vpack.c.b16 %v11219, %v11211
    %v11828 = vpack.c.b16 %v11220, %v11212
    %v11829 = vpack.c.b16 %v11229, %v11221
    %v11830 = vpack.c.b16 %v11230, %v11222
    %v11831 = vpack.c.b16 %v11231, %v11223
    %v11832 = vpack.c.b16 %v11232, %v11224
    %v11833 = vpack.c.b16 %v11233, %v11225
    %v11834 = vpack.c.b16 %v11234, %v11226
    %v11835 = vpack.c.b16 %v11235, %v11227
    %v11836 = vpack.c.b16 %v11236, %v11228
    %v11837 = vpack.c.b16 %v11245, %v11237
    %v11838 = vpack.c.b16 %v11246, %v11238
    %v11839 = vpack.c.b16 %v11247, %v11239
    %v11840 = vpack.c.b16 %v11248, %v11240
    %v11841 = vpack.c.b16 %v11249, %v11241
    %v11842 = vpack.c.b16 %v11250, %v11242
    %v11843 = vpack.c.b16 %v11251, %v11243
    %v11844 = vpack.c.b16 %v11252, %v11244
    %v11845 = vpack.c.b16 %v11261, %v11253
    %v11846 = vpack.c.b16 %v11262, %v11254
    %v11847 = vpack.c.b16 %v11263, %v11255
    %v11848 = vpack.c.b16 %v11264, %v11256
    %v11849 = vpack.c.b16 %v11265, %v11257
    %v11850 = vpack.c.b16 %v11266, %v11258
    %v11851 = vpack.c.b16 %v11267, %v11259
    %v11852 = vpack.c.b16 %v11268, %v11260
    %v11853 = vpack.c.b16 %v11277, %v11269
    %v11854 = vpack.c.b16 %v11278, %v11270
    %v11855 = vpack.c.b16 %v11279, %v11271
    %v11856 = vpack.c.b16 %v11280, %v11272
    %v11857 = vpack.c.b16 %v11281, %v11273
    %v11858 = vpack.c.b16 %v11282, %v11274
    %v11859 = vpack.c.b16 %v11283, %v11275
    %v11860 = vpack.c.b16 %v11284, %v11276
    %v11861 = vpack.c.b16 %v11293, %v11285
    %v11862 = vpack.c.b16 %v11294, %v11286
    %v11863 = vpack.c.b16 %v11295, %v11287
    %v11864 = vpack.c.b16 %v11296, %v11288
    %v11865 = vpack.c.b16 %v11297, %v11289
    %v11866 = vpack.c.b16 %v11298, %v11290
    %v11867 = vpack.c.b16 %v11299, %v11291
    %v11868 = vpack.c.b16 %v11300, %v11292
    %v11869 = vpack.c.b16 %v11309, %v11301
    %v11870 = vpack.c.b16 %v11310, %v11302
    %v11871 = vpack.c.b16 %v11311, %v11303
    %v11872 = vpack.c.b16 %v11312, %v11304
    %v11873 = vpack.c.b16 %v11313, %v11305
    %v11874 = vpack.c.b16 %v11314, %v11306
    %v11875 = vpack.c.b16 %v11315, %v11307
    %v11876 = vpack.c.b16 %v11316, %v11308
    %v11877 = vpack.c.b16 %v11325, %v11317
    %v11878 = vpack.c.b16 %v11326, %v11318
    %v11879 = vpack.c.b16 %v11327, %v11319
    %v11880 = vpack.c.b16 %v11328, %v11320
    %v11881 = vpack.c.b16 %v11329, %v11321
    %v11882 = vpack.c.b16 %v11330, %v11322
    %v11883 = vpack.c.b16 %v11331, %v11323
    %v11884 = vpack.c.b16 %v11332, %v11324
    %v11885 = vpack.c.b16 %v11341, %v11333
    %v11886 = vpack.c.b16 %v11342, %v11334
    %v11887 = vpack.c.b16 %v11343, %v11335
    %v11888 = vpack.c.b16 %v11344, %v11336
    %v11889 = vpack.c.b16 %v11345, %v11337
    %v11890 = vpack.c.b16 %v11346, %v11338
    %v11891 = vpack.c.b16 %v11347, %v11339
    %v11892 = vpack.c.b16 %v11348, %v11340
    %v11893 = vpack.c.b16 %v11357, %v11349
    %v11894 = vpack.c.b16 %v11358, %v11350
    %v11895 = vpack.c.b16 %v11359, %v11351
    %v11896 = vpack.c.b16 %v11360, %v11352
    %v11897 = vpack.c.b16 %v11361, %v11353
    %v11898 = vpack.c.b16 %v11362, %v11354
    %v11899 = vpack.c.b16 %v11363, %v11355
    %v11900 = vpack.c.b16 %v11364, %v11356
    %v11901 = vpack.c.b16 %v11373, %v11365
    %v11902 = vpack.c.b16 %v11374, %v11366
    %v11903 = vpack.c.b16 %v11375, %v11367
    %v11904 = vpack.c.b16 %v11376, %v11368
    %v11905 = vpack.c.b16 %v11377, %v11369
    %v11906 = vpack.c.b16 %v11378, %v11370
    %v11907 = vpack.c.b16 %v11379, %v11371
    %v11908 = vpack.c.b16 %v11380, %v11372
    %v11909 = vpack.c.b16 %v11389, %v11381
    %v11910 = vpack.c.b16 %v11390, %v11382
    %v11911 = vpack.c.b16 %v11391, %v11383
    %v11912 = vpack.c.b16 %v11392, %v11384
    %v11913 = vpack.c.b16 %v11393, %v11385
    %v11914 = vpack.c.b16 %v11394, %v11386
    %v11915 = vpack.c.b16 %v11395, %v11387
    %v11916 = vpack.c.b16 %v11396, %v11388
    %v11917 = vpack.c.b16 %v11405, %v11397
    %v11918 = vpack.c.b16 %v11406, %v11398
    %v11919 = vpack.c.b16 %v11407, %v11399
    %v11920 = vpack.c.b16 %v11408, %v11400
    %v11921 = vpack.c.b16 %v11409, %v11401
    %v11922 = vpack.c.b16 %v11410, %v11402
    %v11923 = vpack.c.b16 %v11411, %v11403
    %v11924 = vpack.c.b16 %v11412, %v11404
    %v11925 = vpack.c.b16 %v11421, %v11413
    %v11926 = vpack.c.b16 %v11422, %v11414
    %v11927 = vpack.c.b16 %v11423, %v11415
    %v11928 = vpack.c.b16 %v11424, %v11416
    %v11929 = vpack.c.b16 %v11425, %v11417
    %v11930 = vpack.c.b16 %v11426, %v11418
    %v11931 = vpack.c.b16 %v11427, %v11419
    %v11932 = vpack.c.b16 %v11428, %v11420
    %v11933 = vpack.c.b16 %v11437, %v11429
    %v11934 = vpack.c.b16 %v11438, %v11430
    %v11935 = vpack.c.b16 %v11439, %v11431
    %v11936 = vpack.c.b16 %v11440, %v11432
    %v11937 = vpack.c.b16 %v11441, %v11433
    %v11938 = vpack.c.b16 %v11442, %v11434
    %v11939 = vpack.c.b16 %v11443, %v11435
    %v11940 = vpack.c.b16 %v11444, %v11436
    %v11941 = vpack.c.b16 %v11453, %v11445
    %v11942 = vpack.c.b16 %v11454, %v11446
    %v11943 = vpack.c.b16 %v11455, %v11447
    %v11944 = vpack.c.b16 %v11456, %v11448
    %v11945 = vpack.c.b16 %v11457, %v11449
    %v11946 = vpack.c.b16 %v11458, %v11450
    %v11947 = vpack.c.b16 %v11459, %v11451
    %v11948 = vpack.c.b16 %v11460, %v11452
    %v11949 = vpack.c.b16 %v11469, %v11461
    %v11950 = vpack.c.b16 %v11470, %v11462
    %v11951 = vpack.c.b16 %v11471, %v11463
    %v11952 = vpack.c.b16 %v11472, %v11464
    %v11953 = vpack.c.b16 %v11473, %v11465
    %v11954 = vpack.c.b16 %v11474, %v11466
    %v11955 = vpack.c.b16 %v11475, %v11467
    %v11956 = vpack.c.b16 %v11476, %v11468
    %v11957 = vpack.c.b16 %v11485, %v11477
    %v11958 = vpack.c.b16 %v11486, %v11478
    %v11959 = vpack.c.b16 %v11487, %v11479
    %v11960 = vpack.c.b16 %v11488, %v11480
    %v11961 = vpack.c.b16 %v11489, %v11481
    %v11962 = vpack.c.b16 %v11490, %v11482
    %v11963 = vpack.c.b16 %v11491, %v11483
    %v11964 = vpack.c.b16 %v11492, %v11484
    %v11965 = vpack.c.b16 %v11501, %v11493
    %v11966 = vpack.c.b16 %v11502, %v11494
    %v11967 = vpack.c.b16 %v11503, %v11495
    %v11968 = vpack.c.b16 %v11504, %v11496
    %v11969 = vpack.c.b16 %v11505, %v11497
    %v11970 = vpack.c.b16 %v11506, %v11498
    %v11971 = vpack.c.b16 %v11507, %v11499
    %v11972 = vpack.c.b16 %v11508, %v11500
    %v11973 = vpack.c.b16 %v11517, %v11509
    %v11974 = vpack.c.b16 %v11518, %v11510
    %v11975 = vpack.c.b16 %v11519, %v11511
    %v11976 = vpack.c.b16 %v11520, %v11512
    %v11977 = vpack.c.b16 %v11521, %v11513
    %v11978 = vpack.c.b16 %v11522, %v11514
    %v11979 = vpack.c.b16 %v11523, %v11515
    %v11980 = vpack.c.b16 %v11524, %v11516
    %v11981 = vpack.c.b16 %v11533, %v11525
    %v11982 = vpack.c.b16 %v11534, %v11526
    %v11983 = vpack.c.b16 %v11535, %v11527
    %v11984 = vpack.c.b16 %v11536, %v11528
    %v11985 = vpack.c.b16 %v11537, %v11529
    %v11986 = vpack.c.b16 %v11538, %v11530
    %v11987 = vpack.c.b16 %v11539, %v11531
    %v11988 = vpack.c.b16 %v11540, %v11532
    %12437 = vmatprep.subr.bf16.mxu0 %v11542
    %12438 = vmatpush1.bf16.msra.mxu0 %v11541
    %12439 = vmatprep.subr.bf16.mxu0 %v11550
    %12440 = vmatpush1.bf16.msra.mxu0 %v11549
    %12441 = vmatprep.subr.bf16.mxu0 %v11558
    %12442 = vmatpush1.bf16.msra.mxu0 %v11557
    %12443 = vmatprep.subr.bf16.mxu0 %v11566
    %12444 = vmatpush1.bf16.msra.mxu0 %v11565
    %12445 = vmatprep.subr.bf16.mxu0 %v11574
    %12446 = vmatpush1.bf16.msra.mxu0 %v11573
    %12447 = vmatprep.subr.bf16.mxu0 %v11582
    %12448 = vmatpush1.bf16.msra.mxu0 %v11581
    %12449 = vmatprep.subr.bf16.mxu0 %v11590
    %12450 = vmatpush1.bf16.msra.mxu0 %v11589
    %12451 = vmatprep.subr.bf16.mxu0 %v11598
    %12452 = vmatpush1.bf16.msra.mxu0 %v11597
    %12453 = vmatprep.subr.bf16.mxu0 %v11606
    %12454 = vmatpush1.bf16.msra.mxu0 %v11605
    %12455 = vmatprep.subr.bf16.mxu0 %v11614
    %12456 = vmatpush1.bf16.msra.mxu0 %v11613
    %12457 = vmatprep.subr.bf16.mxu0 %v11622
    %12458 = vmatpush1.bf16.msra.mxu0 %v11621
    %12459 = vmatprep.subr.bf16.mxu0 %v11630
    %12460 = vmatpush1.bf16.msra.mxu0 %v11629
    %12461 = vmatprep.subr.bf16.mxu0 %v11638
    %12462 = vmatpush1.bf16.msra.mxu0 %v11637
    %12463 = vmatprep.subr.bf16.mxu0 %v11646
    %12464 = vmatpush1.bf16.msra.mxu0 %v11645
    %12465 = vmatprep.subr.bf16.mxu0 %v11654
    %12466 = vmatpush1.bf16.msra.mxu0 %v11653
    %12467 = vmatprep.subr.bf16.mxu0 %v11662
    %12468 = vmatpush1.bf16.msra.mxu0 %v11661
    %12469 = vmatprep.mubr.bf16.mxu0 %v9701
    %12470 = vmatmul.mubr.bf16.gmra.mrb[0].mxu0 %v9700
    %v12471 = vpop.f32.mrb[0].mxu0
    %v12472 = vadd.f32 %v10160, %v12471
    %v12473 = vpop.f32.mrb[0].mxu0
    %v12474 = vadd.f32 %v10164, %v12473
    %v12475 = vpop.f32.mrb[0].mxu0
    %v12476 = vadd.f32 %v10160, %v12475
    %v12477 = vpop.f32.mrb[0].mxu0
    %v12478 = vadd.f32 %v10164, %v12477
    %12479 = vdwg.mxu0
    %12480 = vmatprep.subr.bf16.mxu0 %v11670
    %12481 = vmatpush1.bf16.msra.mxu0 %v11669
    %12482 = vmatprep.subr.bf16.mxu0 %v11678
    %12483 = vmatpush1.bf16.msra.mxu0 %v11677
    %12484 = vmatprep.subr.bf16.mxu0 %v11686
    %12485 = vmatpush1.bf16.msra.mxu0 %v11685
    %12486 = vmatprep.subr.bf16.mxu0 %v11694
    %12487 = vmatpush1.bf16.msra.mxu0 %v11693
    %12488 = vmatprep.subr.bf16.mxu0 %v11702
    %12489 = vmatpush1.bf16.msra.mxu0 %v11701
    %12490 = vmatprep.subr.bf16.mxu0 %v11710
    %12491 = vmatpush1.bf16.msra.mxu0 %v11709
    %12492 = vmatprep.subr.bf16.mxu0 %v11718
    %12493 = vmatpush1.bf16.msra.mxu0 %v11717
    %12494 = vmatprep.subr.bf16.mxu0 %v11726
    %12495 = vmatpush1.bf16.msra.mxu0 %v11725
    %12496 = vmatprep.subr.bf16.mxu0 %v11734
    %12497 = vmatpush1.bf16.msra.mxu0 %v11733
    %12498 = vmatprep.subr.bf16.mxu0 %v11742
    %12499 = vmatpush1.bf16.msra.mxu0 %v11741
    %12500 = vmatprep.subr.bf16.mxu0 %v11750
    %12501 = vmatpush1.bf16.msra.mxu0 %v11749
    %12502 = vmatprep.subr.bf16.mxu0 %v11758
    %12503 = vmatpush1.bf16.msra.mxu0 %v11757
    %12504 = vmatprep.subr.bf16.mxu0 %v11766
    %12505 = vmatpush1.bf16.msra.mxu0 %v11765
    %12506 = vmatprep.subr.bf16.mxu0 %v11774
    %12507 = vmatpush1.bf16.msra.mxu0 %v11773
    %12508 = vmatprep.subr.bf16.mxu0 %v11782
    %12509 = vmatpush1.bf16.msra.mxu0 %v11781
    %12510 = vmatprep.subr.bf16.mxu0 %v11790
    %12511 = vmatpush1.bf16.msra.mxu0 %v11789
    %12512 = vmatprep.mubr.bf16.mxu0 %v9703
    %12513 = vmatmul.mubr.bf16.gmra.mrb[0].mxu0 %v9702
    %v12514 = vpop.f32.mrb[0].mxu0
    %v12515 = vadd.f32 %v12472, %v12514
    %v12516 = vpop.f32.mrb[0].mxu0
    %v12517 = vadd.f32 %v12474, %v12516
    %v12518 = vpop.f32.mrb[0].mxu0
    %v12519 = vadd.f32 %v12476, %v12518
    %v12520 = vpop.f32.mrb[0].mxu0
    %v12521 = vadd.f32 %v12478, %v12520
    %12522 = vdwg.mxu0
    %12523 = vmatprep.subr.bf16.mxu0 %v11798
    %12524 = vmatpush1.bf16.msra.mxu0 %v11797
    %12525 = vmatprep.subr.bf16.mxu0 %v11806
    %12526 = vmatpush1.bf16.msra.mxu0 %v11805
    %12527 = vmatprep.subr.bf16.mxu0 %v11814
    %12528 = vmatpush1.bf16.msra.mxu0 %v11813
    %12529 = vmatprep.subr.bf16.mxu0 %v11822
    %12530 = vmatpush1.bf16.msra.mxu0 %v11821
    %12531 = vmatprep.subr.bf16.mxu0 %v11830
    %12532 = vmatpush1.bf16.msra.mxu0 %v11829
    %12533 = vmatprep.subr.bf16.mxu0 %v11838
    %12534 = vmatpush1.bf16.msra.mxu0 %v11837
    %12535 = vmatprep.subr.bf16.mxu0 %v11846
    %12536 = vmatpush1.bf16.msra.mxu0 %v11845
    %12537 = vmatprep.subr.bf16.mxu0 %v11854
    %12538 = vmatpush1.bf16.msra.mxu0 %v11853
    %12539 = vmatprep.subr.bf16.mxu0 %v11862
    %12540 = vmatpush1.bf16.msra.mxu0 %v11861
    %12541 = vmatprep.subr.bf16.mxu0 %v11870
    %12542 = vmatpush1.bf16.msra.mxu0 %v11869
    %12543 = vmatprep.subr.bf16.mxu0 %v11878
    %12544 = vmatpush1.bf16.msra.mxu0 %v11877
    %12545 = vmatprep.subr.bf16.mxu0 %v11886
    %12546 = vmatpush1.bf16.msra.mxu0 %v11885
    %12547 = vmatprep.subr.bf16.mxu0 %v11894
    %12548 = vmatpush1.bf16.msra.mxu0 %v11893
    %12549 = vmatprep.subr.bf16.mxu0 %v11902
    %12550 = vmatpush1.bf16.msra.mxu0 %v11901
    %12551 = vmatprep.subr.bf16.mxu0 %v11910
    %12552 = vmatpush1.bf16.msra.mxu0 %v11909
    %12553 = vmatprep.subr.bf16.mxu0 %v11918
    %12554 = vmatpush1.bf16.msra.mxu0 %v11917
    %12555 = vmatprep.mubr.bf16.mxu0 %v9705
    %12556 = vmatmul.mubr.bf16.gmra.mrb[0].mxu0 %v9704
    %v12557 = vpop.f32.mrb[0].mxu0
    %v12558 = vadd.f32 %v12515, %v12557
    %v12559 = vpop.f32.mrb[0].mxu0
    %v12560 = vadd.f32 %v12517, %v12559
    %v12561 = vpop.f32.mrb[0].mxu0
    %v12562 = vadd.f32 %v12519, %v12561
    %v12563 = vpop.f32.mrb[0].mxu0
    %v12564 = vadd.f32 %v12521, %v12563
    %12565 = vdwg.mxu0
    %12566 = vmatprep.subr.bf16.mxu0 %v11926
    %12567 = vmatpush1.bf16.msra.mxu0 %v11925
    %12568 = vmatprep.subr.bf16.mxu0 %v11934
    %12569 = vmatpush1.bf16.msra.mxu0 %v11933
    %12570 = vmatprep.subr.bf16.mxu0 %v11942
    %12571 = vmatpush1.bf16.msra.mxu0 %v11941
    %12572 = vmatprep.subr.bf16.mxu0 %v11950
    %12573 = vmatpush1.bf16.msra.mxu0 %v11949
    %12574 = vmatprep.subr.bf16.mxu0 %v11958
    %12575 = vmatpush1.bf16.msra.mxu0 %v11957
    %12576 = vmatprep.subr.bf16.mxu0 %v11966
    %12577 = vmatpush1.bf16.msra.mxu0 %v11965
    %12578 = vmatprep.subr.bf16.mxu0 %v11974
    %12579 = vmatpush1.bf16.msra.mxu0 %v11973
    %12580 = vmatprep.subr.bf16.mxu0 %v11982
    %12581 = vmatpush1.bf16.msra.mxu0 %v11981
    %12582 = vmatprep.subr.bf16.mxu0 0
    %12583 = vmatpush1.bf16.msra.mxu0 0
    %12584 = vmatprep.subr.bf16.mxu0 0
    %12585 = vmatpush1.bf16.msra.mxu0 0
    %12586 = vmatprep.subr.bf16.mxu0 0
    %12587 = vmatpush1.bf16.msra.mxu0 0
    %12588 = vmatprep.subr.bf16.mxu0 0
    %12589 = vmatpush1.bf16.msra.mxu0 0
    %12590 = vmatprep.subr.bf16.mxu0 0
    %12591 = vmatpush1.bf16.msra.mxu0 0
    %12592 = vmatprep.subr.bf16.mxu0 0
    %12593 = vmatpush1.bf16.msra.mxu0 0
    %12594 = vmatprep.subr.bf16.mxu0 0
    %12595 = vmatpush1.bf16.msra.mxu0 0
    %12596 = vmatprep.subr.bf16.mxu0 0
    %12597 = vmatpush1.bf16.msra.mxu0 0
    %12598 = vmatprep.mubr.bf16.mxu0 0
    %12599 = vmatmul.mubr.bf16.gmra.mrb[0].mxu0 %v9706
    %v12600 = vpop.f32.mrb[0].mxu0
    %v12601 = vadd.f32 %v12558, %v12600
    %v12602 = vpop.f32.mrb[0].mxu0
    %v12603 = vadd.f32 %v12560, %v12602
    %v12604 = vpop.f32.mrb[0].mxu0
    %v12605 = vadd.f32 %v12562, %v12604
    %v12606 = vpop.f32.mrb[0].mxu0
    %v12607 = vadd.f32 %v12564, %v12606
    %12608 = vdwg.mxu0
    %12609 = vmatprep.subr.bf16.mxu0 %v11544
    %12610 = vmatpush1.bf16.msra.mxu0 %v11543
    %12611 = vmatprep.subr.bf16.mxu0 %v11552
    %12612 = vmatpush1.bf16.msra.mxu0 %v11551
    %12613 = vmatprep.subr.bf16.mxu0 %v11560
    %12614 = vmatpush1.bf16.msra.mxu0 %v11559
    %12615 = vmatprep.subr.bf16.mxu0 %v11568
    %12616 = vmatpush1.bf16.msra.mxu0 %v11567
    %12617 = vmatprep.subr.bf16.mxu0 %v11576
    %12618 = vmatpush1.bf16.msra.mxu0 %v11575
    %12619 = vmatprep.subr.bf16.mxu0 %v11584
    %12620 = vmatpush1.bf16.msra.mxu0 %v11583
    %12621 = vmatprep.subr.bf16.mxu0 %v11592
    %12622 = vmatpush1.bf16.msra.mxu0 %v11591
    %12623 = vmatprep.subr.bf16.mxu0 %v11600
    %12624 = vmatpush1.bf16.msra.mxu0 %v11599
    %12625 = vmatprep.subr.bf16.mxu0 %v11608
    %12626 = vmatpush1.bf16.msra.mxu0 %v11607
    %12627 = vmatprep.subr.bf16.mxu0 %v11616
    %12628 = vmatpush1.bf16.msra.mxu0 %v11615
    %12629 = vmatprep.subr.bf16.mxu0 %v11624
    %12630 = vmatpush1.bf16.msra.mxu0 %v11623
    %12631 = vmatprep.subr.bf16.mxu0 %v11632
    %12632 = vmatpush1.bf16.msra.mxu0 %v11631
    %12633 = vmatprep.subr.bf16.mxu0 %v11640
    %12634 = vmatpush1.bf16.msra.mxu0 %v11639
    %12635 = vmatprep.subr.bf16.mxu0 %v11648
    %12636 = vmatpush1.bf16.msra.mxu0 %v11647
    %12637 = vmatprep.subr.bf16.mxu0 %v11656
    %12638 = vmatpush1.bf16.msra.mxu0 %v11655
    %12639 = vmatprep.subr.bf16.mxu0 %v11664
    %12640 = vmatpush1.bf16.msra.mxu0 %v11663
    %12641 = vmatprep.mubr.bf16.mxu0 %v9701
    %12642 = vmatmul.mubr.bf16.gmra.mrb[0].mxu0 %v9700
    %v12643 = vpop.f32.mrb[0].mxu0
    %v12644 = vadd.f32 %v10168, %v12643
    %v12645 = vpop.f32.mrb[0].mxu0
    %v12646 = vadd.f32 %v10172, %v12645
    %v12647 = vpop.f32.mrb[0].mxu0
    %v12648 = vadd.f32 %v10168, %v12647
    %v12649 = vpop.f32.mrb[0].mxu0
    %v12650 = vadd.f32 %v10172, %v12649
    %12651 = vdwg.mxu0
    %12652 = vmatprep.subr.bf16.mxu0 %v11672
    %12653 = vmatpush1.bf16.msra.mxu0 %v11671
    %12654 = vmatprep.subr.bf16.mxu0 %v11680
    %12655 = vmatpush1.bf16.msra.mxu0 %v11679
    %12656 = vmatprep.subr.bf16.mxu0 %v11688
    %12657 = vmatpush1.bf16.msra.mxu0 %v11687
    %12658 = vmatprep.subr.bf16.mxu0 %v11696
    %12659 = vmatpush1.bf16.msra.mxu0 %v11695
    %12660 = vmatprep.subr.bf16.mxu0 %v11704
    %12661 = vmatpush1.bf16.msra.mxu0 %v11703
    %12662 = vmatprep.subr.bf16.mxu0 %v11712
    %12663 = vmatpush1.bf16.msra.mxu0 %v11711
    %12664 = vmatprep.subr.bf16.mxu0 %v11720
    %12665 = vmatpush1.bf16.msra.mxu0 %v11719
    %12666 = vmatprep.subr.bf16.mxu0 %v11728
    %12667 = vmatpush1.bf16.msra.mxu0 %v11727
    %12668 = vmatprep.subr.bf16.mxu0 %v11736
    %12669 = vmatpush1.bf16.msra.mxu0 %v11735
    %12670 = vmatprep.subr.bf16.mxu0 %v11744
    %12671 = vmatpush1.bf16.msra.mxu0 %v11743
    %12672 = vmatprep.subr.bf16.mxu0 %v11752
    %12673 = vmatpush1.bf16.msra.mxu0 %v11751
    %12674 = vmatprep.subr.bf16.mxu0 %v11760
    %12675 = vmatpush1.bf16.msra.mxu0 %v11759
    %12676 = vmatprep.subr.bf16.mxu0 %v11768
    %12677 = vmatpush1.bf16.msra.mxu0 %v11767
    %12678 = vmatprep.subr.bf16.mxu0 %v11776
    %12679 = vmatpush1.bf16.msra.mxu0 %v11775
    %12680 = vmatprep.subr.bf16.mxu0 %v11784
    %12681 = vmatpush1.bf16.msra.mxu0 %v11783
    %12682 = vmatprep.subr.bf16.mxu0 %v11792
    %12683 = vmatpush1.bf16.msra.mxu0 %v11791
    %12684 = vmatprep.mubr.bf16.mxu0 %v9703
    %12685 = vmatmul.mubr.bf16.gmra.mrb[0].mxu0 %v9702
    %v12686 = vpop.f32.mrb[0].mxu0
    %v12687 = vadd.f32 %v12644, %v12686
    %v12688 = vpop.f32.mrb[0].mxu0
    %v12689 = vadd.f32 %v12646, %v12688
    %v12690 = vpop.f32.mrb[0].mxu0
    %v12691 = vadd.f32 %v12648, %v12690
    %v12692 = vpop.f32.mrb[0].mxu0
    %v12693 = vadd.f32 %v12650, %v12692
    %12694 = vdwg.mxu0
    %12695 = vmatprep.subr.bf16.mxu0 %v11800
    %12696 = vmatpush1.bf16.msra.mxu0 %v11799
    %12697 = vmatprep.subr.bf16.mxu0 %v11808
    %12698 = vmatpush1.bf16.msra.mxu0 %v11807
    %12699 = vmatprep.subr.bf16.mxu0 %v11816
    %12700 = vmatpush1.bf16.msra.mxu0 %v11815
    %12701 = vmatprep.subr.bf16.mxu0 %v11824
    %12702 = vmatpush1.bf16.msra.mxu0 %v11823
    %12703 = vmatprep.subr.bf16.mxu0 %v11832
    %12704 = vmatpush1.bf16.msra.mxu0 %v11831
    %12705 = vmatprep.subr.bf16.mxu0 %v11840
    %12706 = vmatpush1.bf16.msra.mxu0 %v11839
    %12707 = vmatprep.subr.bf16.mxu0 %v11848
    %12708 = vmatpush1.bf16.msra.mxu0 %v11847
    %12709 = vmatprep.subr.bf16.mxu0 %v11856
    %12710 = vmatpush1.bf16.msra.mxu0 %v11855
    %12711 = vmatprep.subr.bf16.mxu0 %v11864
    %12712 = vmatpush1.bf16.msra.mxu0 %v11863
    %12713 = vmatprep.subr.bf16.mxu0 %v11872
    %12714 = vmatpush1.bf16.msra.mxu0 %v11871
    %12715 = vmatprep.subr.bf16.mxu0 %v11880
    %12716 = vmatpush1.bf16.msra.mxu0 %v11879
    %12717 = vmatprep.subr.bf16.mxu0 %v11888
    %12718 = vmatpush1.bf16.msra.mxu0 %v11887
    %12719 = vmatprep.subr.bf16.mxu0 %v11896
    %12720 = vmatpush1.bf16.msra.mxu0 %v11895
    %12721 = vmatprep.subr.bf16.mxu0 %v11904
    %12722 = vmatpush1.bf16.msra.mxu0 %v11903
    %12723 = vmatprep.subr.bf16.mxu0 %v11912
    %12724 = vmatpush1.bf16.msra.mxu0 %v11911
    %12725 = vmatprep.subr.bf16.mxu0 %v11920
    %12726 = vmatpush1.bf16.msra.mxu0 %v11919
    %12727 = vmatprep.mubr.bf16.mxu0 %v9705
    %12728 = vmatmul.mubr.bf16.gmra.mrb[0].mxu0 %v9704
    %v12729 = vpop.f32.mrb[0].mxu0
    %v12730 = vadd.f32 %v12687, %v12729
    %v12731 = vpop.f32.mrb[0].mxu0
    %v12732 = vadd.f32 %v12689, %v12731
    %v12733 = vpop.f32.mrb[0].mxu0
    %v12734 = vadd.f32 %v12691, %v12733
    %v12735 = vpop.f32.mrb[0].mxu0
    %v12736 = vadd.f32 %v12693, %v12735
    %12737 = vdwg.mxu0
    %12738 = vmatprep.subr.bf16.mxu0 %v11928
    %12739 = vmatpush1.bf16.msra.mxu0 %v11927
    %12740 = vmatprep.subr.bf16.mxu0 %v11936
    %12741 = vmatpush1.bf16.msra.mxu0 %v11935
    %12742 = vmatprep.subr.bf16.mxu0 %v11944
    %12743 = vmatpush1.bf16.msra.mxu0 %v11943
    %12744 = vmatprep.subr.bf16.mxu0 %v11952
    %12745 = vmatpush1.bf16.msra.mxu0 %v11951
    %12746 = vmatprep.subr.bf16.mxu0 %v11960
    %12747 = vmatpush1.bf16.msra.mxu0 %v11959
    %12748 = vmatprep.subr.bf16.mxu0 %v11968
    %12749 = vmatpush1.bf16.msra.mxu0 %v11967
    %12750 = vmatprep.subr.bf16.mxu0 %v11976
    %12751 = vmatpush1.bf16.msra.mxu0 %v11975
    %12752 = vmatprep.subr.bf16.mxu0 %v11984
    %12753 = vmatpush1.bf16.msra.mxu0 %v11983
    %12754 = vmatprep.subr.bf16.mxu0 0
    %12755 = vmatpush1.bf16.msra.mxu0 0
    %12756 = vmatprep.subr.bf16.mxu0 0
    %12757 = vmatpush1.bf16.msra.mxu0 0
    %12758 = vmatprep.subr.bf16.mxu0 0
    %12759 = vmatpush1.bf16.msra.mxu0 0
    %12760 = vmatprep.subr.bf16.mxu0 0
    %12761 = vmatpush1.bf16.msra.mxu0 0
    %12762 = vmatprep.subr.bf16.mxu0 0
    %12763 = vmatpush1.bf16.msra.mxu0 0
    %12764 = vmatprep.subr.bf16.mxu0 0
    %12765 = vmatpush1.bf16.msra.mxu0 0
    %12766 = vmatprep.subr.bf16.mxu0 0
    %12767 = vmatpush1.bf16.msra.mxu0 0
    %12768 = vmatprep.subr.bf16.mxu0 0
    %12769 = vmatpush1.bf16.msra.mxu0 0
    %12770 = vmatprep.mubr.bf16.mxu0 0
    %12771 = vmatmul.mubr.bf16.gmra.mrb[0].mxu0 %v9706
    %v12772 = vpop.f32.mrb[0].mxu0
    %v12773 = vadd.f32 %v12730, %v12772
    %v12774 = vpop.f32.mrb[0].mxu0
    %v12775 = vadd.f32 %v12732, %v12774
    %v12776 = vpop.f32.mrb[0].mxu0
    %v12777 = vadd.f32 %v12734, %v12776
    %v12778 = vpop.f32.mrb[0].mxu0
    %v12779 = vadd.f32 %v12736, %v12778
    %12780 = vdwg.mxu0
    %12781 = vmatprep.subr.bf16.mxu0 %v11546
    %12782 = vmatpush1.bf16.msra.mxu0 %v11545
    %12783 = vmatprep.subr.bf16.mxu0 %v11554
    %12784 = vmatpush1.bf16.msra.mxu0 %v11553
    %12785 = vmatprep.subr.bf16.mxu0 %v11562
    %12786 = vmatpush1.bf16.msra.mxu0 %v11561
    %12787 = vmatprep.subr.bf16.mxu0 %v11570
    %12788 = vmatpush1.bf16.msra.mxu0 %v11569
    %12789 = vmatprep.subr.bf16.mxu0 %v11578
    %12790 = vmatpush1.bf16.msra.mxu0 %v11577
    %12791 = vmatprep.subr.bf16.mxu0 %v11586
    %12792 = vmatpush1.bf16.msra.mxu0 %v11585
    %12793 = vmatprep.subr.bf16.mxu0 %v11594
    %12794 = vmatpush1.bf16.msra.mxu0 %v11593
    %12795 = vmatprep.subr.bf16.mxu0 %v11602
    %12796 = vmatpush1.bf16.msra.mxu0 %v11601
    %12797 = vmatprep.subr.bf16.mxu0 %v11610
    %12798 = vmatpush1.bf16.msra.mxu0 %v11609
    %12799 = vmatprep.subr.bf16.mxu0 %v11618
    %12800 = vmatpush1.bf16.msra.mxu0 %v11617
    %12801 = vmatprep.subr.bf16.mxu0 %v11626
    %12802 = vmatpush1.bf16.msra.mxu0 %v11625
    %12803 = vmatprep.subr.bf16.mxu0 %v11634
    %12804 = vmatpush1.bf16.msra.mxu0 %v11633
    %12805 = vmatprep.subr.bf16.mxu0 %v11642
    %12806 = vmatpush1.bf16.msra.mxu0 %v11641
    %12807 = vmatprep.subr.bf16.mxu0 %v11650
    %12808 = vmatpush1.bf16.msra.mxu0 %v11649
    %12809 = vmatprep.subr.bf16.mxu0 %v11658
    %12810 = vmatpush1.bf16.msra.mxu0 %v11657
    %12811 = vmatprep.subr.bf16.mxu0 %v11666
    %12812 = vmatpush1.bf16.msra.mxu0 %v11665
    %12813 = vmatprep.mubr.bf16.mxu0 %v9701
    %12814 = vmatmul.mubr.bf16.gmra.mrb[0].mxu0 %v9700
    %v12815 = vpop.f32.mrb[0].mxu0
    %v12816 = vadd.f32 %v10176, %v12815
    %v12817 = vpop.f32.mrb[0].mxu0
    %v12818 = vadd.f32 %v10180, %v12817
    %v12819 = vpop.f32.mrb[0].mxu0
    %v12820 = vadd.f32 %v10176, %v12819
    %v12821 = vpop.f32.mrb[0].mxu0
    %v12822 = vadd.f32 %v10180, %v12821
    %12823 = vdwg.mxu0
    %12824 = vmatprep.subr.bf16.mxu0 %v11674
    %12825 = vmatpush1.bf16.msra.mxu0 %v11673
    %12826 = vmatprep.subr.bf16.mxu0 %v11682
    %12827 = vmatpush1.bf16.msra.mxu0 %v11681
    %12828 = vmatprep.subr.bf16.mxu0 %v11690
    %12829 = vmatpush1.bf16.msra.mxu0 %v11689
    %12830 = vmatprep.subr.bf16.mxu0 %v11698
    %12831 = vmatpush1.bf16.msra.mxu0 %v11697
    %12832 = vmatprep.subr.bf16.mxu0 %v11706
    %12833 = vmatpush1.bf16.msra.mxu0 %v11705
    %12834 = vmatprep.subr.bf16.mxu0 %v11714
    %12835 = vmatpush1.bf16.msra.mxu0 %v11713
    %12836 = vmatprep.subr.bf16.mxu0 %v11722
    %12837 = vmatpush1.bf16.msra.mxu0 %v11721
    %12838 = vmatprep.subr.bf16.mxu0 %v11730
    %12839 = vmatpush1.bf16.msra.mxu0 %v11729
    %12840 = vmatprep.subr.bf16.mxu0 %v11738
    %12841 = vmatpush1.bf16.msra.mxu0 %v11737
    %12842 = vmatprep.subr.bf16.mxu0 %v11746
    %12843 = vmatpush1.bf16.msra.mxu0 %v11745
    %12844 = vmatprep.subr.bf16.mxu0 %v11754
    %12845 = vmatpush1.bf16.msra.mxu0 %v11753
    %12846 = vmatprep.subr.bf16.mxu0 %v11762
    %12847 = vmatpush1.bf16.msra.mxu0 %v11761
    %12848 = vmatprep.subr.bf16.mxu0 %v11770
    %12849 = vmatpush1.bf16.msra.mxu0 %v11769
    %12850 = vmatprep.subr.bf16.mxu0 %v11778
    %12851 = vmatpush1.bf16.msra.mxu0 %v11777
    %12852 = vmatprep.subr.bf16.mxu0 %v11786
    %12853 = vmatpush1.bf16.msra.mxu0 %v11785
    %12854 = vmatprep.subr.bf16.mxu0 %v11794
    %12855 = vmatpush1.bf16.msra.mxu0 %v11793
    %12856 = vmatprep.mubr.bf16.mxu0 %v9703
    %12857 = vmatmul.mubr.bf16.gmra.mrb[0].mxu0 %v9702
    %v12858 = vpop.f32.mrb[0].mxu0
    %v12859 = vadd.f32 %v12816, %v12858
    %v12860 = vpop.f32.mrb[0].mxu0
    %v12861 = vadd.f32 %v12818, %v12860
    %v12862 = vpop.f32.mrb[0].mxu0
    %v12863 = vadd.f32 %v12820, %v12862
    %v12864 = vpop.f32.mrb[0].mxu0
    %v12865 = vadd.f32 %v12822, %v12864
    %12866 = vdwg.mxu0
    %12867 = vmatprep.subr.bf16.mxu0 %v11802
    %12868 = vmatpush1.bf16.msra.mxu0 %v11801
    %12869 = vmatprep.subr.bf16.mxu0 %v11810
    %12870 = vmatpush1.bf16.msra.mxu0 %v11809
    %12871 = vmatprep.subr.bf16.mxu0 %v11818
    %12872 = vmatpush1.bf16.msra.mxu0 %v11817
    %12873 = vmatprep.subr.bf16.mxu0 %v11826
    %12874 = vmatpush1.bf16.msra.mxu0 %v11825
    %12875 = vmatprep.subr.bf16.mxu0 %v11834
    %12876 = vmatpush1.bf16.msra.mxu0 %v11833
    %12877 = vmatprep.subr.bf16.mxu0 %v11842
    %12878 = vmatpush1.bf16.msra.mxu0 %v11841
    %12879 = vmatprep.subr.bf16.mxu0 %v11850
    %12880 = vmatpush1.bf16.msra.mxu0 %v11849
    %12881 = vmatprep.subr.bf16.mxu0 %v11858
    %12882 = vmatpush1.bf16.msra.mxu0 %v11857
    %12883 = vmatprep.subr.bf16.mxu0 %v11866
    %12884 = vmatpush1.bf16.msra.mxu0 %v11865
    %12885 = vmatprep.subr.bf16.mxu0 %v11874
    %12886 = vmatpush1.bf16.msra.mxu0 %v11873
    %12887 = vmatprep.subr.bf16.mxu0 %v11882
    %12888 = vmatpush1.bf16.msra.mxu0 %v11881
    %12889 = vmatprep.subr.bf16.mxu0 %v11890
    %12890 = vmatpush1.bf16.msra.mxu0 %v11889
    %12891 = vmatprep.subr.bf16.mxu0 %v11898
    %12892 = vmatpush1.bf16.msra.mxu0 %v11897
    %12893 = vmatprep.subr.bf16.mxu0 %v11906
    %12894 = vmatpush1.bf16.msra.mxu0 %v11905
    %12895 = vmatprep.subr.bf16.mxu0 %v11914
    %12896 = vmatpush1.bf16.msra.mxu0 %v11913
    %12897 = vmatprep.subr.bf16.mxu0 %v11922
    %12898 = vmatpush1.bf16.msra.mxu0 %v11921
    %12899 = vmatprep.mubr.bf16.mxu0 %v9705
    %12900 = vmatmul.mubr.bf16.gmra.mrb[0].mxu0 %v9704
    %v12901 = vpop.f32.mrb[0].mxu0
    %v12902 = vadd.f32 %v12859, %v12901
    %v12903 = vpop.f32.mrb[0].mxu0
    %v12904 = vadd.f32 %v12861, %v12903
    %v12905 = vpop.f32.mrb[0].mxu0
    %v12906 = vadd.f32 %v12863, %v12905
    %v12907 = vpop.f32.mrb[0].mxu0
    %v12908 = vadd.f32 %v12865, %v12907
    %12909 = vdwg.mxu0
    %12910 = vmatprep.subr.bf16.mxu0 %v11930
    %12911 = vmatpush1.bf16.msra.mxu0 %v11929
    %12912 = vmatprep.subr.bf16.mxu0 %v11938
    %12913 = vmatpush1.bf16.msra.mxu0 %v11937
    %12914 = vmatprep.subr.bf16.mxu0 %v11946
    %12915 = vmatpush1.bf16.msra.mxu0 %v11945
    %12916 = vmatprep.subr.bf16.mxu0 %v11954
    %12917 = vmatpush1.bf16.msra.mxu0 %v11953
    %12918 = vmatprep.subr.bf16.mxu0 %v11962
    %12919 = vmatpush1.bf16.msra.mxu0 %v11961
    %12920 = vmatprep.subr.bf16.mxu0 %v11970
    %12921 = vmatpush1.bf16.msra.mxu0 %v11969
    %12922 = vmatprep.subr.bf16.mxu0 %v11978
    %12923 = vmatpush1.bf16.msra.mxu0 %v11977
    %12924 = vmatprep.subr.bf16.mxu0 %v11986
    %12925 = vmatpush1.bf16.msra.mxu0 %v11985
    %12926 = vmatprep.subr.bf16.mxu0 0
    %12927 = vmatpush1.bf16.msra.mxu0 0
    %12928 = vmatprep.subr.bf16.mxu0 0
    %12929 = vmatpush1.bf16.msra.mxu0 0
    %12930 = vmatprep.subr.bf16.mxu0 0
    %12931 = vmatpush1.bf16.msra.mxu0 0
    %12932 = vmatprep.subr.bf16.mxu0 0
    %12933 = vmatpush1.bf16.msra.mxu0 0
    %12934 = vmatprep.subr.bf16.mxu0 0
    %12935 = vmatpush1.bf16.msra.mxu0 0
    %12936 = vmatprep.subr.bf16.mxu0 0
    %12937 = vmatpush1.bf16.msra.mxu0 0
    %12938 = vmatprep.subr.bf16.mxu0 0
    %12939 = vmatpush1.bf16.msra.mxu0 0
    %12940 = vmatprep.subr.bf16.mxu0 0
    %12941 = vmatpush1.bf16.msra.mxu0 0
    %12942 = vmatprep.mubr.bf16.mxu0 0
    %12943 = vmatmul.mubr.bf16.gmra.mrb[0].mxu0 %v9706
    %v12944 = vpop.f32.mrb[0].mxu0
    %v12945 = vadd.f32 %v12902, %v12944
    %v12946 = vpop.f32.mrb[0].mxu0
    %v12947 = vadd.f32 %v12904, %v12946
    %v12948 = vpop.f32.mrb[0].mxu0
    %v12949 = vadd.f32 %v12906, %v12948
    %v12950 = vpop.f32.mrb[0].mxu0
    %v12951 = vadd.f32 %v12908, %v12950
    %12952 = vdwg.mxu0
    %12953 = vmatprep.subr.bf16.mxu0 %v11548
    %12954 = vmatpush1.bf16.msra.mxu0 %v11547
    %12955 = vmatprep.subr.bf16.mxu0 %v11556
    %12956 = vmatpush1.bf16.msra.mxu0 %v11555
    %12957 = vmatprep.subr.bf16.mxu0 %v11564
    %12958 = vmatpush1.bf16.msra.mxu0 %v11563
    %12959 = vmatprep.subr.bf16.mxu0 %v11572
    %12960 = vmatpush1.bf16.msra.mxu0 %v11571
    %12961 = vmatprep.subr.bf16.mxu0 %v11580
    %12962 = vmatpush1.bf16.msra.mxu0 %v11579
    %12963 = vmatprep.subr.bf16.mxu0 %v11588
    %12964 = vmatpush1.bf16.msra.mxu0 %v11587
    %12965 = vmatprep.subr.bf16.mxu0 %v11596
    %12966 = vmatpush1.bf16.msra.mxu0 %v11595
    %12967 = vmatprep.subr.bf16.mxu0 %v11604
    %12968 = vmatpush1.bf16.msra.mxu0 %v11603
    %12969 = vmatprep.subr.bf16.mxu0 %v11612
    %12970 = vmatpush1.bf16.msra.mxu0 %v11611
    %12971 = vmatprep.subr.bf16.mxu0 %v11620
    %12972 = vmatpush1.bf16.msra.mxu0 %v11619
    %12973 = vmatprep.subr.bf16.mxu0 %v11628
    %12974 = vmatpush1.bf16.msra.mxu0 %v11627
    %12975 = vmatprep.subr.bf16.mxu0 %v11636
    %12976 = vmatpush1.bf16.msra.mxu0 %v11635
    %12977 = vmatprep.subr.bf16.mxu0 %v11644
    %12978 = vmatpush1.bf16.msra.mxu0 %v11643
    %12979 = vmatprep.subr.bf16.mxu0 %v11652
    %12980 = vmatpush1.bf16.msra.mxu0 %v11651
    %12981 = vmatprep.subr.bf16.mxu0 %v11660
    %12982 = vmatpush1.bf16.msra.mxu0 %v11659
    %12983 = vmatprep.subr.bf16.mxu0 %v11668
    %12984 = vmatpush1.bf16.msra.mxu0 %v11667
    %12985 = vmatprep.mubr.bf16.mxu0 %v9701
    %12986 = vmatmul.mubr.bf16.gmra.mrb[0].mxu0 %v9700
    %v12987 = vpop.f32.mrb[0].mxu0
    %v12988 = vadd.f32 %v10184, %v12987
    %v12989 = vpop.f32.mrb[0].mxu0
    %v12990 = vadd.f32 %v10188, %v12989
    %v12991 = vpop.f32.mrb[0].mxu0
    %v12992 = vadd.f32 %v10184, %v12991
    %v12993 = vpop.f32.mrb[0].mxu0
    %v12994 = vadd.f32 %v10188, %v12993
    %12995 = vdwg.mxu0
    %12996 = vmatprep.subr.bf16.mxu0 %v11676
    %12997 = vmatpush1.bf16.msra.mxu0 %v11675
    %12998 = vmatprep.subr.bf16.mxu0 %v11684
    %12999 = vmatpush1.bf16.msra.mxu0 %v11683
    %13000 = vmatprep.subr.bf16.mxu0 %v11692
    %13001 = vmatpush1.bf16.msra.mxu0 %v11691
    %13002 = vmatprep.subr.bf16.mxu0 %v11700
    %13003 = vmatpush1.bf16.msra.mxu0 %v11699
    %13004 = vmatprep.subr.bf16.mxu0 %v11708
    %13005 = vmatpush1.bf16.msra.mxu0 %v11707
    %13006 = vmatprep.subr.bf16.mxu0 %v11716
    %13007 = vmatpush1.bf16.msra.mxu0 %v11715
    %13008 = vmatprep.subr.bf16.mxu0 %v11724
    %13009 = vmatpush1.bf16.msra.mxu0 %v11723
    %13010 = vmatprep.subr.bf16.mxu0 %v11732
    %13011 = vmatpush1.bf16.msra.mxu0 %v11731
    %13012 = vmatprep.subr.bf16.mxu0 %v11740
    %13013 = vmatpush1.bf16.msra.mxu0 %v11739
    %13014 = vmatprep.subr.bf16.mxu0 %v11748
    %13015 = vmatpush1.bf16.msra.mxu0 %v11747
    %13016 = vmatprep.subr.bf16.mxu0 %v11756
    %13017 = vmatpush1.bf16.msra.mxu0 %v11755
    %13018 = vmatprep.subr.bf16.mxu0 %v11764
    %13019 = vmatpush1.bf16.msra.mxu0 %v11763
    %13020 = vmatprep.subr.bf16.mxu0 %v11772
    %13021 = vmatpush1.bf16.msra.mxu0 %v11771
    %13022 = vmatprep.subr.bf16.mxu0 %v11780
    %13023 = vmatpush1.bf16.msra.mxu0 %v11779
    %13024 = vmatprep.subr.bf16.mxu0 %v11788
    %13025 = vmatpush1.bf16.msra.mxu0 %v11787
    %13026 = vmatprep.subr.bf16.mxu0 %v11796
    %13027 = vmatpush1.bf16.msra.mxu0 %v11795
    %13028 = vmatprep.mubr.bf16.mxu0 %v9703
    %13029 = vmatmul.mubr.bf16.gmra.mrb[0].mxu0 %v9702
    %v13030 = vpop.f32.mrb[0].mxu0
    %v13031 = vadd.f32 %v12988, %v13030
    %v13032 = vpop.f32.mrb[0].mxu0
    %v13033 = vadd.f32 %v12990, %v13032
    %v13034 = vpop.f32.mrb[0].mxu0
    %v13035 = vadd.f32 %v12992, %v13034
    %v13036 = vpop.f32.mrb[0].mxu0
    %v13037 = vadd.f32 %v12994, %v13036
    %13038 = vdwg.mxu0
    %13039 = vmatprep.subr.bf16.mxu0 %v11804
    %13040 = vmatpush1.bf16.msra.mxu0 %v11803
    %13041 = vmatprep.subr.bf16.mxu0 %v11812
    %13042 = vmatpush1.bf16.msra.mxu0 %v11811
    %13043 = vmatprep.subr.bf16.mxu0 %v11820
    %13044 = vmatpush1.bf16.msra.mxu0 %v11819
    %13045 = vmatprep.subr.bf16.mxu0 %v11828
    %13046 = vmatpush1.bf16.msra.mxu0 %v11827
    %13047 = vmatprep.subr.bf16.mxu0 %v11836
    %13048 = vmatpush1.bf16.msra.mxu0 %v11835
    %13049 = vmatprep.subr.bf16.mxu0 %v11844
    %13050 = vmatpush1.bf16.msra.mxu0 %v11843
    %13051 = vmatprep.subr.bf16.mxu0 %v11852
    %13052 = vmatpush1.bf16.msra.mxu0 %v11851
    %13053 = vmatprep.subr.bf16.mxu0 %v11860
    %13054 = vmatpush1.bf16.msra.mxu0 %v11859
    %13055 = vmatprep.subr.bf16.mxu0 %v11868
    %13056 = vmatpush1.bf16.msra.mxu0 %v11867
    %13057 = vmatprep.subr.bf16.mxu0 %v11876
    %13058 = vmatpush1.bf16.msra.mxu0 %v11875
    %13059 = vmatprep.subr.bf16.mxu0 %v11884
    %13060 = vmatpush1.bf16.msra.mxu0 %v11883
    %13061 = vmatprep.subr.bf16.mxu0 %v11892
    %13062 = vmatpush1.bf16.msra.mxu0 %v11891
    %13063 = vmatprep.subr.bf16.mxu0 %v11900
    %13064 = vmatpush1.bf16.msra.mxu0 %v11899
    %13065 = vmatprep.subr.bf16.mxu0 %v11908
    %13066 = vmatpush1.bf16.msra.mxu0 %v11907
    %13067 = vmatprep.subr.bf16.mxu0 %v11916
    %13068 = vmatpush1.bf16.msra.mxu0 %v11915
    %13069 = vmatprep.subr.bf16.mxu0 %v11924
    %13070 = vmatpush1.bf16.msra.mxu0 %v11923
    %13071 = vmatprep.mubr.bf16.mxu0 %v9705
    %13072 = vmatmul.mubr.bf16.gmra.mrb[0].mxu0 %v9704
    %v13073 = vpop.f32.mrb[0].mxu0
    %v13074 = vadd.f32 %v13031, %v13073
    %v13075 = vpop.f32.mrb[0].mxu0
    %v13076 = vadd.f32 %v13033, %v13075
    %v13077 = vpop.f32.mrb[0].mxu0
    %v13078 = vadd.f32 %v13035, %v13077
    %v13079 = vpop.f32.mrb[0].mxu0
    %v13080 = vadd.f32 %v13037, %v13079
    %13081 = vdwg.mxu0
    %13082 = vmatprep.subr.bf16.mxu0 %v11932
    %13083 = vmatpush1.bf16.msra.mxu0 %v11931
    %13084 = vmatprep.subr.bf16.mxu0 %v11940
    %13085 = vmatpush1.bf16.msra.mxu0 %v11939
    %13086 = vmatprep.subr.bf16.mxu0 %v11948
    %13087 = vmatpush1.bf16.msra.mxu0 %v11947
    %13088 = vmatprep.subr.bf16.mxu0 %v11956
    %13089 = vmatpush1.bf16.msra.mxu0 %v11955
    %13090 = vmatprep.subr.bf16.mxu0 %v11964
    %13091 = vmatpush1.bf16.msra.mxu0 %v11963
    %13092 = vmatprep.subr.bf16.mxu0 %v11972
    %13093 = vmatpush1.bf16.msra.mxu0 %v11971
    %13094 = vmatprep.subr.bf16.mxu0 %v11980
    %13095 = vmatpush1.bf16.msra.mxu0 %v11979
    %13096 = vmatprep.subr.bf16.mxu0 %v11988
    %13097 = vmatpush1.bf16.msra.mxu0 %v11987
    %13098 = vmatprep.subr.bf16.mxu0 0
    %13099 = vmatpush1.bf16.msra.mxu0 0
    %13100 = vmatprep.subr.bf16.mxu0 0
    %13101 = vmatpush1.bf16.msra.mxu0 0
    %13102 = vmatprep.subr.bf16.mxu0 0
    %13103 = vmatpush1.bf16.msra.mxu0 0
    %13104 = vmatprep.subr.bf16.mxu0 0
    %13105 = vmatpush1.bf16.msra.mxu0 0
    %13106 = vmatprep.subr.bf16.mxu0 0
    %13107 = vmatpush1.bf16.msra.mxu0 0
    %13108 = vmatprep.subr.bf16.mxu0 0
    %13109 = vmatpush1.bf16.msra.mxu0 0
    %13110 = vmatprep.subr.bf16.mxu0 0
    %13111 = vmatpush1.bf16.msra.mxu0 0
    %13112 = vmatprep.subr.bf16.mxu0 0
    %13113 = vmatpush1.bf16.msra.mxu0 0
    %13114 = vmatprep.mubr.bf16.mxu0 0
    %13115 = vmatmul.mubr.bf16.gmra.mrb[0].mxu0 %v9706
    %v13116 = vpop.f32.mrb[0].mxu0
    %v13117 = vadd.f32 %v13074, %v13116
    %v13118 = vpop.f32.mrb[0].mxu0
    %v13119 = vadd.f32 %v13076, %v13118
    %v13120 = vpop.f32.mrb[0].mxu0
    %v13121 = vadd.f32 %v13078, %v13120
    %v13122 = vpop.f32.mrb[0].mxu0
    %v13123 = vadd.f32 %v13080, %v13122
    %13124 = vdwg.mxu0
    %v13125 = vxor.u32 %v12601, 2147483648
    %v13126 = vxor.u32 %v12603, 2147483648
    %v13127 = vxor.u32 %v12773, 2147483648
    %v13128 = vxor.u32 %v12775, 2147483648
    %v13129 = vxor.u32 %v12945, 2147483648
    %v13130 = vxor.u32 %v12947, 2147483648
    %v13131 = vxor.u32 %v13117, 2147483648
    %v13132 = vxor.u32 %v13119, 2147483648
    %v13133 = vxor.u32 %v12605, 2147483648
    %v13134 = vxor.u32 %v12607, 2147483648
    %v13135 = vxor.u32 %v12777, 2147483648
    %v13136 = vxor.u32 %v12779, 2147483648
    %v13137 = vxor.u32 %v12949, 2147483648
    %v13138 = vxor.u32 %v12951, 2147483648
    %v13139 = vxor.u32 %v13121, 2147483648
    %v13140 = vxor.u32 %v13123, 2147483648
    %v13141 = vmul.f32 %v13125, 1.442695
    %v13142 = vpow.pop %v13141
    %v13143 = vmul.f32 %v13126, 1.442695
    %v13144 = vpow.pop %v13143
    %v13145 = vmul.f32 %v13127, 1.442695
    %v13146 = vpow.pop %v13145
    %v13147 = vmul.f32 %v13128, 1.442695
    %v13148 = vpow.pop %v13147
    %v13149 = vmul.f32 %v13129, 1.442695
    %v13150 = vpow.pop %v13149
    %v13151 = vmul.f32 %v13130, 1.442695
    %v13152 = vpow.pop %v13151
    %v13153 = vmul.f32 %v13131, 1.442695
    %v13154 = vpow.pop %v13153
    %v13155 = vmul.f32 %v13132, 1.442695
    %v13156 = vpow.pop %v13155
    %v13157 = vmul.f32 %v13133, 1.442695
    %v13158 = vpow.pop %v13157
    %v13159 = vmul.f32 %v13134, 1.442695
    %v13160 = vpow.pop %v13159
    %v13161 = vmul.f32 %v13135, 1.442695
    %v13162 = vpow.pop %v13161
    %v13163 = vmul.f32 %v13136, 1.442695
    %v13164 = vpow.pop %v13163
    %v13165 = vmul.f32 %v13137, 1.442695
    %v13166 = vpow.pop %v13165
    %v13167 = vmul.f32 %v13138, 1.442695
    %v13168 = vpow.pop %v13167
    %v13169 = vmul.f32 %v13139, 1.442695
    %v13170 = vpow.pop %v13169
    %v13171 = vmul.f32 %v13140, 1.442695
    %v13172 = vpow.pop %v13171
    %v13173 = vadd.f32 %v13142, 1.0
    %v13174 = vadd.f32 %v13144, 1.0
    %v13175 = vadd.f32 %v13146, 1.0
    %v13176 = vadd.f32 %v13148, 1.0
    %v13177 = vadd.f32 %v13150, 1.0
    %v13178 = vadd.f32 %v13152, 1.0
    %v13179 = vadd.f32 %v13154, 1.0
    %v13180 = vadd.f32 %v13156, 1.0
    %v13181 = vadd.f32 %v13158, 1.0
    %v13182 = vadd.f32 %v13160, 1.0
    %v13183 = vadd.f32 %v13162, 1.0
    %v13184 = vadd.f32 %v13164, 1.0
    %v13185 = vadd.f32 %v13166, 1.0
    %v13186 = vadd.f32 %v13168, 1.0
    %v13187 = vadd.f32 %v13170, 1.0
    %v13188 = vadd.f32 %v13172, 1.0
    %v13189 = vrcp.pop %v13173
    %v13190 = vmul.f32 1.0, %v13189
    %v13191 = vrcp.pop %v13174
    %v13192 = vmul.f32 1.0, %v13191
    %v13193 = vrcp.pop %v13175
    %v13194 = vmul.f32 1.0, %v13193
    %v13195 = vrcp.pop %v13176
    %v13196 = vmul.f32 1.0, %v13195
    %v13197 = vrcp.pop %v13177
    %v13198 = vmul.f32 1.0, %v13197
    %v13199 = vrcp.pop %v13178
    %v13200 = vmul.f32 1.0, %v13199
    %v13201 = vrcp.pop %v13179
    %v13202 = vmul.f32 1.0, %v13201
    %v13203 = vrcp.pop %v13180
    %v13204 = vmul.f32 1.0, %v13203
    %v13205 = vrcp.pop %v13181
    %v13206 = vmul.f32 1.0, %v13205
    %v13207 = vrcp.pop %v13182
    %v13208 = vmul.f32 1.0, %v13207
    %v13209 = vrcp.pop %v13183
    %v13210 = vmul.f32 1.0, %v13209
    %v13211 = vrcp.pop %v13184
    %v13212 = vmul.f32 1.0, %v13211
    %v13213 = vrcp.pop %v13185
    %v13214 = vmul.f32 1.0, %v13213
    %v13215 = vrcp.pop %v13186
    %v13216 = vmul.f32 1.0, %v13215
    %v13217 = vrcp.pop %v13187
    %v13218 = vmul.f32 1.0, %v13217
    %v13219 = vrcp.pop %v13188
    %v13220 = vmul.f32 1.0, %v13219
    %13221 = vst [vmem:[#allocation31] sm:$0xff] %v13190
    %13222 = vst [vmem:[#allocation31 + $0x8] sm:$0xff] %v13192
    %13223 = vst [vmem:[#allocation31 + $0x10] sm:$0xff] %v13194
    %13224 = vst [vmem:[#allocation31 + $0x18] sm:$0xff] %v13196
    %13225 = vst [vmem:[#allocation31 + $0x20] sm:$0xff] %v13198
    %13226 = vst [vmem:[#allocation31 + $0x28] sm:$0xff] %v13200
    %13227 = vst [vmem:[#allocation31 + $0x30] sm:$0xff] %v13202
    %13228 = vst [vmem:[#allocation31 + $0x38] sm:$0xff] %v13204
    %13229 = vst [vmem:[#allocation31 + $0x40] sm:$0xff] %v13206
    %13230 = vst [vmem:[#allocation31 + $0x48] sm:$0xff] %v13208
    %13231 = vst [vmem:[#allocation31 + $0x50] sm:$0xff] %v13210
    %13232 = vst [vmem:[#allocation31 + $0x58] sm:$0xff] %v13212
    %13233 = vst [vmem:[#allocation31 + $0x60] sm:$0xff] %v13214
    %13234 = vst [vmem:[#allocation31 + $0x68] sm:$0xff] %v13216
    %13235 = vst [vmem:[#allocation31 + $0x70] sm:$0xff] %v13218
    %13236 = vst [vmem:[#allocation31 + $0x78] sm:$0xff] %v13220
    %13237 = vst [vmem:[#allocation32] sm:$0xff] %v6828
    %13238 = vst [vmem:[#allocation32 + $0x8] sm:$0xff] %v6830
    %13239 = vst [vmem:[#allocation32 + $0x10] sm:$0xff] %v6832
    %13240 = vst [vmem:[#allocation32 + $0x18] sm:$0xff] %v6834
    // Predicated region
    $region146: #{tpu_custom_call.1} parent=1 // pred_check
      _
    $region147: #{tpu_custom_call.1} parent=1 // pred_check_branch
      %13242 = sbr.rel (0) target = $region149
    $region148: #{tpu_custom_call.1} parent=1 // pred_region
      %s13244 = ssub.s32 2048, 2048
      %13245 = vsyncadd [#allocation4], %s13244
      %s13246 = sshll.u32 [#allocation31], 4
      %s13247 = int_to_ptr.vmem [resolvable:$true] %s13246
      %13252 = dma.vmem_to_hbm [thread:$0]  %s13247, 2048, %s18, [#allocation4], 1024, 1024, 64
    $region149: #{tpu_custom_call.1} parent=1 // pred_fallthru
      _
    // Predicated region
    $region150: #{tpu_custom_call.1} parent=1 // pred_check
      _
    $region151: #{tpu_custom_call.1} parent=1 // pred_check_branch
      %13254 = sbr.rel (0) target = $region153
    $region152: #{tpu_custom_call.1} parent=1 // pred_region
      %s13256 = ssub.s32 512, 512
      %13257 = vsyncadd [#allocation33], %s13256
      %s13258 = sshll.u32 [#allocation32], 4
      %s13259 = int_to_ptr.vmem [resolvable:$true] %s13258
      %13264 = dma.vmem_to_hbm [thread:$0]  %s13259, 512, %s19, [#allocation33], 256, 256, 16
    $region153: #{tpu_custom_call.1} parent=1 // pred_fallthru
      _
    // Predicated region
    $region154: #{tpu_custom_call.1} parent=1 // pred_check
      _
    $region155: #{tpu_custom_call.1} parent=1 // pred_check_branch
      %13266 = sbr.rel (0) target = $region157
    $region156: #{tpu_custom_call.1} parent=1 // pred_region
      %13267 = dma.done [#allocation4], 2048
    $region157: #{tpu_custom_call.1} parent=1 // pred_fallthru
      _
    // Predicated region
    $region158: #{tpu_custom_call.1} parent=1 // pred_check
      _
    $region159: #{tpu_custom_call.1} parent=1 // pred_check_branch
      %13269 = sbr.rel (0) target = $region161
    $region160: #{tpu_custom_call.1} parent=1 // pred_region
      %13270 = dma.done [#allocation33], 512
    $region161: #{tpu_custom_call.1} parent=1 // pred_fallthru
      _
    %13271 = vsyncpa [#allocation3], 1
    %13272 = vsyncpa [#allocation6], 1
    %13273 = vsyncpa [#allocation9], 1
    %13274 = vsyncpa [#allocation12], 1
    %13275 = vsyncpa [#allocation15], 1
    %13276 = vsyncpa [#allocation18], 1
    %13277 = vsyncpa [#allocation21], 1
    %13278 = vsyncpa [#allocation24], 1
    %13279 = vsyncpa [#allocation27], 1
    %13280 = vsyncpa [#allocation30], 1
    %13281 = vsyncpa [#allocation4], 1
    %13282 = vsyncpa [#allocation33], 1

</llo_original>
